<compile_context>
chip_gen: v7x
topology: tpu7x:2x2x1
jax: 0.10.0
libtpu: 0.0.40
codegen_flags: <defaults>
</compile_context>

<pallas_src>
import math

import numpy as np
import jax
import jax.numpy as jnp
from jax import lax
from jax.experimental import pallas as pl
from jax.experimental.pallas import tpu as pltpu  # noqa: F401  (kept for TPU-specific tuning hooks)

# ----------------------------- configuration ------------------------------- #
N_STEPS = 16
N_LAYERS = 2
D_MODEL = 32
N_HEADS = 2
D_FFN = 64
WINDOW_SIZE = [2, 2]
INNER_SIZE = 3
D_B = D_MODEL // 4          # d_bottleneck = 8
D_K = D_MODEL // N_HEADS    # 16 (= d_v)
BATCH = 2


# ------------------------ mask / gather-index helpers ----------------------- #
def get_mask(input_size, window_size, inner_size):
    """Returns (mask, all_size); mask[i,j] == 1.0 means attention is BLOCKED."""
    all_size = [input_size]
    for i in range(len(window_size)):
        all_size.append(math.floor(all_size[i] / window_size[i]))
    seq_length = sum(all_size)
    allowed = np.zeros((seq_length, seq_length), dtype=np.float32)

    inner_window = inner_size // 2
    for layer_idx in range(len(all_size)):
        start = sum(all_size[:layer_idx])
        for i in range(start, start + all_size[layer_idx]):
            left = max(i - inner_window, start)
            right = min(i + inner_window + 1, start + all_size[layer_idx])
            allowed[i, left:right] = 1

    for layer_idx in range(1, len(all_size)):
        start = sum(all_size[:layer_idx])
        for i in range(start, start + all_size[layer_idx]):
            left = (start - all_size[layer_idx - 1]) + (i - start) * window_size[layer_idx - 1]
            if i == (start + all_size[layer_idx] - 1):
                right = start
            else:
                right = (start - all_size[layer_idx - 1]) + (i - start + 1) * window_size[layer_idx - 1]
            allowed[i, left:right] = 1
            allowed[left:right, i] = 1

    return (1.0 - allowed).astype(np.float32), all_size


def refer_points(all_sizes, window_size):
    input_size = all_sizes[0]
    indexes = np.zeros((input_size, len(all_sizes)), dtype=np.int32)
    for i in range(input_size):
        indexes[i][0] = i
        former_index = i
        for j in range(1, len(all_sizes)):
            start = sum(all_sizes[:j])
            inner_layer_idx = former_index - (start - all_sizes[j - 1])
            former_index = start + min(inner_layer_idx // window_size[j - 1], all_sizes[j] - 1)
            indexes[i][j] = former_index
    return indexes  # (input_size, n_levels)


# ------------------------------ fused kernel -------------------------------- #
def _layernorm(v, g, b, eps):
    mu = jnp.mean(v, axis=-1, keepdims=True)
    var = jnp.mean((v - mu) ** 2, axis=-1, keepdims=True)
    return (v - mu) * lax.rsqrt(var + eps) * g + b


def make_fused_kernel(window_size, all_size, d_model, n_heads, d_k, n_layers, batch):
    n_conv = len(window_size)
    S = sum(all_size)
    inv_temp = 1.0 / (d_k ** 0.5)

    def kernel(*refs):
        it = iter(refs)
        x_ref = next(it)                       # (B, n_steps, d_model)
        mask_ref = next(it)                    # (S, S) additive mask (-1e9 blocked)
        gsel_ref = next(it)                    # (n_steps * n_levels, S) one-hot gather
        wd_ref, bd_ref = next(it), next(it)    # down projection
        conv_refs = [(next(it), next(it), next(it)) for _ in range(n_conv)]
        wu_ref, bu_ref = next(it), next(it)    # up projection
        lng_ref, lnb_ref = next(it), next(it)  # bottleneck LayerNorm
        layer_refs = [tuple(next(it) for _ in range(10)) for _ in range(n_layers)]
        out_ref = next(it)                     # (B, n_steps * n_levels, d_model)
        attn_ref = next(it)                    # (n_layers, B, n_heads, S, S)

        # --- hoist every weight load once (trace-time; JAX does not CSE these) ---
        mask_add = mask_ref[...]
        gsel = gsel_ref[...]
        wd, bd = wd_ref[...], bd_ref[...]
        wu, bu = wu_ref[...], bu_ref[...]
        lng, lnb = lng_ref[...], lnb_ref[...]

        conv_w = []
        for i in range(n_conv):
            sel_r, cw_r, cb_r = conv_refs[i]
            w = window_size[i]
            conv_w.append(([sel_r[k] for k in range(w)],     # (Lout, L) selection per tap
                           [cw_r[k] for k in range(w)],      # (d_b, d_b) BN-folded weight
                           cb_r[...]))                       # (1, d_b) BN-folded bias
        layers = []
        for li in range(n_layers):
            (wqkv_r, wo_r, g1_r, be1_r, w1_r, b1_r, w2_r, b2_r, g2_r, be2_r) = layer_refs[li]
            layers.append(dict(
                wqkv=wqkv_r[...],                            # (d_model, 3*d_model)
                wo_h=[wo_r[h] for h in range(n_heads)],      # n_heads x (d_k, d_model)
                ln1g=g1_r[...], ln1b=be1_r[...],
                w1=w1_r[...], b1=b1_r[...], w2=w2_r[...], b2=b2_r[...],
                ln2g=g2_r[...], ln2b=be2_r[...]))

        # ----------------------- Bottleneck_Construct ------------------------ #
        enc_list = []
        for b in range(batch):
            xb = x_ref[b]                                            # (n_steps, d_model)
            cur = jnp.dot(xb, wd, preferred_element_type=jnp.float32) + bd   # (n_steps, d_b)
            pieces = [xb]
            for i in range(n_conv):
                sels, cws, cb = conv_w[i]
                w = window_size[i]
                # Conv1d(kernel=stride=w) + BatchNorm1d(eval) folded into weights.
                y = cb
                for k in range(w):
                    rows_k = jnp.dot(sels[k], cur, preferred_element_type=jnp.float32)
                    y = y + jnp.dot(rows_k, cws[k], preferred_element_type=jnp.float32)
                # ELU (overflow-safe: only exponentiate the non-positive part)
                y = jnp.where(y > 0, y, jnp.exp(jnp.minimum(y, 0.0)) - 1.0)
                cur = y
                pieces.append(jnp.dot(y, wu, preferred_element_type=jnp.float32) + bu)
            # [x, up(level1), up(level2)] -> (S, d_model); offsets 0/16/24 are 8-aligned.
            pre = jnp.concatenate(pieces, axis=0)
            enc_list.append(_layernorm(pre, lng, lnb, 1e-5))

        # ---------------------- Transformer encoder stack -------------------- #
        for li in range(n_layers):
            p = layers[li]
            new_enc = []
            for b in range(batch):
                e = enc_list[b]                                      # (S, d_model)
                qkv = jnp.dot(e, p["wqkv"], preferred_element_type=jnp.float32)  # (S, 3*d_model)
                attn_out = jnp.zeros((S, d_model), jnp.float32)
                for h in range(n_heads):
                    q = qkv[:, h * d_k:(h + 1) * d_k] * inv_temp
                    k = qkv[:, d_model + h * d_k:d_model + (h + 1) * d_k]
                    v = qkv[:, 2 * d_model + h * d_k:2 * d_model + (h + 1) * d_k]
                    scores = lax.dot_general(q, k, (((1,), (1,)), ((), ())),
                                             preferred_element_type=jnp.float32)
                    scores = scores + mask_add
                    m = jnp.max(scores, axis=-1, keepdims=True)
                    ex = jnp.exp(scores - m)
                    denom = jnp.sum(ex, axis=-1, keepdims=True)
                    attn = ex * pl.reciprocal(denom, approx=True)
                    attn_ref[li, b, h] = attn
                    oh = jnp.dot(attn, v, preferred_element_type=jnp.float32)
                    attn_out = attn_out + jnp.dot(oh, p["wo_h"][h],
                                                  preferred_element_type=jnp.float32)

                # residual + LayerNorm(eps=1e-6)
                ln1 = _layernorm(attn_out + e, p["ln1g"], p["ln1b"], 1e-6)
                # position-wise FFN + residual + LayerNorm(eps=1e-6)
                h1 = jnp.maximum(
                    jnp.dot(ln1, p["w1"], preferred_element_type=jnp.float32) + p["b1"], 0.0)
                h2 = jnp.dot(h1, p["w2"], preferred_element_type=jnp.float32) + p["b2"]
                new_enc.append(_layernorm(h2 + ln1, p["ln2g"], p["ln2b"], 1e-6))
            enc_list = new_enc

        # --------------- pyramid gather (one-hot selection matmul) ----------- #
        for b in range(batch):
            out_ref[b] = jnp.dot(gsel, enc_list[b], preferred_element_type=jnp.float32)

    return kernel


# -------------------------- host-side weight packing ------------------------ #
def pack_inputs(x, params, mask_np, indexes, all_size, window_size):
    """Fold BatchNorm into conv weights, fuse QKV, build additive mask,
    strided-selection matrices and the one-hot gather matrix (all on host)."""
    n_conv = len(window_size)
    S = sum(all_size)
    bott = params["bottleneck"]

    mask_add = jnp.asarray(mask_np, jnp.float32) * jnp.float32(-1e9)

    flat_idx = indexes.reshape(-1)                          # (n_steps * n_levels,)
    gsel_np = np.zeros((flat_idx.shape[0], S), np.float32)
    gsel_np[np.arange(flat_idx.shape[0]), flat_idx] = 1.0

    inputs = [x, mask_add, jnp.asarray(gsel_np), bott["wd"], bott["bd"]]

    L = all_size[0]
    for i in range(n_conv):
        w = window_size[i]
        Lout = all_size[i + 1]
        # 0/1 row-selection matrices for stride == kernel_size == w
        sel_np = np.zeros((w, Lout, L), np.float32)
        for k in range(w):
            sel_np[k, np.arange(Lout), np.arange(Lout) * w + k] = 1.0
        # fold BatchNorm1d (eval mode, running stats) into Conv1d weight/bias
        wt = bott[f"convw_{i}"]                             # (c_out, c_in, k) torch layout
        cb = bott[f"convb_{i}"]                             # (1, c_out)
        s = bott[f"bng_{i}"] / jnp.sqrt(bott[f"bnv_{i}"] + 1e-5)     # (1, c_out)
        w_f = wt * s.reshape(-1, 1, 1)
        b_f = (cb - bott[f"bnm_{i}"]) * s + bott[f"bnb_{i}"]
        inputs += [jnp.asarray(sel_np),
                   jnp.transpose(w_f, (2, 1, 0)),           # -> (k, c_in, c_out)
                   b_f]
        L = Lout

    inputs += [bott["wu"], bott["bu"], bott["lng"], bott["lnb"]]

    for lp in params["layers"]:
        wqkv = jnp.concatenate([lp["wq"], lp["wk"], lp["wv"]], axis=1)   # (d_model, 3*d_model)
        wo_h = lp["wo"].reshape(N_HEADS, D_K, D_MODEL)                   # per-head output proj
        inputs += [wqkv, wo_h, lp["ln1g"], lp["ln1b"], lp["w1"], lp["b1"],
                   lp["w2"], lp["b2"], lp["ln2g"], lp["ln2b"]]
    return inputs


def pyraformer_encoder_forward(x, params, mask_np, indexes, all_size, window_size):
    B, n_steps, d_model = x.shape
    S = sum(all_size)
    n_levels = len(all_size)

    inputs = pack_inputs(x, params, mask_np, indexes, all_size, window_size)
    kernel = make_fused_kernel(window_size, all_size, d_model, N_HEADS, D_K, N_LAYERS, B)

    out, attn_all = pl.pallas_call(
        kernel,
        out_shape=(
            jax.ShapeDtypeStruct((B, n_steps * n_levels, d_model), jnp.float32),
            jax.ShapeDtypeStruct((N_LAYERS, B, N_HEADS, S, S), jnp.float32),
        ),
    )(*inputs)

    # (B, n_steps*n_levels, d_model) and (B, n_steps, n_levels*d_model) share the
    # same row-major layout, so this host reshape is a free metadata op.
    enc_output = out.reshape(B, n_steps, n_levels * d_model)
    attn_list = [attn_all[li] for li in range(N_LAYERS)]
    return enc_output, attn_list


# ------------------------------ parameter init ------------------------------ #
def init_params(key):
    keys = iter(jax.random.split(key, 64))

    def nrm(shape, scale=0.05):
        return jax.random.normal(next(keys), shape, jnp.float32) * scale

    bott = {
        "wd": nrm((D_MODEL, D_B)), "bd": nrm((1, D_B)),
        "wu": nrm((D_B, D_MODEL)), "bu": nrm((1, D_MODEL)),
        "lng": jnp.ones((1, D_MODEL), jnp.float32),
        "lnb": jnp.zeros((1, D_MODEL), jnp.float32),
    }
    for i, w in enumerate(WINDOW_SIZE):
        bott[f"convw_{i}"] = nrm((D_B, D_B, w))             # torch Conv1d weight (out, in, k)
        bott[f"convb_{i}"] = nrm((1, D_B))
        bott[f"bng_{i}"] = jnp.ones((1, D_B), jnp.float32)
        bott[f"bnb_{i}"] = jnp.zeros((1, D_B), jnp.float32)
        bott[f"bnm_{i}"] = jnp.zeros((1, D_B), jnp.float32)  # running mean
        bott[f"bnv_{i}"] = jnp.ones((1, D_B), jnp.float32)   # running var

    layers = []
    for _ in range(N_LAYERS):
        layers.append({
            "wq": nrm((D_MODEL, N_HEADS * D_K)),
            "wk": nrm((D_MODEL, N_HEADS * D_K)),
            "wv": nrm((D_MODEL, N_HEADS * D_K)),
            "wo": nrm((N_HEADS * D_K, D_MODEL)),
            "ln1g": jnp.ones((1, D_MODEL), jnp.float32),
            "ln1b": jnp.zeros((1, D_MODEL), jnp.float32),
            "w1": nrm((D_MODEL, D_FFN)), "b1": nrm((1, D_FFN)),
            "w2": nrm((D_FFN, D_MODEL)), "b2": nrm((1, D_MODEL)),
            "ln2g": jnp.ones((1, D_MODEL), jnp.float32),
            "ln2b": jnp.zeros((1, D_MODEL), jnp.float32),
        })
    return {"bottleneck": bott, "layers": layers}


# ----------------------------------- main ----------------------------------- #
if __name__ == "__main__":
    mask_np, all_size = get_mask(N_STEPS, WINDOW_SIZE, INNER_SIZE)
    indexes = refer_points(all_size, WINDOW_SIZE)

    key = jax.random.PRNGKey(0)
    pkey, xkey = jax.random.split(key)
    params = init_params(pkey)

    x = jax.random.normal(xkey, (BATCH, N_STEPS, D_MODEL), jnp.float32)

    enc_output, attn_list = pyraformer_encoder_forward(
        x, params, mask_np, indexes, all_size, WINDOW_SIZE)

    enc_output = jax.block_until_ready(enc_output)
    for a in attn_list:
        jax.block_until_ready(a)

    seq_total = sum(all_size)
    assert enc_output.shape == (BATCH, N_STEPS, len(all_size) * D_MODEL)
    assert all(a.shape == (BATCH, N_HEADS, seq_total, seq_total) for a in attn_list)
    assert bool(jnp.all(jnp.isfinite(enc_output)))
    print("KERNEL_OK")
</pallas_src>

<mosaic_0001>
module attributes {stable_mosaic.version = 11 : i64} {
  func.func @kernel(%arg0: memref<2x16x32xf32, #tpu.memory_space<vmem>>, %arg1: memref<28x28xf32, #tpu.memory_space<vmem>>, %arg2: memref<48x28xf32, #tpu.memory_space<vmem>>, %arg3: memref<32x8xf32, #tpu.memory_space<vmem>>, %arg4: memref<1x8xf32, #tpu.memory_space<vmem>>, %arg5: memref<2x8x16xf32, #tpu.memory_space<vmem>>, %arg6: memref<2x8x8xf32, #tpu.memory_space<vmem>>, %arg7: memref<1x8xf32, #tpu.memory_space<vmem>>, %arg8: memref<2x4x8xf32, #tpu.memory_space<vmem>>, %arg9: memref<2x8x8xf32, #tpu.memory_space<vmem>>, %arg10: memref<1x8xf32, #tpu.memory_space<vmem>>, %arg11: memref<8x32xf32, #tpu.memory_space<vmem>>, %arg12: memref<1x32xf32, #tpu.memory_space<vmem>>, %arg13: memref<1x32xf32, #tpu.memory_space<vmem>>, %arg14: memref<1x32xf32, #tpu.memory_space<vmem>>, %arg15: memref<32x96xf32, #tpu.memory_space<vmem>>, %arg16: memref<2x16x32xf32, #tpu.memory_space<vmem>>, %arg17: memref<1x32xf32, #tpu.memory_space<vmem>>, %arg18: memref<1x32xf32, #tpu.memory_space<vmem>>, %arg19: memref<32x64xf32, #tpu.memory_space<vmem>>, %arg20: memref<1x64xf32, #tpu.memory_space<vmem>>, %arg21: memref<64x32xf32, #tpu.memory_space<vmem>>, %arg22: memref<1x32xf32, #tpu.memory_space<vmem>>, %arg23: memref<1x32xf32, #tpu.memory_space<vmem>>, %arg24: memref<1x32xf32, #tpu.memory_space<vmem>>, %arg25: memref<32x96xf32, #tpu.memory_space<vmem>>, %arg26: memref<2x16x32xf32, #tpu.memory_space<vmem>>, %arg27: memref<1x32xf32, #tpu.memory_space<vmem>>, %arg28: memref<1x32xf32, #tpu.memory_space<vmem>>, %arg29: memref<32x64xf32, #tpu.memory_space<vmem>>, %arg30: memref<1x64xf32, #tpu.memory_space<vmem>>, %arg31: memref<64x32xf32, #tpu.memory_space<vmem>>, %arg32: memref<1x32xf32, #tpu.memory_space<vmem>>, %arg33: memref<1x32xf32, #tpu.memory_space<vmem>>, %arg34: memref<1x32xf32, #tpu.memory_space<vmem>>, %arg35: memref<2x48x32xf32, #tpu.memory_space<vmem>>, %arg36: memref<2x2x2x28x28xf32, #tpu.memory_space<vmem>>) attributes {dimension_semantics = [], scalar_prefetch = 0 : i64, scratch_operands = 0 : i64, tpu.core_type = #tpu.core_type<tc>} {
    %c0 = arith.constant 0 : index
    %c0_0 = arith.constant 0 : index
    %0 = vector.load %arg1[%c0, %c0_0] : memref<28x28xf32, #tpu.memory_space<vmem>>, vector<28x28xf32>
    %c0_1 = arith.constant 0 : index
    %c0_2 = arith.constant 0 : index
    %1 = vector.load %arg2[%c0_1, %c0_2] : memref<48x28xf32, #tpu.memory_space<vmem>>, vector<48x28xf32>
    %c0_3 = arith.constant 0 : index
    %c0_4 = arith.constant 0 : index
    %2 = vector.load %arg3[%c0_3, %c0_4] : memref<32x8xf32, #tpu.memory_space<vmem>>, vector<32x8xf32>
    %c0_5 = arith.constant 0 : index
    %c0_6 = arith.constant 0 : index
    %3 = vector.load %arg4[%c0_5, %c0_6] : memref<1x8xf32, #tpu.memory_space<vmem>>, vector<1x8xf32>
    %c0_7 = arith.constant 0 : index
    %c0_8 = arith.constant 0 : index
    %4 = vector.load %arg11[%c0_7, %c0_8] : memref<8x32xf32, #tpu.memory_space<vmem>>, vector<8x32xf32>
    %c0_9 = arith.constant 0 : index
    %c0_10 = arith.constant 0 : index
    %5 = vector.load %arg12[%c0_9, %c0_10] : memref<1x32xf32, #tpu.memory_space<vmem>>, vector<1x32xf32>
    %c0_11 = arith.constant 0 : index
    %c0_12 = arith.constant 0 : index
    %6 = vector.load %arg13[%c0_11, %c0_12] : memref<1x32xf32, #tpu.memory_space<vmem>>, vector<1x32xf32>
    %c0_13 = arith.constant 0 : index
    %c0_14 = arith.constant 0 : index
    %7 = vector.load %arg14[%c0_13, %c0_14] : memref<1x32xf32, #tpu.memory_space<vmem>>, vector<1x32xf32>
    %c0_15 = arith.constant 0 : index
    %c0_16 = arith.constant 0 : index
    %c0_17 = arith.constant 0 : index
    %8 = vector.load %arg5[%c0_15, %c0_16, %c0_17] : memref<2x8x16xf32, #tpu.memory_space<vmem>>, vector<1x8x16xf32>
    %9 = vector.shape_cast %8 : vector<1x8x16xf32> to vector<8x16xf32>
    %c1 = arith.constant 1 : index
    %c0_18 = arith.constant 0 : index
    %c0_19 = arith.constant 0 : index
    %10 = vector.load %arg5[%c1, %c0_18, %c0_19] : memref<2x8x16xf32, #tpu.memory_space<vmem>>, vector<1x8x16xf32>
    %11 = vector.shape_cast %10 : vector<1x8x16xf32> to vector<8x16xf32>
    %c0_20 = arith.constant 0 : index
    %c0_21 = arith.constant 0 : index
    %c0_22 = arith.constant 0 : index
    %12 = vector.load %arg6[%c0_20, %c0_21, %c0_22] : memref<2x8x8xf32, #tpu.memory_space<vmem>>, vector<1x8x8xf32>
    %13 = vector.shape_cast %12 : vector<1x8x8xf32> to vector<8x8xf32>
    %c1_23 = arith.constant 1 : index
    %c0_24 = arith.constant 0 : index
    %c0_25 = arith.constant 0 : index
    %14 = vector.load %arg6[%c1_23, %c0_24, %c0_25] : memref<2x8x8xf32, #tpu.memory_space<vmem>>, vector<1x8x8xf32>
    %15 = vector.shape_cast %14 : vector<1x8x8xf32> to vector<8x8xf32>
    %c0_26 = arith.constant 0 : index
    %c0_27 = arith.constant 0 : index
    %16 = vector.load %arg7[%c0_26, %c0_27] : memref<1x8xf32, #tpu.memory_space<vmem>>, vector<1x8xf32>
    %c0_28 = arith.constant 0 : index
    %c0_29 = arith.constant 0 : index
    %c0_30 = arith.constant 0 : index
    %17 = vector.load %arg8[%c0_28, %c0_29, %c0_30] : memref<2x4x8xf32, #tpu.memory_space<vmem>>, vector<1x4x8xf32>
    %18 = vector.shape_cast %17 : vector<1x4x8xf32> to vector<4x8xf32>
    %c1_31 = arith.constant 1 : index
    %c0_32 = arith.constant 0 : index
    %c0_33 = arith.constant 0 : index
    %19 = vector.load %arg8[%c1_31, %c0_32, %c0_33] : memref<2x4x8xf32, #tpu.memory_space<vmem>>, vector<1x4x8xf32>
    %20 = vector.shape_cast %19 : vector<1x4x8xf32> to vector<4x8xf32>
    %c0_34 = arith.constant 0 : index
    %c0_35 = arith.constant 0 : index
    %c0_36 = arith.constant 0 : index
    %21 = vector.load %arg9[%c0_34, %c0_35, %c0_36] : memref<2x8x8xf32, #tpu.memory_space<vmem>>, vector<1x8x8xf32>
    %22 = vector.shape_cast %21 : vector<1x8x8xf32> to vector<8x8xf32>
    %c1_37 = arith.constant 1 : index
    %c0_38 = arith.constant 0 : index
    %c0_39 = arith.constant 0 : index
    %23 = vector.load %arg9[%c1_37, %c0_38, %c0_39] : memref<2x8x8xf32, #tpu.memory_space<vmem>>, vector<1x8x8xf32>
    %24 = vector.shape_cast %23 : vector<1x8x8xf32> to vector<8x8xf32>
    %c0_40 = arith.constant 0 : index
    %c0_41 = arith.constant 0 : index
    %25 = vector.load %arg10[%c0_40, %c0_41] : memref<1x8xf32, #tpu.memory_space<vmem>>, vector<1x8xf32>
    %c0_42 = arith.constant 0 : index
    %c0_43 = arith.constant 0 : index
    %26 = vector.load %arg15[%c0_42, %c0_43] : memref<32x96xf32, #tpu.memory_space<vmem>>, vector<32x96xf32>
    %c0_44 = arith.constant 0 : index
    %c0_45 = arith.constant 0 : index
    %c0_46 = arith.constant 0 : index
    %27 = vector.load %arg16[%c0_44, %c0_45, %c0_46] : memref<2x16x32xf32, #tpu.memory_space<vmem>>, vector<1x16x32xf32>
    %28 = vector.shape_cast %27 : vector<1x16x32xf32> to vector<16x32xf32>
    %c1_47 = arith.constant 1 : index
    %c0_48 = arith.constant 0 : index
    %c0_49 = arith.constant 0 : index
    %29 = vector.load %arg16[%c1_47, %c0_48, %c0_49] : memref<2x16x32xf32, #tpu.memory_space<vmem>>, vector<1x16x32xf32>
    %30 = vector.shape_cast %29 : vector<1x16x32xf32> to vector<16x32xf32>
    %c0_50 = arith.constant 0 : index
    %c0_51 = arith.constant 0 : index
    %31 = vector.load %arg17[%c0_50, %c0_51] : memref<1x32xf32, #tpu.memory_space<vmem>>, vector<1x32xf32>
    %c0_52 = arith.constant 0 : index
    %c0_53 = arith.constant 0 : index
    %32 = vector.load %arg18[%c0_52, %c0_53] : memref<1x32xf32, #tpu.memory_space<vmem>>, vector<1x32xf32>
    %c0_54 = arith.constant 0 : index
    %c0_55 = arith.constant 0 : index
    %33 = vector.load %arg19[%c0_54, %c0_55] : memref<32x64xf32, #tpu.memory_space<vmem>>, vector<32x64xf32>
    %c0_56 = arith.constant 0 : index
    %c0_57 = arith.constant 0 : index
    %34 = vector.load %arg20[%c0_56, %c0_57] : memref<1x64xf32, #tpu.memory_space<vmem>>, vector<1x64xf32>
    %c0_58 = arith.constant 0 : index
    %c0_59 = arith.constant 0 : index
    %35 = vector.load %arg21[%c0_58, %c0_59] : memref<64x32xf32, #tpu.memory_space<vmem>>, vector<64x32xf32>
    %c0_60 = arith.constant 0 : index
    %c0_61 = arith.constant 0 : index
    %36 = vector.load %arg22[%c0_60, %c0_61] : memref<1x32xf32, #tpu.memory_space<vmem>>, vector<1x32xf32>
    %c0_62 = arith.constant 0 : index
    %c0_63 = arith.constant 0 : index
    %37 = vector.load %arg23[%c0_62, %c0_63] : memref<1x32xf32, #tpu.memory_space<vmem>>, vector<1x32xf32>
    %c0_64 = arith.constant 0 : index
    %c0_65 = arith.constant 0 : index
    %38 = vector.load %arg24[%c0_64, %c0_65] : memref<1x32xf32, #tpu.memory_space<vmem>>, vector<1x32xf32>
    %c0_66 = arith.constant 0 : index
    %c0_67 = arith.constant 0 : index
    %39 = vector.load %arg25[%c0_66, %c0_67] : memref<32x96xf32, #tpu.memory_space<vmem>>, vector<32x96xf32>
    %c0_68 = arith.constant 0 : index
    %c0_69 = arith.constant 0 : index
    %c0_70 = arith.constant 0 : index
    %40 = vector.load %arg26[%c0_68, %c0_69, %c0_70] : memref<2x16x32xf32, #tpu.memory_space<vmem>>, vector<1x16x32xf32>
    %41 = vector.shape_cast %40 : vector<1x16x32xf32> to vector<16x32xf32>
    %c1_71 = arith.constant 1 : index
    %c0_72 = arith.constant 0 : index
    %c0_73 = arith.constant 0 : index
    %42 = vector.load %arg26[%c1_71, %c0_72, %c0_73] : memref<2x16x32xf32, #tpu.memory_space<vmem>>, vector<1x16x32xf32>
    %43 = vector.shape_cast %42 : vector<1x16x32xf32> to vector<16x32xf32>
    %c0_74 = arith.constant 0 : index
    %c0_75 = arith.constant 0 : index
    %44 = vector.load %arg27[%c0_74, %c0_75] : memref<1x32xf32, #tpu.memory_space<vmem>>, vector<1x32xf32>
    %c0_76 = arith.constant 0 : index
    %c0_77 = arith.constant 0 : index
    %45 = vector.load %arg28[%c0_76, %c0_77] : memref<1x32xf32, #tpu.memory_space<vmem>>, vector<1x32xf32>
    %c0_78 = arith.constant 0 : index
    %c0_79 = arith.constant 0 : index
    %46 = vector.load %arg29[%c0_78, %c0_79] : memref<32x64xf32, #tpu.memory_space<vmem>>, vector<32x64xf32>
    %c0_80 = arith.constant 0 : index
    %c0_81 = arith.constant 0 : index
    %47 = vector.load %arg30[%c0_80, %c0_81] : memref<1x64xf32, #tpu.memory_space<vmem>>, vector<1x64xf32>
    %c0_82 = arith.constant 0 : index
    %c0_83 = arith.constant 0 : index
    %48 = vector.load %arg31[%c0_82, %c0_83] : memref<64x32xf32, #tpu.memory_space<vmem>>, vector<64x32xf32>
    %c0_84 = arith.constant 0 : index
    %c0_85 = arith.constant 0 : index
    %49 = vector.load %arg32[%c0_84, %c0_85] : memref<1x32xf32, #tpu.memory_space<vmem>>, vector<1x32xf32>
    %c0_86 = arith.constant 0 : index
    %c0_87 = arith.constant 0 : index
    %50 = vector.load %arg33[%c0_86, %c0_87] : memref<1x32xf32, #tpu.memory_space<vmem>>, vector<1x32xf32>
    %c0_88 = arith.constant 0 : index
    %c0_89 = arith.constant 0 : index
    %51 = vector.load %arg34[%c0_88, %c0_89] : memref<1x32xf32, #tpu.memory_space<vmem>>, vector<1x32xf32>
    %c0_90 = arith.constant 0 : index
    %c0_91 = arith.constant 0 : index
    %c0_92 = arith.constant 0 : index
    %52 = vector.load %arg0[%c0_90, %c0_91, %c0_92] : memref<2x16x32xf32, #tpu.memory_space<vmem>>, vector<1x16x32xf32>
    %53 = vector.shape_cast %52 : vector<1x16x32xf32> to vector<16x32xf32>
    %cst = arith.constant dense<0.000000e+00> : vector<16x8xf32>
    %54 = tpu.matmul %53, %2, %cst {dimension_numbers = #tpu.dot_dimension_numbers<[1], [0], [0], [1], [0, 0, 1, 1], [], []>} : vector<16x32xf32>, vector<32x8xf32>, vector<16x8xf32> -> vector<16x8xf32>
    %55 = vector.broadcast %3 : vector<1x8xf32> to vector<16x8xf32>
    %56 = arith.addf %54, %55 : vector<16x8xf32>
    %cst_93 = arith.constant dense<0.000000e+00> : vector<8x8xf32>
    %57 = tpu.matmul %9, %56, %cst_93 {dimension_numbers = #tpu.dot_dimension_numbers<[1], [0], [0], [1], [0, 0, 1, 1], [], []>} : vector<8x16xf32>, vector<16x8xf32>, vector<8x8xf32> -> vector<8x8xf32>
    %cst_94 = arith.constant dense<0.000000e+00> : vector<8x8xf32>
    %58 = tpu.matmul %57, %13, %cst_94 {dimension_numbers = #tpu.dot_dimension_numbers<[1], [0], [0], [1], [0, 0, 1, 1], [], []>} : vector<8x8xf32>, vector<8x8xf32>, vector<8x8xf32> -> vector<8x8xf32>
    %59 = vector.broadcast %16 : vector<1x8xf32> to vector<8x8xf32>
    %60 = arith.addf %59, %58 : vector<8x8xf32>
    %cst_95 = arith.constant dense<0.000000e+00> : vector<8x8xf32>
    %61 = tpu.matmul %11, %56, %cst_95 {dimension_numbers = #tpu.dot_dimension_numbers<[1], [0], [0], [1], [0, 0, 1, 1], [], []>} : vector<8x16xf32>, vector<16x8xf32>, vector<8x8xf32> -> vector<8x8xf32>
    %cst_96 = arith.constant dense<0.000000e+00> : vector<8x8xf32>
    %62 = tpu.matmul %61, %15, %cst_96 {dimension_numbers = #tpu.dot_dimension_numbers<[1], [0], [0], [1], [0, 0, 1, 1], [], []>} : vector<8x8xf32>, vector<8x8xf32>, vector<8x8xf32> -> vector<8x8xf32>
    %63 = arith.addf %60, %62 : vector<8x8xf32>
    %cst_97 = arith.constant 0.000000e+00 : f32
    %64 = vector.broadcast %cst_97 : f32 to vector<8x8xf32>
    %65 = arith.cmpf ogt, %63, %64 : vector<8x8xf32>
    %cst_98 = arith.constant 0.000000e+00 : f32
    %66 = vector.broadcast %cst_98 : f32 to vector<8x8xf32>
    %67 = arith.minimumf %63, %66 : vector<8x8xf32>
    %68 = math.exp %67 : vector<8x8xf32>
    %cst_99 = arith.constant 1.000000e+00 : f32
    %69 = vector.broadcast %cst_99 : f32 to vector<8x8xf32>
    %70 = arith.subf %68, %69 : vector<8x8xf32>
    %71 = arith.select %65, %63, %70 : vector<8x8xi1>, vector<8x8xf32>
    %cst_100 = arith.constant dense<0.000000e+00> : vector<8x32xf32>
    %72 = tpu.matmul %71, %4, %cst_100 {dimension_numbers = #tpu.dot_dimension_numbers<[1], [0], [0], [1], [0, 0, 1, 1], [], []>} : vector<8x8xf32>, vector<8x32xf32>, vector<8x32xf32> -> vector<8x32xf32>
    %73 = vector.broadcast %5 : vector<1x32xf32> to vector<8x32xf32>
    %74 = arith.addf %72, %73 : vector<8x32xf32>
    %cst_101 = arith.constant dense<0.000000e+00> : vector<4x8xf32>
    %75 = tpu.matmul %18, %71, %cst_101 {dimension_numbers = #tpu.dot_dimension_numbers<[1], [0], [0], [1], [0, 0, 1, 1], [], []>} : vector<4x8xf32>, vector<8x8xf32>, vector<4x8xf32> -> vector<4x8xf32>
    %cst_102 = arith.constant dense<0.000000e+00> : vector<4x8xf32>
    %76 = tpu.matmul %75, %22, %cst_102 {dimension_numbers = #tpu.dot_dimension_numbers<[1], [0], [0], [1], [0, 0, 1, 1], [], []>} : vector<4x8xf32>, vector<8x8xf32>, vector<4x8xf32> -> vector<4x8xf32>
    %77 = vector.broadcast %25 : vector<1x8xf32> to vector<4x8xf32>
    %78 = arith.addf %77, %76 : vector<4x8xf32>
    %cst_103 = arith.constant dense<0.000000e+00> : vector<4x8xf32>
    %79 = tpu.matmul %20, %71, %cst_103 {dimension_numbers = #tpu.dot_dimension_numbers<[1], [0], [0], [1], [0, 0, 1, 1], [], []>} : vector<4x8xf32>, vector<8x8xf32>, vector<4x8xf32> -> vector<4x8xf32>
    %cst_104 = arith.constant dense<0.000000e+00> : vector<4x8xf32>
    %80 = tpu.matmul %79, %24, %cst_104 {dimension_numbers = #tpu.dot_dimension_numbers<[1], [0], [0], [1], [0, 0, 1, 1], [], []>} : vector<4x8xf32>, vector<8x8xf32>, vector<4x8xf32> -> vector<4x8xf32>
    %81 = arith.addf %78, %80 : vector<4x8xf32>
    %cst_105 = arith.constant 0.000000e+00 : f32
    %82 = vector.broadcast %cst_105 : f32 to vector<4x8xf32>
    %83 = arith.cmpf ogt, %81, %82 : vector<4x8xf32>
    %cst_106 = arith.constant 0.000000e+00 : f32
    %84 = vector.broadcast %cst_106 : f32 to vector<4x8xf32>
    %85 = arith.minimumf %81, %84 : vector<4x8xf32>
    %86 = math.exp %85 : vector<4x8xf32>
    %cst_107 = arith.constant 1.000000e+00 : f32
    %87 = vector.broadcast %cst_107 : f32 to vector<4x8xf32>
    %88 = arith.subf %86, %87 : vector<4x8xf32>
    %89 = arith.select %83, %81, %88 : vector<4x8xi1>, vector<4x8xf32>
    %cst_108 = arith.constant dense<0.000000e+00> : vector<4x32xf32>
    %90 = tpu.matmul %89, %4, %cst_108 {dimension_numbers = #tpu.dot_dimension_numbers<[1], [0], [0], [1], [0, 0, 1, 1], [], []>} : vector<4x8xf32>, vector<8x32xf32>, vector<4x32xf32> -> vector<4x32xf32>
    %91 = vector.broadcast %5 : vector<1x32xf32> to vector<4x32xf32>
    %92 = arith.addf %90, %91 : vector<4x32xf32>
    %93 = tpu.concatenate %53, %74, %92 in 0 : vector<16x32xf32>, vector<8x32xf32>, vector<4x32xf32> -> vector<28x32xf32>
    %cst_109 = arith.constant dense<0.000000e+00> : vector<28xf32>
    %94 = vector.multi_reduction <add>, %93, %cst_109 [1] : vector<28x32xf32> to vector<28xf32>
    %95 = vector.shape_cast %94 : vector<28xf32> to vector<28x1xf32>
    %cst_110 = arith.constant 3.200000e+01 : f32
    %96 = vector.broadcast %cst_110 : f32 to vector<28x1xf32>
    %97 = arith.divf %95, %96 : vector<28x1xf32>
    %98 = vector.broadcast %97 : vector<28x1xf32> to vector<28x32xf32>
    %99 = arith.subf %93, %98 : vector<28x32xf32>
    %100 = arith.mulf %99, %99 : vector<28x32xf32>
    %cst_111 = arith.constant dense<0.000000e+00> : vector<28xf32>
    %101 = vector.multi_reduction <add>, %100, %cst_111 [1] : vector<28x32xf32> to vector<28xf32>
    %102 = vector.shape_cast %101 : vector<28xf32> to vector<28x1xf32>
    %cst_112 = arith.constant 3.200000e+01 : f32
    %103 = vector.broadcast %cst_112 : f32 to vector<28x1xf32>
    %104 = arith.divf %102, %103 : vector<28x1xf32>
    %105 = vector.broadcast %97 : vector<28x1xf32> to vector<28x32xf32>
    %106 = arith.subf %93, %105 : vector<28x32xf32>
    %cst_113 = arith.constant 9.99999974E-6 : f32
    %107 = vector.broadcast %cst_113 : f32 to vector<28x1xf32>
    %108 = arith.addf %104, %107 : vector<28x1xf32>
    %109 = math.rsqrt %108 : vector<28x1xf32>
    %110 = vector.broadcast %109 : vector<28x1xf32> to vector<28x32xf32>
    %111 = arith.mulf %106, %110 : vector<28x32xf32>
    %112 = vector.broadcast %6 : vector<1x32xf32> to vector<28x32xf32>
    %113 = arith.mulf %111, %112 : vector<28x32xf32>
    %114 = vector.broadcast %7 : vector<1x32xf32> to vector<28x32xf32>
    %115 = arith.addf %113, %114 : vector<28x32xf32>
    %c1_114 = arith.constant 1 : index
    %c0_115 = arith.constant 0 : index
    %c0_116 = arith.constant 0 : index
    %116 = vector.load %arg0[%c1_114, %c0_115, %c0_116] : memref<2x16x32xf32, #tpu.memory_space<vmem>>, vector<1x16x32xf32>
    %117 = vector.shape_cast %116 : vector<1x16x32xf32> to vector<16x32xf32>
    %cst_117 = arith.constant dense<0.000000e+00> : vector<16x8xf32>
    %118 = tpu.matmul %117, %2, %cst_117 {dimension_numbers = #tpu.dot_dimension_numbers<[1], [0], [0], [1], [0, 0, 1, 1], [], []>} : vector<16x32xf32>, vector<32x8xf32>, vector<16x8xf32> -> vector<16x8xf32>
    %119 = vector.broadcast %3 : vector<1x8xf32> to vector<16x8xf32>
    %120 = arith.addf %118, %119 : vector<16x8xf32>
    %cst_118 = arith.constant dense<0.000000e+00> : vector<8x8xf32>
    %121 = tpu.matmul %9, %120, %cst_118 {dimension_numbers = #tpu.dot_dimension_numbers<[1], [0], [0], [1], [0, 0, 1, 1], [], []>} : vector<8x16xf32>, vector<16x8xf32>, vector<8x8xf32> -> vector<8x8xf32>
    %cst_119 = arith.constant dense<0.000000e+00> : vector<8x8xf32>
    %122 = tpu.matmul %121, %13, %cst_119 {dimension_numbers = #tpu.dot_dimension_numbers<[1], [0], [0], [1], [0, 0, 1, 1], [], []>} : vector<8x8xf32>, vector<8x8xf32>, vector<8x8xf32> -> vector<8x8xf32>
    %123 = vector.broadcast %16 : vector<1x8xf32> to vector<8x8xf32>
    %124 = arith.addf %123, %122 : vector<8x8xf32>
    %cst_120 = arith.constant dense<0.000000e+00> : vector<8x8xf32>
    %125 = tpu.matmul %11, %120, %cst_120 {dimension_numbers = #tpu.dot_dimension_numbers<[1], [0], [0], [1], [0, 0, 1, 1], [], []>} : vector<8x16xf32>, vector<16x8xf32>, vector<8x8xf32> -> vector<8x8xf32>
    %cst_121 = arith.constant dense<0.000000e+00> : vector<8x8xf32>
    %126 = tpu.matmul %125, %15, %cst_121 {dimension_numbers = #tpu.dot_dimension_numbers<[1], [0], [0], [1], [0, 0, 1, 1], [], []>} : vector<8x8xf32>, vector<8x8xf32>, vector<8x8xf32> -> vector<8x8xf32>
    %127 = arith.addf %124, %126 : vector<8x8xf32>
    %cst_122 = arith.constant 0.000000e+00 : f32
    %128 = vector.broadcast %cst_122 : f32 to vector<8x8xf32>
    %129 = arith.cmpf ogt, %127, %128 : vector<8x8xf32>
    %cst_123 = arith.constant 0.000000e+00 : f32
    %130 = vector.broadcast %cst_123 : f32 to vector<8x8xf32>
    %131 = arith.minimumf %127, %130 : vector<8x8xf32>
    %132 = math.exp %131 : vector<8x8xf32>
    %cst_124 = arith.constant 1.000000e+00 : f32
    %133 = vector.broadcast %cst_124 : f32 to vector<8x8xf32>
    %134 = arith.subf %132, %133 : vector<8x8xf32>
    %135 = arith.select %129, %127, %134 : vector<8x8xi1>, vector<8x8xf32>
    %cst_125 = arith.constant dense<0.000000e+00> : vector<8x32xf32>
    %136 = tpu.matmul %135, %4, %cst_125 {dimension_numbers = #tpu.dot_dimension_numbers<[1], [0], [0], [1], [0, 0, 1, 1], [], []>} : vector<8x8xf32>, vector<8x32xf32>, vector<8x32xf32> -> vector<8x32xf32>
    %137 = vector.broadcast %5 : vector<1x32xf32> to vector<8x32xf32>
    %138 = arith.addf %136, %137 : vector<8x32xf32>
    %cst_126 = arith.constant dense<0.000000e+00> : vector<4x8xf32>
    %139 = tpu.matmul %18, %135, %cst_126 {dimension_numbers = #tpu.dot_dimension_numbers<[1], [0], [0], [1], [0, 0, 1, 1], [], []>} : vector<4x8xf32>, vector<8x8xf32>, vector<4x8xf32> -> vector<4x8xf32>
    %cst_127 = arith.constant dense<0.000000e+00> : vector<4x8xf32>
    %140 = tpu.matmul %139, %22, %cst_127 {dimension_numbers = #tpu.dot_dimension_numbers<[1], [0], [0], [1], [0, 0, 1, 1], [], []>} : vector<4x8xf32>, vector<8x8xf32>, vector<4x8xf32> -> vector<4x8xf32>
    %141 = vector.broadcast %25 : vector<1x8xf32> to vector<4x8xf32>
    %142 = arith.addf %141, %140 : vector<4x8xf32>
    %cst_128 = arith.constant dense<0.000000e+00> : vector<4x8xf32>
    %143 = tpu.matmul %20, %135, %cst_128 {dimension_numbers = #tpu.dot_dimension_numbers<[1], [0], [0], [1], [0, 0, 1, 1], [], []>} : vector<4x8xf32>, vector<8x8xf32>, vector<4x8xf32> -> vector<4x8xf32>
    %cst_129 = arith.constant dense<0.000000e+00> : vector<4x8xf32>
    %144 = tpu.matmul %143, %24, %cst_129 {dimension_numbers = #tpu.dot_dimension_numbers<[1], [0], [0], [1], [0, 0, 1, 1], [], []>} : vector<4x8xf32>, vector<8x8xf32>, vector<4x8xf32> -> vector<4x8xf32>
    %145 = arith.addf %142, %144 : vector<4x8xf32>
    %cst_130 = arith.constant 0.000000e+00 : f32
    %146 = vector.broadcast %cst_130 : f32 to vector<4x8xf32>
    %147 = arith.cmpf ogt, %145, %146 : vector<4x8xf32>
    %cst_131 = arith.constant 0.000000e+00 : f32
    %148 = vector.broadcast %cst_131 : f32 to vector<4x8xf32>
    %149 = arith.minimumf %145, %148 : vector<4x8xf32>
    %150 = math.exp %149 : vector<4x8xf32>
    %cst_132 = arith.constant 1.000000e+00 : f32
    %151 = vector.broadcast %cst_132 : f32 to vector<4x8xf32>
    %152 = arith.subf %150, %151 : vector<4x8xf32>
    %153 = arith.select %147, %145, %152 : vector<4x8xi1>, vector<4x8xf32>
    %cst_133 = arith.constant dense<0.000000e+00> : vector<4x32xf32>
    %154 = tpu.matmul %153, %4, %cst_133 {dimension_numbers = #tpu.dot_dimension_numbers<[1], [0], [0], [1], [0, 0, 1, 1], [], []>} : vector<4x8xf32>, vector<8x32xf32>, vector<4x32xf32> -> vector<4x32xf32>
    %155 = vector.broadcast %5 : vector<1x32xf32> to vector<4x32xf32>
    %156 = arith.addf %154, %155 : vector<4x32xf32>
    %157 = tpu.concatenate %117, %138, %156 in 0 : vector<16x32xf32>, vector<8x32xf32>, vector<4x32xf32> -> vector<28x32xf32>
    %cst_134 = arith.constant dense<0.000000e+00> : vector<28xf32>
    %158 = vector.multi_reduction <add>, %157, %cst_134 [1] : vector<28x32xf32> to vector<28xf32>
    %159 = vector.shape_cast %158 : vector<28xf32> to vector<28x1xf32>
    %cst_135 = arith.constant 3.200000e+01 : f32
    %160 = vector.broadcast %cst_135 : f32 to vector<28x1xf32>
    %161 = arith.divf %159, %160 : vector<28x1xf32>
    %162 = vector.broadcast %161 : vector<28x1xf32> to vector<28x32xf32>
    %163 = arith.subf %157, %162 : vector<28x32xf32>
    %164 = arith.mulf %163, %163 : vector<28x32xf32>
    %cst_136 = arith.constant dense<0.000000e+00> : vector<28xf32>
    %165 = vector.multi_reduction <add>, %164, %cst_136 [1] : vector<28x32xf32> to vector<28xf32>
    %166 = vector.shape_cast %165 : vector<28xf32> to vector<28x1xf32>
    %cst_137 = arith.constant 3.200000e+01 : f32
    %167 = vector.broadcast %cst_137 : f32 to vector<28x1xf32>
    %168 = arith.divf %166, %167 : vector<28x1xf32>
    %169 = vector.broadcast %161 : vector<28x1xf32> to vector<28x32xf32>
    %170 = arith.subf %157, %169 : vector<28x32xf32>
    %cst_138 = arith.constant 9.99999974E-6 : f32
    %171 = vector.broadcast %cst_138 : f32 to vector<28x1xf32>
    %172 = arith.addf %168, %171 : vector<28x1xf32>
    %173 = math.rsqrt %172 : vector<28x1xf32>
    %174 = vector.broadcast %173 : vector<28x1xf32> to vector<28x32xf32>
    %175 = arith.mulf %170, %174 : vector<28x32xf32>
    %176 = vector.broadcast %6 : vector<1x32xf32> to vector<28x32xf32>
    %177 = arith.mulf %175, %176 : vector<28x32xf32>
    %178 = vector.broadcast %7 : vector<1x32xf32> to vector<28x32xf32>
    %179 = arith.addf %177, %178 : vector<28x32xf32>
    %cst_139 = arith.constant dense<0.000000e+00> : vector<28x96xf32>
    %180 = tpu.matmul %115, %26, %cst_139 {dimension_numbers = #tpu.dot_dimension_numbers<[1], [0], [0], [1], [0, 0, 1, 1], [], []>} : vector<28x32xf32>, vector<32x96xf32>, vector<28x96xf32> -> vector<28x96xf32>
    %cst_140 = arith.constant 0.000000e+00 : f32
    %181 = vector.broadcast %cst_140 : f32 to vector<28x32xf32>
    %182 = vector.extract_strided_slice %180 {offsets = [0, 0], sizes = [28, 16], strides = [1, 1]} : vector<28x96xf32> to vector<28x16xf32>
    %cst_141 = arith.constant 2.500000e-01 : f32
    %183 = vector.broadcast %cst_141 : f32 to vector<28x16xf32>
    %184 = arith.mulf %182, %183 : vector<28x16xf32>
    %185 = vector.extract_strided_slice %180 {offsets = [0, 32], sizes = [28, 16], strides = [1, 1]} : vector<28x96xf32> to vector<28x16xf32>
    %186 = vector.extract_strided_slice %180 {offsets = [0, 64], sizes = [28, 16], strides = [1, 1]} : vector<28x96xf32> to vector<28x16xf32>
    %cst_142 = arith.constant dense<0.000000e+00> : vector<28x28xf32>
    %187 = tpu.matmul %184, %185, %cst_142 {dimension_numbers = #tpu.dot_dimension_numbers<[1], [1], [0], [0], [0, 0, 1, 0], [], []>} : vector<28x16xf32>, vector<28x16xf32>, vector<28x28xf32> -> vector<28x28xf32>
    %188 = arith.addf %187, %0 : vector<28x28xf32>
    %cst_143 = arith.constant dense<0xFF800000> : vector<28xf32>
    %189 = vector.multi_reduction <maximumf>, %188, %cst_143 [1] : vector<28x28xf32> to vector<28xf32>
    %190 = vector.shape_cast %189 : vector<28xf32> to vector<28x1xf32>
    %191 = vector.broadcast %190 : vector<28x1xf32> to vector<28x28xf32>
    %192 = arith.subf %188, %191 : vector<28x28xf32>
    %193 = math.exp %192 : vector<28x28xf32>
    %cst_144 = arith.constant dense<0.000000e+00> : vector<28xf32>
    %194 = vector.multi_reduction <add>, %193, %cst_144 [1] : vector<28x28xf32> to vector<28xf32>
    %195 = vector.shape_cast %194 : vector<28xf32> to vector<28x1xf32>
    %196 = tpu.reciprocal %195 {approx = true} : vector<28x1xf32> -> vector<28x1xf32>
    %197 = vector.broadcast %196 : vector<28x1xf32> to vector<28x28xf32>
    %198 = arith.mulf %193, %197 : vector<28x28xf32>
    %c0_145 = arith.constant 0 : index
    %c0_146 = arith.constant 0 : index
    %c0_147 = arith.constant 0 : index
    %c0_148 = arith.constant 0 : index
    %c0_149 = arith.constant 0 : index
    %199 = vector.load %arg36[%c0_145, %c0_146, %c0_147, %c0_148, %c0_149] : memref<2x2x2x28x28xf32, #tpu.memory_space<vmem>>, vector<1x1x1x28x28xf32>
    %200 = vector.shape_cast %199 : vector<1x1x1x28x28xf32> to vector<28x28xf32>
    %201 = vector.shape_cast %198 : vector<28x28xf32> to vector<1x1x1x28x28xf32>
    tpu.vector_store %arg36[%c0_145, %c0_146, %c0_147, %c0_148, %c0_149], %201 {strides = array<i32>} : memref<2x2x2x28x28xf32, #tpu.memory_space<vmem>>, vector<1x1x1x28x28xf32>,
    %cst_150 = arith.constant dense<0.000000e+00> : vector<28x16xf32>
    %202 = tpu.matmul %198, %186, %cst_150 {dimension_numbers = #tpu.dot_dimension_numbers<[1], [0], [0], [1], [0, 0, 1, 1], [], []>} : vector<28x28xf32>, vector<28x16xf32>, vector<28x16xf32> -> vector<28x16xf32>
    %cst_151 = arith.constant dense<0.000000e+00> : vector<28x32xf32>
    %203 = tpu.matmul %202, %28, %cst_151 {dimension_numbers = #tpu.dot_dimension_numbers<[1], [0], [0], [1], [0, 0, 1, 1], [], []>} : vector<28x16xf32>, vector<16x32xf32>, vector<28x32xf32> -> vector<28x32xf32>
    %204 = arith.addf %181, %203 : vector<28x32xf32>
    %205 = vector.extract_strided_slice %180 {offsets = [0, 16], sizes = [28, 16], strides = [1, 1]} : vector<28x96xf32> to vector<28x16xf32>
    %cst_152 = arith.constant 2.500000e-01 : f32
    %206 = vector.broadcast %cst_152 : f32 to vector<28x16xf32>
    %207 = arith.mulf %205, %206 : vector<28x16xf32>
    %208 = vector.extract_strided_slice %180 {offsets = [0, 48], sizes = [28, 16], strides = [1, 1]} : vector<28x96xf32> to vector<28x16xf32>
    %209 = vector.extract_strided_slice %180 {offsets = [0, 80], sizes = [28, 16], strides = [1, 1]} : vector<28x96xf32> to vector<28x16xf32>
    %cst_153 = arith.constant dense<0.000000e+00> : vector<28x28xf32>
    %210 = tpu.matmul %207, %208, %cst_153 {dimension_numbers = #tpu.dot_dimension_numbers<[1], [1], [0], [0], [0, 0, 1, 0], [], []>} : vector<28x16xf32>, vector<28x16xf32>, vector<28x28xf32> -> vector<28x28xf32>
    %211 = arith.addf %210, %0 : vector<28x28xf32>
    %cst_154 = arith.constant dense<0xFF800000> : vector<28xf32>
    %212 = vector.multi_reduction <maximumf>, %211, %cst_154 [1] : vector<28x28xf32> to vector<28xf32>
    %213 = vector.shape_cast %212 : vector<28xf32> to vector<28x1xf32>
    %214 = vector.broadcast %213 : vector<28x1xf32> to vector<28x28xf32>
    %215 = arith.subf %211, %214 : vector<28x28xf32>
    %216 = math.exp %215 : vector<28x28xf32>
    %cst_155 = arith.constant dense<0.000000e+00> : vector<28xf32>
    %217 = vector.multi_reduction <add>, %216, %cst_155 [1] : vector<28x28xf32> to vector<28xf32>
    %218 = vector.shape_cast %217 : vector<28xf32> to vector<28x1xf32>
    %219 = tpu.reciprocal %218 {approx = true} : vector<28x1xf32> -> vector<28x1xf32>
    %220 = vector.broadcast %219 : vector<28x1xf32> to vector<28x28xf32>
    %221 = arith.mulf %216, %220 : vector<28x28xf32>
    %c0_156 = arith.constant 0 : index
    %c0_157 = arith.constant 0 : index
    %c1_158 = arith.constant 1 : index
    %c0_159 = arith.constant 0 : index
    %c0_160 = arith.constant 0 : index
    %222 = vector.load %arg36[%c0_156, %c0_157, %c1_158, %c0_159, %c0_160] : memref<2x2x2x28x28xf32, #tpu.memory_space<vmem>>, vector<1x1x1x28x28xf32>
    %223 = vector.shape_cast %222 : vector<1x1x1x28x28xf32> to vector<28x28xf32>
    %224 = vector.shape_cast %221 : vector<28x28xf32> to vector<1x1x1x28x28xf32>
    tpu.vector_store %arg36[%c0_156, %c0_157, %c1_158, %c0_159, %c0_160], %224 {strides = array<i32>} : memref<2x2x2x28x28xf32, #tpu.memory_space<vmem>>, vector<1x1x1x28x28xf32>,
    %cst_161 = arith.constant dense<0.000000e+00> : vector<28x16xf32>
    %225 = tpu.matmul %221, %209, %cst_161 {dimension_numbers = #tpu.dot_dimension_numbers<[1], [0], [0], [1], [0, 0, 1, 1], [], []>} : vector<28x28xf32>, vector<28x16xf32>, vector<28x16xf32> -> vector<28x16xf32>
    %cst_162 = arith.constant dense<0.000000e+00> : vector<28x32xf32>
    %226 = tpu.matmul %225, %30, %cst_162 {dimension_numbers = #tpu.dot_dimension_numbers<[1], [0], [0], [1], [0, 0, 1, 1], [], []>} : vector<28x16xf32>, vector<16x32xf32>, vector<28x32xf32> -> vector<28x32xf32>
    %227 = arith.addf %204, %226 : vector<28x32xf32>
    %228 = arith.addf %227, %115 : vector<28x32xf32>
    %cst_163 = arith.constant dense<0.000000e+00> : vector<28xf32>
    %229 = vector.multi_reduction <add>, %228, %cst_163 [1] : vector<28x32xf32> to vector<28xf32>
    %230 = vector.shape_cast %229 : vector<28xf32> to vector<28x1xf32>
    %cst_164 = arith.constant 3.200000e+01 : f32
    %231 = vector.broadcast %cst_164 : f32 to vector<28x1xf32>
    %232 = arith.divf %230, %231 : vector<28x1xf32>
    %233 = vector.broadcast %232 : vector<28x1xf32> to vector<28x32xf32>
    %234 = arith.subf %228, %233 : vector<28x32xf32>
    %235 = arith.mulf %234, %234 : vector<28x32xf32>
    %cst_165 = arith.constant dense<0.000000e+00> : vector<28xf32>
    %236 = vector.multi_reduction <add>, %235, %cst_165 [1] : vector<28x32xf32> to vector<28xf32>
    %237 = vector.shape_cast %236 : vector<28xf32> to vector<28x1xf32>
    %cst_166 = arith.constant 3.200000e+01 : f32
    %238 = vector.broadcast %cst_166 : f32 to vector<28x1xf32>
    %239 = arith.divf %237, %238 : vector<28x1xf32>
    %240 = vector.broadcast %232 : vector<28x1xf32> to vector<28x32xf32>
    %241 = arith.subf %228, %240 : vector<28x32xf32>
    %cst_167 = arith.constant 9.99999997E-7 : f32
    %242 = vector.broadcast %cst_167 : f32 to vector<28x1xf32>
    %243 = arith.addf %239, %242 : vector<28x1xf32>
    %244 = math.rsqrt %243 : vector<28x1xf32>
    %245 = vector.broadcast %244 : vector<28x1xf32> to vector<28x32xf32>
    %246 = arith.mulf %241, %245 : vector<28x32xf32>
    %247 = vector.broadcast %31 : vector<1x32xf32> to vector<28x32xf32>
    %248 = arith.mulf %246, %247 : vector<28x32xf32>
    %249 = vector.broadcast %32 : vector<1x32xf32> to vector<28x32xf32>
    %250 = arith.addf %248, %249 : vector<28x32xf32>
    %cst_168 = arith.constant dense<0.000000e+00> : vector<28x64xf32>
    %251 = tpu.matmul %250, %33, %cst_168 {dimension_numbers = #tpu.dot_dimension_numbers<[1], [0], [0], [1], [0, 0, 1, 1], [], []>} : vector<28x32xf32>, vector<32x64xf32>, vector<28x64xf32> -> vector<28x64xf32>
    %252 = vector.broadcast %34 : vector<1x64xf32> to vector<28x64xf32>
    %253 = arith.addf %251, %252 : vector<28x64xf32>
    %cst_169 = arith.constant 0.000000e+00 : f32
    %254 = vector.broadcast %cst_169 : f32 to vector<28x64xf32>
    %255 = arith.maximumf %253, %254 : vector<28x64xf32>
    %cst_170 = arith.constant dense<0.000000e+00> : vector<28x32xf32>
    %256 = tpu.matmul %255, %35, %cst_170 {dimension_numbers = #tpu.dot_dimension_numbers<[1], [0], [0], [1], [0, 0, 1, 1], [], []>} : vector<28x64xf32>, vector<64x32xf32>, vector<28x32xf32> -> vector<28x32xf32>
    %257 = vector.broadcast %36 : vector<1x32xf32> to vector<28x32xf32>
    %258 = arith.addf %256, %257 : vector<28x32xf32>
    %259 = arith.addf %258, %250 : vector<28x32xf32>
    %cst_171 = arith.constant dense<0.000000e+00> : vector<28xf32>
    %260 = vector.multi_reduction <add>, %259, %cst_171 [1] : vector<28x32xf32> to vector<28xf32>
    %261 = vector.shape_cast %260 : vector<28xf32> to vector<28x1xf32>
    %cst_172 = arith.constant 3.200000e+01 : f32
    %262 = vector.broadcast %cst_172 : f32 to vector<28x1xf32>
    %263 = arith.divf %261, %262 : vector<28x1xf32>
    %264 = vector.broadcast %263 : vector<28x1xf32> to vector<28x32xf32>
    %265 = arith.subf %259, %264 : vector<28x32xf32>
    %266 = arith.mulf %265, %265 : vector<28x32xf32>
    %cst_173 = arith.constant dense<0.000000e+00> : vector<28xf32>
    %267 = vector.multi_reduction <add>, %266, %cst_173 [1] : vector<28x32xf32> to vector<28xf32>
    %268 = vector.shape_cast %267 : vector<28xf32> to vector<28x1xf32>
    %cst_174 = arith.constant 3.200000e+01 : f32
    %269 = vector.broadcast %cst_174 : f32 to vector<28x1xf32>
    %270 = arith.divf %268, %269 : vector<28x1xf32>
    %271 = vector.broadcast %263 : vector<28x1xf32> to vector<28x32xf32>
    %272 = arith.subf %259, %271 : vector<28x32xf32>
    %cst_175 = arith.constant 9.99999997E-7 : f32
    %273 = vector.broadcast %cst_175 : f32 to vector<28x1xf32>
    %274 = arith.addf %270, %273 : vector<28x1xf32>
    %275 = math.rsqrt %274 : vector<28x1xf32>
    %276 = vector.broadcast %275 : vector<28x1xf32> to vector<28x32xf32>
    %277 = arith.mulf %272, %276 : vector<28x32xf32>
    %278 = vector.broadcast %37 : vector<1x32xf32> to vector<28x32xf32>
    %279 = arith.mulf %277, %278 : vector<28x32xf32>
    %280 = vector.broadcast %38 : vector<1x32xf32> to vector<28x32xf32>
    %281 = arith.addf %279, %280 : vector<28x32xf32>
    %cst_176 = arith.constant dense<0.000000e+00> : vector<28x96xf32>
    %282 = tpu.matmul %179, %26, %cst_176 {dimension_numbers = #tpu.dot_dimension_numbers<[1], [0], [0], [1], [0, 0, 1, 1], [], []>} : vector<28x32xf32>, vector<32x96xf32>, vector<28x96xf32> -> vector<28x96xf32>
    %cst_177 = arith.constant 0.000000e+00 : f32
    %283 = vector.broadcast %cst_177 : f32 to vector<28x32xf32>
    %284 = vector.extract_strided_slice %282 {offsets = [0, 0], sizes = [28, 16], strides = [1, 1]} : vector<28x96xf32> to vector<28x16xf32>
    %cst_178 = arith.constant 2.500000e-01 : f32
    %285 = vector.broadcast %cst_178 : f32 to vector<28x16xf32>
    %286 = arith.mulf %284, %285 : vector<28x16xf32>
    %287 = vector.extract_strided_slice %282 {offsets = [0, 32], sizes = [28, 16], strides = [1, 1]} : vector<28x96xf32> to vector<28x16xf32>
    %288 = vector.extract_strided_slice %282 {offsets = [0, 64], sizes = [28, 16], strides = [1, 1]} : vector<28x96xf32> to vector<28x16xf32>
    %cst_179 = arith.constant dense<0.000000e+00> : vector<28x28xf32>
    %289 = tpu.matmul %286, %287, %cst_179 {dimension_numbers = #tpu.dot_dimension_numbers<[1], [1], [0], [0], [0, 0, 1, 0], [], []>} : vector<28x16xf32>, vector<28x16xf32>, vector<28x28xf32> -> vector<28x28xf32>
    %290 = arith.addf %289, %0 : vector<28x28xf32>
    %cst_180 = arith.constant dense<0xFF800000> : vector<28xf32>
    %291 = vector.multi_reduction <maximumf>, %290, %cst_180 [1] : vector<28x28xf32> to vector<28xf32>
    %292 = vector.shape_cast %291 : vector<28xf32> to vector<28x1xf32>
    %293 = vector.broadcast %292 : vector<28x1xf32> to vector<28x28xf32>
    %294 = arith.subf %290, %293 : vector<28x28xf32>
    %295 = math.exp %294 : vector<28x28xf32>
    %cst_181 = arith.constant dense<0.000000e+00> : vector<28xf32>
    %296 = vector.multi_reduction <add>, %295, %cst_181 [1] : vector<28x28xf32> to vector<28xf32>
    %297 = vector.shape_cast %296 : vector<28xf32> to vector<28x1xf32>
    %298 = tpu.reciprocal %297 {approx = true} : vector<28x1xf32> -> vector<28x1xf32>
    %299 = vector.broadcast %298 : vector<28x1xf32> to vector<28x28xf32>
    %300 = arith.mulf %295, %299 : vector<28x28xf32>
    %c0_182 = arith.constant 0 : index
    %c1_183 = arith.constant 1 : index
    %c0_184 = arith.constant 0 : index
    %c0_185 = arith.constant 0 : index
    %c0_186 = arith.constant 0 : index
    %301 = vector.load %arg36[%c0_182, %c1_183, %c0_184, %c0_185, %c0_186] : memref<2x2x2x28x28xf32, #tpu.memory_space<vmem>>, vector<1x1x1x28x28xf32>
    %302 = vector.shape_cast %301 : vector<1x1x1x28x28xf32> to vector<28x28xf32>
    %303 = vector.shape_cast %300 : vector<28x28xf32> to vector<1x1x1x28x28xf32>
    tpu.vector_store %arg36[%c0_182, %c1_183, %c0_184, %c0_185, %c0_186], %303 {strides = array<i32>} : memref<2x2x2x28x28xf32, #tpu.memory_space<vmem>>, vector<1x1x1x28x28xf32>,
    %cst_187 = arith.constant dense<0.000000e+00> : vector<28x16xf32>
    %304 = tpu.matmul %300, %288, %cst_187 {dimension_numbers = #tpu.dot_dimension_numbers<[1], [0], [0], [1], [0, 0, 1, 1], [], []>} : vector<28x28xf32>, vector<28x16xf32>, vector<28x16xf32> -> vector<28x16xf32>
    %cst_188 = arith.constant dense<0.000000e+00> : vector<28x32xf32>
    %305 = tpu.matmul %304, %28, %cst_188 {dimension_numbers = #tpu.dot_dimension_numbers<[1], [0], [0], [1], [0, 0, 1, 1], [], []>} : vector<28x16xf32>, vector<16x32xf32>, vector<28x32xf32> -> vector<28x32xf32>
    %306 = arith.addf %283, %305 : vector<28x32xf32>
    %307 = vector.extract_strided_slice %282 {offsets = [0, 16], sizes = [28, 16], strides = [1, 1]} : vector<28x96xf32> to vector<28x16xf32>
    %cst_189 = arith.constant 2.500000e-01 : f32
    %308 = vector.broadcast %cst_189 : f32 to vector<28x16xf32>
    %309 = arith.mulf %307, %308 : vector<28x16xf32>
    %310 = vector.extract_strided_slice %282 {offsets = [0, 48], sizes = [28, 16], strides = [1, 1]} : vector<28x96xf32> to vector<28x16xf32>
    %311 = vector.extract_strided_slice %282 {offsets = [0, 80], sizes = [28, 16], strides = [1, 1]} : vector<28x96xf32> to vector<28x16xf32>
    %cst_190 = arith.constant dense<0.000000e+00> : vector<28x28xf32>
    %312 = tpu.matmul %309, %310, %cst_190 {dimension_numbers = #tpu.dot_dimension_numbers<[1], [1], [0], [0], [0, 0, 1, 0], [], []>} : vector<28x16xf32>, vector<28x16xf32>, vector<28x28xf32> -> vector<28x28xf32>
    %313 = arith.addf %312, %0 : vector<28x28xf32>
    %cst_191 = arith.constant dense<0xFF800000> : vector<28xf32>
    %314 = vector.multi_reduction <maximumf>, %313, %cst_191 [1] : vector<28x28xf32> to vector<28xf32>
    %315 = vector.shape_cast %314 : vector<28xf32> to vector<28x1xf32>
    %316 = vector.broadcast %315 : vector<28x1xf32> to vector<28x28xf32>
    %317 = arith.subf %313, %316 : vector<28x28xf32>
    %318 = math.exp %317 : vector<28x28xf32>
    %cst_192 = arith.constant dense<0.000000e+00> : vector<28xf32>
    %319 = vector.multi_reduction <add>, %318, %cst_192 [1] : vector<28x28xf32> to vector<28xf32>
    %320 = vector.shape_cast %319 : vector<28xf32> to vector<28x1xf32>
    %321 = tpu.reciprocal %320 {approx = true} : vector<28x1xf32> -> vector<28x1xf32>
    %322 = vector.broadcast %321 : vector<28x1xf32> to vector<28x28xf32>
    %323 = arith.mulf %318, %322 : vector<28x28xf32>
    %c0_193 = arith.constant 0 : index
    %c1_194 = arith.constant 1 : index
    %c1_195 = arith.constant 1 : index
    %c0_196 = arith.constant 0 : index
    %c0_197 = arith.constant 0 : index
    %324 = vector.load %arg36[%c0_193, %c1_194, %c1_195, %c0_196, %c0_197] : memref<2x2x2x28x28xf32, #tpu.memory_space<vmem>>, vector<1x1x1x28x28xf32>
    %325 = vector.shape_cast %324 : vector<1x1x1x28x28xf32> to vector<28x28xf32>
    %326 = vector.shape_cast %323 : vector<28x28xf32> to vector<1x1x1x28x28xf32>
    tpu.vector_store %arg36[%c0_193, %c1_194, %c1_195, %c0_196, %c0_197], %326 {strides = array<i32>} : memref<2x2x2x28x28xf32, #tpu.memory_space<vmem>>, vector<1x1x1x28x28xf32>,
    %cst_198 = arith.constant dense<0.000000e+00> : vector<28x16xf32>
    %327 = tpu.matmul %323, %311, %cst_198 {dimension_numbers = #tpu.dot_dimension_numbers<[1], [0], [0], [1], [0, 0, 1, 1], [], []>} : vector<28x28xf32>, vector<28x16xf32>, vector<28x16xf32> -> vector<28x16xf32>
    %cst_199 = arith.constant dense<0.000000e+00> : vector<28x32xf32>
    %328 = tpu.matmul %327, %30, %cst_199 {dimension_numbers = #tpu.dot_dimension_numbers<[1], [0], [0], [1], [0, 0, 1, 1], [], []>} : vector<28x16xf32>, vector<16x32xf32>, vector<28x32xf32> -> vector<28x32xf32>
    %329 = arith.addf %306, %328 : vector<28x32xf32>
    %330 = arith.addf %329, %179 : vector<28x32xf32>
    %cst_200 = arith.constant dense<0.000000e+00> : vector<28xf32>
    %331 = vector.multi_reduction <add>, %330, %cst_200 [1] : vector<28x32xf32> to vector<28xf32>
    %332 = vector.shape_cast %331 : vector<28xf32> to vector<28x1xf32>
    %cst_201 = arith.constant 3.200000e+01 : f32
    %333 = vector.broadcast %cst_201 : f32 to vector<28x1xf32>
    %334 = arith.divf %332, %333 : vector<28x1xf32>
    %335 = vector.broadcast %334 : vector<28x1xf32> to vector<28x32xf32>
    %336 = arith.subf %330, %335 : vector<28x32xf32>
    %337 = arith.mulf %336, %336 : vector<28x32xf32>
    %cst_202 = arith.constant dense<0.000000e+00> : vector<28xf32>
    %338 = vector.multi_reduction <add>, %337, %cst_202 [1] : vector<28x32xf32> to vector<28xf32>
    %339 = vector.shape_cast %338 : vector<28xf32> to vector<28x1xf32>
    %cst_203 = arith.constant 3.200000e+01 : f32
    %340 = vector.broadcast %cst_203 : f32 to vector<28x1xf32>
    %341 = arith.divf %339, %340 : vector<28x1xf32>
    %342 = vector.broadcast %334 : vector<28x1xf32> to vector<28x32xf32>
    %343 = arith.subf %330, %342 : vector<28x32xf32>
    %cst_204 = arith.constant 9.99999997E-7 : f32
    %344 = vector.broadcast %cst_204 : f32 to vector<28x1xf32>
    %345 = arith.addf %341, %344 : vector<28x1xf32>
    %346 = math.rsqrt %345 : vector<28x1xf32>
    %347 = vector.broadcast %346 : vector<28x1xf32> to vector<28x32xf32>
    %348 = arith.mulf %343, %347 : vector<28x32xf32>
    %349 = vector.broadcast %31 : vector<1x32xf32> to vector<28x32xf32>
    %350 = arith.mulf %348, %349 : vector<28x32xf32>
    %351 = vector.broadcast %32 : vector<1x32xf32> to vector<28x32xf32>
    %352 = arith.addf %350, %351 : vector<28x32xf32>
    %cst_205 = arith.constant dense<0.000000e+00> : vector<28x64xf32>
    %353 = tpu.matmul %352, %33, %cst_205 {dimension_numbers = #tpu.dot_dimension_numbers<[1], [0], [0], [1], [0, 0, 1, 1], [], []>} : vector<28x32xf32>, vector<32x64xf32>, vector<28x64xf32> -> vector<28x64xf32>
    %354 = vector.broadcast %34 : vector<1x64xf32> to vector<28x64xf32>
    %355 = arith.addf %353, %354 : vector<28x64xf32>
    %cst_206 = arith.constant 0.000000e+00 : f32
    %356 = vector.broadcast %cst_206 : f32 to vector<28x64xf32>
    %357 = arith.maximumf %355, %356 : vector<28x64xf32>
    %cst_207 = arith.constant dense<0.000000e+00> : vector<28x32xf32>
    %358 = tpu.matmul %357, %35, %cst_207 {dimension_numbers = #tpu.dot_dimension_numbers<[1], [0], [0], [1], [0, 0, 1, 1], [], []>} : vector<28x64xf32>, vector<64x32xf32>, vector<28x32xf32> -> vector<28x32xf32>
    %359 = vector.broadcast %36 : vector<1x32xf32> to vector<28x32xf32>
    %360 = arith.addf %358, %359 : vector<28x32xf32>
    %361 = arith.addf %360, %352 : vector<28x32xf32>
    %cst_208 = arith.constant dense<0.000000e+00> : vector<28xf32>
    %362 = vector.multi_reduction <add>, %361, %cst_208 [1] : vector<28x32xf32> to vector<28xf32>
    %363 = vector.shape_cast %362 : vector<28xf32> to vector<28x1xf32>
    %cst_209 = arith.constant 3.200000e+01 : f32
    %364 = vector.broadcast %cst_209 : f32 to vector<28x1xf32>
    %365 = arith.divf %363, %364 : vector<28x1xf32>
    %366 = vector.broadcast %365 : vector<28x1xf32> to vector<28x32xf32>
    %367 = arith.subf %361, %366 : vector<28x32xf32>
    %368 = arith.mulf %367, %367 : vector<28x32xf32>
    %cst_210 = arith.constant dense<0.000000e+00> : vector<28xf32>
    %369 = vector.multi_reduction <add>, %368, %cst_210 [1] : vector<28x32xf32> to vector<28xf32>
    %370 = vector.shape_cast %369 : vector<28xf32> to vector<28x1xf32>
    %cst_211 = arith.constant 3.200000e+01 : f32
    %371 = vector.broadcast %cst_211 : f32 to vector<28x1xf32>
    %372 = arith.divf %370, %371 : vector<28x1xf32>
    %373 = vector.broadcast %365 : vector<28x1xf32> to vector<28x32xf32>
    %374 = arith.subf %361, %373 : vector<28x32xf32>
    %cst_212 = arith.constant 9.99999997E-7 : f32
    %375 = vector.broadcast %cst_212 : f32 to vector<28x1xf32>
    %376 = arith.addf %372, %375 : vector<28x1xf32>
    %377 = math.rsqrt %376 : vector<28x1xf32>
    %378 = vector.broadcast %377 : vector<28x1xf32> to vector<28x32xf32>
    %379 = arith.mulf %374, %378 : vector<28x32xf32>
    %380 = vector.broadcast %37 : vector<1x32xf32> to vector<28x32xf32>
    %381 = arith.mulf %379, %380 : vector<28x32xf32>
    %382 = vector.broadcast %38 : vector<1x32xf32> to vector<28x32xf32>
    %383 = arith.addf %381, %382 : vector<28x32xf32>
    %cst_213 = arith.constant dense<0.000000e+00> : vector<28x96xf32>
    %384 = tpu.matmul %281, %39, %cst_213 {dimension_numbers = #tpu.dot_dimension_numbers<[1], [0], [0], [1], [0, 0, 1, 1], [], []>} : vector<28x32xf32>, vector<32x96xf32>, vector<28x96xf32> -> vector<28x96xf32>
    %cst_214 = arith.constant 0.000000e+00 : f32
    %385 = vector.broadcast %cst_214 : f32 to vector<28x32xf32>
    %386 = vector.extract_strided_slice %384 {offsets = [0, 0], sizes = [28, 16], strides = [1, 1]} : vector<28x96xf32> to vector<28x16xf32>
    %cst_215 = arith.constant 2.500000e-01 : f32
    %387 = vector.broadcast %cst_215 : f32 to vector<28x16xf32>
    %388 = arith.mulf %386, %387 : vector<28x16xf32>
    %389 = vector.extract_strided_slice %384 {offsets = [0, 32], sizes = [28, 16], strides = [1, 1]} : vector<28x96xf32> to vector<28x16xf32>
    %390 = vector.extract_strided_slice %384 {offsets = [0, 64], sizes = [28, 16], strides = [1, 1]} : vector<28x96xf32> to vector<28x16xf32>
    %cst_216 = arith.constant dense<0.000000e+00> : vector<28x28xf32>
    %391 = tpu.matmul %388, %389, %cst_216 {dimension_numbers = #tpu.dot_dimension_numbers<[1], [1], [0], [0], [0, 0, 1, 0], [], []>} : vector<28x16xf32>, vector<28x16xf32>, vector<28x28xf32> -> vector<28x28xf32>
    %392 = arith.addf %391, %0 : vector<28x28xf32>
    %cst_217 = arith.constant dense<0xFF800000> : vector<28xf32>
    %393 = vector.multi_reduction <maximumf>, %392, %cst_217 [1] : vector<28x28xf32> to vector<28xf32>
    %394 = vector.shape_cast %393 : vector<28xf32> to vector<28x1xf32>
    %395 = vector.broadcast %394 : vector<28x1xf32> to vector<28x28xf32>
    %396 = arith.subf %392, %395 : vector<28x28xf32>
    %397 = math.exp %396 : vector<28x28xf32>
    %cst_218 = arith.constant dense<0.000000e+00> : vector<28xf32>
    %398 = vector.multi_reduction <add>, %397, %cst_218 [1] : vector<28x28xf32> to vector<28xf32>
    %399 = vector.shape_cast %398 : vector<28xf32> to vector<28x1xf32>
    %400 = tpu.reciprocal %399 {approx = true} : vector<28x1xf32> -> vector<28x1xf32>
    %401 = vector.broadcast %400 : vector<28x1xf32> to vector<28x28xf32>
    %402 = arith.mulf %397, %401 : vector<28x28xf32>
    %c1_219 = arith.constant 1 : index
    %c0_220 = arith.constant 0 : index
    %c0_221 = arith.constant 0 : index
    %c0_222 = arith.constant 0 : index
    %c0_223 = arith.constant 0 : index
    %403 = vector.load %arg36[%c1_219, %c0_220, %c0_221, %c0_222, %c0_223] : memref<2x2x2x28x28xf32, #tpu.memory_space<vmem>>, vector<1x1x1x28x28xf32>
    %404 = vector.shape_cast %403 : vector<1x1x1x28x28xf32> to vector<28x28xf32>
    %405 = vector.shape_cast %402 : vector<28x28xf32> to vector<1x1x1x28x28xf32>
    tpu.vector_store %arg36[%c1_219, %c0_220, %c0_221, %c0_222, %c0_223], %405 {strides = array<i32>} : memref<2x2x2x28x28xf32, #tpu.memory_space<vmem>>, vector<1x1x1x28x28xf32>,
    %cst_224 = arith.constant dense<0.000000e+00> : vector<28x16xf32>
    %406 = tpu.matmul %402, %390, %cst_224 {dimension_numbers = #tpu.dot_dimension_numbers<[1], [0], [0], [1], [0, 0, 1, 1], [], []>} : vector<28x28xf32>, vector<28x16xf32>, vector<28x16xf32> -> vector<28x16xf32>
    %cst_225 = arith.constant dense<0.000000e+00> : vector<28x32xf32>
    %407 = tpu.matmul %406, %41, %cst_225 {dimension_numbers = #tpu.dot_dimension_numbers<[1], [0], [0], [1], [0, 0, 1, 1], [], []>} : vector<28x16xf32>, vector<16x32xf32>, vector<28x32xf32> -> vector<28x32xf32>
    %408 = arith.addf %385, %407 : vector<28x32xf32>
    %409 = vector.extract_strided_slice %384 {offsets = [0, 16], sizes = [28, 16], strides = [1, 1]} : vector<28x96xf32> to vector<28x16xf32>
    %cst_226 = arith.constant 2.500000e-01 : f32
    %410 = vector.broadcast %cst_226 : f32 to vector<28x16xf32>
    %411 = arith.mulf %409, %410 : vector<28x16xf32>
    %412 = vector.extract_strided_slice %384 {offsets = [0, 48], sizes = [28, 16], strides = [1, 1]} : vector<28x96xf32> to vector<28x16xf32>
    %413 = vector.extract_strided_slice %384 {offsets = [0, 80], sizes = [28, 16], strides = [1, 1]} : vector<28x96xf32> to vector<28x16xf32>
    %cst_227 = arith.constant dense<0.000000e+00> : vector<28x28xf32>
    %414 = tpu.matmul %411, %412, %cst_227 {dimension_numbers = #tpu.dot_dimension_numbers<[1], [1], [0], [0], [0, 0, 1, 0], [], []>} : vector<28x16xf32>, vector<28x16xf32>, vector<28x28xf32> -> vector<28x28xf32>
    %415 = arith.addf %414, %0 : vector<28x28xf32>
    %cst_228 = arith.constant dense<0xFF800000> : vector<28xf32>
    %416 = vector.multi_reduction <maximumf>, %415, %cst_228 [1] : vector<28x28xf32> to vector<28xf32>
    %417 = vector.shape_cast %416 : vector<28xf32> to vector<28x1xf32>
    %418 = vector.broadcast %417 : vector<28x1xf32> to vector<28x28xf32>
    %419 = arith.subf %415, %418 : vector<28x28xf32>
    %420 = math.exp %419 : vector<28x28xf32>
    %cst_229 = arith.constant dense<0.000000e+00> : vector<28xf32>
    %421 = vector.multi_reduction <add>, %420, %cst_229 [1] : vector<28x28xf32> to vector<28xf32>
    %422 = vector.shape_cast %421 : vector<28xf32> to vector<28x1xf32>
    %423 = tpu.reciprocal %422 {approx = true} : vector<28x1xf32> -> vector<28x1xf32>
    %424 = vector.broadcast %423 : vector<28x1xf32> to vector<28x28xf32>
    %425 = arith.mulf %420, %424 : vector<28x28xf32>
    %c1_230 = arith.constant 1 : index
    %c0_231 = arith.constant 0 : index
    %c1_232 = arith.constant 1 : index
    %c0_233 = arith.constant 0 : index
    %c0_234 = arith.constant 0 : index
    %426 = vector.load %arg36[%c1_230, %c0_231, %c1_232, %c0_233, %c0_234] : memref<2x2x2x28x28xf32, #tpu.memory_space<vmem>>, vector<1x1x1x28x28xf32>
    %427 = vector.shape_cast %426 : vector<1x1x1x28x28xf32> to vector<28x28xf32>
    %428 = vector.shape_cast %425 : vector<28x28xf32> to vector<1x1x1x28x28xf32>
    tpu.vector_store %arg36[%c1_230, %c0_231, %c1_232, %c0_233, %c0_234], %428 {strides = array<i32>} : memref<2x2x2x28x28xf32, #tpu.memory_space<vmem>>, vector<1x1x1x28x28xf32>,
    %cst_235 = arith.constant dense<0.000000e+00> : vector<28x16xf32>
    %429 = tpu.matmul %425, %413, %cst_235 {dimension_numbers = #tpu.dot_dimension_numbers<[1], [0], [0], [1], [0, 0, 1, 1], [], []>} : vector<28x28xf32>, vector<28x16xf32>, vector<28x16xf32> -> vector<28x16xf32>
    %cst_236 = arith.constant dense<0.000000e+00> : vector<28x32xf32>
    %430 = tpu.matmul %429, %43, %cst_236 {dimension_numbers = #tpu.dot_dimension_numbers<[1], [0], [0], [1], [0, 0, 1, 1], [], []>} : vector<28x16xf32>, vector<16x32xf32>, vector<28x32xf32> -> vector<28x32xf32>
    %431 = arith.addf %408, %430 : vector<28x32xf32>
    %432 = arith.addf %431, %281 : vector<28x32xf32>
    %cst_237 = arith.constant dense<0.000000e+00> : vector<28xf32>
    %433 = vector.multi_reduction <add>, %432, %cst_237 [1] : vector<28x32xf32> to vector<28xf32>
    %434 = vector.shape_cast %433 : vector<28xf32> to vector<28x1xf32>
    %cst_238 = arith.constant 3.200000e+01 : f32
    %435 = vector.broadcast %cst_238 : f32 to vector<28x1xf32>
    %436 = arith.divf %434, %435 : vector<28x1xf32>
    %437 = vector.broadcast %436 : vector<28x1xf32> to vector<28x32xf32>
    %438 = arith.subf %432, %437 : vector<28x32xf32>
    %439 = arith.mulf %438, %438 : vector<28x32xf32>
    %cst_239 = arith.constant dense<0.000000e+00> : vector<28xf32>
    %440 = vector.multi_reduction <add>, %439, %cst_239 [1] : vector<28x32xf32> to vector<28xf32>
    %441 = vector.shape_cast %440 : vector<28xf32> to vector<28x1xf32>
    %cst_240 = arith.constant 3.200000e+01 : f32
    %442 = vector.broadcast %cst_240 : f32 to vector<28x1xf32>
    %443 = arith.divf %441, %442 : vector<28x1xf32>
    %444 = vector.broadcast %436 : vector<28x1xf32> to vector<28x32xf32>
    %445 = arith.subf %432, %444 : vector<28x32xf32>
    %cst_241 = arith.constant 9.99999997E-7 : f32
    %446 = vector.broadcast %cst_241 : f32 to vector<28x1xf32>
    %447 = arith.addf %443, %446 : vector<28x1xf32>
    %448 = math.rsqrt %447 : vector<28x1xf32>
    %449 = vector.broadcast %448 : vector<28x1xf32> to vector<28x32xf32>
    %450 = arith.mulf %445, %449 : vector<28x32xf32>
    %451 = vector.broadcast %44 : vector<1x32xf32> to vector<28x32xf32>
    %452 = arith.mulf %450, %451 : vector<28x32xf32>
    %453 = vector.broadcast %45 : vector<1x32xf32> to vector<28x32xf32>
    %454 = arith.addf %452, %453 : vector<28x32xf32>
    %cst_242 = arith.constant dense<0.000000e+00> : vector<28x64xf32>
    %455 = tpu.matmul %454, %46, %cst_242 {dimension_numbers = #tpu.dot_dimension_numbers<[1], [0], [0], [1], [0, 0, 1, 1], [], []>} : vector<28x32xf32>, vector<32x64xf32>, vector<28x64xf32> -> vector<28x64xf32>
    %456 = vector.broadcast %47 : vector<1x64xf32> to vector<28x64xf32>
    %457 = arith.addf %455, %456 : vector<28x64xf32>
    %cst_243 = arith.constant 0.000000e+00 : f32
    %458 = vector.broadcast %cst_243 : f32 to vector<28x64xf32>
    %459 = arith.maximumf %457, %458 : vector<28x64xf32>
    %cst_244 = arith.constant dense<0.000000e+00> : vector<28x32xf32>
    %460 = tpu.matmul %459, %48, %cst_244 {dimension_numbers = #tpu.dot_dimension_numbers<[1], [0], [0], [1], [0, 0, 1, 1], [], []>} : vector<28x64xf32>, vector<64x32xf32>, vector<28x32xf32> -> vector<28x32xf32>
    %461 = vector.broadcast %49 : vector<1x32xf32> to vector<28x32xf32>
    %462 = arith.addf %460, %461 : vector<28x32xf32>
    %463 = arith.addf %462, %454 : vector<28x32xf32>
    %cst_245 = arith.constant dense<0.000000e+00> : vector<28xf32>
    %464 = vector.multi_reduction <add>, %463, %cst_245 [1] : vector<28x32xf32> to vector<28xf32>
    %465 = vector.shape_cast %464 : vector<28xf32> to vector<28x1xf32>
    %cst_246 = arith.constant 3.200000e+01 : f32
    %466 = vector.broadcast %cst_246 : f32 to vector<28x1xf32>
    %467 = arith.divf %465, %466 : vector<28x1xf32>
    %468 = vector.broadcast %467 : vector<28x1xf32> to vector<28x32xf32>
    %469 = arith.subf %463, %468 : vector<28x32xf32>
    %470 = arith.mulf %469, %469 : vector<28x32xf32>
    %cst_247 = arith.constant dense<0.000000e+00> : vector<28xf32>
    %471 = vector.multi_reduction <add>, %470, %cst_247 [1] : vector<28x32xf32> to vector<28xf32>
    %472 = vector.shape_cast %471 : vector<28xf32> to vector<28x1xf32>
    %cst_248 = arith.constant 3.200000e+01 : f32
    %473 = vector.broadcast %cst_248 : f32 to vector<28x1xf32>
    %474 = arith.divf %472, %473 : vector<28x1xf32>
    %475 = vector.broadcast %467 : vector<28x1xf32> to vector<28x32xf32>
    %476 = arith.subf %463, %475 : vector<28x32xf32>
    %cst_249 = arith.constant 9.99999997E-7 : f32
    %477 = vector.broadcast %cst_249 : f32 to vector<28x1xf32>
    %478 = arith.addf %474, %477 : vector<28x1xf32>
    %479 = math.rsqrt %478 : vector<28x1xf32>
    %480 = vector.broadcast %479 : vector<28x1xf32> to vector<28x32xf32>
    %481 = arith.mulf %476, %480 : vector<28x32xf32>
    %482 = vector.broadcast %50 : vector<1x32xf32> to vector<28x32xf32>
    %483 = arith.mulf %481, %482 : vector<28x32xf32>
    %484 = vector.broadcast %51 : vector<1x32xf32> to vector<28x32xf32>
    %485 = arith.addf %483, %484 : vector<28x32xf32>
    %cst_250 = arith.constant dense<0.000000e+00> : vector<28x96xf32>
    %486 = tpu.matmul %383, %39, %cst_250 {dimension_numbers = #tpu.dot_dimension_numbers<[1], [0], [0], [1], [0, 0, 1, 1], [], []>} : vector<28x32xf32>, vector<32x96xf32>, vector<28x96xf32> -> vector<28x96xf32>
    %cst_251 = arith.constant 0.000000e+00 : f32
    %487 = vector.broadcast %cst_251 : f32 to vector<28x32xf32>
    %488 = vector.extract_strided_slice %486 {offsets = [0, 0], sizes = [28, 16], strides = [1, 1]} : vector<28x96xf32> to vector<28x16xf32>
    %cst_252 = arith.constant 2.500000e-01 : f32
    %489 = vector.broadcast %cst_252 : f32 to vector<28x16xf32>
    %490 = arith.mulf %488, %489 : vector<28x16xf32>
    %491 = vector.extract_strided_slice %486 {offsets = [0, 32], sizes = [28, 16], strides = [1, 1]} : vector<28x96xf32> to vector<28x16xf32>
    %492 = vector.extract_strided_slice %486 {offsets = [0, 64], sizes = [28, 16], strides = [1, 1]} : vector<28x96xf32> to vector<28x16xf32>
    %cst_253 = arith.constant dense<0.000000e+00> : vector<28x28xf32>
    %493 = tpu.matmul %490, %491, %cst_253 {dimension_numbers = #tpu.dot_dimension_numbers<[1], [1], [0], [0], [0, 0, 1, 0], [], []>} : vector<28x16xf32>, vector<28x16xf32>, vector<28x28xf32> -> vector<28x28xf32>
    %494 = arith.addf %493, %0 : vector<28x28xf32>
    %cst_254 = arith.constant dense<0xFF800000> : vector<28xf32>
    %495 = vector.multi_reduction <maximumf>, %494, %cst_254 [1] : vector<28x28xf32> to vector<28xf32>
    %496 = vector.shape_cast %495 : vector<28xf32> to vector<28x1xf32>
    %497 = vector.broadcast %496 : vector<28x1xf32> to vector<28x28xf32>
    %498 = arith.subf %494, %497 : vector<28x28xf32>
    %499 = math.exp %498 : vector<28x28xf32>
    %cst_255 = arith.constant dense<0.000000e+00> : vector<28xf32>
    %500 = vector.multi_reduction <add>, %499, %cst_255 [1] : vector<28x28xf32> to vector<28xf32>
    %501 = vector.shape_cast %500 : vector<28xf32> to vector<28x1xf32>
    %502 = tpu.reciprocal %501 {approx = true} : vector<28x1xf32> -> vector<28x1xf32>
    %503 = vector.broadcast %502 : vector<28x1xf32> to vector<28x28xf32>
    %504 = arith.mulf %499, %503 : vector<28x28xf32>
    %c1_256 = arith.constant 1 : index
    %c1_257 = arith.constant 1 : index
    %c0_258 = arith.constant 0 : index
    %c0_259 = arith.constant 0 : index
    %c0_260 = arith.constant 0 : index
    %505 = vector.load %arg36[%c1_256, %c1_257, %c0_258, %c0_259, %c0_260] : memref<2x2x2x28x28xf32, #tpu.memory_space<vmem>>, vector<1x1x1x28x28xf32>
    %506 = vector.shape_cast %505 : vector<1x1x1x28x28xf32> to vector<28x28xf32>
    %507 = vector.shape_cast %504 : vector<28x28xf32> to vector<1x1x1x28x28xf32>
    tpu.vector_store %arg36[%c1_256, %c1_257, %c0_258, %c0_259, %c0_260], %507 {strides = array<i32>} : memref<2x2x2x28x28xf32, #tpu.memory_space<vmem>>, vector<1x1x1x28x28xf32>,
    %cst_261 = arith.constant dense<0.000000e+00> : vector<28x16xf32>
    %508 = tpu.matmul %504, %492, %cst_261 {dimension_numbers = #tpu.dot_dimension_numbers<[1], [0], [0], [1], [0, 0, 1, 1], [], []>} : vector<28x28xf32>, vector<28x16xf32>, vector<28x16xf32> -> vector<28x16xf32>
    %cst_262 = arith.constant dense<0.000000e+00> : vector<28x32xf32>
    %509 = tpu.matmul %508, %41, %cst_262 {dimension_numbers = #tpu.dot_dimension_numbers<[1], [0], [0], [1], [0, 0, 1, 1], [], []>} : vector<28x16xf32>, vector<16x32xf32>, vector<28x32xf32> -> vector<28x32xf32>
    %510 = arith.addf %487, %509 : vector<28x32xf32>
    %511 = vector.extract_strided_slice %486 {offsets = [0, 16], sizes = [28, 16], strides = [1, 1]} : vector<28x96xf32> to vector<28x16xf32>
    %cst_263 = arith.constant 2.500000e-01 : f32
    %512 = vector.broadcast %cst_263 : f32 to vector<28x16xf32>
    %513 = arith.mulf %511, %512 : vector<28x16xf32>
    %514 = vector.extract_strided_slice %486 {offsets = [0, 48], sizes = [28, 16], strides = [1, 1]} : vector<28x96xf32> to vector<28x16xf32>
    %515 = vector.extract_strided_slice %486 {offsets = [0, 80], sizes = [28, 16], strides = [1, 1]} : vector<28x96xf32> to vector<28x16xf32>
    %cst_264 = arith.constant dense<0.000000e+00> : vector<28x28xf32>
    %516 = tpu.matmul %513, %514, %cst_264 {dimension_numbers = #tpu.dot_dimension_numbers<[1], [1], [0], [0], [0, 0, 1, 0], [], []>} : vector<28x16xf32>, vector<28x16xf32>, vector<28x28xf32> -> vector<28x28xf32>
    %517 = arith.addf %516, %0 : vector<28x28xf32>
    %cst_265 = arith.constant dense<0xFF800000> : vector<28xf32>
    %518 = vector.multi_reduction <maximumf>, %517, %cst_265 [1] : vector<28x28xf32> to vector<28xf32>
    %519 = vector.shape_cast %518 : vector<28xf32> to vector<28x1xf32>
    %520 = vector.broadcast %519 : vector<28x1xf32> to vector<28x28xf32>
    %521 = arith.subf %517, %520 : vector<28x28xf32>
    %522 = math.exp %521 : vector<28x28xf32>
    %cst_266 = arith.constant dense<0.000000e+00> : vector<28xf32>
    %523 = vector.multi_reduction <add>, %522, %cst_266 [1] : vector<28x28xf32> to vector<28xf32>
    %524 = vector.shape_cast %523 : vector<28xf32> to vector<28x1xf32>
    %525 = tpu.reciprocal %524 {approx = true} : vector<28x1xf32> -> vector<28x1xf32>
    %526 = vector.broadcast %525 : vector<28x1xf32> to vector<28x28xf32>
    %527 = arith.mulf %522, %526 : vector<28x28xf32>
    %c1_267 = arith.constant 1 : index
    %c1_268 = arith.constant 1 : index
    %c1_269 = arith.constant 1 : index
    %c0_270 = arith.constant 0 : index
    %c0_271 = arith.constant 0 : index
    %528 = vector.load %arg36[%c1_267, %c1_268, %c1_269, %c0_270, %c0_271] : memref<2x2x2x28x28xf32, #tpu.memory_space<vmem>>, vector<1x1x1x28x28xf32>
    %529 = vector.shape_cast %528 : vector<1x1x1x28x28xf32> to vector<28x28xf32>
    %530 = vector.shape_cast %527 : vector<28x28xf32> to vector<1x1x1x28x28xf32>
    tpu.vector_store %arg36[%c1_267, %c1_268, %c1_269, %c0_270, %c0_271], %530 {strides = array<i32>} : memref<2x2x2x28x28xf32, #tpu.memory_space<vmem>>, vector<1x1x1x28x28xf32>,
    %cst_272 = arith.constant dense<0.000000e+00> : vector<28x16xf32>
    %531 = tpu.matmul %527, %515, %cst_272 {dimension_numbers = #tpu.dot_dimension_numbers<[1], [0], [0], [1], [0, 0, 1, 1], [], []>} : vector<28x28xf32>, vector<28x16xf32>, vector<28x16xf32> -> vector<28x16xf32>
    %cst_273 = arith.constant dense<0.000000e+00> : vector<28x32xf32>
    %532 = tpu.matmul %531, %43, %cst_273 {dimension_numbers = #tpu.dot_dimension_numbers<[1], [0], [0], [1], [0, 0, 1, 1], [], []>} : vector<28x16xf32>, vector<16x32xf32>, vector<28x32xf32> -> vector<28x32xf32>
    %533 = arith.addf %510, %532 : vector<28x32xf32>
    %534 = arith.addf %533, %383 : vector<28x32xf32>
    %cst_274 = arith.constant dense<0.000000e+00> : vector<28xf32>
    %535 = vector.multi_reduction <add>, %534, %cst_274 [1] : vector<28x32xf32> to vector<28xf32>
    %536 = vector.shape_cast %535 : vector<28xf32> to vector<28x1xf32>
    %cst_275 = arith.constant 3.200000e+01 : f32
    %537 = vector.broadcast %cst_275 : f32 to vector<28x1xf32>
    %538 = arith.divf %536, %537 : vector<28x1xf32>
    %539 = vector.broadcast %538 : vector<28x1xf32> to vector<28x32xf32>
    %540 = arith.subf %534, %539 : vector<28x32xf32>
    %541 = arith.mulf %540, %540 : vector<28x32xf32>
    %cst_276 = arith.constant dense<0.000000e+00> : vector<28xf32>
    %542 = vector.multi_reduction <add>, %541, %cst_276 [1] : vector<28x32xf32> to vector<28xf32>
    %543 = vector.shape_cast %542 : vector<28xf32> to vector<28x1xf32>
    %cst_277 = arith.constant 3.200000e+01 : f32
    %544 = vector.broadcast %cst_277 : f32 to vector<28x1xf32>
    %545 = arith.divf %543, %544 : vector<28x1xf32>
    %546 = vector.broadcast %538 : vector<28x1xf32> to vector<28x32xf32>
    %547 = arith.subf %534, %546 : vector<28x32xf32>
    %cst_278 = arith.constant 9.99999997E-7 : f32
    %548 = vector.broadcast %cst_278 : f32 to vector<28x1xf32>
    %549 = arith.addf %545, %548 : vector<28x1xf32>
    %550 = math.rsqrt %549 : vector<28x1xf32>
    %551 = vector.broadcast %550 : vector<28x1xf32> to vector<28x32xf32>
    %552 = arith.mulf %547, %551 : vector<28x32xf32>
    %553 = vector.broadcast %44 : vector<1x32xf32> to vector<28x32xf32>
    %554 = arith.mulf %552, %553 : vector<28x32xf32>
    %555 = vector.broadcast %45 : vector<1x32xf32> to vector<28x32xf32>
    %556 = arith.addf %554, %555 : vector<28x32xf32>
    %cst_279 = arith.constant dense<0.000000e+00> : vector<28x64xf32>
    %557 = tpu.matmul %556, %46, %cst_279 {dimension_numbers = #tpu.dot_dimension_numbers<[1], [0], [0], [1], [0, 0, 1, 1], [], []>} : vector<28x32xf32>, vector<32x64xf32>, vector<28x64xf32> -> vector<28x64xf32>
    %558 = vector.broadcast %47 : vector<1x64xf32> to vector<28x64xf32>
    %559 = arith.addf %557, %558 : vector<28x64xf32>
    %cst_280 = arith.constant 0.000000e+00 : f32
    %560 = vector.broadcast %cst_280 : f32 to vector<28x64xf32>
    %561 = arith.maximumf %559, %560 : vector<28x64xf32>
    %cst_281 = arith.constant dense<0.000000e+00> : vector<28x32xf32>
    %562 = tpu.matmul %561, %48, %cst_281 {dimension_numbers = #tpu.dot_dimension_numbers<[1], [0], [0], [1], [0, 0, 1, 1], [], []>} : vector<28x64xf32>, vector<64x32xf32>, vector<28x32xf32> -> vector<28x32xf32>
    %563 = vector.broadcast %49 : vector<1x32xf32> to vector<28x32xf32>
    %564 = arith.addf %562, %563 : vector<28x32xf32>
    %565 = arith.addf %564, %556 : vector<28x32xf32>
    %cst_282 = arith.constant dense<0.000000e+00> : vector<28xf32>
    %566 = vector.multi_reduction <add>, %565, %cst_282 [1] : vector<28x32xf32> to vector<28xf32>
    %567 = vector.shape_cast %566 : vector<28xf32> to vector<28x1xf32>
    %cst_283 = arith.constant 3.200000e+01 : f32
    %568 = vector.broadcast %cst_283 : f32 to vector<28x1xf32>
    %569 = arith.divf %567, %568 : vector<28x1xf32>
    %570 = vector.broadcast %569 : vector<28x1xf32> to vector<28x32xf32>
    %571 = arith.subf %565, %570 : vector<28x32xf32>
    %572 = arith.mulf %571, %571 : vector<28x32xf32>
    %cst_284 = arith.constant dense<0.000000e+00> : vector<28xf32>
    %573 = vector.multi_reduction <add>, %572, %cst_284 [1] : vector<28x32xf32> to vector<28xf32>
    %574 = vector.shape_cast %573 : vector<28xf32> to vector<28x1xf32>
    %cst_285 = arith.constant 3.200000e+01 : f32
    %575 = vector.broadcast %cst_285 : f32 to vector<28x1xf32>
    %576 = arith.divf %574, %575 : vector<28x1xf32>
    %577 = vector.broadcast %569 : vector<28x1xf32> to vector<28x32xf32>
    %578 = arith.subf %565, %577 : vector<28x32xf32>
    %cst_286 = arith.constant 9.99999997E-7 : f32
    %579 = vector.broadcast %cst_286 : f32 to vector<28x1xf32>
    %580 = arith.addf %576, %579 : vector<28x1xf32>
    %581 = math.rsqrt %580 : vector<28x1xf32>
    %582 = vector.broadcast %581 : vector<28x1xf32> to vector<28x32xf32>
    %583 = arith.mulf %578, %582 : vector<28x32xf32>
    %584 = vector.broadcast %50 : vector<1x32xf32> to vector<28x32xf32>
    %585 = arith.mulf %583, %584 : vector<28x32xf32>
    %586 = vector.broadcast %51 : vector<1x32xf32> to vector<28x32xf32>
    %587 = arith.addf %585, %586 : vector<28x32xf32>
    %cst_287 = arith.constant dense<0.000000e+00> : vector<48x32xf32>
    %588 = tpu.matmul %1, %485, %cst_287 {dimension_numbers = #tpu.dot_dimension_numbers<[1], [0], [0], [1], [0, 0, 1, 1], [], []>} : vector<48x28xf32>, vector<28x32xf32>, vector<48x32xf32> -> vector<48x32xf32>
    %c0_288 = arith.constant 0 : index
    %c0_289 = arith.constant 0 : index
    %c0_290 = arith.constant 0 : index
    %589 = vector.load %arg35[%c0_288, %c0_289, %c0_290] : memref<2x48x32xf32, #tpu.memory_space<vmem>>, vector<1x48x32xf32>
    %590 = vector.shape_cast %589 : vector<1x48x32xf32> to vector<48x32xf32>
    %591 = vector.shape_cast %588 : vector<48x32xf32> to vector<1x48x32xf32>
    tpu.vector_store %arg35[%c0_288, %c0_289, %c0_290], %591 {strides = array<i32>} : memref<2x48x32xf32, #tpu.memory_space<vmem>>, vector<1x48x32xf32>,
    %cst_291 = arith.constant dense<0.000000e+00> : vector<48x32xf32>
    %592 = tpu.matmul %1, %587, %cst_291 {dimension_numbers = #tpu.dot_dimension_numbers<[1], [0], [0], [1], [0, 0, 1, 1], [], []>} : vector<48x28xf32>, vector<28x32xf32>, vector<48x32xf32> -> vector<48x32xf32>
    %c1_292 = arith.constant 1 : index
    %c0_293 = arith.constant 0 : index
    %c0_294 = arith.constant 0 : index
    %593 = vector.load %arg35[%c1_292, %c0_293, %c0_294] : memref<2x48x32xf32, #tpu.memory_space<vmem>>, vector<1x48x32xf32>
    %594 = vector.shape_cast %593 : vector<1x48x32xf32> to vector<48x32xf32>
    %595 = vector.shape_cast %592 : vector<48x32xf32> to vector<1x48x32xf32>
    tpu.vector_store %arg35[%c1_292, %c0_293, %c0_294], %595 {strides = array<i32>} : memref<2x48x32xf32, #tpu.memory_space<vmem>>, vector<1x48x32xf32>,
    return
  }
}

</mosaic_0001>

<llo_original>
// kernel: tpu_custom_call.1
$region0: #{tpu_custom_call.1}
  #allocation0 [shape = 'u32[]', space=smem, size = 0x4, offset = 0x4, fixed_abs, tag = 'smem constant byte address 0x4 - core index']
  #allocation1 [shape = 'u32[144,128]{1,0:T(1,128)}', space=vmem, size = 0x12000, scoped, tag = 'internal scratch']
  %s0 = inlined_call_operand.smem [shape: u32[37], index: -1, kind: input, shape index: {}]
  %s1 = sld [smem:[%s0]]
  %s2 = scalar_lea.smem %s0, 1
  %s3 = sld [smem:[%s2]]
  %s4 = scalar_lea.smem %s0, 2
  %s5 = sld [smem:[%s4]]
  %s6 = scalar_lea.smem %s0, 3
  %s7 = sld [smem:[%s6]]
  %s8 = scalar_lea.smem %s0, 4
  %s9 = sld [smem:[%s8]]
  %s10 = scalar_lea.smem %s0, 5
  %s11 = sld [smem:[%s10]]
  %s12 = scalar_lea.smem %s0, 6
  %s13 = sld [smem:[%s12]]
  %s14 = scalar_lea.smem %s0, 7
  %s15 = sld [smem:[%s14]]
  %s16 = scalar_lea.smem %s0, 8
  %s17 = sld [smem:[%s16]]
  %s18 = scalar_lea.smem %s0, 9
  %s19 = sld [smem:[%s18]]
  %s20 = scalar_lea.smem %s0, 10
  %s21 = sld [smem:[%s20]]
  %s22 = scalar_lea.smem %s0, 11
  %s23 = sld [smem:[%s22]]
  %s24 = scalar_lea.smem %s0, 12
  %s25 = sld [smem:[%s24]]
  %s26 = scalar_lea.smem %s0, 13
  %s27 = sld [smem:[%s26]]
  %s28 = scalar_lea.smem %s0, 14
  %s29 = sld [smem:[%s28]]
  %s30 = scalar_lea.smem %s0, 15
  %s31 = sld [smem:[%s30]]
  %s32 = scalar_lea.smem %s0, 16
  %s33 = sld [smem:[%s32]]
  %s34 = scalar_lea.smem %s0, 17
  %s35 = sld [smem:[%s34]]
  %s36 = scalar_lea.smem %s0, 18
  %s37 = sld [smem:[%s36]]
  %s38 = scalar_lea.smem %s0, 19
  %s39 = sld [smem:[%s38]]
  %s40 = scalar_lea.smem %s0, 20
  %s41 = sld [smem:[%s40]]
  %s42 = scalar_lea.smem %s0, 21
  %s43 = sld [smem:[%s42]]
  %s44 = scalar_lea.smem %s0, 22
  %s45 = sld [smem:[%s44]]
  %s46 = scalar_lea.smem %s0, 23
  %s47 = sld [smem:[%s46]]
  %s48 = scalar_lea.smem %s0, 24
  %s49 = sld [smem:[%s48]]
  %s50 = scalar_lea.smem %s0, 25
  %s51 = sld [smem:[%s50]]
  %s52 = scalar_lea.smem %s0, 26
  %s53 = sld [smem:[%s52]]
  %s54 = scalar_lea.smem %s0, 27
  %s55 = sld [smem:[%s54]]
  %s56 = scalar_lea.smem %s0, 28
  %s57 = sld [smem:[%s56]]
  %s58 = scalar_lea.smem %s0, 29
  %s59 = sld [smem:[%s58]]
  %s60 = scalar_lea.smem %s0, 30
  %s61 = sld [smem:[%s60]]
  %s62 = scalar_lea.smem %s0, 31
  %s63 = sld [smem:[%s62]]
  %s64 = scalar_lea.smem %s0, 32
  %s65 = sld [smem:[%s64]]
  %s66 = scalar_lea.smem %s0, 33
  %s67 = sld [smem:[%s66]]
  %s68 = scalar_lea.smem %s0, 34
  %s69 = sld [smem:[%s68]]
  %s70 = scalar_lea.smem %s0, 35
  %s71 = sld [smem:[%s70]]
  %s72 = scalar_lea.smem %s0, 36
  %s73 = sld [smem:[%s72]]
  %74 = xla_tuple %s71, %s73
  %s75 = sld [smem:[#allocation0]]
  $region170: #{tpu_custom_call.1} parent=0
    _
  %s77 = ssub.s32 1, %s75
  %s78 = scalar_select 0, %s77, %s75
  $region1: #{tpu_custom_call.1} parent=0
    #allocation2 [shape = 'u8[8192]{0}', space=vmem, size = 0x2000, scoped, tag = 'input window, operand 5, single buffered']
    #allocation3 [shape = 's32[1]{0}', space=sflag, size = 0x4, scoped, tag = 'scoped memory for tpu_custom_call.1']
    #allocation4 [shape = 'u8[8192]{0}', space=vmem, size = 0x2000, scoped, tag = 'input window, operand 6, single buffered']
    #allocation5 [shape = 's32[1]{0}', space=sflag, size = 0x4, scoped, tag = 'scoped memory for tpu_custom_call.1']
    #allocation6 [shape = 'u8[4096]{0}', space=vmem, size = 0x1000, scoped, tag = 'input window, operand 8, single buffered']
    %79 = vsyncpa [#allocation3], 0
    %80 = vsyncpa [#allocation5], 0
    // Predicated region
    $region2: #{tpu_custom_call.1} parent=1 // pred_check
      _
    $region3: #{tpu_custom_call.1} parent=1 // pred_check_branch
      %82 = sbr.rel (0) target = $region5
    $region4: #{tpu_custom_call.1} parent=1 // pred_region
      _
    $region5: #{tpu_custom_call.1} parent=1 // pred_fallthru
      _
    // Predicated region
    $region6: #{tpu_custom_call.1} parent=1 // pred_check
      _
    $region7: #{tpu_custom_call.1} parent=1 // pred_check_branch
      %84 = sbr.rel (0) target = $region9
    $region8: #{tpu_custom_call.1} parent=1 // pred_region
      _
    $region9: #{tpu_custom_call.1} parent=1 // pred_fallthru
      _
    // Predicated region
    $region10: #{tpu_custom_call.1} parent=1 // pred_check
      _
    $region11: #{tpu_custom_call.1} parent=1 // pred_check_branch
      %86 = sbr.rel (0) target = $region13
    $region12: #{tpu_custom_call.1} parent=1 // pred_region
      _
    $region13: #{tpu_custom_call.1} parent=1 // pred_fallthru
      _
    // Predicated region
    $region14: #{tpu_custom_call.1} parent=1 // pred_check
      _
    $region15: #{tpu_custom_call.1} parent=1 // pred_check_branch
      %88 = sbr.rel (0) target = $region17
    $region16: #{tpu_custom_call.1} parent=1 // pred_region
      _
    $region17: #{tpu_custom_call.1} parent=1 // pred_fallthru
      _
    // Predicated region
    $region18: #{tpu_custom_call.1} parent=1 // pred_check
      _
    $region19: #{tpu_custom_call.1} parent=1 // pred_check_branch
      %90 = sbr.rel (0) target = $region21
    $region20: #{tpu_custom_call.1} parent=1 // pred_region
      _
    $region21: #{tpu_custom_call.1} parent=1 // pred_fallthru
      _
    // Predicated region
    $region22: #{tpu_custom_call.1} parent=1 // pred_check
      _
    $region23: #{tpu_custom_call.1} parent=1 // pred_check_branch
      %92 = sbr.rel (0) target = $region25
    $region24: #{tpu_custom_call.1} parent=1 // pred_region
      %s94 = ssub.s32 256, 256
      %95 = vsyncadd [#allocation3], %s94
      %s96 = sshll.u32 [#allocation2], 4
      %s97 = int_to_ptr.vmem [resolvable:$true] %s96
      %102 = dma.hbm_to_vmem [thread:$0]  %s11, 256, %s97, [#allocation3], 128, 128, 8
    $region25: #{tpu_custom_call.1} parent=1 // pred_fallthru
      _
    // Predicated region
    $region26: #{tpu_custom_call.1} parent=1 // pred_check
      _
    $region27: #{tpu_custom_call.1} parent=1 // pred_check_branch
      %104 = sbr.rel (0) target = $region29
    $region28: #{tpu_custom_call.1} parent=1 // pred_region
      %s106 = ssub.s32 256, 256
      %107 = vsyncadd [#allocation5], %s106
      %s108 = sshll.u32 [#allocation4], 4
      %s109 = int_to_ptr.vmem [resolvable:$true] %s108
      %114 = dma.hbm_to_vmem [thread:$0]  %s13, 256, %s109, [#allocation5], 128, 128, 8
    $region29: #{tpu_custom_call.1} parent=1 // pred_fallthru
      _
    // Predicated region
    $region30: #{tpu_custom_call.1} parent=1 // pred_check
      _
    $region31: #{tpu_custom_call.1} parent=1 // pred_check_branch
      %116 = sbr.rel (0) target = $region33
    $region32: #{tpu_custom_call.1} parent=1 // pred_region
      _
    $region33: #{tpu_custom_call.1} parent=1 // pred_fallthru
      _
    // Predicated region
    $region34: #{tpu_custom_call.1} parent=1 // pred_check
      _
    $region35: #{tpu_custom_call.1} parent=1 // pred_check_branch
      %118 = sbr.rel (0) target = $region37
    $region36: #{tpu_custom_call.1} parent=1 // pred_region
      %s120 = ssub.s32 128, 128
      %121 = vsyncadd [#allocation5], %s120
      %s122 = sshll.u32 [#allocation6], 4
      %s123 = int_to_ptr.vmem [resolvable:$true] %s122
      %128 = dma.hbm_to_vmem [thread:$0]  %s17, 128, %s123, [#allocation5], 64, 64, 4
    $region37: #{tpu_custom_call.1} parent=1 // pred_fallthru
      _
    // Predicated region
    $region38: #{tpu_custom_call.1} parent=1 // pred_check
      _
    $region39: #{tpu_custom_call.1} parent=1 // pred_check_branch
      %130 = sbr.rel (0) target = $region41
    $region40: #{tpu_custom_call.1} parent=1 // pred_region
      _
    $region41: #{tpu_custom_call.1} parent=1 // pred_fallthru
      _
    // Predicated region
    $region42: #{tpu_custom_call.1} parent=1 // pred_check
      _
    $region43: #{tpu_custom_call.1} parent=1 // pred_check_branch
      %132 = sbr.rel (0) target = $region45
    $region44: #{tpu_custom_call.1} parent=1 // pred_region
      _
    $region45: #{tpu_custom_call.1} parent=1 // pred_fallthru
      _
    // Predicated region
    $region46: #{tpu_custom_call.1} parent=1 // pred_check
      _
    $region47: #{tpu_custom_call.1} parent=1 // pred_check_branch
      %134 = sbr.rel (0) target = $region49
    $region48: #{tpu_custom_call.1} parent=1 // pred_region
      _
    $region49: #{tpu_custom_call.1} parent=1 // pred_fallthru
      _
    // Predicated region
    $region50: #{tpu_custom_call.1} parent=1 // pred_check
      _
    $region51: #{tpu_custom_call.1} parent=1 // pred_check_branch
      %136 = sbr.rel (0) target = $region53
    $region52: #{tpu_custom_call.1} parent=1 // pred_region
      _
    $region53: #{tpu_custom_call.1} parent=1 // pred_fallthru
      _
    // Predicated region
    $region54: #{tpu_custom_call.1} parent=1 // pred_check
      _
    $region55: #{tpu_custom_call.1} parent=1 // pred_check_branch
      %138 = sbr.rel (0) target = $region57
    $region56: #{tpu_custom_call.1} parent=1 // pred_region
      _
    $region57: #{tpu_custom_call.1} parent=1 // pred_fallthru
      _
    // Predicated region
    $region58: #{tpu_custom_call.1} parent=1 // pred_check
      _
    $region59: #{tpu_custom_call.1} parent=1 // pred_check_branch
      %140 = sbr.rel (0) target = $region61
    $region60: #{tpu_custom_call.1} parent=1 // pred_region
      _
    $region61: #{tpu_custom_call.1} parent=1 // pred_fallthru
      _
    // Predicated region
    $region62: #{tpu_custom_call.1} parent=1 // pred_check
      _
    $region63: #{tpu_custom_call.1} parent=1 // pred_check_branch
      %142 = sbr.rel (0) target = $region65
    $region64: #{tpu_custom_call.1} parent=1 // pred_region
      _
    $region65: #{tpu_custom_call.1} parent=1 // pred_fallthru
      _
    // Predicated region
    $region66: #{tpu_custom_call.1} parent=1 // pred_check
      _
    $region67: #{tpu_custom_call.1} parent=1 // pred_check_branch
      %144 = sbr.rel (0) target = $region69
    $region68: #{tpu_custom_call.1} parent=1 // pred_region
      _
    $region69: #{tpu_custom_call.1} parent=1 // pred_fallthru
      _
    // Predicated region
    $region70: #{tpu_custom_call.1} parent=1 // pred_check
      _
    $region71: #{tpu_custom_call.1} parent=1 // pred_check_branch
      %146 = sbr.rel (0) target = $region73
    $region72: #{tpu_custom_call.1} parent=1 // pred_region
      _
    $region73: #{tpu_custom_call.1} parent=1 // pred_fallthru
      _
    // Predicated region
    $region74: #{tpu_custom_call.1} parent=1 // pred_check
      _
    $region75: #{tpu_custom_call.1} parent=1 // pred_check_branch
      %148 = sbr.rel (0) target = $region77
    $region76: #{tpu_custom_call.1} parent=1 // pred_region
      _
    $region77: #{tpu_custom_call.1} parent=1 // pred_fallthru
      _
    // Predicated region
    $region78: #{tpu_custom_call.1} parent=1 // pred_check
      _
    $region79: #{tpu_custom_call.1} parent=1 // pred_check_branch
      %150 = sbr.rel (0) target = $region81
    $region80: #{tpu_custom_call.1} parent=1 // pred_region
      _
    $region81: #{tpu_custom_call.1} parent=1 // pred_fallthru
      _
    // Predicated region
    $region82: #{tpu_custom_call.1} parent=1 // pred_check
      _
    $region83: #{tpu_custom_call.1} parent=1 // pred_check_branch
      %152 = sbr.rel (0) target = $region85
    $region84: #{tpu_custom_call.1} parent=1 // pred_region
      _
    $region85: #{tpu_custom_call.1} parent=1 // pred_fallthru
      _
    // Predicated region
    $region86: #{tpu_custom_call.1} parent=1 // pred_check
      _
    $region87: #{tpu_custom_call.1} parent=1 // pred_check_branch
      %154 = sbr.rel (0) target = $region89
    $region88: #{tpu_custom_call.1} parent=1 // pred_region
      _
    $region89: #{tpu_custom_call.1} parent=1 // pred_fallthru
      _
    // Predicated region
    $region90: #{tpu_custom_call.1} parent=1 // pred_check
      _
    $region91: #{tpu_custom_call.1} parent=1 // pred_check_branch
      %156 = sbr.rel (0) target = $region93
    $region92: #{tpu_custom_call.1} parent=1 // pred_region
      _
    $region93: #{tpu_custom_call.1} parent=1 // pred_fallthru
      _
    // Predicated region
    $region94: #{tpu_custom_call.1} parent=1 // pred_check
      _
    $region95: #{tpu_custom_call.1} parent=1 // pred_check_branch
      %158 = sbr.rel (0) target = $region97
    $region96: #{tpu_custom_call.1} parent=1 // pred_region
      _
    $region97: #{tpu_custom_call.1} parent=1 // pred_fallthru
      _
    // Predicated region
    $region98: #{tpu_custom_call.1} parent=1 // pred_check
      _
    $region99: #{tpu_custom_call.1} parent=1 // pred_check_branch
      %160 = sbr.rel (0) target = $region101
    $region100: #{tpu_custom_call.1} parent=1 // pred_region
      _
    $region101: #{tpu_custom_call.1} parent=1 // pred_fallthru
      _
    // Predicated region
    $region102: #{tpu_custom_call.1} parent=1 // pred_check
      _
    $region103: #{tpu_custom_call.1} parent=1 // pred_check_branch
      %162 = sbr.rel (0) target = $region105
    $region104: #{tpu_custom_call.1} parent=1 // pred_region
      _
    $region105: #{tpu_custom_call.1} parent=1 // pred_fallthru
      _
    // Predicated region
    $region106: #{tpu_custom_call.1} parent=1 // pred_check
      _
    $region107: #{tpu_custom_call.1} parent=1 // pred_check_branch
      %164 = sbr.rel (0) target = $region109
    $region108: #{tpu_custom_call.1} parent=1 // pred_region
      _
    $region109: #{tpu_custom_call.1} parent=1 // pred_fallthru
      _
    // Predicated region
    $region110: #{tpu_custom_call.1} parent=1 // pred_check
      _
    $region111: #{tpu_custom_call.1} parent=1 // pred_check_branch
      %166 = sbr.rel (0) target = $region113
    $region112: #{tpu_custom_call.1} parent=1 // pred_region
      _
    $region113: #{tpu_custom_call.1} parent=1 // pred_fallthru
      _
    // Predicated region
    $region114: #{tpu_custom_call.1} parent=1 // pred_check
      _
    $region115: #{tpu_custom_call.1} parent=1 // pred_check_branch
      %168 = sbr.rel (0) target = $region117
    $region116: #{tpu_custom_call.1} parent=1 // pred_region
      _
    $region117: #{tpu_custom_call.1} parent=1 // pred_fallthru
      _
    // Predicated region
    $region118: #{tpu_custom_call.1} parent=1 // pred_check
      _
    $region119: #{tpu_custom_call.1} parent=1 // pred_check_branch
      %170 = sbr.rel (0) target = $region121
    $region120: #{tpu_custom_call.1} parent=1 // pred_region
      _
    $region121: #{tpu_custom_call.1} parent=1 // pred_fallthru
      _
    // Predicated region
    $region122: #{tpu_custom_call.1} parent=1 // pred_check
      _
    $region123: #{tpu_custom_call.1} parent=1 // pred_check_branch
      %172 = sbr.rel (0) target = $region125
    $region124: #{tpu_custom_call.1} parent=1 // pred_region
      _
    $region125: #{tpu_custom_call.1} parent=1 // pred_fallthru
      _
    // Predicated region
    $region126: #{tpu_custom_call.1} parent=1 // pred_check
      _
    $region127: #{tpu_custom_call.1} parent=1 // pred_check_branch
      %174 = sbr.rel (0) target = $region129
    $region128: #{tpu_custom_call.1} parent=1 // pred_region
      _
    $region129: #{tpu_custom_call.1} parent=1 // pred_fallthru
      _
    // Predicated region
    $region130: #{tpu_custom_call.1} parent=1 // pred_check
      _
    $region131: #{tpu_custom_call.1} parent=1 // pred_check_branch
      %176 = sbr.rel (0) target = $region133
    $region132: #{tpu_custom_call.1} parent=1 // pred_region
      _
    $region133: #{tpu_custom_call.1} parent=1 // pred_fallthru
      _
    // Predicated region
    $region134: #{tpu_custom_call.1} parent=1 // pred_check
      _
    $region135: #{tpu_custom_call.1} parent=1 // pred_check_branch
      %178 = sbr.rel (0) target = $region137
    $region136: #{tpu_custom_call.1} parent=1 // pred_region
      _
    $region137: #{tpu_custom_call.1} parent=1 // pred_fallthru
      _
    // Predicated region
    $region138: #{tpu_custom_call.1} parent=1 // pred_check
      _
    $region139: #{tpu_custom_call.1} parent=1 // pred_check_branch
      %180 = sbr.rel (0) target = $region141
    $region140: #{tpu_custom_call.1} parent=1 // pred_region
      _
    $region141: #{tpu_custom_call.1} parent=1 // pred_fallthru
      _
    // Predicated region
    $region142: #{tpu_custom_call.1} parent=1 // pred_check
      _
    $region143: #{tpu_custom_call.1} parent=1 // pred_check_branch
      %182 = sbr.rel (0) target = $region145
    $region144: #{tpu_custom_call.1} parent=1 // pred_region
      %183 = dma.done [#allocation3], 256
    $region145: #{tpu_custom_call.1} parent=1 // pred_fallthru
      _
    // Predicated region
    $region146: #{tpu_custom_call.1} parent=1 // pred_check
      _
    $region147: #{tpu_custom_call.1} parent=1 // pred_check_branch
      %185 = sbr.rel (0) target = $region149
    $region148: #{tpu_custom_call.1} parent=1 // pred_region
      %186 = dma.done [#allocation5], 256
    $region149: #{tpu_custom_call.1} parent=1 // pred_fallthru
      _
    // Predicated region
    $region150: #{tpu_custom_call.1} parent=1 // pred_check
      _
    $region151: #{tpu_custom_call.1} parent=1 // pred_check_branch
      %188 = sbr.rel (0) target = $region153
    $region152: #{tpu_custom_call.1} parent=1 // pred_region
      %189 = dma.done [#allocation5], 128
    $region153: #{tpu_custom_call.1} parent=1 // pred_fallthru
      _
    %v190 = vld [vmem:[%s3] sm:$0xff]
    %v191 = vld [vmem:[%s3 + $0x8] sm:$0xff]
    %v192 = vld [vmem:[%s3 + $0x10] sm:$0xff]
    %v193 = vld [vmem:[%s3 + $0x18] sm:$0xf]
    %v194 = vld [vmem:[%s5] sm:$0xff]
    %v195 = vld [vmem:[%s5 + $0x8] sm:$0xff]
    %v196 = vld [vmem:[%s5 + $0x10] sm:$0xff]
    %v197 = vld [vmem:[%s5 + $0x18] sm:$0xff]
    %v198 = vld [vmem:[%s5 + $0x20] sm:$0xff]
    %v199 = vld [vmem:[%s5 + $0x28] sm:$0xff]
    %v200 = vld [vmem:[%s7] sm:$0xff]
    %v201 = vld [vmem:[%s7 + $0x8] sm:$0xff]
    %v202 = vld [vmem:[%s7 + $0x10] sm:$0xff]
    %v203 = vld [vmem:[%s7 + $0x18] sm:$0xff]
    %v204 = vld [vmem:[%s9] sm:$0x1]
    %v205 = vld [vmem:[%s23] sm:$0xff]
    %v206 = vld [vmem:[%s25] sm:$0x1]
    %v207 = vld [vmem:[%s27] sm:$0x1]
    %v208 = vld [vmem:[%s29] sm:$0x1]
    %v209 = vld [vmem:[#allocation2] sm:$0xff]
    %s210 = scalar_lea.vmem [#allocation2], 8
    %v211 = vld [vmem:[%s210] sm:$0xff]
    %v212 = vld [vmem:[#allocation4] sm:$0xff]
    %s213 = scalar_lea.vmem [#allocation4], 8
    %v214 = vld [vmem:[%s213] sm:$0xff]
    %v215 = vld [vmem:[%s15] sm:$0x1]
    %v216 = vld [vmem:[#allocation6] sm:$0xf]
    %s217 = scalar_lea.vmem [#allocation6], 4
    %v218 = vld [vmem:[%s217] sm:$0xf]
    %v219 = vld [vmem:[%s19] sm:$0xff]
    %s220 = scalar_lea.vmem %s19, 8
    %v221 = vld [vmem:[%s220] sm:$0xff]
    %v222 = vld [vmem:[%s21] sm:$0x1]
    %v223 = vld [vmem:[%s31] sm:$0xff]
    %v224 = vld [vmem:[%s31 + $0x8] sm:$0xff]
    %v225 = vld [vmem:[%s31 + $0x10] sm:$0xff]
    %v226 = vld [vmem:[%s31 + $0x18] sm:$0xff]
    %v227 = vld [vmem:[%s33] sm:$0xff]
    %v228 = vld [vmem:[%s33 + $0x8] sm:$0xff]
    %s229 = scalar_lea.vmem %s33, 16
    %v230 = vld [vmem:[%s229] sm:$0xff]
    %v231 = vld [vmem:[%s229 + $0x8] sm:$0xff]
    %v232 = vld [vmem:[%s35] sm:$0x1]
    %v233 = vld [vmem:[%s37] sm:$0x1]
    %v234 = vld [vmem:[%s39] sm:$0xff]
    %v235 = vld [vmem:[%s39 + $0x8] sm:$0xff]
    %v236 = vld [vmem:[%s39 + $0x10] sm:$0xff]
    %v237 = vld [vmem:[%s39 + $0x18] sm:$0xff]
    %v238 = vld [vmem:[%s41] sm:$0x1]
    %v239 = vld [vmem:[%s43] sm:$0xff]
    %v240 = vld [vmem:[%s43 + $0x8] sm:$0xff]
    %v241 = vld [vmem:[%s43 + $0x10] sm:$0xff]
    %v242 = vld [vmem:[%s43 + $0x18] sm:$0xff]
    %v243 = vld [vmem:[%s43 + $0x20] sm:$0xff]
    %v244 = vld [vmem:[%s43 + $0x28] sm:$0xff]
    %v245 = vld [vmem:[%s43 + $0x30] sm:$0xff]
    %v246 = vld [vmem:[%s43 + $0x38] sm:$0xff]
    %v247 = vld [vmem:[%s45] sm:$0x1]
    %v248 = vld [vmem:[%s47] sm:$0x1]
    %v249 = vld [vmem:[%s49] sm:$0x1]
    %v250 = vld [vmem:[%s51] sm:$0xff]
    %v251 = vld [vmem:[%s51 + $0x8] sm:$0xff]
    %v252 = vld [vmem:[%s51 + $0x10] sm:$0xff]
    %v253 = vld [vmem:[%s51 + $0x18] sm:$0xff]
    %v254 = vld [vmem:[%s53] sm:$0xff]
    %v255 = vld [vmem:[%s53 + $0x8] sm:$0xff]
    %s256 = scalar_lea.vmem %s53, 16
    %v257 = vld [vmem:[%s256] sm:$0xff]
    %v258 = vld [vmem:[%s256 + $0x8] sm:$0xff]
    %v259 = vld [vmem:[%s55] sm:$0x1]
    %v260 = vld [vmem:[%s57] sm:$0x1]
    %v261 = vld [vmem:[%s59] sm:$0xff]
    %v262 = vld [vmem:[%s59 + $0x8] sm:$0xff]
    %v263 = vld [vmem:[%s59 + $0x10] sm:$0xff]
    %v264 = vld [vmem:[%s59 + $0x18] sm:$0xff]
    %v265 = vld [vmem:[%s61] sm:$0x1]
    %v266 = vld [vmem:[%s63] sm:$0xff]
    %v267 = vld [vmem:[%s63 + $0x8] sm:$0xff]
    %v268 = vld [vmem:[%s63 + $0x10] sm:$0xff]
    %v269 = vld [vmem:[%s63 + $0x18] sm:$0xff]
    %v270 = vld [vmem:[%s63 + $0x20] sm:$0xff]
    %v271 = vld [vmem:[%s63 + $0x28] sm:$0xff]
    %v272 = vld [vmem:[%s63 + $0x30] sm:$0xff]
    %v273 = vld [vmem:[%s63 + $0x38] sm:$0xff]
    %v274 = vld [vmem:[%s65] sm:$0x1]
    %v275 = vld [vmem:[%s67] sm:$0x1]
    %v276 = vld [vmem:[%s69] sm:$0x1]
    %v277 = vld [vmem:[%s1] sm:$0xff]
    %v278 = vld [vmem:[%s1 + $0x8] sm:$0xff]
    %v280 = vlaneseq
    %v281 = vshrl.u32 %v280, 7
    %v282 = vsub.s32 0, %v281
    %v283 = vrot.slane %v204, %v282
    %vm285 = vcmask 261120
    %v287 = vsel %vm285, %v277, 0
    %v290 = vsel %vm285, %v278, 0
    %292 = vmatprep.subr.mxu0 0.0
    %293 = vmatpush1.msra.mxu0 %v200
    %294 = vmatprep.subr.mxu0 0.0
    %295 = vmatpush1.msra.mxu0 %v201
    %296 = vmatprep.subr.mxu0 0.0
    %297 = vmatpush1.msra.mxu0 %v202
    %298 = vmatprep.subr.mxu0 0.0
    %299 = vmatpush1.msra.mxu0 %v203
    %300 = vmatprep.subr.mxu0 0.0
    %301 = vmatpush1.msra.mxu0 0.0
    %302 = vmatprep.subr.mxu0 0.0
    %303 = vmatpush1.msra.mxu0 0.0
    %304 = vmatprep.subr.mxu0 0.0
    %305 = vmatpush1.msra.mxu0 0.0
    %306 = vmatprep.subr.mxu0 0.0
    %307 = vmatpush1.msra.mxu0 0.0
    %308 = vmatprep.subr.mxu0 0.0
    %309 = vmatpush1.msra.mxu0 0.0
    %310 = vmatprep.subr.mxu0 0.0
    %311 = vmatpush1.msra.mxu0 0.0
    %312 = vmatprep.subr.mxu0 0.0
    %313 = vmatpush1.msra.mxu0 0.0
    %314 = vmatprep.subr.mxu0 0.0
    %315 = vmatpush1.msra.mxu0 0.0
    %316 = vmatprep.subr.mxu0 0.0
    %317 = vmatpush1.msra.mxu0 0.0
    %318 = vmatprep.subr.mxu0 0.0
    %319 = vmatpush1.msra.mxu0 0.0
    %320 = vmatprep.subr.mxu0 0.0
    %321 = vmatpush1.msra.mxu0 0.0
    %322 = vmatprep.subr.mxu0 0.0
    %323 = vmatpush1.msra.mxu0 0.0
    %324 = vmatprep.subr.mxu0 0.0
    %325 = vmatpush1.msra.mxu0 0.0
    %326 = vmatprep.subr.mxu0 0.0
    %327 = vmatpush1.msra.mxu0 0.0
    %328 = vmatprep.subr.mxu0 0.0
    %329 = vmatpush1.msra.mxu0 0.0
    %330 = vmatprep.subr.mxu0 0.0
    %331 = vmatpush1.msra.mxu0 0.0
    %332 = vmatprep.subr.mxu0 0.0
    %333 = vmatpush1.msra.mxu0 0.0
    %334 = vmatprep.subr.mxu0 0.0
    %335 = vmatpush1.msra.mxu0 0.0
    %336 = vmatprep.subr.mxu0 0.0
    %337 = vmatpush1.msra.mxu0 0.0
    %338 = vmatprep.subr.mxu0 0.0
    %339 = vmatpush1.msra.mxu0 0.0
    %340 = vmatprep.subr.mxu0 0.0
    %341 = vmatpush1.msra.mxu0 0.0
    %342 = vmatprep.subr.mxu0 0.0
    %343 = vmatpush1.msra.mxu0 0.0
    %344 = vmatprep.subr.mxu0 0.0
    %345 = vmatpush1.msra.mxu0 0.0
    %346 = vmatprep.subr.mxu0 0.0
    %347 = vmatpush1.msra.mxu0 0.0
    %348 = vmatprep.subr.mxu0 0.0
    %349 = vmatpush1.msra.mxu0 0.0
    %350 = vmatprep.subr.mxu0 0.0
    %351 = vmatpush1.msra.mxu0 0.0
    %352 = vmatprep.subr.mxu0 0.0
    %353 = vmatpush1.msra.mxu0 0.0
    %354 = vmatprep.subr.mxu0 0.0
    %355 = vmatpush1.msra.mxu0 0.0
    %356 = vmatprep.mubr.f32.mxu0 0.0
    %357 = vmatmul.mubr.f32.gmra.mrb[0].mxu0 %v287
    %v358 = vpop.f32.mrb[0].mxu0
    %v359 = vadd.f32 %v283, %v358
    %v360 = vpop.f32.mrb[0].mxu0
    %361 = vmatprep.mubr.f32.mxu0 0.0
    %362 = vmatmul.mubr.f32.gmra.mrb[0].mxu0 %v290
    %v363 = vpop.f32.mrb[0].mxu0
    %v364 = vadd.f32 %v283, %v363
    %v365 = vpop.f32.mrb[0].mxu0
    %366 = vdwg.mxu0
    %vm367 = vcmask 130048
    %v369 = vsel %vm367, %v209, 0
    %371 = vmatprep.subr.mxu0 0.0
    %372 = vmatpush1.msra.mxu0 %v359
    %373 = vmatprep.subr.mxu0 0.0
    %374 = vmatpush1.msra.mxu0 %v364
    %375 = vmatprep.subr.mxu0 0.0
    %376 = vmatpush1.msra.mxu0 0.0
    %377 = vmatprep.subr.mxu0 0.0
    %378 = vmatpush1.msra.mxu0 0.0
    %379 = vmatprep.subr.mxu0 0.0
    %380 = vmatpush1.msra.mxu0 0.0
    %381 = vmatprep.subr.mxu0 0.0
    %382 = vmatpush1.msra.mxu0 0.0
    %383 = vmatprep.subr.mxu0 0.0
    %384 = vmatpush1.msra.mxu0 0.0
    %385 = vmatprep.subr.mxu0 0.0
    %386 = vmatpush1.msra.mxu0 0.0
    %387 = vmatprep.subr.mxu0 0.0
    %388 = vmatpush1.msra.mxu0 0.0
    %389 = vmatprep.subr.mxu0 0.0
    %390 = vmatpush1.msra.mxu0 0.0
    %391 = vmatprep.subr.mxu0 0.0
    %392 = vmatpush1.msra.mxu0 0.0
    %393 = vmatprep.subr.mxu0 0.0
    %394 = vmatpush1.msra.mxu0 0.0
    %395 = vmatprep.subr.mxu0 0.0
    %396 = vmatpush1.msra.mxu0 0.0
    %397 = vmatprep.subr.mxu0 0.0
    %398 = vmatpush1.msra.mxu0 0.0
    %399 = vmatprep.subr.mxu0 0.0
    %400 = vmatpush1.msra.mxu0 0.0
    %401 = vmatprep.subr.mxu0 0.0
    %402 = vmatpush1.msra.mxu0 0.0
    %403 = vmatprep.subr.mxu0 0.0
    %404 = vmatpush1.msra.mxu0 0.0
    %405 = vmatprep.subr.mxu0 0.0
    %406 = vmatpush1.msra.mxu0 0.0
    %407 = vmatprep.subr.mxu0 0.0
    %408 = vmatpush1.msra.mxu0 0.0
    %409 = vmatprep.subr.mxu0 0.0
    %410 = vmatpush1.msra.mxu0 0.0
    %411 = vmatprep.subr.mxu0 0.0
    %412 = vmatpush1.msra.mxu0 0.0
    %413 = vmatprep.subr.mxu0 0.0
    %414 = vmatpush1.msra.mxu0 0.0
    %415 = vmatprep.subr.mxu0 0.0
    %416 = vmatpush1.msra.mxu0 0.0
    %417 = vmatprep.subr.mxu0 0.0
    %418 = vmatpush1.msra.mxu0 0.0
    %419 = vmatprep.subr.mxu0 0.0
    %420 = vmatpush1.msra.mxu0 0.0
    %421 = vmatprep.subr.mxu0 0.0
    %422 = vmatpush1.msra.mxu0 0.0
    %423 = vmatprep.subr.mxu0 0.0
    %424 = vmatpush1.msra.mxu0 0.0
    %425 = vmatprep.subr.mxu0 0.0
    %426 = vmatpush1.msra.mxu0 0.0
    %427 = vmatprep.subr.mxu0 0.0
    %428 = vmatpush1.msra.mxu0 0.0
    %429 = vmatprep.subr.mxu0 0.0
    %430 = vmatpush1.msra.mxu0 0.0
    %431 = vmatprep.subr.mxu0 0.0
    %432 = vmatpush1.msra.mxu0 0.0
    %433 = vmatprep.subr.mxu0 0.0
    %434 = vmatpush1.msra.mxu0 0.0
    %435 = vmatprep.mubr.f32.mxu0 0.0
    %436 = vmatmul.mubr.f32.gmra.mrb[0].mxu0 %v369
    %v437 = vpop.f32.mrb[0].mxu0
    %v438 = vadd.f32 0.0, %v437
    %v439 = vpop.f32.mrb[0].mxu0
    %440 = vdwg.mxu0
    %vm441 = vcmask 64512
    %v443 = vsel %vm441, %v438, 0
    %445 = vmatprep.subr.mxu0 0.0
    %446 = vmatpush1.msra.mxu0 %v212
    %447 = vmatprep.subr.mxu0 0.0
    %448 = vmatpush1.msra.mxu0 0.0
    %449 = vmatprep.subr.mxu0 0.0
    %450 = vmatpush1.msra.mxu0 0.0
    %451 = vmatprep.subr.mxu0 0.0
    %452 = vmatpush1.msra.mxu0 0.0
    %453 = vmatprep.subr.mxu0 0.0
    %454 = vmatpush1.msra.mxu0 0.0
    %455 = vmatprep.subr.mxu0 0.0
    %456 = vmatpush1.msra.mxu0 0.0
    %457 = vmatprep.subr.mxu0 0.0
    %458 = vmatpush1.msra.mxu0 0.0
    %459 = vmatprep.subr.mxu0 0.0
    %460 = vmatpush1.msra.mxu0 0.0
    %461 = vmatprep.subr.mxu0 0.0
    %462 = vmatpush1.msra.mxu0 0.0
    %463 = vmatprep.subr.mxu0 0.0
    %464 = vmatpush1.msra.mxu0 0.0
    %465 = vmatprep.subr.mxu0 0.0
    %466 = vmatpush1.msra.mxu0 0.0
    %467 = vmatprep.subr.mxu0 0.0
    %468 = vmatpush1.msra.mxu0 0.0
    %469 = vmatprep.subr.mxu0 0.0
    %470 = vmatpush1.msra.mxu0 0.0
    %471 = vmatprep.subr.mxu0 0.0
    %472 = vmatpush1.msra.mxu0 0.0
    %473 = vmatprep.subr.mxu0 0.0
    %474 = vmatpush1.msra.mxu0 0.0
    %475 = vmatprep.subr.mxu0 0.0
    %476 = vmatpush1.msra.mxu0 0.0
    %477 = vmatprep.subr.mxu0 0.0
    %478 = vmatpush1.msra.mxu0 0.0
    %479 = vmatprep.subr.mxu0 0.0
    %480 = vmatpush1.msra.mxu0 0.0
    %481 = vmatprep.subr.mxu0 0.0
    %482 = vmatpush1.msra.mxu0 0.0
    %483 = vmatprep.subr.mxu0 0.0
    %484 = vmatpush1.msra.mxu0 0.0
    %485 = vmatprep.subr.mxu0 0.0
    %486 = vmatpush1.msra.mxu0 0.0
    %487 = vmatprep.subr.mxu0 0.0
    %488 = vmatpush1.msra.mxu0 0.0
    %489 = vmatprep.subr.mxu0 0.0
    %490 = vmatpush1.msra.mxu0 0.0
    %491 = vmatprep.subr.mxu0 0.0
    %492 = vmatpush1.msra.mxu0 0.0
    %493 = vmatprep.subr.mxu0 0.0
    %494 = vmatpush1.msra.mxu0 0.0
    %495 = vmatprep.subr.mxu0 0.0
    %496 = vmatpush1.msra.mxu0 0.0
    %497 = vmatprep.subr.mxu0 0.0
    %498 = vmatpush1.msra.mxu0 0.0
    %499 = vmatprep.subr.mxu0 0.0
    %500 = vmatpush1.msra.mxu0 0.0
    %501 = vmatprep.subr.mxu0 0.0
    %502 = vmatpush1.msra.mxu0 0.0
    %503 = vmatprep.subr.mxu0 0.0
    %504 = vmatpush1.msra.mxu0 0.0
    %505 = vmatprep.subr.mxu0 0.0
    %506 = vmatpush1.msra.mxu0 0.0
    %507 = vmatprep.subr.mxu0 0.0
    %508 = vmatpush1.msra.mxu0 0.0
    %509 = vmatprep.mubr.f32.mxu0 0.0
    %510 = vmatmul.mubr.f32.gmra.mrb[0].mxu0 %v443
    %v511 = vpop.f32.mrb[0].mxu0
    %v512 = vadd.f32 0.0, %v511
    %v513 = vpop.f32.mrb[0].mxu0
    %514 = vdwg.mxu0
    %v516 = vlaneseq
    %v517 = vshrl.u32 %v516, 7
    %v518 = vsub.s32 0, %v517
    %v519 = vrot.slane %v215, %v518
    %v521 = vadd.f32 %v519, %v512
    %v523 = vsel %vm367, %v211, 0
    %525 = vmatprep.subr.mxu0 0.0
    %526 = vmatpush1.msra.mxu0 %v359
    %527 = vmatprep.subr.mxu0 0.0
    %528 = vmatpush1.msra.mxu0 %v364
    %529 = vmatprep.subr.mxu0 0.0
    %530 = vmatpush1.msra.mxu0 0.0
    %531 = vmatprep.subr.mxu0 0.0
    %532 = vmatpush1.msra.mxu0 0.0
    %533 = vmatprep.subr.mxu0 0.0
    %534 = vmatpush1.msra.mxu0 0.0
    %535 = vmatprep.subr.mxu0 0.0
    %536 = vmatpush1.msra.mxu0 0.0
    %537 = vmatprep.subr.mxu0 0.0
    %538 = vmatpush1.msra.mxu0 0.0
    %539 = vmatprep.subr.mxu0 0.0
    %540 = vmatpush1.msra.mxu0 0.0
    %541 = vmatprep.subr.mxu0 0.0
    %542 = vmatpush1.msra.mxu0 0.0
    %543 = vmatprep.subr.mxu0 0.0
    %544 = vmatpush1.msra.mxu0 0.0
    %545 = vmatprep.subr.mxu0 0.0
    %546 = vmatpush1.msra.mxu0 0.0
    %547 = vmatprep.subr.mxu0 0.0
    %548 = vmatpush1.msra.mxu0 0.0
    %549 = vmatprep.subr.mxu0 0.0
    %550 = vmatpush1.msra.mxu0 0.0
    %551 = vmatprep.subr.mxu0 0.0
    %552 = vmatpush1.msra.mxu0 0.0
    %553 = vmatprep.subr.mxu0 0.0
    %554 = vmatpush1.msra.mxu0 0.0
    %555 = vmatprep.subr.mxu0 0.0
    %556 = vmatpush1.msra.mxu0 0.0
    %557 = vmatprep.subr.mxu0 0.0
    %558 = vmatpush1.msra.mxu0 0.0
    %559 = vmatprep.subr.mxu0 0.0
    %560 = vmatpush1.msra.mxu0 0.0
    %561 = vmatprep.subr.mxu0 0.0
    %562 = vmatpush1.msra.mxu0 0.0
    %563 = vmatprep.subr.mxu0 0.0
    %564 = vmatpush1.msra.mxu0 0.0
    %565 = vmatprep.subr.mxu0 0.0
    %566 = vmatpush1.msra.mxu0 0.0
    %567 = vmatprep.subr.mxu0 0.0
    %568 = vmatpush1.msra.mxu0 0.0
    %569 = vmatprep.subr.mxu0 0.0
    %570 = vmatpush1.msra.mxu0 0.0
    %571 = vmatprep.subr.mxu0 0.0
    %572 = vmatpush1.msra.mxu0 0.0
    %573 = vmatprep.subr.mxu0 0.0
    %574 = vmatpush1.msra.mxu0 0.0
    %575 = vmatprep.subr.mxu0 0.0
    %576 = vmatpush1.msra.mxu0 0.0
    %577 = vmatprep.subr.mxu0 0.0
    %578 = vmatpush1.msra.mxu0 0.0
    %579 = vmatprep.subr.mxu0 0.0
    %580 = vmatpush1.msra.mxu0 0.0
    %581 = vmatprep.subr.mxu0 0.0
    %582 = vmatpush1.msra.mxu0 0.0
    %583 = vmatprep.subr.mxu0 0.0
    %584 = vmatpush1.msra.mxu0 0.0
    %585 = vmatprep.subr.mxu0 0.0
    %586 = vmatpush1.msra.mxu0 0.0
    %587 = vmatprep.subr.mxu0 0.0
    %588 = vmatpush1.msra.mxu0 0.0
    %589 = vmatprep.mubr.f32.mxu0 0.0
    %590 = vmatmul.mubr.f32.gmra.mrb[0].mxu0 %v523
    %v591 = vpop.f32.mrb[0].mxu0
    %v592 = vadd.f32 0.0, %v591
    %v593 = vpop.f32.mrb[0].mxu0
    %594 = vdwg.mxu0
    %v596 = vsel %vm441, %v592, 0
    %598 = vmatprep.subr.mxu0 0.0
    %599 = vmatpush1.msra.mxu0 %v214
    %600 = vmatprep.subr.mxu0 0.0
    %601 = vmatpush1.msra.mxu0 0.0
    %602 = vmatprep.subr.mxu0 0.0
    %603 = vmatpush1.msra.mxu0 0.0
    %604 = vmatprep.subr.mxu0 0.0
    %605 = vmatpush1.msra.mxu0 0.0
    %606 = vmatprep.subr.mxu0 0.0
    %607 = vmatpush1.msra.mxu0 0.0
    %608 = vmatprep.subr.mxu0 0.0
    %609 = vmatpush1.msra.mxu0 0.0
    %610 = vmatprep.subr.mxu0 0.0
    %611 = vmatpush1.msra.mxu0 0.0
    %612 = vmatprep.subr.mxu0 0.0
    %613 = vmatpush1.msra.mxu0 0.0
    %614 = vmatprep.subr.mxu0 0.0
    %615 = vmatpush1.msra.mxu0 0.0
    %616 = vmatprep.subr.mxu0 0.0
    %617 = vmatpush1.msra.mxu0 0.0
    %618 = vmatprep.subr.mxu0 0.0
    %619 = vmatpush1.msra.mxu0 0.0
    %620 = vmatprep.subr.mxu0 0.0
    %621 = vmatpush1.msra.mxu0 0.0
    %622 = vmatprep.subr.mxu0 0.0
    %623 = vmatpush1.msra.mxu0 0.0
    %624 = vmatprep.subr.mxu0 0.0
    %625 = vmatpush1.msra.mxu0 0.0
    %626 = vmatprep.subr.mxu0 0.0
    %627 = vmatpush1.msra.mxu0 0.0
    %628 = vmatprep.subr.mxu0 0.0
    %629 = vmatpush1.msra.mxu0 0.0
    %630 = vmatprep.subr.mxu0 0.0
    %631 = vmatpush1.msra.mxu0 0.0
    %632 = vmatprep.subr.mxu0 0.0
    %633 = vmatpush1.msra.mxu0 0.0
    %634 = vmatprep.subr.mxu0 0.0
    %635 = vmatpush1.msra.mxu0 0.0
    %636 = vmatprep.subr.mxu0 0.0
    %637 = vmatpush1.msra.mxu0 0.0
    %638 = vmatprep.subr.mxu0 0.0
    %639 = vmatpush1.msra.mxu0 0.0
    %640 = vmatprep.subr.mxu0 0.0
    %641 = vmatpush1.msra.mxu0 0.0
    %642 = vmatprep.subr.mxu0 0.0
    %643 = vmatpush1.msra.mxu0 0.0
    %644 = vmatprep.subr.mxu0 0.0
    %645 = vmatpush1.msra.mxu0 0.0
    %646 = vmatprep.subr.mxu0 0.0
    %647 = vmatpush1.msra.mxu0 0.0
    %648 = vmatprep.subr.mxu0 0.0
    %649 = vmatpush1.msra.mxu0 0.0
    %650 = vmatprep.subr.mxu0 0.0
    %651 = vmatpush1.msra.mxu0 0.0
    %652 = vmatprep.subr.mxu0 0.0
    %653 = vmatpush1.msra.mxu0 0.0
    %654 = vmatprep.subr.mxu0 0.0
    %655 = vmatpush1.msra.mxu0 0.0
    %656 = vmatprep.subr.mxu0 0.0
    %657 = vmatpush1.msra.mxu0 0.0
    %658 = vmatprep.subr.mxu0 0.0
    %659 = vmatpush1.msra.mxu0 0.0
    %660 = vmatprep.subr.mxu0 0.0
    %661 = vmatpush1.msra.mxu0 0.0
    %662 = vmatprep.mubr.f32.mxu0 0.0
    %663 = vmatmul.mubr.f32.gmra.mrb[0].mxu0 %v596
    %v664 = vpop.f32.mrb[0].mxu0
    %v665 = vadd.f32 0.0, %v664
    %v666 = vpop.f32.mrb[0].mxu0
    %667 = vdwg.mxu0
    %v668 = vadd.f32 %v521, %v665
    %vm669 = vcmp.gt.f32.partialorder %v668, 0.0
    %v670 = vmin.f32 %v668, 0.0
    %v671 = vmul.f32 %v670, 1.442695
    %v672 = vpow.pop %v671
    %v673 = vsub.f32 %v672, 1.0
    %v674 = vsel %vm669, %v668, %v673
    %v676 = vlaneseq
    %v677 = vshrl.u32 %v676, 7
    %v678 = vsub.s32 0, %v677
    %v679 = vrot.slane %v206, %v678
    %v682 = vsel %vm441, %v674, 0
    %684 = vmatprep.subr.mxu0 0.0
    %685 = vmatpush1.msra.mxu0 %v205
    %686 = vmatprep.subr.mxu0 0.0
    %687 = vmatpush1.msra.mxu0 0.0
    %688 = vmatprep.subr.mxu0 0.0
    %689 = vmatpush1.msra.mxu0 0.0
    %690 = vmatprep.subr.mxu0 0.0
    %691 = vmatpush1.msra.mxu0 0.0
    %692 = vmatprep.subr.mxu0 0.0
    %693 = vmatpush1.msra.mxu0 0.0
    %694 = vmatprep.subr.mxu0 0.0
    %695 = vmatpush1.msra.mxu0 0.0
    %696 = vmatprep.subr.mxu0 0.0
    %697 = vmatpush1.msra.mxu0 0.0
    %698 = vmatprep.subr.mxu0 0.0
    %699 = vmatpush1.msra.mxu0 0.0
    %700 = vmatprep.subr.mxu0 0.0
    %701 = vmatpush1.msra.mxu0 0.0
    %702 = vmatprep.subr.mxu0 0.0
    %703 = vmatpush1.msra.mxu0 0.0
    %704 = vmatprep.subr.mxu0 0.0
    %705 = vmatpush1.msra.mxu0 0.0
    %706 = vmatprep.subr.mxu0 0.0
    %707 = vmatpush1.msra.mxu0 0.0
    %708 = vmatprep.subr.mxu0 0.0
    %709 = vmatpush1.msra.mxu0 0.0
    %710 = vmatprep.subr.mxu0 0.0
    %711 = vmatpush1.msra.mxu0 0.0
    %712 = vmatprep.subr.mxu0 0.0
    %713 = vmatpush1.msra.mxu0 0.0
    %714 = vmatprep.subr.mxu0 0.0
    %715 = vmatpush1.msra.mxu0 0.0
    %716 = vmatprep.subr.mxu0 0.0
    %717 = vmatpush1.msra.mxu0 0.0
    %718 = vmatprep.subr.mxu0 0.0
    %719 = vmatpush1.msra.mxu0 0.0
    %720 = vmatprep.subr.mxu0 0.0
    %721 = vmatpush1.msra.mxu0 0.0
    %722 = vmatprep.subr.mxu0 0.0
    %723 = vmatpush1.msra.mxu0 0.0
    %724 = vmatprep.subr.mxu0 0.0
    %725 = vmatpush1.msra.mxu0 0.0
    %726 = vmatprep.subr.mxu0 0.0
    %727 = vmatpush1.msra.mxu0 0.0
    %728 = vmatprep.subr.mxu0 0.0
    %729 = vmatpush1.msra.mxu0 0.0
    %730 = vmatprep.subr.mxu0 0.0
    %731 = vmatpush1.msra.mxu0 0.0
    %732 = vmatprep.subr.mxu0 0.0
    %733 = vmatpush1.msra.mxu0 0.0
    %734 = vmatprep.subr.mxu0 0.0
    %735 = vmatpush1.msra.mxu0 0.0
    %736 = vmatprep.subr.mxu0 0.0
    %737 = vmatpush1.msra.mxu0 0.0
    %738 = vmatprep.subr.mxu0 0.0
    %739 = vmatpush1.msra.mxu0 0.0
    %740 = vmatprep.subr.mxu0 0.0
    %741 = vmatpush1.msra.mxu0 0.0
    %742 = vmatprep.subr.mxu0 0.0
    %743 = vmatpush1.msra.mxu0 0.0
    %744 = vmatprep.subr.mxu0 0.0
    %745 = vmatpush1.msra.mxu0 0.0
    %746 = vmatprep.subr.mxu0 0.0
    %747 = vmatpush1.msra.mxu0 0.0
    %748 = vmatprep.mubr.f32.mxu0 0.0
    %749 = vmatmul.mubr.f32.gmra.mrb[0].mxu0 %v682
    %v750 = vpop.f32.mrb[0].mxu0
    %v751 = vadd.f32 %v679, %v750
    %v752 = vpop.f32.mrb[0].mxu0
    %753 = vdwg.mxu0
    %v755 = vsel %vm441, %v216, 0
    %757 = vmatprep.subr.mxu0 0.0
    %758 = vmatpush1.msra.mxu0 %v674
    %759 = vmatprep.subr.mxu0 0.0
    %760 = vmatpush1.msra.mxu0 0.0
    %761 = vmatprep.subr.mxu0 0.0
    %762 = vmatpush1.msra.mxu0 0.0
    %763 = vmatprep.subr.mxu0 0.0
    %764 = vmatpush1.msra.mxu0 0.0
    %765 = vmatprep.subr.mxu0 0.0
    %766 = vmatpush1.msra.mxu0 0.0
    %767 = vmatprep.subr.mxu0 0.0
    %768 = vmatpush1.msra.mxu0 0.0
    %769 = vmatprep.subr.mxu0 0.0
    %770 = vmatpush1.msra.mxu0 0.0
    %771 = vmatprep.subr.mxu0 0.0
    %772 = vmatpush1.msra.mxu0 0.0
    %773 = vmatprep.subr.mxu0 0.0
    %774 = vmatpush1.msra.mxu0 0.0
    %775 = vmatprep.subr.mxu0 0.0
    %776 = vmatpush1.msra.mxu0 0.0
    %777 = vmatprep.subr.mxu0 0.0
    %778 = vmatpush1.msra.mxu0 0.0
    %779 = vmatprep.subr.mxu0 0.0
    %780 = vmatpush1.msra.mxu0 0.0
    %781 = vmatprep.subr.mxu0 0.0
    %782 = vmatpush1.msra.mxu0 0.0
    %783 = vmatprep.subr.mxu0 0.0
    %784 = vmatpush1.msra.mxu0 0.0
    %785 = vmatprep.subr.mxu0 0.0
    %786 = vmatpush1.msra.mxu0 0.0
    %787 = vmatprep.subr.mxu0 0.0
    %788 = vmatpush1.msra.mxu0 0.0
    %789 = vmatprep.subr.mxu0 0.0
    %790 = vmatpush1.msra.mxu0 0.0
    %791 = vmatprep.subr.mxu0 0.0
    %792 = vmatpush1.msra.mxu0 0.0
    %793 = vmatprep.subr.mxu0 0.0
    %794 = vmatpush1.msra.mxu0 0.0
    %795 = vmatprep.subr.mxu0 0.0
    %796 = vmatpush1.msra.mxu0 0.0
    %797 = vmatprep.subr.mxu0 0.0
    %798 = vmatpush1.msra.mxu0 0.0
    %799 = vmatprep.subr.mxu0 0.0
    %800 = vmatpush1.msra.mxu0 0.0
    %801 = vmatprep.subr.mxu0 0.0
    %802 = vmatpush1.msra.mxu0 0.0
    %803 = vmatprep.subr.mxu0 0.0
    %804 = vmatpush1.msra.mxu0 0.0
    %805 = vmatprep.subr.mxu0 0.0
    %806 = vmatpush1.msra.mxu0 0.0
    %807 = vmatprep.subr.mxu0 0.0
    %808 = vmatpush1.msra.mxu0 0.0
    %809 = vmatprep.subr.mxu0 0.0
    %810 = vmatpush1.msra.mxu0 0.0
    %811 = vmatprep.subr.mxu0 0.0
    %812 = vmatpush1.msra.mxu0 0.0
    %813 = vmatprep.subr.mxu0 0.0
    %814 = vmatpush1.msra.mxu0 0.0
    %815 = vmatprep.subr.mxu0 0.0
    %816 = vmatpush1.msra.mxu0 0.0
    %817 = vmatprep.subr.mxu0 0.0
    %818 = vmatpush1.msra.mxu0 0.0
    %819 = vmatprep.subr.mxu0 0.0
    %820 = vmatpush1.msra.mxu0 0.0
    %821 = vmatprep.mubr.f32.mxu0 0.0
    %822 = vmatmul.mubr.f32.gmra.mrb[0].mxu0 %v755
    %v823 = vpop.f32.mrb[0].mxu0
    %v824 = vadd.f32 0.0, %v823
    %v825 = vpop.f32.mrb[0].mxu0
    %826 = vdwg.mxu0
    %v828 = vsel %vm441, %v824, 0
    %830 = vmatprep.subr.mxu0 0.0
    %831 = vmatpush1.msra.mxu0 %v219
    %832 = vmatprep.subr.mxu0 0.0
    %833 = vmatpush1.msra.mxu0 0.0
    %834 = vmatprep.subr.mxu0 0.0
    %835 = vmatpush1.msra.mxu0 0.0
    %836 = vmatprep.subr.mxu0 0.0
    %837 = vmatpush1.msra.mxu0 0.0
    %838 = vmatprep.subr.mxu0 0.0
    %839 = vmatpush1.msra.mxu0 0.0
    %840 = vmatprep.subr.mxu0 0.0
    %841 = vmatpush1.msra.mxu0 0.0
    %842 = vmatprep.subr.mxu0 0.0
    %843 = vmatpush1.msra.mxu0 0.0
    %844 = vmatprep.subr.mxu0 0.0
    %845 = vmatpush1.msra.mxu0 0.0
    %846 = vmatprep.subr.mxu0 0.0
    %847 = vmatpush1.msra.mxu0 0.0
    %848 = vmatprep.subr.mxu0 0.0
    %849 = vmatpush1.msra.mxu0 0.0
    %850 = vmatprep.subr.mxu0 0.0
    %851 = vmatpush1.msra.mxu0 0.0
    %852 = vmatprep.subr.mxu0 0.0
    %853 = vmatpush1.msra.mxu0 0.0
    %854 = vmatprep.subr.mxu0 0.0
    %855 = vmatpush1.msra.mxu0 0.0
    %856 = vmatprep.subr.mxu0 0.0
    %857 = vmatpush1.msra.mxu0 0.0
    %858 = vmatprep.subr.mxu0 0.0
    %859 = vmatpush1.msra.mxu0 0.0
    %860 = vmatprep.subr.mxu0 0.0
    %861 = vmatpush1.msra.mxu0 0.0
    %862 = vmatprep.subr.mxu0 0.0
    %863 = vmatpush1.msra.mxu0 0.0
    %864 = vmatprep.subr.mxu0 0.0
    %865 = vmatpush1.msra.mxu0 0.0
    %866 = vmatprep.subr.mxu0 0.0
    %867 = vmatpush1.msra.mxu0 0.0
    %868 = vmatprep.subr.mxu0 0.0
    %869 = vmatpush1.msra.mxu0 0.0
    %870 = vmatprep.subr.mxu0 0.0
    %871 = vmatpush1.msra.mxu0 0.0
    %872 = vmatprep.subr.mxu0 0.0
    %873 = vmatpush1.msra.mxu0 0.0
    %874 = vmatprep.subr.mxu0 0.0
    %875 = vmatpush1.msra.mxu0 0.0
    %876 = vmatprep.subr.mxu0 0.0
    %877 = vmatpush1.msra.mxu0 0.0
    %878 = vmatprep.subr.mxu0 0.0
    %879 = vmatpush1.msra.mxu0 0.0
    %880 = vmatprep.subr.mxu0 0.0
    %881 = vmatpush1.msra.mxu0 0.0
    %882 = vmatprep.subr.mxu0 0.0
    %883 = vmatpush1.msra.mxu0 0.0
    %884 = vmatprep.subr.mxu0 0.0
    %885 = vmatpush1.msra.mxu0 0.0
    %886 = vmatprep.subr.mxu0 0.0
    %887 = vmatpush1.msra.mxu0 0.0
    %888 = vmatprep.subr.mxu0 0.0
    %889 = vmatpush1.msra.mxu0 0.0
    %890 = vmatprep.subr.mxu0 0.0
    %891 = vmatpush1.msra.mxu0 0.0
    %892 = vmatprep.subr.mxu0 0.0
    %893 = vmatpush1.msra.mxu0 0.0
    %894 = vmatprep.mubr.f32.mxu0 0.0
    %895 = vmatmul.mubr.f32.gmra.mrb[0].mxu0 %v828
    %v896 = vpop.f32.mrb[0].mxu0
    %v897 = vadd.f32 0.0, %v896
    %v898 = vpop.f32.mrb[0].mxu0
    %899 = vdwg.mxu0
    %v901 = vlaneseq
    %v902 = vshrl.u32 %v901, 7
    %v903 = vsub.s32 0, %v902
    %v904 = vrot.slane %v222, %v903
    %v906 = vadd.f32 %v904, %v897
    %v908 = vsel %vm441, %v218, 0
    %910 = vmatprep.subr.mxu0 0.0
    %911 = vmatpush1.msra.mxu0 %v674
    %912 = vmatprep.subr.mxu0 0.0
    %913 = vmatpush1.msra.mxu0 0.0
    %914 = vmatprep.subr.mxu0 0.0
    %915 = vmatpush1.msra.mxu0 0.0
    %916 = vmatprep.subr.mxu0 0.0
    %917 = vmatpush1.msra.mxu0 0.0
    %918 = vmatprep.subr.mxu0 0.0
    %919 = vmatpush1.msra.mxu0 0.0
    %920 = vmatprep.subr.mxu0 0.0
    %921 = vmatpush1.msra.mxu0 0.0
    %922 = vmatprep.subr.mxu0 0.0
    %923 = vmatpush1.msra.mxu0 0.0
    %924 = vmatprep.subr.mxu0 0.0
    %925 = vmatpush1.msra.mxu0 0.0
    %926 = vmatprep.subr.mxu0 0.0
    %927 = vmatpush1.msra.mxu0 0.0
    %928 = vmatprep.subr.mxu0 0.0
    %929 = vmatpush1.msra.mxu0 0.0
    %930 = vmatprep.subr.mxu0 0.0
    %931 = vmatpush1.msra.mxu0 0.0
    %932 = vmatprep.subr.mxu0 0.0
    %933 = vmatpush1.msra.mxu0 0.0
    %934 = vmatprep.subr.mxu0 0.0
    %935 = vmatpush1.msra.mxu0 0.0
    %936 = vmatprep.subr.mxu0 0.0
    %937 = vmatpush1.msra.mxu0 0.0
    %938 = vmatprep.subr.mxu0 0.0
    %939 = vmatpush1.msra.mxu0 0.0
    %940 = vmatprep.subr.mxu0 0.0
    %941 = vmatpush1.msra.mxu0 0.0
    %942 = vmatprep.subr.mxu0 0.0
    %943 = vmatpush1.msra.mxu0 0.0
    %944 = vmatprep.subr.mxu0 0.0
    %945 = vmatpush1.msra.mxu0 0.0
    %946 = vmatprep.subr.mxu0 0.0
    %947 = vmatpush1.msra.mxu0 0.0
    %948 = vmatprep.subr.mxu0 0.0
    %949 = vmatpush1.msra.mxu0 0.0
    %950 = vmatprep.subr.mxu0 0.0
    %951 = vmatpush1.msra.mxu0 0.0
    %952 = vmatprep.subr.mxu0 0.0
    %953 = vmatpush1.msra.mxu0 0.0
    %954 = vmatprep.subr.mxu0 0.0
    %955 = vmatpush1.msra.mxu0 0.0
    %956 = vmatprep.subr.mxu0 0.0
    %957 = vmatpush1.msra.mxu0 0.0
    %958 = vmatprep.subr.mxu0 0.0
    %959 = vmatpush1.msra.mxu0 0.0
    %960 = vmatprep.subr.mxu0 0.0
    %961 = vmatpush1.msra.mxu0 0.0
    %962 = vmatprep.subr.mxu0 0.0
    %963 = vmatpush1.msra.mxu0 0.0
    %964 = vmatprep.subr.mxu0 0.0
    %965 = vmatpush1.msra.mxu0 0.0
    %966 = vmatprep.subr.mxu0 0.0
    %967 = vmatpush1.msra.mxu0 0.0
    %968 = vmatprep.subr.mxu0 0.0
    %969 = vmatpush1.msra.mxu0 0.0
    %970 = vmatprep.subr.mxu0 0.0
    %971 = vmatpush1.msra.mxu0 0.0
    %972 = vmatprep.subr.mxu0 0.0
    %973 = vmatpush1.msra.mxu0 0.0
    %974 = vmatprep.mubr.f32.mxu0 0.0
    %975 = vmatmul.mubr.f32.gmra.mrb[0].mxu0 %v908
    %v976 = vpop.f32.mrb[0].mxu0
    %v977 = vadd.f32 0.0, %v976
    %v978 = vpop.f32.mrb[0].mxu0
    %979 = vdwg.mxu0
    %v981 = vsel %vm441, %v977, 0
    %983 = vmatprep.subr.mxu0 0.0
    %984 = vmatpush1.msra.mxu0 %v221
    %985 = vmatprep.subr.mxu0 0.0
    %986 = vmatpush1.msra.mxu0 0.0
    %987 = vmatprep.subr.mxu0 0.0
    %988 = vmatpush1.msra.mxu0 0.0
    %989 = vmatprep.subr.mxu0 0.0
    %990 = vmatpush1.msra.mxu0 0.0
    %991 = vmatprep.subr.mxu0 0.0
    %992 = vmatpush1.msra.mxu0 0.0
    %993 = vmatprep.subr.mxu0 0.0
    %994 = vmatpush1.msra.mxu0 0.0
    %995 = vmatprep.subr.mxu0 0.0
    %996 = vmatpush1.msra.mxu0 0.0
    %997 = vmatprep.subr.mxu0 0.0
    %998 = vmatpush1.msra.mxu0 0.0
    %999 = vmatprep.subr.mxu0 0.0
    %1000 = vmatpush1.msra.mxu0 0.0
    %1001 = vmatprep.subr.mxu0 0.0
    %1002 = vmatpush1.msra.mxu0 0.0
    %1003 = vmatprep.subr.mxu0 0.0
    %1004 = vmatpush1.msra.mxu0 0.0
    %1005 = vmatprep.subr.mxu0 0.0
    %1006 = vmatpush1.msra.mxu0 0.0
    %1007 = vmatprep.subr.mxu0 0.0
    %1008 = vmatpush1.msra.mxu0 0.0
    %1009 = vmatprep.subr.mxu0 0.0
    %1010 = vmatpush1.msra.mxu0 0.0
    %1011 = vmatprep.subr.mxu0 0.0
    %1012 = vmatpush1.msra.mxu0 0.0
    %1013 = vmatprep.subr.mxu0 0.0
    %1014 = vmatpush1.msra.mxu0 0.0
    %1015 = vmatprep.subr.mxu0 0.0
    %1016 = vmatpush1.msra.mxu0 0.0
    %1017 = vmatprep.subr.mxu0 0.0
    %1018 = vmatpush1.msra.mxu0 0.0
    %1019 = vmatprep.subr.mxu0 0.0
    %1020 = vmatpush1.msra.mxu0 0.0
    %1021 = vmatprep.subr.mxu0 0.0
    %1022 = vmatpush1.msra.mxu0 0.0
    %1023 = vmatprep.subr.mxu0 0.0
    %1024 = vmatpush1.msra.mxu0 0.0
    %1025 = vmatprep.subr.mxu0 0.0
    %1026 = vmatpush1.msra.mxu0 0.0
    %1027 = vmatprep.subr.mxu0 0.0
    %1028 = vmatpush1.msra.mxu0 0.0
    %1029 = vmatprep.subr.mxu0 0.0
    %1030 = vmatpush1.msra.mxu0 0.0
    %1031 = vmatprep.subr.mxu0 0.0
    %1032 = vmatpush1.msra.mxu0 0.0
    %1033 = vmatprep.subr.mxu0 0.0
    %1034 = vmatpush1.msra.mxu0 0.0
    %1035 = vmatprep.subr.mxu0 0.0
    %1036 = vmatpush1.msra.mxu0 0.0
    %1037 = vmatprep.subr.mxu0 0.0
    %1038 = vmatpush1.msra.mxu0 0.0
    %1039 = vmatprep.subr.mxu0 0.0
    %1040 = vmatpush1.msra.mxu0 0.0
    %1041 = vmatprep.subr.mxu0 0.0
    %1042 = vmatpush1.msra.mxu0 0.0
    %1043 = vmatprep.subr.mxu0 0.0
    %1044 = vmatpush1.msra.mxu0 0.0
    %1045 = vmatprep.subr.mxu0 0.0
    %1046 = vmatpush1.msra.mxu0 0.0
    %1047 = vmatprep.mubr.f32.mxu0 0.0
    %1048 = vmatmul.mubr.f32.gmra.mrb[0].mxu0 %v981
    %v1049 = vpop.f32.mrb[0].mxu0
    %v1050 = vadd.f32 0.0, %v1049
    %v1051 = vpop.f32.mrb[0].mxu0
    %1052 = vdwg.mxu0
    %v1053 = vadd.f32 %v906, %v1050
    %vm1054 = vcmp.gt.f32.partialorder %v1053, 0.0
    %v1055 = vmin.f32 %v1053, 0.0
    %v1056 = vmul.f32 %v1055, 1.442695
    %v1057 = vpow.pop %v1056
    %v1058 = vsub.f32 %v1057, 1.0
    %v1059 = vsel %vm1054, %v1053, %v1058
    %v1061 = vsel %vm441, %v1059, 0
    %1063 = vmatprep.subr.mxu0 0.0
    %1064 = vmatpush1.msra.mxu0 %v205
    %1065 = vmatprep.subr.mxu0 0.0
    %1066 = vmatpush1.msra.mxu0 0.0
    %1067 = vmatprep.subr.mxu0 0.0
    %1068 = vmatpush1.msra.mxu0 0.0
    %1069 = vmatprep.subr.mxu0 0.0
    %1070 = vmatpush1.msra.mxu0 0.0
    %1071 = vmatprep.subr.mxu0 0.0
    %1072 = vmatpush1.msra.mxu0 0.0
    %1073 = vmatprep.subr.mxu0 0.0
    %1074 = vmatpush1.msra.mxu0 0.0
    %1075 = vmatprep.subr.mxu0 0.0
    %1076 = vmatpush1.msra.mxu0 0.0
    %1077 = vmatprep.subr.mxu0 0.0
    %1078 = vmatpush1.msra.mxu0 0.0
    %1079 = vmatprep.subr.mxu0 0.0
    %1080 = vmatpush1.msra.mxu0 0.0
    %1081 = vmatprep.subr.mxu0 0.0
    %1082 = vmatpush1.msra.mxu0 0.0
    %1083 = vmatprep.subr.mxu0 0.0
    %1084 = vmatpush1.msra.mxu0 0.0
    %1085 = vmatprep.subr.mxu0 0.0
    %1086 = vmatpush1.msra.mxu0 0.0
    %1087 = vmatprep.subr.mxu0 0.0
    %1088 = vmatpush1.msra.mxu0 0.0
    %1089 = vmatprep.subr.mxu0 0.0
    %1090 = vmatpush1.msra.mxu0 0.0
    %1091 = vmatprep.subr.mxu0 0.0
    %1092 = vmatpush1.msra.mxu0 0.0
    %1093 = vmatprep.subr.mxu0 0.0
    %1094 = vmatpush1.msra.mxu0 0.0
    %1095 = vmatprep.subr.mxu0 0.0
    %1096 = vmatpush1.msra.mxu0 0.0
    %1097 = vmatprep.subr.mxu0 0.0
    %1098 = vmatpush1.msra.mxu0 0.0
    %1099 = vmatprep.subr.mxu0 0.0
    %1100 = vmatpush1.msra.mxu0 0.0
    %1101 = vmatprep.subr.mxu0 0.0
    %1102 = vmatpush1.msra.mxu0 0.0
    %1103 = vmatprep.subr.mxu0 0.0
    %1104 = vmatpush1.msra.mxu0 0.0
    %1105 = vmatprep.subr.mxu0 0.0
    %1106 = vmatpush1.msra.mxu0 0.0
    %1107 = vmatprep.subr.mxu0 0.0
    %1108 = vmatpush1.msra.mxu0 0.0
    %1109 = vmatprep.subr.mxu0 0.0
    %1110 = vmatpush1.msra.mxu0 0.0
    %1111 = vmatprep.subr.mxu0 0.0
    %1112 = vmatpush1.msra.mxu0 0.0
    %1113 = vmatprep.subr.mxu0 0.0
    %1114 = vmatpush1.msra.mxu0 0.0
    %1115 = vmatprep.subr.mxu0 0.0
    %1116 = vmatpush1.msra.mxu0 0.0
    %1117 = vmatprep.subr.mxu0 0.0
    %1118 = vmatpush1.msra.mxu0 0.0
    %1119 = vmatprep.subr.mxu0 0.0
    %1120 = vmatpush1.msra.mxu0 0.0
    %1121 = vmatprep.subr.mxu0 0.0
    %1122 = vmatpush1.msra.mxu0 0.0
    %1123 = vmatprep.subr.mxu0 0.0
    %1124 = vmatpush1.msra.mxu0 0.0
    %1125 = vmatprep.subr.mxu0 0.0
    %1126 = vmatpush1.msra.mxu0 0.0
    %1127 = vmatprep.mubr.f32.mxu0 0.0
    %1128 = vmatmul.mubr.f32.gmra.mrb[0].mxu0 %v1061
    %v1129 = vpop.f32.mrb[0].mxu0
    %v1130 = vadd.f32 %v679, %v1129
    %v1131 = vpop.f32.mrb[0].mxu0
    %1132 = vdwg.mxu0
    %v1133 = vsel %vm285, %v277, 0.0
    %1134 = vadd.xlane.f32.xlu0 %v1133
    %v1135 = vpop.xlane.xlu0 %1134
    %v1136 = vsel %vm285, %v278, 0.0
    %1137 = vadd.xlane.f32.xlu0 %v1136
    %v1138 = vpop.xlane.xlu0 %1137
    %v1139 = vsel %vm285, %v751, 0.0
    %1140 = vadd.xlane.f32.xlu0 %v1139
    %v1141 = vpop.xlane.xlu0 %1140
    %vm1142 = vcmask 257024
    %v1143 = vsel %vm1142, %v1130, 0.0
    %1144 = vadd.xlane.f32.xlu0 %v1143
    %v1145 = vpop.xlane.xlu0 %1144
    %v1146 = vrcp.pop 32.0
    %v1147 = vmul.f32 %v1135, %v1146
    %v1148 = vmul.f32 %v1138, %v1146
    %v1149 = vmul.f32 %v1141, %v1146
    %v1150 = vmul.f32 %v1145, %v1146
    %v1151 = vsub.f32 %v277, %v1147
    %v1152 = vsub.f32 %v278, %v1148
    %v1153 = vsub.f32 %v751, %v1149
    %v1154 = vsub.f32 %v1130, %v1150
    %v1155 = vmul.f32 %v1151, %v1151
    %v1156 = vmul.f32 %v1152, %v1152
    %v1157 = vmul.f32 %v1153, %v1153
    %v1158 = vmul.f32 %v1154, %v1154
    %v1159 = vsel %vm285, %v1155, 0.0
    %1160 = vadd.xlane.f32.xlu0 %v1159
    %v1161 = vpop.xlane.xlu0 %1160
    %v1162 = vsel %vm285, %v1156, 0.0
    %1163 = vadd.xlane.f32.xlu0 %v1162
    %v1164 = vpop.xlane.xlu0 %1163
    %v1165 = vsel %vm285, %v1157, 0.0
    %1166 = vadd.xlane.f32.xlu0 %v1165
    %v1167 = vpop.xlane.xlu0 %1166
    %v1168 = vsel %vm1142, %v1158, 0.0
    %1169 = vadd.xlane.f32.xlu0 %v1168
    %v1170 = vpop.xlane.xlu0 %1169
    %v1171 = vmul.f32 %v1161, %v1146
    %v1172 = vmul.f32 %v1164, %v1146
    %v1173 = vmul.f32 %v1167, %v1146
    %v1174 = vmul.f32 %v1170, %v1146
    %v1175 = vadd.f32 %v1171, 1e-05
    %v1176 = vadd.f32 %v1172, 1e-05
    %v1177 = vadd.f32 %v1173, 1e-05
    %v1178 = vadd.f32 %v1174, 1e-05
    %v1179 = vrsqrt.pop %v1175
    %v1180 = vrsqrt.pop %v1176
    %v1181 = vrsqrt.pop %v1177
    %v1182 = vrsqrt.pop %v1178
    %v1183 = vmul.f32 %v1151, %v1179
    %v1184 = vmul.f32 %v1152, %v1180
    %v1185 = vmul.f32 %v1153, %v1181
    %v1186 = vmul.f32 %v1154, %v1182
    %v1188 = vlaneseq
    %v1189 = vshrl.u32 %v1188, 7
    %v1190 = vsub.s32 0, %v1189
    %v1191 = vrot.slane %v207, %v1190
    %v1193 = vmul.f32 %v1183, %v1191
    %v1194 = vmul.f32 %v1184, %v1191
    %v1195 = vmul.f32 %v1185, %v1191
    %v1196 = vmul.f32 %v1186, %v1191
    %v1198 = vlaneseq
    %v1199 = vshrl.u32 %v1198, 7
    %v1200 = vsub.s32 0, %v1199
    %v1201 = vrot.slane %v208, %v1200
    %v1203 = vadd.f32 %v1193, %v1201
    %v1204 = vadd.f32 %v1194, %v1201
    %v1205 = vadd.f32 %v1195, %v1201
    %v1206 = vadd.f32 %v1196, %v1201
    %s1207 = scalar_lea.vmem %s1, 16
    %v1208 = vld [vmem:[%s1207] sm:$0xff]
    %v1209 = vld [vmem:[%s1207 + $0x8] sm:$0xff]
    %v1211 = vsel %vm285, %v1208, 0
    %v1214 = vsel %vm285, %v1209, 0
    %1216 = vmatprep.subr.mxu0 0.0
    %1217 = vmatpush1.msra.mxu0 %v200
    %1218 = vmatprep.subr.mxu0 0.0
    %1219 = vmatpush1.msra.mxu0 %v201
    %1220 = vmatprep.subr.mxu0 0.0
    %1221 = vmatpush1.msra.mxu0 %v202
    %1222 = vmatprep.subr.mxu0 0.0
    %1223 = vmatpush1.msra.mxu0 %v203
    %1224 = vmatprep.subr.mxu0 0.0
    %1225 = vmatpush1.msra.mxu0 0.0
    %1226 = vmatprep.subr.mxu0 0.0
    %1227 = vmatpush1.msra.mxu0 0.0
    %1228 = vmatprep.subr.mxu0 0.0
    %1229 = vmatpush1.msra.mxu0 0.0
    %1230 = vmatprep.subr.mxu0 0.0
    %1231 = vmatpush1.msra.mxu0 0.0
    %1232 = vmatprep.subr.mxu0 0.0
    %1233 = vmatpush1.msra.mxu0 0.0
    %1234 = vmatprep.subr.mxu0 0.0
    %1235 = vmatpush1.msra.mxu0 0.0
    %1236 = vmatprep.subr.mxu0 0.0
    %1237 = vmatpush1.msra.mxu0 0.0
    %1238 = vmatprep.subr.mxu0 0.0
    %1239 = vmatpush1.msra.mxu0 0.0
    %1240 = vmatprep.subr.mxu0 0.0
    %1241 = vmatpush1.msra.mxu0 0.0
    %1242 = vmatprep.subr.mxu0 0.0
    %1243 = vmatpush1.msra.mxu0 0.0
    %1244 = vmatprep.subr.mxu0 0.0
    %1245 = vmatpush1.msra.mxu0 0.0
    %1246 = vmatprep.subr.mxu0 0.0
    %1247 = vmatpush1.msra.mxu0 0.0
    %1248 = vmatprep.subr.mxu0 0.0
    %1249 = vmatpush1.msra.mxu0 0.0
    %1250 = vmatprep.subr.mxu0 0.0
    %1251 = vmatpush1.msra.mxu0 0.0
    %1252 = vmatprep.subr.mxu0 0.0
    %1253 = vmatpush1.msra.mxu0 0.0
    %1254 = vmatprep.subr.mxu0 0.0
    %1255 = vmatpush1.msra.mxu0 0.0
    %1256 = vmatprep.subr.mxu0 0.0
    %1257 = vmatpush1.msra.mxu0 0.0
    %1258 = vmatprep.subr.mxu0 0.0
    %1259 = vmatpush1.msra.mxu0 0.0
    %1260 = vmatprep.subr.mxu0 0.0
    %1261 = vmatpush1.msra.mxu0 0.0
    %1262 = vmatprep.subr.mxu0 0.0
    %1263 = vmatpush1.msra.mxu0 0.0
    %1264 = vmatprep.subr.mxu0 0.0
    %1265 = vmatpush1.msra.mxu0 0.0
    %1266 = vmatprep.subr.mxu0 0.0
    %1267 = vmatpush1.msra.mxu0 0.0
    %1268 = vmatprep.subr.mxu0 0.0
    %1269 = vmatpush1.msra.mxu0 0.0
    %1270 = vmatprep.subr.mxu0 0.0
    %1271 = vmatpush1.msra.mxu0 0.0
    %1272 = vmatprep.subr.mxu0 0.0
    %1273 = vmatpush1.msra.mxu0 0.0
    %1274 = vmatprep.subr.mxu0 0.0
    %1275 = vmatpush1.msra.mxu0 0.0
    %1276 = vmatprep.subr.mxu0 0.0
    %1277 = vmatpush1.msra.mxu0 0.0
    %1278 = vmatprep.subr.mxu0 0.0
    %1279 = vmatpush1.msra.mxu0 0.0
    %1280 = vmatprep.mubr.f32.mxu0 0.0
    %1281 = vmatmul.mubr.f32.gmra.mrb[0].mxu0 %v1211
    %v1282 = vpop.f32.mrb[0].mxu0
    %v1283 = vadd.f32 %v283, %v1282
    %v1284 = vpop.f32.mrb[0].mxu0
    %1285 = vmatprep.mubr.f32.mxu0 0.0
    %1286 = vmatmul.mubr.f32.gmra.mrb[0].mxu0 %v1214
    %v1287 = vpop.f32.mrb[0].mxu0
    %v1288 = vadd.f32 %v283, %v1287
    %v1289 = vpop.f32.mrb[0].mxu0
    %1290 = vdwg.mxu0
    %1291 = vmatprep.subr.mxu0 0.0
    %1292 = vmatpush1.msra.mxu0 %v1283
    %1293 = vmatprep.subr.mxu0 0.0
    %1294 = vmatpush1.msra.mxu0 %v1288
    %1295 = vmatprep.subr.mxu0 0.0
    %1296 = vmatpush1.msra.mxu0 0.0
    %1297 = vmatprep.subr.mxu0 0.0
    %1298 = vmatpush1.msra.mxu0 0.0
    %1299 = vmatprep.subr.mxu0 0.0
    %1300 = vmatpush1.msra.mxu0 0.0
    %1301 = vmatprep.subr.mxu0 0.0
    %1302 = vmatpush1.msra.mxu0 0.0
    %1303 = vmatprep.subr.mxu0 0.0
    %1304 = vmatpush1.msra.mxu0 0.0
    %1305 = vmatprep.subr.mxu0 0.0
    %1306 = vmatpush1.msra.mxu0 0.0
    %1307 = vmatprep.subr.mxu0 0.0
    %1308 = vmatpush1.msra.mxu0 0.0
    %1309 = vmatprep.subr.mxu0 0.0
    %1310 = vmatpush1.msra.mxu0 0.0
    %1311 = vmatprep.subr.mxu0 0.0
    %1312 = vmatpush1.msra.mxu0 0.0
    %1313 = vmatprep.subr.mxu0 0.0
    %1314 = vmatpush1.msra.mxu0 0.0
    %1315 = vmatprep.subr.mxu0 0.0
    %1316 = vmatpush1.msra.mxu0 0.0
    %1317 = vmatprep.subr.mxu0 0.0
    %1318 = vmatpush1.msra.mxu0 0.0
    %1319 = vmatprep.subr.mxu0 0.0
    %1320 = vmatpush1.msra.mxu0 0.0
    %1321 = vmatprep.subr.mxu0 0.0
    %1322 = vmatpush1.msra.mxu0 0.0
    %1323 = vmatprep.subr.mxu0 0.0
    %1324 = vmatpush1.msra.mxu0 0.0
    %1325 = vmatprep.subr.mxu0 0.0
    %1326 = vmatpush1.msra.mxu0 0.0
    %1327 = vmatprep.subr.mxu0 0.0
    %1328 = vmatpush1.msra.mxu0 0.0
    %1329 = vmatprep.subr.mxu0 0.0
    %1330 = vmatpush1.msra.mxu0 0.0
    %1331 = vmatprep.subr.mxu0 0.0
    %1332 = vmatpush1.msra.mxu0 0.0
    %1333 = vmatprep.subr.mxu0 0.0
    %1334 = vmatpush1.msra.mxu0 0.0
    %1335 = vmatprep.subr.mxu0 0.0
    %1336 = vmatpush1.msra.mxu0 0.0
    %1337 = vmatprep.subr.mxu0 0.0
    %1338 = vmatpush1.msra.mxu0 0.0
    %1339 = vmatprep.subr.mxu0 0.0
    %1340 = vmatpush1.msra.mxu0 0.0
    %1341 = vmatprep.subr.mxu0 0.0
    %1342 = vmatpush1.msra.mxu0 0.0
    %1343 = vmatprep.subr.mxu0 0.0
    %1344 = vmatpush1.msra.mxu0 0.0
    %1345 = vmatprep.subr.mxu0 0.0
    %1346 = vmatpush1.msra.mxu0 0.0
    %1347 = vmatprep.subr.mxu0 0.0
    %1348 = vmatpush1.msra.mxu0 0.0
    %1349 = vmatprep.subr.mxu0 0.0
    %1350 = vmatpush1.msra.mxu0 0.0
    %1351 = vmatprep.subr.mxu0 0.0
    %1352 = vmatpush1.msra.mxu0 0.0
    %1353 = vmatprep.subr.mxu0 0.0
    %1354 = vmatpush1.msra.mxu0 0.0
    %1355 = vmatprep.mubr.f32.mxu0 0.0
    %1356 = vmatmul.mubr.f32.gmra.mrb[0].mxu0 %v369
    %v1357 = vpop.f32.mrb[0].mxu0
    %v1358 = vadd.f32 0.0, %v1357
    %v1359 = vpop.f32.mrb[0].mxu0
    %1360 = vdwg.mxu0
    %v1362 = vsel %vm441, %v1358, 0
    %1364 = vmatprep.subr.mxu0 0.0
    %1365 = vmatpush1.msra.mxu0 %v212
    %1366 = vmatprep.subr.mxu0 0.0
    %1367 = vmatpush1.msra.mxu0 0.0
    %1368 = vmatprep.subr.mxu0 0.0
    %1369 = vmatpush1.msra.mxu0 0.0
    %1370 = vmatprep.subr.mxu0 0.0
    %1371 = vmatpush1.msra.mxu0 0.0
    %1372 = vmatprep.subr.mxu0 0.0
    %1373 = vmatpush1.msra.mxu0 0.0
    %1374 = vmatprep.subr.mxu0 0.0
    %1375 = vmatpush1.msra.mxu0 0.0
    %1376 = vmatprep.subr.mxu0 0.0
    %1377 = vmatpush1.msra.mxu0 0.0
    %1378 = vmatprep.subr.mxu0 0.0
    %1379 = vmatpush1.msra.mxu0 0.0
    %1380 = vmatprep.subr.mxu0 0.0
    %1381 = vmatpush1.msra.mxu0 0.0
    %1382 = vmatprep.subr.mxu0 0.0
    %1383 = vmatpush1.msra.mxu0 0.0
    %1384 = vmatprep.subr.mxu0 0.0
    %1385 = vmatpush1.msra.mxu0 0.0
    %1386 = vmatprep.subr.mxu0 0.0
    %1387 = vmatpush1.msra.mxu0 0.0
    %1388 = vmatprep.subr.mxu0 0.0
    %1389 = vmatpush1.msra.mxu0 0.0
    %1390 = vmatprep.subr.mxu0 0.0
    %1391 = vmatpush1.msra.mxu0 0.0
    %1392 = vmatprep.subr.mxu0 0.0
    %1393 = vmatpush1.msra.mxu0 0.0
    %1394 = vmatprep.subr.mxu0 0.0
    %1395 = vmatpush1.msra.mxu0 0.0
    %1396 = vmatprep.subr.mxu0 0.0
    %1397 = vmatpush1.msra.mxu0 0.0
    %1398 = vmatprep.subr.mxu0 0.0
    %1399 = vmatpush1.msra.mxu0 0.0
    %1400 = vmatprep.subr.mxu0 0.0
    %1401 = vmatpush1.msra.mxu0 0.0
    %1402 = vmatprep.subr.mxu0 0.0
    %1403 = vmatpush1.msra.mxu0 0.0
    %1404 = vmatprep.subr.mxu0 0.0
    %1405 = vmatpush1.msra.mxu0 0.0
    %1406 = vmatprep.subr.mxu0 0.0
    %1407 = vmatpush1.msra.mxu0 0.0
    %1408 = vmatprep.subr.mxu0 0.0
    %1409 = vmatpush1.msra.mxu0 0.0
    %1410 = vmatprep.subr.mxu0 0.0
    %1411 = vmatpush1.msra.mxu0 0.0
    %1412 = vmatprep.subr.mxu0 0.0
    %1413 = vmatpush1.msra.mxu0 0.0
    %1414 = vmatprep.subr.mxu0 0.0
    %1415 = vmatpush1.msra.mxu0 0.0
    %1416 = vmatprep.subr.mxu0 0.0
    %1417 = vmatpush1.msra.mxu0 0.0
    %1418 = vmatprep.subr.mxu0 0.0
    %1419 = vmatpush1.msra.mxu0 0.0
    %1420 = vmatprep.subr.mxu0 0.0
    %1421 = vmatpush1.msra.mxu0 0.0
    %1422 = vmatprep.subr.mxu0 0.0
    %1423 = vmatpush1.msra.mxu0 0.0
    %1424 = vmatprep.subr.mxu0 0.0
    %1425 = vmatpush1.msra.mxu0 0.0
    %1426 = vmatprep.subr.mxu0 0.0
    %1427 = vmatpush1.msra.mxu0 0.0
    %1428 = vmatprep.mubr.f32.mxu0 0.0
    %1429 = vmatmul.mubr.f32.gmra.mrb[0].mxu0 %v1362
    %v1430 = vpop.f32.mrb[0].mxu0
    %v1431 = vadd.f32 0.0, %v1430
    %v1432 = vpop.f32.mrb[0].mxu0
    %1433 = vdwg.mxu0
    %v1434 = vadd.f32 %v519, %v1431
    %1435 = vmatprep.subr.mxu0 0.0
    %1436 = vmatpush1.msra.mxu0 %v1283
    %1437 = vmatprep.subr.mxu0 0.0
    %1438 = vmatpush1.msra.mxu0 %v1288
    %1439 = vmatprep.subr.mxu0 0.0
    %1440 = vmatpush1.msra.mxu0 0.0
    %1441 = vmatprep.subr.mxu0 0.0
    %1442 = vmatpush1.msra.mxu0 0.0
    %1443 = vmatprep.subr.mxu0 0.0
    %1444 = vmatpush1.msra.mxu0 0.0
    %1445 = vmatprep.subr.mxu0 0.0
    %1446 = vmatpush1.msra.mxu0 0.0
    %1447 = vmatprep.subr.mxu0 0.0
    %1448 = vmatpush1.msra.mxu0 0.0
    %1449 = vmatprep.subr.mxu0 0.0
    %1450 = vmatpush1.msra.mxu0 0.0
    %1451 = vmatprep.subr.mxu0 0.0
    %1452 = vmatpush1.msra.mxu0 0.0
    %1453 = vmatprep.subr.mxu0 0.0
    %1454 = vmatpush1.msra.mxu0 0.0
    %1455 = vmatprep.subr.mxu0 0.0
    %1456 = vmatpush1.msra.mxu0 0.0
    %1457 = vmatprep.subr.mxu0 0.0
    %1458 = vmatpush1.msra.mxu0 0.0
    %1459 = vmatprep.subr.mxu0 0.0
    %1460 = vmatpush1.msra.mxu0 0.0
    %1461 = vmatprep.subr.mxu0 0.0
    %1462 = vmatpush1.msra.mxu0 0.0
    %1463 = vmatprep.subr.mxu0 0.0
    %1464 = vmatpush1.msra.mxu0 0.0
    %1465 = vmatprep.subr.mxu0 0.0
    %1466 = vmatpush1.msra.mxu0 0.0
    %1467 = vmatprep.subr.mxu0 0.0
    %1468 = vmatpush1.msra.mxu0 0.0
    %1469 = vmatprep.subr.mxu0 0.0
    %1470 = vmatpush1.msra.mxu0 0.0
    %1471 = vmatprep.subr.mxu0 0.0
    %1472 = vmatpush1.msra.mxu0 0.0
    %1473 = vmatprep.subr.mxu0 0.0
    %1474 = vmatpush1.msra.mxu0 0.0
    %1475 = vmatprep.subr.mxu0 0.0
    %1476 = vmatpush1.msra.mxu0 0.0
    %1477 = vmatprep.subr.mxu0 0.0
    %1478 = vmatpush1.msra.mxu0 0.0
    %1479 = vmatprep.subr.mxu0 0.0
    %1480 = vmatpush1.msra.mxu0 0.0
    %1481 = vmatprep.subr.mxu0 0.0
    %1482 = vmatpush1.msra.mxu0 0.0
    %1483 = vmatprep.subr.mxu0 0.0
    %1484 = vmatpush1.msra.mxu0 0.0
    %1485 = vmatprep.subr.mxu0 0.0
    %1486 = vmatpush1.msra.mxu0 0.0
    %1487 = vmatprep.subr.mxu0 0.0
    %1488 = vmatpush1.msra.mxu0 0.0
    %1489 = vmatprep.subr.mxu0 0.0
    %1490 = vmatpush1.msra.mxu0 0.0
    %1491 = vmatprep.subr.mxu0 0.0
    %1492 = vmatpush1.msra.mxu0 0.0
    %1493 = vmatprep.subr.mxu0 0.0
    %1494 = vmatpush1.msra.mxu0 0.0
    %1495 = vmatprep.subr.mxu0 0.0
    %1496 = vmatpush1.msra.mxu0 0.0
    %1497 = vmatprep.subr.mxu0 0.0
    %1498 = vmatpush1.msra.mxu0 0.0
    %1499 = vmatprep.mubr.f32.mxu0 0.0
    %1500 = vmatmul.mubr.f32.gmra.mrb[0].mxu0 %v523
    %v1501 = vpop.f32.mrb[0].mxu0
    %v1502 = vadd.f32 0.0, %v1501
    %v1503 = vpop.f32.mrb[0].mxu0
    %1504 = vdwg.mxu0
    %v1506 = vsel %vm441, %v1502, 0
    %1508 = vmatprep.subr.mxu0 0.0
    %1509 = vmatpush1.msra.mxu0 %v214
    %1510 = vmatprep.subr.mxu0 0.0
    %1511 = vmatpush1.msra.mxu0 0.0
    %1512 = vmatprep.subr.mxu0 0.0
    %1513 = vmatpush1.msra.mxu0 0.0
    %1514 = vmatprep.subr.mxu0 0.0
    %1515 = vmatpush1.msra.mxu0 0.0
    %1516 = vmatprep.subr.mxu0 0.0
    %1517 = vmatpush1.msra.mxu0 0.0
    %1518 = vmatprep.subr.mxu0 0.0
    %1519 = vmatpush1.msra.mxu0 0.0
    %1520 = vmatprep.subr.mxu0 0.0
    %1521 = vmatpush1.msra.mxu0 0.0
    %1522 = vmatprep.subr.mxu0 0.0
    %1523 = vmatpush1.msra.mxu0 0.0
    %1524 = vmatprep.subr.mxu0 0.0
    %1525 = vmatpush1.msra.mxu0 0.0
    %1526 = vmatprep.subr.mxu0 0.0
    %1527 = vmatpush1.msra.mxu0 0.0
    %1528 = vmatprep.subr.mxu0 0.0
    %1529 = vmatpush1.msra.mxu0 0.0
    %1530 = vmatprep.subr.mxu0 0.0
    %1531 = vmatpush1.msra.mxu0 0.0
    %1532 = vmatprep.subr.mxu0 0.0
    %1533 = vmatpush1.msra.mxu0 0.0
    %1534 = vmatprep.subr.mxu0 0.0
    %1535 = vmatpush1.msra.mxu0 0.0
    %1536 = vmatprep.subr.mxu0 0.0
    %1537 = vmatpush1.msra.mxu0 0.0
    %1538 = vmatprep.subr.mxu0 0.0
    %1539 = vmatpush1.msra.mxu0 0.0
    %1540 = vmatprep.subr.mxu0 0.0
    %1541 = vmatpush1.msra.mxu0 0.0
    %1542 = vmatprep.subr.mxu0 0.0
    %1543 = vmatpush1.msra.mxu0 0.0
    %1544 = vmatprep.subr.mxu0 0.0
    %1545 = vmatpush1.msra.mxu0 0.0
    %1546 = vmatprep.subr.mxu0 0.0
    %1547 = vmatpush1.msra.mxu0 0.0
    %1548 = vmatprep.subr.mxu0 0.0
    %1549 = vmatpush1.msra.mxu0 0.0
    %1550 = vmatprep.subr.mxu0 0.0
    %1551 = vmatpush1.msra.mxu0 0.0
    %1552 = vmatprep.subr.mxu0 0.0
    %1553 = vmatpush1.msra.mxu0 0.0
    %1554 = vmatprep.subr.mxu0 0.0
    %1555 = vmatpush1.msra.mxu0 0.0
    %1556 = vmatprep.subr.mxu0 0.0
    %1557 = vmatpush1.msra.mxu0 0.0
    %1558 = vmatprep.subr.mxu0 0.0
    %1559 = vmatpush1.msra.mxu0 0.0
    %1560 = vmatprep.subr.mxu0 0.0
    %1561 = vmatpush1.msra.mxu0 0.0
    %1562 = vmatprep.subr.mxu0 0.0
    %1563 = vmatpush1.msra.mxu0 0.0
    %1564 = vmatprep.subr.mxu0 0.0
    %1565 = vmatpush1.msra.mxu0 0.0
    %1566 = vmatprep.subr.mxu0 0.0
    %1567 = vmatpush1.msra.mxu0 0.0
    %1568 = vmatprep.subr.mxu0 0.0
    %1569 = vmatpush1.msra.mxu0 0.0
    %1570 = vmatprep.subr.mxu0 0.0
    %1571 = vmatpush1.msra.mxu0 0.0
    %1572 = vmatprep.mubr.f32.mxu0 0.0
    %1573 = vmatmul.mubr.f32.gmra.mrb[0].mxu0 %v1506
    %v1574 = vpop.f32.mrb[0].mxu0
    %v1575 = vadd.f32 0.0, %v1574
    %v1576 = vpop.f32.mrb[0].mxu0
    %1577 = vdwg.mxu0
    %v1578 = vadd.f32 %v1434, %v1575
    %vm1579 = vcmp.gt.f32.partialorder %v1578, 0.0
    %v1580 = vmin.f32 %v1578, 0.0
    %v1581 = vmul.f32 %v1580, 1.442695
    %v1582 = vpow.pop %v1581
    %v1583 = vsub.f32 %v1582, 1.0
    %v1584 = vsel %vm1579, %v1578, %v1583
    %v1586 = vsel %vm441, %v1584, 0
    %1588 = vmatprep.subr.mxu0 0.0
    %1589 = vmatpush1.msra.mxu0 %v205
    %1590 = vmatprep.subr.mxu0 0.0
    %1591 = vmatpush1.msra.mxu0 0.0
    %1592 = vmatprep.subr.mxu0 0.0
    %1593 = vmatpush1.msra.mxu0 0.0
    %1594 = vmatprep.subr.mxu0 0.0
    %1595 = vmatpush1.msra.mxu0 0.0
    %1596 = vmatprep.subr.mxu0 0.0
    %1597 = vmatpush1.msra.mxu0 0.0
    %1598 = vmatprep.subr.mxu0 0.0
    %1599 = vmatpush1.msra.mxu0 0.0
    %1600 = vmatprep.subr.mxu0 0.0
    %1601 = vmatpush1.msra.mxu0 0.0
    %1602 = vmatprep.subr.mxu0 0.0
    %1603 = vmatpush1.msra.mxu0 0.0
    %1604 = vmatprep.subr.mxu0 0.0
    %1605 = vmatpush1.msra.mxu0 0.0
    %1606 = vmatprep.subr.mxu0 0.0
    %1607 = vmatpush1.msra.mxu0 0.0
    %1608 = vmatprep.subr.mxu0 0.0
    %1609 = vmatpush1.msra.mxu0 0.0
    %1610 = vmatprep.subr.mxu0 0.0
    %1611 = vmatpush1.msra.mxu0 0.0
    %1612 = vmatprep.subr.mxu0 0.0
    %1613 = vmatpush1.msra.mxu0 0.0
    %1614 = vmatprep.subr.mxu0 0.0
    %1615 = vmatpush1.msra.mxu0 0.0
    %1616 = vmatprep.subr.mxu0 0.0
    %1617 = vmatpush1.msra.mxu0 0.0
    %1618 = vmatprep.subr.mxu0 0.0
    %1619 = vmatpush1.msra.mxu0 0.0
    %1620 = vmatprep.subr.mxu0 0.0
    %1621 = vmatpush1.msra.mxu0 0.0
    %1622 = vmatprep.subr.mxu0 0.0
    %1623 = vmatpush1.msra.mxu0 0.0
    %1624 = vmatprep.subr.mxu0 0.0
    %1625 = vmatpush1.msra.mxu0 0.0
    %1626 = vmatprep.subr.mxu0 0.0
    %1627 = vmatpush1.msra.mxu0 0.0
    %1628 = vmatprep.subr.mxu0 0.0
    %1629 = vmatpush1.msra.mxu0 0.0
    %1630 = vmatprep.subr.mxu0 0.0
    %1631 = vmatpush1.msra.mxu0 0.0
    %1632 = vmatprep.subr.mxu0 0.0
    %1633 = vmatpush1.msra.mxu0 0.0
    %1634 = vmatprep.subr.mxu0 0.0
    %1635 = vmatpush1.msra.mxu0 0.0
    %1636 = vmatprep.subr.mxu0 0.0
    %1637 = vmatpush1.msra.mxu0 0.0
    %1638 = vmatprep.subr.mxu0 0.0
    %1639 = vmatpush1.msra.mxu0 0.0
    %1640 = vmatprep.subr.mxu0 0.0
    %1641 = vmatpush1.msra.mxu0 0.0
    %1642 = vmatprep.subr.mxu0 0.0
    %1643 = vmatpush1.msra.mxu0 0.0
    %1644 = vmatprep.subr.mxu0 0.0
    %1645 = vmatpush1.msra.mxu0 0.0
    %1646 = vmatprep.subr.mxu0 0.0
    %1647 = vmatpush1.msra.mxu0 0.0
    %1648 = vmatprep.subr.mxu0 0.0
    %1649 = vmatpush1.msra.mxu0 0.0
    %1650 = vmatprep.subr.mxu0 0.0
    %1651 = vmatpush1.msra.mxu0 0.0
    %1652 = vmatprep.mubr.f32.mxu0 0.0
    %1653 = vmatmul.mubr.f32.gmra.mrb[0].mxu0 %v1586
    %v1654 = vpop.f32.mrb[0].mxu0
    %v1655 = vadd.f32 %v679, %v1654
    %v1656 = vpop.f32.mrb[0].mxu0
    %1657 = vdwg.mxu0
    %1658 = vmatprep.subr.mxu0 0.0
    %1659 = vmatpush1.msra.mxu0 %v1584
    %1660 = vmatprep.subr.mxu0 0.0
    %1661 = vmatpush1.msra.mxu0 0.0
    %1662 = vmatprep.subr.mxu0 0.0
    %1663 = vmatpush1.msra.mxu0 0.0
    %1664 = vmatprep.subr.mxu0 0.0
    %1665 = vmatpush1.msra.mxu0 0.0
    %1666 = vmatprep.subr.mxu0 0.0
    %1667 = vmatpush1.msra.mxu0 0.0
    %1668 = vmatprep.subr.mxu0 0.0
    %1669 = vmatpush1.msra.mxu0 0.0
    %1670 = vmatprep.subr.mxu0 0.0
    %1671 = vmatpush1.msra.mxu0 0.0
    %1672 = vmatprep.subr.mxu0 0.0
    %1673 = vmatpush1.msra.mxu0 0.0
    %1674 = vmatprep.subr.mxu0 0.0
    %1675 = vmatpush1.msra.mxu0 0.0
    %1676 = vmatprep.subr.mxu0 0.0
    %1677 = vmatpush1.msra.mxu0 0.0
    %1678 = vmatprep.subr.mxu0 0.0
    %1679 = vmatpush1.msra.mxu0 0.0
    %1680 = vmatprep.subr.mxu0 0.0
    %1681 = vmatpush1.msra.mxu0 0.0
    %1682 = vmatprep.subr.mxu0 0.0
    %1683 = vmatpush1.msra.mxu0 0.0
    %1684 = vmatprep.subr.mxu0 0.0
    %1685 = vmatpush1.msra.mxu0 0.0
    %1686 = vmatprep.subr.mxu0 0.0
    %1687 = vmatpush1.msra.mxu0 0.0
    %1688 = vmatprep.subr.mxu0 0.0
    %1689 = vmatpush1.msra.mxu0 0.0
    %1690 = vmatprep.subr.mxu0 0.0
    %1691 = vmatpush1.msra.mxu0 0.0
    %1692 = vmatprep.subr.mxu0 0.0
    %1693 = vmatpush1.msra.mxu0 0.0
    %1694 = vmatprep.subr.mxu0 0.0
    %1695 = vmatpush1.msra.mxu0 0.0
    %1696 = vmatprep.subr.mxu0 0.0
    %1697 = vmatpush1.msra.mxu0 0.0
    %1698 = vmatprep.subr.mxu0 0.0
    %1699 = vmatpush1.msra.mxu0 0.0
    %1700 = vmatprep.subr.mxu0 0.0
    %1701 = vmatpush1.msra.mxu0 0.0
    %1702 = vmatprep.subr.mxu0 0.0
    %1703 = vmatpush1.msra.mxu0 0.0
    %1704 = vmatprep.subr.mxu0 0.0
    %1705 = vmatpush1.msra.mxu0 0.0
    %1706 = vmatprep.subr.mxu0 0.0
    %1707 = vmatpush1.msra.mxu0 0.0
    %1708 = vmatprep.subr.mxu0 0.0
    %1709 = vmatpush1.msra.mxu0 0.0
    %1710 = vmatprep.subr.mxu0 0.0
    %1711 = vmatpush1.msra.mxu0 0.0
    %1712 = vmatprep.subr.mxu0 0.0
    %1713 = vmatpush1.msra.mxu0 0.0
    %1714 = vmatprep.subr.mxu0 0.0
    %1715 = vmatpush1.msra.mxu0 0.0
    %1716 = vmatprep.subr.mxu0 0.0
    %1717 = vmatpush1.msra.mxu0 0.0
    %1718 = vmatprep.subr.mxu0 0.0
    %1719 = vmatpush1.msra.mxu0 0.0
    %1720 = vmatprep.subr.mxu0 0.0
    %1721 = vmatpush1.msra.mxu0 0.0
    %1722 = vmatprep.mubr.f32.mxu0 0.0
    %1723 = vmatmul.mubr.f32.gmra.mrb[0].mxu0 %v755
    %v1724 = vpop.f32.mrb[0].mxu0
    %v1725 = vadd.f32 0.0, %v1724
    %v1726 = vpop.f32.mrb[0].mxu0
    %1727 = vdwg.mxu0
    %v1729 = vsel %vm441, %v1725, 0
    %1731 = vmatprep.subr.mxu0 0.0
    %1732 = vmatpush1.msra.mxu0 %v219
    %1733 = vmatprep.subr.mxu0 0.0
    %1734 = vmatpush1.msra.mxu0 0.0
    %1735 = vmatprep.subr.mxu0 0.0
    %1736 = vmatpush1.msra.mxu0 0.0
    %1737 = vmatprep.subr.mxu0 0.0
    %1738 = vmatpush1.msra.mxu0 0.0
    %1739 = vmatprep.subr.mxu0 0.0
    %1740 = vmatpush1.msra.mxu0 0.0
    %1741 = vmatprep.subr.mxu0 0.0
    %1742 = vmatpush1.msra.mxu0 0.0
    %1743 = vmatprep.subr.mxu0 0.0
    %1744 = vmatpush1.msra.mxu0 0.0
    %1745 = vmatprep.subr.mxu0 0.0
    %1746 = vmatpush1.msra.mxu0 0.0
    %1747 = vmatprep.subr.mxu0 0.0
    %1748 = vmatpush1.msra.mxu0 0.0
    %1749 = vmatprep.subr.mxu0 0.0
    %1750 = vmatpush1.msra.mxu0 0.0
    %1751 = vmatprep.subr.mxu0 0.0
    %1752 = vmatpush1.msra.mxu0 0.0
    %1753 = vmatprep.subr.mxu0 0.0
    %1754 = vmatpush1.msra.mxu0 0.0
    %1755 = vmatprep.subr.mxu0 0.0
    %1756 = vmatpush1.msra.mxu0 0.0
    %1757 = vmatprep.subr.mxu0 0.0
    %1758 = vmatpush1.msra.mxu0 0.0
    %1759 = vmatprep.subr.mxu0 0.0
    %1760 = vmatpush1.msra.mxu0 0.0
    %1761 = vmatprep.subr.mxu0 0.0
    %1762 = vmatpush1.msra.mxu0 0.0
    %1763 = vmatprep.subr.mxu0 0.0
    %1764 = vmatpush1.msra.mxu0 0.0
    %1765 = vmatprep.subr.mxu0 0.0
    %1766 = vmatpush1.msra.mxu0 0.0
    %1767 = vmatprep.subr.mxu0 0.0
    %1768 = vmatpush1.msra.mxu0 0.0
    %1769 = vmatprep.subr.mxu0 0.0
    %1770 = vmatpush1.msra.mxu0 0.0
    %1771 = vmatprep.subr.mxu0 0.0
    %1772 = vmatpush1.msra.mxu0 0.0
    %1773 = vmatprep.subr.mxu0 0.0
    %1774 = vmatpush1.msra.mxu0 0.0
    %1775 = vmatprep.subr.mxu0 0.0
    %1776 = vmatpush1.msra.mxu0 0.0
    %1777 = vmatprep.subr.mxu0 0.0
    %1778 = vmatpush1.msra.mxu0 0.0
    %1779 = vmatprep.subr.mxu0 0.0
    %1780 = vmatpush1.msra.mxu0 0.0
    %1781 = vmatprep.subr.mxu0 0.0
    %1782 = vmatpush1.msra.mxu0 0.0
    %1783 = vmatprep.subr.mxu0 0.0
    %1784 = vmatpush1.msra.mxu0 0.0
    %1785 = vmatprep.subr.mxu0 0.0
    %1786 = vmatpush1.msra.mxu0 0.0
    %1787 = vmatprep.subr.mxu0 0.0
    %1788 = vmatpush1.msra.mxu0 0.0
    %1789 = vmatprep.subr.mxu0 0.0
    %1790 = vmatpush1.msra.mxu0 0.0
    %1791 = vmatprep.subr.mxu0 0.0
    %1792 = vmatpush1.msra.mxu0 0.0
    %1793 = vmatprep.subr.mxu0 0.0
    %1794 = vmatpush1.msra.mxu0 0.0
    %1795 = vmatprep.mubr.f32.mxu0 0.0
    %1796 = vmatmul.mubr.f32.gmra.mrb[0].mxu0 %v1729
    %v1797 = vpop.f32.mrb[0].mxu0
    %v1798 = vadd.f32 0.0, %v1797
    %v1799 = vpop.f32.mrb[0].mxu0
    %1800 = vdwg.mxu0
    %v1801 = vadd.f32 %v904, %v1798
    %1802 = vmatprep.subr.mxu0 0.0
    %1803 = vmatpush1.msra.mxu0 %v1584
    %1804 = vmatprep.subr.mxu0 0.0
    %1805 = vmatpush1.msra.mxu0 0.0
    %1806 = vmatprep.subr.mxu0 0.0
    %1807 = vmatpush1.msra.mxu0 0.0
    %1808 = vmatprep.subr.mxu0 0.0
    %1809 = vmatpush1.msra.mxu0 0.0
    %1810 = vmatprep.subr.mxu0 0.0
    %1811 = vmatpush1.msra.mxu0 0.0
    %1812 = vmatprep.subr.mxu0 0.0
    %1813 = vmatpush1.msra.mxu0 0.0
    %1814 = vmatprep.subr.mxu0 0.0
    %1815 = vmatpush1.msra.mxu0 0.0
    %1816 = vmatprep.subr.mxu0 0.0
    %1817 = vmatpush1.msra.mxu0 0.0
    %1818 = vmatprep.subr.mxu0 0.0
    %1819 = vmatpush1.msra.mxu0 0.0
    %1820 = vmatprep.subr.mxu0 0.0
    %1821 = vmatpush1.msra.mxu0 0.0
    %1822 = vmatprep.subr.mxu0 0.0
    %1823 = vmatpush1.msra.mxu0 0.0
    %1824 = vmatprep.subr.mxu0 0.0
    %1825 = vmatpush1.msra.mxu0 0.0
    %1826 = vmatprep.subr.mxu0 0.0
    %1827 = vmatpush1.msra.mxu0 0.0
    %1828 = vmatprep.subr.mxu0 0.0
    %1829 = vmatpush1.msra.mxu0 0.0
    %1830 = vmatprep.subr.mxu0 0.0
    %1831 = vmatpush1.msra.mxu0 0.0
    %1832 = vmatprep.subr.mxu0 0.0
    %1833 = vmatpush1.msra.mxu0 0.0
    %1834 = vmatprep.subr.mxu0 0.0
    %1835 = vmatpush1.msra.mxu0 0.0
    %1836 = vmatprep.subr.mxu0 0.0
    %1837 = vmatpush1.msra.mxu0 0.0
    %1838 = vmatprep.subr.mxu0 0.0
    %1839 = vmatpush1.msra.mxu0 0.0
    %1840 = vmatprep.subr.mxu0 0.0
    %1841 = vmatpush1.msra.mxu0 0.0
    %1842 = vmatprep.subr.mxu0 0.0
    %1843 = vmatpush1.msra.mxu0 0.0
    %1844 = vmatprep.subr.mxu0 0.0
    %1845 = vmatpush1.msra.mxu0 0.0
    %1846 = vmatprep.subr.mxu0 0.0
    %1847 = vmatpush1.msra.mxu0 0.0
    %1848 = vmatprep.subr.mxu0 0.0
    %1849 = vmatpush1.msra.mxu0 0.0
    %1850 = vmatprep.subr.mxu0 0.0
    %1851 = vmatpush1.msra.mxu0 0.0
    %1852 = vmatprep.subr.mxu0 0.0
    %1853 = vmatpush1.msra.mxu0 0.0
    %1854 = vmatprep.subr.mxu0 0.0
    %1855 = vmatpush1.msra.mxu0 0.0
    %1856 = vmatprep.subr.mxu0 0.0
    %1857 = vmatpush1.msra.mxu0 0.0
    %1858 = vmatprep.subr.mxu0 0.0
    %1859 = vmatpush1.msra.mxu0 0.0
    %1860 = vmatprep.subr.mxu0 0.0
    %1861 = vmatpush1.msra.mxu0 0.0
    %1862 = vmatprep.subr.mxu0 0.0
    %1863 = vmatpush1.msra.mxu0 0.0
    %1864 = vmatprep.subr.mxu0 0.0
    %1865 = vmatpush1.msra.mxu0 0.0
    %1866 = vmatprep.mubr.f32.mxu0 0.0
    %1867 = vmatmul.mubr.f32.gmra.mrb[0].mxu0 %v908
    %v1868 = vpop.f32.mrb[0].mxu0
    %v1869 = vadd.f32 0.0, %v1868
    %v1870 = vpop.f32.mrb[0].mxu0
    %1871 = vdwg.mxu0
    %v1873 = vsel %vm441, %v1869, 0
    %1875 = vmatprep.subr.mxu0 0.0
    %1876 = vmatpush1.msra.mxu0 %v221
    %1877 = vmatprep.subr.mxu0 0.0
    %1878 = vmatpush1.msra.mxu0 0.0
    %1879 = vmatprep.subr.mxu0 0.0
    %1880 = vmatpush1.msra.mxu0 0.0
    %1881 = vmatprep.subr.mxu0 0.0
    %1882 = vmatpush1.msra.mxu0 0.0
    %1883 = vmatprep.subr.mxu0 0.0
    %1884 = vmatpush1.msra.mxu0 0.0
    %1885 = vmatprep.subr.mxu0 0.0
    %1886 = vmatpush1.msra.mxu0 0.0
    %1887 = vmatprep.subr.mxu0 0.0
    %1888 = vmatpush1.msra.mxu0 0.0
    %1889 = vmatprep.subr.mxu0 0.0
    %1890 = vmatpush1.msra.mxu0 0.0
    %1891 = vmatprep.subr.mxu0 0.0
    %1892 = vmatpush1.msra.mxu0 0.0
    %1893 = vmatprep.subr.mxu0 0.0
    %1894 = vmatpush1.msra.mxu0 0.0
    %1895 = vmatprep.subr.mxu0 0.0
    %1896 = vmatpush1.msra.mxu0 0.0
    %1897 = vmatprep.subr.mxu0 0.0
    %1898 = vmatpush1.msra.mxu0 0.0
    %1899 = vmatprep.subr.mxu0 0.0
    %1900 = vmatpush1.msra.mxu0 0.0
    %1901 = vmatprep.subr.mxu0 0.0
    %1902 = vmatpush1.msra.mxu0 0.0
    %1903 = vmatprep.subr.mxu0 0.0
    %1904 = vmatpush1.msra.mxu0 0.0
    %1905 = vmatprep.subr.mxu0 0.0
    %1906 = vmatpush1.msra.mxu0 0.0
    %1907 = vmatprep.subr.mxu0 0.0
    %1908 = vmatpush1.msra.mxu0 0.0
    %1909 = vmatprep.subr.mxu0 0.0
    %1910 = vmatpush1.msra.mxu0 0.0
    %1911 = vmatprep.subr.mxu0 0.0
    %1912 = vmatpush1.msra.mxu0 0.0
    %1913 = vmatprep.subr.mxu0 0.0
    %1914 = vmatpush1.msra.mxu0 0.0
    %1915 = vmatprep.subr.mxu0 0.0
    %1916 = vmatpush1.msra.mxu0 0.0
    %1917 = vmatprep.subr.mxu0 0.0
    %1918 = vmatpush1.msra.mxu0 0.0
    %1919 = vmatprep.subr.mxu0 0.0
    %1920 = vmatpush1.msra.mxu0 0.0
    %1921 = vmatprep.subr.mxu0 0.0
    %1922 = vmatpush1.msra.mxu0 0.0
    %1923 = vmatprep.subr.mxu0 0.0
    %1924 = vmatpush1.msra.mxu0 0.0
    %1925 = vmatprep.subr.mxu0 0.0
    %1926 = vmatpush1.msra.mxu0 0.0
    %1927 = vmatprep.subr.mxu0 0.0
    %1928 = vmatpush1.msra.mxu0 0.0
    %1929 = vmatprep.subr.mxu0 0.0
    %1930 = vmatpush1.msra.mxu0 0.0
    %1931 = vmatprep.subr.mxu0 0.0
    %1932 = vmatpush1.msra.mxu0 0.0
    %1933 = vmatprep.subr.mxu0 0.0
    %1934 = vmatpush1.msra.mxu0 0.0
    %1935 = vmatprep.subr.mxu0 0.0
    %1936 = vmatpush1.msra.mxu0 0.0
    %1937 = vmatprep.subr.mxu0 0.0
    %1938 = vmatpush1.msra.mxu0 0.0
    %1939 = vmatprep.mubr.f32.mxu0 0.0
    %1940 = vmatmul.mubr.f32.gmra.mrb[0].mxu0 %v1873
    %v1941 = vpop.f32.mrb[0].mxu0
    %v1942 = vadd.f32 0.0, %v1941
    %v1943 = vpop.f32.mrb[0].mxu0
    %1944 = vdwg.mxu0
    %v1945 = vadd.f32 %v1801, %v1942
    %vm1946 = vcmp.gt.f32.partialorder %v1945, 0.0
    %v1947 = vmin.f32 %v1945, 0.0
    %v1948 = vmul.f32 %v1947, 1.442695
    %v1949 = vpow.pop %v1948
    %v1950 = vsub.f32 %v1949, 1.0
    %v1951 = vsel %vm1946, %v1945, %v1950
    %v1953 = vsel %vm441, %v1951, 0
    %1955 = vmatprep.subr.mxu0 0.0
    %1956 = vmatpush1.msra.mxu0 %v205
    %1957 = vmatprep.subr.mxu0 0.0
    %1958 = vmatpush1.msra.mxu0 0.0
    %1959 = vmatprep.subr.mxu0 0.0
    %1960 = vmatpush1.msra.mxu0 0.0
    %1961 = vmatprep.subr.mxu0 0.0
    %1962 = vmatpush1.msra.mxu0 0.0
    %1963 = vmatprep.subr.mxu0 0.0
    %1964 = vmatpush1.msra.mxu0 0.0
    %1965 = vmatprep.subr.mxu0 0.0
    %1966 = vmatpush1.msra.mxu0 0.0
    %1967 = vmatprep.subr.mxu0 0.0
    %1968 = vmatpush1.msra.mxu0 0.0
    %1969 = vmatprep.subr.mxu0 0.0
    %1970 = vmatpush1.msra.mxu0 0.0
    %1971 = vmatprep.subr.mxu0 0.0
    %1972 = vmatpush1.msra.mxu0 0.0
    %1973 = vmatprep.subr.mxu0 0.0
    %1974 = vmatpush1.msra.mxu0 0.0
    %1975 = vmatprep.subr.mxu0 0.0
    %1976 = vmatpush1.msra.mxu0 0.0
    %1977 = vmatprep.subr.mxu0 0.0
    %1978 = vmatpush1.msra.mxu0 0.0
    %1979 = vmatprep.subr.mxu0 0.0
    %1980 = vmatpush1.msra.mxu0 0.0
    %1981 = vmatprep.subr.mxu0 0.0
    %1982 = vmatpush1.msra.mxu0 0.0
    %1983 = vmatprep.subr.mxu0 0.0
    %1984 = vmatpush1.msra.mxu0 0.0
    %1985 = vmatprep.subr.mxu0 0.0
    %1986 = vmatpush1.msra.mxu0 0.0
    %1987 = vmatprep.subr.mxu0 0.0
    %1988 = vmatpush1.msra.mxu0 0.0
    %1989 = vmatprep.subr.mxu0 0.0
    %1990 = vmatpush1.msra.mxu0 0.0
    %1991 = vmatprep.subr.mxu0 0.0
    %1992 = vmatpush1.msra.mxu0 0.0
    %1993 = vmatprep.subr.mxu0 0.0
    %1994 = vmatpush1.msra.mxu0 0.0
    %1995 = vmatprep.subr.mxu0 0.0
    %1996 = vmatpush1.msra.mxu0 0.0
    %1997 = vmatprep.subr.mxu0 0.0
    %1998 = vmatpush1.msra.mxu0 0.0
    %1999 = vmatprep.subr.mxu0 0.0
    %2000 = vmatpush1.msra.mxu0 0.0
    %2001 = vmatprep.subr.mxu0 0.0
    %2002 = vmatpush1.msra.mxu0 0.0
    %2003 = vmatprep.subr.mxu0 0.0
    %2004 = vmatpush1.msra.mxu0 0.0
    %2005 = vmatprep.subr.mxu0 0.0
    %2006 = vmatpush1.msra.mxu0 0.0
    %2007 = vmatprep.subr.mxu0 0.0
    %2008 = vmatpush1.msra.mxu0 0.0
    %2009 = vmatprep.subr.mxu0 0.0
    %2010 = vmatpush1.msra.mxu0 0.0
    %2011 = vmatprep.subr.mxu0 0.0
    %2012 = vmatpush1.msra.mxu0 0.0
    %2013 = vmatprep.subr.mxu0 0.0
    %2014 = vmatpush1.msra.mxu0 0.0
    %2015 = vmatprep.subr.mxu0 0.0
    %2016 = vmatpush1.msra.mxu0 0.0
    %2017 = vmatprep.subr.mxu0 0.0
    %2018 = vmatpush1.msra.mxu0 0.0
    %2019 = vmatprep.mubr.f32.mxu0 0.0
    %2020 = vmatmul.mubr.f32.gmra.mrb[0].mxu0 %v1953
    %v2021 = vpop.f32.mrb[0].mxu0
    %v2022 = vadd.f32 %v679, %v2021
    %v2023 = vpop.f32.mrb[0].mxu0
    %2024 = vdwg.mxu0
    %v2025 = vsel %vm285, %v1208, 0.0
    %2026 = vadd.xlane.f32.xlu0 %v2025
    %v2027 = vpop.xlane.xlu0 %2026
    %v2028 = vsel %vm285, %v1209, 0.0
    %2029 = vadd.xlane.f32.xlu0 %v2028
    %v2030 = vpop.xlane.xlu0 %2029
    %v2031 = vsel %vm285, %v1655, 0.0
    %2032 = vadd.xlane.f32.xlu0 %v2031
    %v2033 = vpop.xlane.xlu0 %2032
    %v2034 = vsel %vm1142, %v2022, 0.0
    %2035 = vadd.xlane.f32.xlu0 %v2034
    %v2036 = vpop.xlane.xlu0 %2035
    %v2037 = vmul.f32 %v2027, %v1146
    %v2038 = vmul.f32 %v2030, %v1146
    %v2039 = vmul.f32 %v2033, %v1146
    %v2040 = vmul.f32 %v2036, %v1146
    %v2041 = vsub.f32 %v1208, %v2037
    %v2042 = vsub.f32 %v1209, %v2038
    %v2043 = vsub.f32 %v1655, %v2039
    %v2044 = vsub.f32 %v2022, %v2040
    %v2045 = vmul.f32 %v2041, %v2041
    %v2046 = vmul.f32 %v2042, %v2042
    %v2047 = vmul.f32 %v2043, %v2043
    %v2048 = vmul.f32 %v2044, %v2044
    %v2049 = vsel %vm285, %v2045, 0.0
    %2050 = vadd.xlane.f32.xlu0 %v2049
    %v2051 = vpop.xlane.xlu0 %2050
    %v2052 = vsel %vm285, %v2046, 0.0
    %2053 = vadd.xlane.f32.xlu0 %v2052
    %v2054 = vpop.xlane.xlu0 %2053
    %v2055 = vsel %vm285, %v2047, 0.0
    %2056 = vadd.xlane.f32.xlu0 %v2055
    %v2057 = vpop.xlane.xlu0 %2056
    %v2058 = vsel %vm1142, %v2048, 0.0
    %2059 = vadd.xlane.f32.xlu0 %v2058
    %v2060 = vpop.xlane.xlu0 %2059
    %v2061 = vmul.f32 %v2051, %v1146
    %v2062 = vmul.f32 %v2054, %v1146
    %v2063 = vmul.f32 %v2057, %v1146
    %v2064 = vmul.f32 %v2060, %v1146
    %v2065 = vadd.f32 %v2061, 1e-05
    %v2066 = vadd.f32 %v2062, 1e-05
    %v2067 = vadd.f32 %v2063, 1e-05
    %v2068 = vadd.f32 %v2064, 1e-05
    %v2069 = vrsqrt.pop %v2065
    %v2070 = vrsqrt.pop %v2066
    %v2071 = vrsqrt.pop %v2067
    %v2072 = vrsqrt.pop %v2068
    %v2073 = vmul.f32 %v2041, %v2069
    %v2074 = vmul.f32 %v2042, %v2070
    %v2075 = vmul.f32 %v2043, %v2071
    %v2076 = vmul.f32 %v2044, %v2072
    %v2077 = vmul.f32 %v2073, %v1191
    %v2078 = vmul.f32 %v2074, %v1191
    %v2079 = vmul.f32 %v2075, %v1191
    %v2080 = vmul.f32 %v2076, %v1191
    %v2081 = vadd.f32 %v2077, %v1201
    %v2082 = vadd.f32 %v2078, %v1201
    %v2083 = vadd.f32 %v2079, %v1201
    %v2084 = vadd.f32 %v2080, %v1201
    %v2086 = vsel %vm285, %v1203, 0
    %v2089 = vsel %vm285, %v1204, 0
    %v2092 = vsel %vm285, %v1205, 0
    %v2095 = vsel %vm285, %v1206, 0
    %2097 = vmatprep.subr.mxu0 0.0
    %2098 = vmatpush1.msra.mxu0 %v223
    %2099 = vmatprep.subr.mxu0 0.0
    %2100 = vmatpush1.msra.mxu0 %v224
    %2101 = vmatprep.subr.mxu0 0.0
    %2102 = vmatpush1.msra.mxu0 %v225
    %2103 = vmatprep.subr.mxu0 0.0
    %2104 = vmatpush1.msra.mxu0 %v226
    %2105 = vmatprep.subr.mxu0 0.0
    %2106 = vmatpush1.msra.mxu0 0.0
    %2107 = vmatprep.subr.mxu0 0.0
    %2108 = vmatpush1.msra.mxu0 0.0
    %2109 = vmatprep.subr.mxu0 0.0
    %2110 = vmatpush1.msra.mxu0 0.0
    %2111 = vmatprep.subr.mxu0 0.0
    %2112 = vmatpush1.msra.mxu0 0.0
    %2113 = vmatprep.subr.mxu0 0.0
    %2114 = vmatpush1.msra.mxu0 0.0
    %2115 = vmatprep.subr.mxu0 0.0
    %2116 = vmatpush1.msra.mxu0 0.0
    %2117 = vmatprep.subr.mxu0 0.0
    %2118 = vmatpush1.msra.mxu0 0.0
    %2119 = vmatprep.subr.mxu0 0.0
    %2120 = vmatpush1.msra.mxu0 0.0
    %2121 = vmatprep.subr.mxu0 0.0
    %2122 = vmatpush1.msra.mxu0 0.0
    %2123 = vmatprep.subr.mxu0 0.0
    %2124 = vmatpush1.msra.mxu0 0.0
    %2125 = vmatprep.subr.mxu0 0.0
    %2126 = vmatpush1.msra.mxu0 0.0
    %2127 = vmatprep.subr.mxu0 0.0
    %2128 = vmatpush1.msra.mxu0 0.0
    %2129 = vmatprep.subr.mxu0 0.0
    %2130 = vmatpush1.msra.mxu0 0.0
    %2131 = vmatprep.subr.mxu0 0.0
    %2132 = vmatpush1.msra.mxu0 0.0
    %2133 = vmatprep.subr.mxu0 0.0
    %2134 = vmatpush1.msra.mxu0 0.0
    %2135 = vmatprep.subr.mxu0 0.0
    %2136 = vmatpush1.msra.mxu0 0.0
    %2137 = vmatprep.subr.mxu0 0.0
    %2138 = vmatpush1.msra.mxu0 0.0
    %2139 = vmatprep.subr.mxu0 0.0
    %2140 = vmatpush1.msra.mxu0 0.0
    %2141 = vmatprep.subr.mxu0 0.0
    %2142 = vmatpush1.msra.mxu0 0.0
    %2143 = vmatprep.subr.mxu0 0.0
    %2144 = vmatpush1.msra.mxu0 0.0
    %2145 = vmatprep.subr.mxu0 0.0
    %2146 = vmatpush1.msra.mxu0 0.0
    %2147 = vmatprep.subr.mxu0 0.0
    %2148 = vmatpush1.msra.mxu0 0.0
    %2149 = vmatprep.subr.mxu0 0.0
    %2150 = vmatpush1.msra.mxu0 0.0
    %2151 = vmatprep.subr.mxu0 0.0
    %2152 = vmatpush1.msra.mxu0 0.0
    %2153 = vmatprep.subr.mxu0 0.0
    %2154 = vmatpush1.msra.mxu0 0.0
    %2155 = vmatprep.subr.mxu0 0.0
    %2156 = vmatpush1.msra.mxu0 0.0
    %2157 = vmatprep.subr.mxu0 0.0
    %2158 = vmatpush1.msra.mxu0 0.0
    %2159 = vmatprep.subr.mxu0 0.0
    %2160 = vmatpush1.msra.mxu0 0.0
    %2161 = vmatprep.mubr.f32.mxu0 0.0
    %2162 = vmatmul.mubr.f32.gmra.mrb[0].mxu0 %v2086
    %v2163 = vpop.f32.mrb[0].mxu0
    %v2164 = vadd.f32 0.0, %v2163
    %v2165 = vpop.f32.mrb[0].mxu0
    %2166 = vmatprep.mubr.f32.mxu0 0.0
    %2167 = vmatmul.mubr.f32.gmra.mrb[0].mxu0 %v2089
    %v2168 = vpop.f32.mrb[0].mxu0
    %v2169 = vadd.f32 0.0, %v2168
    %v2170 = vpop.f32.mrb[0].mxu0
    %2171 = vmatprep.mubr.f32.mxu0 0.0
    %2172 = vmatmul.mubr.f32.gmra.mrb[0].mxu0 %v2092
    %v2173 = vpop.f32.mrb[0].mxu0
    %v2174 = vadd.f32 0.0, %v2173
    %v2175 = vpop.f32.mrb[0].mxu0
    %2176 = vmatprep.mubr.f32.mxu0 0.0
    %2177 = vmatmul.mubr.f32.gmra.mrb[0].mxu0 %v2095
    %v2178 = vpop.f32.mrb[0].mxu0
    %v2179 = vadd.f32 0.0, %v2178
    %v2180 = vpop.f32.mrb[0].mxu0
    %2181 = vdwg.mxu0
    %v2182 = vmul.f32 %v2164, 0.25
    %v2183 = vmul.f32 %v2169, 0.25
    %v2184 = vmul.f32 %v2174, 0.25
    %v2185 = vmul.f32 %v2179, 0.25
    %2190 = vrot.lane.b32.xlu0 %v2164, 96
    %v2191 = vpop.permute.xlu0 %2190
    %2192 = vrot.lane.b32.xlu0 %v2169, 96
    %v2193 = vpop.permute.xlu0 %2192
    %2194 = vrot.lane.b32.xlu0 %v2174, 96
    %v2195 = vpop.permute.xlu0 %2194
    %2196 = vrot.lane.b32.xlu0 %v2179, 96
    %v2197 = vpop.permute.xlu0 %2196
    %v2199 = vsel %vm367, %v2182, 0
    %v2202 = vsel %vm367, %v2183, 0
    %v2205 = vsel %vm367, %v2184, 0
    %v2208 = vsel %vm367, %v2185, 0
    %v2210 = vsel %vm367, %v2191, 0
    %v2212 = vsel %vm367, %v2193, 0
    %v2214 = vsel %vm367, %v2195, 0
    %v2216 = vsel %vm367, %v2197, 0
    %2218 = vmatprep.subr.mxu0 0.0
    %2219 = vmatpush1.xpose.msra.mxu0 %v2210
    %2220 = vmatprep.subr.mxu0 0.0
    %2221 = vmatpush1.xpose.msra.mxu0 %v2212
    %2222 = vmatprep.subr.mxu0 0.0
    %2223 = vmatpush1.xpose.msra.mxu0 %v2214
    %2224 = vmatprep.subr.mxu0 0.0
    %2225 = vmatpush1.xpose.msra.mxu0 %v2216
    %2226 = vmatprep.subr.mxu0 0.0
    %2227 = vmatpush1.xpose.msra.mxu0 0.0
    %2228 = vmatprep.subr.mxu0 0.0
    %2229 = vmatpush1.xpose.msra.mxu0 0.0
    %2230 = vmatprep.subr.mxu0 0.0
    %2231 = vmatpush1.xpose.msra.mxu0 0.0
    %2232 = vmatprep.subr.mxu0 0.0
    %2233 = vmatpush1.xpose.msra.mxu0 0.0
    %2234 = vmatprep.subr.mxu0 0.0
    %2235 = vmatpush1.xpose.msra.mxu0 0.0
    %2236 = vmatprep.subr.mxu0 0.0
    %2237 = vmatpush1.xpose.msra.mxu0 0.0
    %2238 = vmatprep.subr.mxu0 0.0
    %2239 = vmatpush1.xpose.msra.mxu0 0.0
    %2240 = vmatprep.subr.mxu0 0.0
    %2241 = vmatpush1.xpose.msra.mxu0 0.0
    %2242 = vmatprep.subr.mxu0 0.0
    %2243 = vmatpush1.xpose.msra.mxu0 0.0
    %2244 = vmatprep.subr.mxu0 0.0
    %2245 = vmatpush1.xpose.msra.mxu0 0.0
    %2246 = vmatprep.subr.mxu0 0.0
    %2247 = vmatpush1.xpose.msra.mxu0 0.0
    %2248 = vmatprep.subr.mxu0 0.0
    %2249 = vmatpush1.xpose.msra.mxu0 0.0
    %2250 = vmatprep.subr.mxu0 0.0
    %2251 = vmatpush1.xpose.msra.mxu0 0.0
    %2252 = vmatprep.subr.mxu0 0.0
    %2253 = vmatpush1.xpose.msra.mxu0 0.0
    %2254 = vmatprep.subr.mxu0 0.0
    %2255 = vmatpush1.xpose.msra.mxu0 0.0
    %2256 = vmatprep.subr.mxu0 0.0
    %2257 = vmatpush1.xpose.msra.mxu0 0.0
    %2258 = vmatprep.subr.mxu0 0.0
    %2259 = vmatpush1.xpose.msra.mxu0 0.0
    %2260 = vmatprep.subr.mxu0 0.0
    %2261 = vmatpush1.xpose.msra.mxu0 0.0
    %2262 = vmatprep.subr.mxu0 0.0
    %2263 = vmatpush1.xpose.msra.mxu0 0.0
    %2264 = vmatprep.subr.mxu0 0.0
    %2265 = vmatpush1.xpose.msra.mxu0 0.0
    %2266 = vmatprep.subr.mxu0 0.0
    %2267 = vmatpush1.xpose.msra.mxu0 0.0
    %2268 = vmatprep.subr.mxu0 0.0
    %2269 = vmatpush1.xpose.msra.mxu0 0.0
    %2270 = vmatprep.subr.mxu0 0.0
    %2271 = vmatpush1.xpose.msra.mxu0 0.0
    %2272 = vmatprep.subr.mxu0 0.0
    %2273 = vmatpush1.xpose.msra.mxu0 0.0
    %2274 = vmatprep.subr.mxu0 0.0
    %2275 = vmatpush1.xpose.msra.mxu0 0.0
    %2276 = vmatprep.subr.mxu0 0.0
    %2277 = vmatpush1.xpose.msra.mxu0 0.0
    %2278 = vmatprep.subr.mxu0 0.0
    %2279 = vmatpush1.xpose.msra.mxu0 0.0
    %2280 = vmatprep.subr.mxu0 0.0
    %2281 = vmatpush1.xpose.msra.mxu0 0.0
    %2282 = vmatprep.mubr.f32.mxu0 0.0
    %2283 = vmatmul.mubr.f32.gmra.mrb[0].mxu0 %v2199
    %v2284 = vpop.f32.mrb[0].mxu0
    %v2285 = vadd.f32 %v190, %v2284
    %v2286 = vpop.f32.mrb[0].mxu0
    %2287 = vmatprep.mubr.f32.mxu0 0.0
    %2288 = vmatmul.mubr.f32.gmra.mrb[0].mxu0 %v2202
    %v2289 = vpop.f32.mrb[0].mxu0
    %v2290 = vadd.f32 %v191, %v2289
    %v2291 = vpop.f32.mrb[0].mxu0
    %2292 = vmatprep.mubr.f32.mxu0 0.0
    %2293 = vmatmul.mubr.f32.gmra.mrb[0].mxu0 %v2205
    %v2294 = vpop.f32.mrb[0].mxu0
    %v2295 = vadd.f32 %v192, %v2294
    %v2296 = vpop.f32.mrb[0].mxu0
    %2297 = vmatprep.mubr.f32.mxu0 0.0
    %2298 = vmatmul.mubr.f32.gmra.mrb[0].mxu0 %v2208
    %v2299 = vpop.f32.mrb[0].mxu0
    %v2300 = vadd.f32 %v193, %v2299
    %v2301 = vpop.f32.mrb[0].mxu0
    %2302 = vdwg.mxu0
    %vm2303 = vcmask 228352
    %v2304 = vsel %vm2303, %v2285, -inf
    %2305 = vmax.xlane.f32.xlu0 %v2304
    %v2306 = vpop.xlane.xlu0 %2305
    %v2307 = vsel %vm2303, %v2290, -inf
    %2308 = vmax.xlane.f32.xlu0 %v2307
    %v2309 = vpop.xlane.xlu0 %2308
    %v2310 = vsel %vm2303, %v2295, -inf
    %2311 = vmax.xlane.f32.xlu0 %v2310
    %v2312 = vpop.xlane.xlu0 %2311
    %vm2313 = vcmask 224256
    %v2314 = vsel %vm2313, %v2300, -inf
    %2315 = vmax.xlane.f32.xlu0 %v2314
    %v2316 = vpop.xlane.xlu0 %2315
    %v2317 = vsub.f32 %v2285, %v2306
    %v2318 = vsub.f32 %v2290, %v2309
    %v2319 = vsub.f32 %v2295, %v2312
    %v2320 = vsub.f32 %v2300, %v2316
    %v2321 = vmul.f32 %v2317, 1.442695
    %v2322 = vpow.pop %v2321
    %v2323 = vmul.f32 %v2318, 1.442695
    %v2324 = vpow.pop %v2323
    %v2325 = vmul.f32 %v2319, 1.442695
    %v2326 = vpow.pop %v2325
    %v2327 = vmul.f32 %v2320, 1.442695
    %v2328 = vpow.pop %v2327
    %v2329 = vsel %vm2303, %v2322, 0.0
    %2330 = vadd.xlane.f32.xlu0 %v2329
    %v2331 = vpop.xlane.xlu0 %2330
    %v2332 = vsel %vm2303, %v2324, 0.0
    %2333 = vadd.xlane.f32.xlu0 %v2332
    %v2334 = vpop.xlane.xlu0 %2333
    %v2335 = vsel %vm2303, %v2326, 0.0
    %2336 = vadd.xlane.f32.xlu0 %v2335
    %v2337 = vpop.xlane.xlu0 %2336
    %v2338 = vsel %vm2313, %v2328, 0.0
    %2339 = vadd.xlane.f32.xlu0 %v2338
    %v2340 = vpop.xlane.xlu0 %2339
    %v2341 = vrcp.pop %v2331
    %v2342 = vrcp.pop %v2334
    %v2343 = vrcp.pop %v2337
    %v2344 = vrcp.pop %v2340
    %v2345 = vmul.f32 %v2322, %v2341
    %v2346 = vmul.f32 %v2324, %v2342
    %v2347 = vmul.f32 %v2326, %v2343
    %v2348 = vmul.f32 %v2328, %v2344
    %2349 = vst.msk [vmem:[%s73] sm:$0xff] %vm2303, %v2345
    %2350 = vst.msk [vmem:[%s73 + $0x8] sm:$0xff] %vm2303, %v2346
    %2351 = vst.msk [vmem:[%s73 + $0x10] sm:$0xff] %vm2303, %v2347
    %2352 = vst.msk [vmem:[%s73 + $0x18] sm:$0xf] %vm2313, %v2348
    %2353 = vrot.lane.b32.xlu0 %v2164, 64
    %v2354 = vpop.permute.xlu0 %2353
    %2355 = vrot.lane.b32.xlu0 %v2169, 64
    %v2356 = vpop.permute.xlu0 %2355
    %2357 = vrot.lane.b32.xlu0 %v2174, 64
    %v2358 = vpop.permute.xlu0 %2357
    %2359 = vrot.lane.b32.xlu0 %v2179, 64
    %v2360 = vpop.permute.xlu0 %2359
    %v2365 = vsel %vm2303, %v2345, 0
    %v2368 = vsel %vm2303, %v2346, 0
    %v2371 = vsel %vm2303, %v2347, 0
    %v2374 = vsel %vm2303, %v2348, 0
    %vm2376 = vcmask 1043456
    %v2377 = vsel %vm2376, %v2360, 0
    %2379 = vmatprep.subr.mxu0 0.0
    %2380 = vmatpush1.msra.mxu0 %v2354
    %2381 = vmatprep.subr.mxu0 0.0
    %2382 = vmatpush1.msra.mxu0 %v2356
    %2383 = vmatprep.subr.mxu0 0.0
    %2384 = vmatpush1.msra.mxu0 %v2358
    %2385 = vmatprep.subr.mxu0 0.0
    %2386 = vmatpush1.msra.mxu0 %v2377
    %2387 = vmatprep.subr.mxu0 0.0
    %2388 = vmatpush1.msra.mxu0 0.0
    %2389 = vmatprep.subr.mxu0 0.0
    %2390 = vmatpush1.msra.mxu0 0.0
    %2391 = vmatprep.subr.mxu0 0.0
    %2392 = vmatpush1.msra.mxu0 0.0
    %2393 = vmatprep.subr.mxu0 0.0
    %2394 = vmatpush1.msra.mxu0 0.0
    %2395 = vmatprep.subr.mxu0 0.0
    %2396 = vmatpush1.msra.mxu0 0.0
    %2397 = vmatprep.subr.mxu0 0.0
    %2398 = vmatpush1.msra.mxu0 0.0
    %2399 = vmatprep.subr.mxu0 0.0
    %2400 = vmatpush1.msra.mxu0 0.0
    %2401 = vmatprep.subr.mxu0 0.0
    %2402 = vmatpush1.msra.mxu0 0.0
    %2403 = vmatprep.subr.mxu0 0.0
    %2404 = vmatpush1.msra.mxu0 0.0
    %2405 = vmatprep.subr.mxu0 0.0
    %2406 = vmatpush1.msra.mxu0 0.0
    %2407 = vmatprep.subr.mxu0 0.0
    %2408 = vmatpush1.msra.mxu0 0.0
    %2409 = vmatprep.subr.mxu0 0.0
    %2410 = vmatpush1.msra.mxu0 0.0
    %2411 = vmatprep.subr.mxu0 0.0
    %2412 = vmatpush1.msra.mxu0 0.0
    %2413 = vmatprep.subr.mxu0 0.0
    %2414 = vmatpush1.msra.mxu0 0.0
    %2415 = vmatprep.subr.mxu0 0.0
    %2416 = vmatpush1.msra.mxu0 0.0
    %2417 = vmatprep.subr.mxu0 0.0
    %2418 = vmatpush1.msra.mxu0 0.0
    %2419 = vmatprep.subr.mxu0 0.0
    %2420 = vmatpush1.msra.mxu0 0.0
    %2421 = vmatprep.subr.mxu0 0.0
    %2422 = vmatpush1.msra.mxu0 0.0
    %2423 = vmatprep.subr.mxu0 0.0
    %2424 = vmatpush1.msra.mxu0 0.0
    %2425 = vmatprep.subr.mxu0 0.0
    %2426 = vmatpush1.msra.mxu0 0.0
    %2427 = vmatprep.subr.mxu0 0.0
    %2428 = vmatpush1.msra.mxu0 0.0
    %2429 = vmatprep.subr.mxu0 0.0
    %2430 = vmatpush1.msra.mxu0 0.0
    %2431 = vmatprep.subr.mxu0 0.0
    %2432 = vmatpush1.msra.mxu0 0.0
    %2433 = vmatprep.subr.mxu0 0.0
    %2434 = vmatpush1.msra.mxu0 0.0
    %2435 = vmatprep.subr.mxu0 0.0
    %2436 = vmatpush1.msra.mxu0 0.0
    %2437 = vmatprep.subr.mxu0 0.0
    %2438 = vmatpush1.msra.mxu0 0.0
    %2439 = vmatprep.subr.mxu0 0.0
    %2440 = vmatpush1.msra.mxu0 0.0
    %2441 = vmatprep.subr.mxu0 0.0
    %2442 = vmatpush1.msra.mxu0 0.0
    %2443 = vmatprep.mubr.f32.mxu0 0.0
    %2444 = vmatmul.mubr.f32.gmra.mrb[0].mxu0 %v2365
    %v2445 = vpop.f32.mrb[0].mxu0
    %v2446 = vadd.f32 0.0, %v2445
    %v2447 = vpop.f32.mrb[0].mxu0
    %2448 = vmatprep.mubr.f32.mxu0 0.0
    %2449 = vmatmul.mubr.f32.gmra.mrb[0].mxu0 %v2368
    %v2450 = vpop.f32.mrb[0].mxu0
    %v2451 = vadd.f32 0.0, %v2450
    %v2452 = vpop.f32.mrb[0].mxu0
    %2453 = vmatprep.mubr.f32.mxu0 0.0
    %2454 = vmatmul.mubr.f32.gmra.mrb[0].mxu0 %v2371
    %v2455 = vpop.f32.mrb[0].mxu0
    %v2456 = vadd.f32 0.0, %v2455
    %v2457 = vpop.f32.mrb[0].mxu0
    %2458 = vmatprep.mubr.f32.mxu0 0.0
    %2459 = vmatmul.mubr.f32.gmra.mrb[0].mxu0 %v2374
    %v2460 = vpop.f32.mrb[0].mxu0
    %v2461 = vadd.f32 0.0, %v2460
    %v2462 = vpop.f32.mrb[0].mxu0
    %2463 = vdwg.mxu0
    %2464 = vrot.lane.b32.xlu0 %v2182, 112
    %v2465 = vpop.permute.xlu0 %2464
    %2466 = vrot.lane.b32.xlu0 %v2183, 112
    %v2467 = vpop.permute.xlu0 %2466
    %2468 = vrot.lane.b32.xlu0 %v2184, 112
    %v2469 = vpop.permute.xlu0 %2468
    %2470 = vrot.lane.b32.xlu0 %v2185, 112
    %v2471 = vpop.permute.xlu0 %2470
    %2472 = vrot.lane.b32.xlu0 %v2164, 80
    %v2473 = vpop.permute.xlu0 %2472
    %2474 = vrot.lane.b32.xlu0 %v2169, 80
    %v2475 = vpop.permute.xlu0 %2474
    %2476 = vrot.lane.b32.xlu0 %v2174, 80
    %v2477 = vpop.permute.xlu0 %2476
    %2478 = vrot.lane.b32.xlu0 %v2179, 80
    %v2479 = vpop.permute.xlu0 %2478
    %v2480 = vsel %vm367, %v2465, 0
    %v2482 = vsel %vm367, %v2467, 0
    %v2484 = vsel %vm367, %v2469, 0
    %v2486 = vsel %vm367, %v2471, 0
    %v2488 = vsel %vm367, %v2473, 0
    %v2490 = vsel %vm367, %v2475, 0
    %v2492 = vsel %vm367, %v2477, 0
    %v2494 = vsel %vm367, %v2479, 0
    %2496 = vmatprep.subr.mxu0 0.0
    %2497 = vmatpush1.xpose.msra.mxu0 %v2488
    %2498 = vmatprep.subr.mxu0 0.0
    %2499 = vmatpush1.xpose.msra.mxu0 %v2490
    %2500 = vmatprep.subr.mxu0 0.0
    %2501 = vmatpush1.xpose.msra.mxu0 %v2492
    %2502 = vmatprep.subr.mxu0 0.0
    %2503 = vmatpush1.xpose.msra.mxu0 %v2494
    %2504 = vmatprep.subr.mxu0 0.0
    %2505 = vmatpush1.xpose.msra.mxu0 0.0
    %2506 = vmatprep.subr.mxu0 0.0
    %2507 = vmatpush1.xpose.msra.mxu0 0.0
    %2508 = vmatprep.subr.mxu0 0.0
    %2509 = vmatpush1.xpose.msra.mxu0 0.0
    %2510 = vmatprep.subr.mxu0 0.0
    %2511 = vmatpush1.xpose.msra.mxu0 0.0
    %2512 = vmatprep.subr.mxu0 0.0
    %2513 = vmatpush1.xpose.msra.mxu0 0.0
    %2514 = vmatprep.subr.mxu0 0.0
    %2515 = vmatpush1.xpose.msra.mxu0 0.0
    %2516 = vmatprep.subr.mxu0 0.0
    %2517 = vmatpush1.xpose.msra.mxu0 0.0
    %2518 = vmatprep.subr.mxu0 0.0
    %2519 = vmatpush1.xpose.msra.mxu0 0.0
    %2520 = vmatprep.subr.mxu0 0.0
    %2521 = vmatpush1.xpose.msra.mxu0 0.0
    %2522 = vmatprep.subr.mxu0 0.0
    %2523 = vmatpush1.xpose.msra.mxu0 0.0
    %2524 = vmatprep.subr.mxu0 0.0
    %2525 = vmatpush1.xpose.msra.mxu0 0.0
    %2526 = vmatprep.subr.mxu0 0.0
    %2527 = vmatpush1.xpose.msra.mxu0 0.0
    %2528 = vmatprep.subr.mxu0 0.0
    %2529 = vmatpush1.xpose.msra.mxu0 0.0
    %2530 = vmatprep.subr.mxu0 0.0
    %2531 = vmatpush1.xpose.msra.mxu0 0.0
    %2532 = vmatprep.subr.mxu0 0.0
    %2533 = vmatpush1.xpose.msra.mxu0 0.0
    %2534 = vmatprep.subr.mxu0 0.0
    %2535 = vmatpush1.xpose.msra.mxu0 0.0
    %2536 = vmatprep.subr.mxu0 0.0
    %2537 = vmatpush1.xpose.msra.mxu0 0.0
    %2538 = vmatprep.subr.mxu0 0.0
    %2539 = vmatpush1.xpose.msra.mxu0 0.0
    %2540 = vmatprep.subr.mxu0 0.0
    %2541 = vmatpush1.xpose.msra.mxu0 0.0
    %2542 = vmatprep.subr.mxu0 0.0
    %2543 = vmatpush1.xpose.msra.mxu0 0.0
    %2544 = vmatprep.subr.mxu0 0.0
    %2545 = vmatpush1.xpose.msra.mxu0 0.0
    %2546 = vmatprep.subr.mxu0 0.0
    %2547 = vmatpush1.xpose.msra.mxu0 0.0
    %2548 = vmatprep.subr.mxu0 0.0
    %2549 = vmatpush1.xpose.msra.mxu0 0.0
    %2550 = vmatprep.subr.mxu0 0.0
    %2551 = vmatpush1.xpose.msra.mxu0 0.0
    %2552 = vmatprep.subr.mxu0 0.0
    %2553 = vmatpush1.xpose.msra.mxu0 0.0
    %2554 = vmatprep.subr.mxu0 0.0
    %2555 = vmatpush1.xpose.msra.mxu0 0.0
    %2556 = vmatprep.subr.mxu0 0.0
    %2557 = vmatpush1.xpose.msra.mxu0 0.0
    %2558 = vmatprep.subr.mxu0 0.0
    %2559 = vmatpush1.xpose.msra.mxu0 0.0
    %2560 = vmatprep.mubr.f32.mxu0 0.0
    %2561 = vmatmul.mubr.f32.gmra.mrb[0].mxu0 %v2480
    %v2562 = vpop.f32.mrb[0].mxu0
    %v2563 = vadd.f32 %v190, %v2562
    %v2564 = vpop.f32.mrb[0].mxu0
    %2565 = vmatprep.mubr.f32.mxu0 0.0
    %2566 = vmatmul.mubr.f32.gmra.mrb[0].mxu0 %v2482
    %v2567 = vpop.f32.mrb[0].mxu0
    %v2568 = vadd.f32 %v191, %v2567
    %v2569 = vpop.f32.mrb[0].mxu0
    %2570 = vmatprep.mubr.f32.mxu0 0.0
    %2571 = vmatmul.mubr.f32.gmra.mrb[0].mxu0 %v2484
    %v2572 = vpop.f32.mrb[0].mxu0
    %v2573 = vadd.f32 %v192, %v2572
    %v2574 = vpop.f32.mrb[0].mxu0
    %2575 = vmatprep.mubr.f32.mxu0 0.0
    %2576 = vmatmul.mubr.f32.gmra.mrb[0].mxu0 %v2486
    %v2577 = vpop.f32.mrb[0].mxu0
    %v2578 = vadd.f32 %v193, %v2577
    %v2579 = vpop.f32.mrb[0].mxu0
    %2580 = vdwg.mxu0
    %v2581 = vsel %vm2303, %v2563, -inf
    %2582 = vmax.xlane.f32.xlu0 %v2581
    %v2583 = vpop.xlane.xlu0 %2582
    %v2584 = vsel %vm2303, %v2568, -inf
    %2585 = vmax.xlane.f32.xlu0 %v2584
    %v2586 = vpop.xlane.xlu0 %2585
    %v2587 = vsel %vm2303, %v2573, -inf
    %2588 = vmax.xlane.f32.xlu0 %v2587
    %v2589 = vpop.xlane.xlu0 %2588
    %v2590 = vsel %vm2313, %v2578, -inf
    %2591 = vmax.xlane.f32.xlu0 %v2590
    %v2592 = vpop.xlane.xlu0 %2591
    %v2593 = vsub.f32 %v2563, %v2583
    %v2594 = vsub.f32 %v2568, %v2586
    %v2595 = vsub.f32 %v2573, %v2589
    %v2596 = vsub.f32 %v2578, %v2592
    %v2597 = vmul.f32 %v2593, 1.442695
    %v2598 = vpow.pop %v2597
    %v2599 = vmul.f32 %v2594, 1.442695
    %v2600 = vpow.pop %v2599
    %v2601 = vmul.f32 %v2595, 1.442695
    %v2602 = vpow.pop %v2601
    %v2603 = vmul.f32 %v2596, 1.442695
    %v2604 = vpow.pop %v2603
    %v2605 = vsel %vm2303, %v2598, 0.0
    %2606 = vadd.xlane.f32.xlu0 %v2605
    %v2607 = vpop.xlane.xlu0 %2606
    %v2608 = vsel %vm2303, %v2600, 0.0
    %2609 = vadd.xlane.f32.xlu0 %v2608
    %v2610 = vpop.xlane.xlu0 %2609
    %v2611 = vsel %vm2303, %v2602, 0.0
    %2612 = vadd.xlane.f32.xlu0 %v2611
    %v2613 = vpop.xlane.xlu0 %2612
    %v2614 = vsel %vm2313, %v2604, 0.0
    %2615 = vadd.xlane.f32.xlu0 %v2614
    %v2616 = vpop.xlane.xlu0 %2615
    %v2617 = vrcp.pop %v2607
    %v2618 = vrcp.pop %v2610
    %v2619 = vrcp.pop %v2613
    %v2620 = vrcp.pop %v2616
    %v2621 = vmul.f32 %v2598, %v2617
    %v2622 = vmul.f32 %v2600, %v2618
    %v2623 = vmul.f32 %v2602, %v2619
    %v2624 = vmul.f32 %v2604, %v2620
    %s2625 = scalar_lea.vmem %s73, 32
    %2626 = vst.msk [vmem:[%s2625] sm:$0xff] %vm2303, %v2621
    %2627 = vst.msk [vmem:[%s2625 + $0x8] sm:$0xff] %vm2303, %v2622
    %2628 = vst.msk [vmem:[%s2625 + $0x10] sm:$0xff] %vm2303, %v2623
    %2629 = vst.msk [vmem:[%s2625 + $0x18] sm:$0xf] %vm2313, %v2624
    %2630 = vrot.lane.b32.xlu0 %v2164, 48
    %v2631 = vpop.permute.xlu0 %2630
    %2632 = vrot.lane.b32.xlu0 %v2169, 48
    %v2633 = vpop.permute.xlu0 %2632
    %2634 = vrot.lane.b32.xlu0 %v2174, 48
    %v2635 = vpop.permute.xlu0 %2634
    %2636 = vrot.lane.b32.xlu0 %v2179, 48
    %v2637 = vpop.permute.xlu0 %2636
    %v2642 = vsel %vm2303, %v2621, 0
    %v2645 = vsel %vm2303, %v2622, 0
    %v2648 = vsel %vm2303, %v2623, 0
    %v2651 = vsel %vm2303, %v2624, 0
    %v2653 = vsel %vm2376, %v2637, 0
    %2655 = vmatprep.subr.mxu0 0.0
    %2656 = vmatpush1.msra.mxu0 %v2631
    %2657 = vmatprep.subr.mxu0 0.0
    %2658 = vmatpush1.msra.mxu0 %v2633
    %2659 = vmatprep.subr.mxu0 0.0
    %2660 = vmatpush1.msra.mxu0 %v2635
    %2661 = vmatprep.subr.mxu0 0.0
    %2662 = vmatpush1.msra.mxu0 %v2653
    %2663 = vmatprep.subr.mxu0 0.0
    %2664 = vmatpush1.msra.mxu0 0.0
    %2665 = vmatprep.subr.mxu0 0.0
    %2666 = vmatpush1.msra.mxu0 0.0
    %2667 = vmatprep.subr.mxu0 0.0
    %2668 = vmatpush1.msra.mxu0 0.0
    %2669 = vmatprep.subr.mxu0 0.0
    %2670 = vmatpush1.msra.mxu0 0.0
    %2671 = vmatprep.subr.mxu0 0.0
    %2672 = vmatpush1.msra.mxu0 0.0
    %2673 = vmatprep.subr.mxu0 0.0
    %2674 = vmatpush1.msra.mxu0 0.0
    %2675 = vmatprep.subr.mxu0 0.0
    %2676 = vmatpush1.msra.mxu0 0.0
    %2677 = vmatprep.subr.mxu0 0.0
    %2678 = vmatpush1.msra.mxu0 0.0
    %2679 = vmatprep.subr.mxu0 0.0
    %2680 = vmatpush1.msra.mxu0 0.0
    %2681 = vmatprep.subr.mxu0 0.0
    %2682 = vmatpush1.msra.mxu0 0.0
    %2683 = vmatprep.subr.mxu0 0.0
    %2684 = vmatpush1.msra.mxu0 0.0
    %2685 = vmatprep.subr.mxu0 0.0
    %2686 = vmatpush1.msra.mxu0 0.0
    %2687 = vmatprep.subr.mxu0 0.0
    %2688 = vmatpush1.msra.mxu0 0.0
    %2689 = vmatprep.subr.mxu0 0.0
    %2690 = vmatpush1.msra.mxu0 0.0
    %2691 = vmatprep.subr.mxu0 0.0
    %2692 = vmatpush1.msra.mxu0 0.0
    %2693 = vmatprep.subr.mxu0 0.0
    %2694 = vmatpush1.msra.mxu0 0.0
    %2695 = vmatprep.subr.mxu0 0.0
    %2696 = vmatpush1.msra.mxu0 0.0
    %2697 = vmatprep.subr.mxu0 0.0
    %2698 = vmatpush1.msra.mxu0 0.0
    %2699 = vmatprep.subr.mxu0 0.0
    %2700 = vmatpush1.msra.mxu0 0.0
    %2701 = vmatprep.subr.mxu0 0.0
    %2702 = vmatpush1.msra.mxu0 0.0
    %2703 = vmatprep.subr.mxu0 0.0
    %2704 = vmatpush1.msra.mxu0 0.0
    %2705 = vmatprep.subr.mxu0 0.0
    %2706 = vmatpush1.msra.mxu0 0.0
    %2707 = vmatprep.subr.mxu0 0.0
    %2708 = vmatpush1.msra.mxu0 0.0
    %2709 = vmatprep.subr.mxu0 0.0
    %2710 = vmatpush1.msra.mxu0 0.0
    %2711 = vmatprep.subr.mxu0 0.0
    %2712 = vmatpush1.msra.mxu0 0.0
    %2713 = vmatprep.subr.mxu0 0.0
    %2714 = vmatpush1.msra.mxu0 0.0
    %2715 = vmatprep.subr.mxu0 0.0
    %2716 = vmatpush1.msra.mxu0 0.0
    %2717 = vmatprep.subr.mxu0 0.0
    %2718 = vmatpush1.msra.mxu0 0.0
    %2719 = vmatprep.mubr.f32.mxu0 0.0
    %2720 = vmatmul.mubr.f32.gmra.mrb[0].mxu0 %v2642
    %v2721 = vpop.f32.mrb[0].mxu0
    %v2722 = vadd.f32 0.0, %v2721
    %v2723 = vpop.f32.mrb[0].mxu0
    %2724 = vmatprep.mubr.f32.mxu0 0.0
    %2725 = vmatmul.mubr.f32.gmra.mrb[0].mxu0 %v2645
    %v2726 = vpop.f32.mrb[0].mxu0
    %v2727 = vadd.f32 0.0, %v2726
    %v2728 = vpop.f32.mrb[0].mxu0
    %2729 = vmatprep.mubr.f32.mxu0 0.0
    %2730 = vmatmul.mubr.f32.gmra.mrb[0].mxu0 %v2648
    %v2731 = vpop.f32.mrb[0].mxu0
    %v2732 = vadd.f32 0.0, %v2731
    %v2733 = vpop.f32.mrb[0].mxu0
    %2734 = vmatprep.mubr.f32.mxu0 0.0
    %2735 = vmatmul.mubr.f32.gmra.mrb[0].mxu0 %v2651
    %v2736 = vpop.f32.mrb[0].mxu0
    %v2737 = vadd.f32 0.0, %v2736
    %v2738 = vpop.f32.mrb[0].mxu0
    %2739 = vdwg.mxu0
    %v2741 = vsel %vm367, %v2722, 0
    %v2744 = vsel %vm367, %v2727, 0
    %v2747 = vsel %vm367, %v2732, 0
    %v2750 = vsel %vm367, %v2737, 0
    %2752 = vmatprep.subr.mxu0 0.0
    %2753 = vmatpush1.msra.mxu0 %v230
    %2754 = vmatprep.subr.mxu0 0.0
    %2755 = vmatpush1.msra.mxu0 %v231
    %2756 = vmatprep.subr.mxu0 0.0
    %2757 = vmatpush1.msra.mxu0 0.0
    %2758 = vmatprep.subr.mxu0 0.0
    %2759 = vmatpush1.msra.mxu0 0.0
    %2760 = vmatprep.subr.mxu0 0.0
    %2761 = vmatpush1.msra.mxu0 0.0
    %2762 = vmatprep.subr.mxu0 0.0
    %2763 = vmatpush1.msra.mxu0 0.0
    %2764 = vmatprep.subr.mxu0 0.0
    %2765 = vmatpush1.msra.mxu0 0.0
    %2766 = vmatprep.subr.mxu0 0.0
    %2767 = vmatpush1.msra.mxu0 0.0
    %2768 = vmatprep.subr.mxu0 0.0
    %2769 = vmatpush1.msra.mxu0 0.0
    %2770 = vmatprep.subr.mxu0 0.0
    %2771 = vmatpush1.msra.mxu0 0.0
    %2772 = vmatprep.subr.mxu0 0.0
    %2773 = vmatpush1.msra.mxu0 0.0
    %2774 = vmatprep.subr.mxu0 0.0
    %2775 = vmatpush1.msra.mxu0 0.0
    %2776 = vmatprep.subr.mxu0 0.0
    %2777 = vmatpush1.msra.mxu0 0.0
    %2778 = vmatprep.subr.mxu0 0.0
    %2779 = vmatpush1.msra.mxu0 0.0
    %2780 = vmatprep.subr.mxu0 0.0
    %2781 = vmatpush1.msra.mxu0 0.0
    %2782 = vmatprep.subr.mxu0 0.0
    %2783 = vmatpush1.msra.mxu0 0.0
    %2784 = vmatprep.subr.mxu0 0.0
    %2785 = vmatpush1.msra.mxu0 0.0
    %2786 = vmatprep.subr.mxu0 0.0
    %2787 = vmatpush1.msra.mxu0 0.0
    %2788 = vmatprep.subr.mxu0 0.0
    %2789 = vmatpush1.msra.mxu0 0.0
    %2790 = vmatprep.subr.mxu0 0.0
    %2791 = vmatpush1.msra.mxu0 0.0
    %2792 = vmatprep.subr.mxu0 0.0
    %2793 = vmatpush1.msra.mxu0 0.0
    %2794 = vmatprep.subr.mxu0 0.0
    %2795 = vmatpush1.msra.mxu0 0.0
    %2796 = vmatprep.subr.mxu0 0.0
    %2797 = vmatpush1.msra.mxu0 0.0
    %2798 = vmatprep.subr.mxu0 0.0
    %2799 = vmatpush1.msra.mxu0 0.0
    %2800 = vmatprep.subr.mxu0 0.0
    %2801 = vmatpush1.msra.mxu0 0.0
    %2802 = vmatprep.subr.mxu0 0.0
    %2803 = vmatpush1.msra.mxu0 0.0
    %2804 = vmatprep.subr.mxu0 0.0
    %2805 = vmatpush1.msra.mxu0 0.0
    %2806 = vmatprep.subr.mxu0 0.0
    %2807 = vmatpush1.msra.mxu0 0.0
    %2808 = vmatprep.subr.mxu0 0.0
    %2809 = vmatpush1.msra.mxu0 0.0
    %2810 = vmatprep.subr.mxu0 0.0
    %2811 = vmatpush1.msra.mxu0 0.0
    %2812 = vmatprep.subr.mxu0 0.0
    %2813 = vmatpush1.msra.mxu0 0.0
    %2814 = vmatprep.subr.mxu0 0.0
    %2815 = vmatpush1.msra.mxu0 0.0
    %2816 = vmatprep.mubr.f32.mxu0 0.0
    %2817 = vmatmul.mubr.f32.gmra.mrb[0].mxu0 %v2741
    %v2818 = vpop.f32.mrb[0].mxu0
    %v2819 = vadd.f32 0.0, %v2818
    %v2820 = vpop.f32.mrb[0].mxu0
    %2821 = vmatprep.mubr.f32.mxu0 0.0
    %2822 = vmatmul.mubr.f32.gmra.mrb[0].mxu0 %v2744
    %v2823 = vpop.f32.mrb[0].mxu0
    %v2824 = vadd.f32 0.0, %v2823
    %v2825 = vpop.f32.mrb[0].mxu0
    %2826 = vmatprep.mubr.f32.mxu0 0.0
    %2827 = vmatmul.mubr.f32.gmra.mrb[0].mxu0 %v2747
    %v2828 = vpop.f32.mrb[0].mxu0
    %v2829 = vadd.f32 0.0, %v2828
    %v2830 = vpop.f32.mrb[0].mxu0
    %2831 = vmatprep.mubr.f32.mxu0 0.0
    %2832 = vmatmul.mubr.f32.gmra.mrb[0].mxu0 %v2750
    %v2833 = vpop.f32.mrb[0].mxu0
    %v2834 = vadd.f32 0.0, %v2833
    %v2835 = vpop.f32.mrb[0].mxu0
    %2836 = vdwg.mxu0
    %v2838 = vsel %vm367, %v2446, 0
    %v2841 = vsel %vm367, %v2451, 0
    %v2844 = vsel %vm367, %v2456, 0
    %v2847 = vsel %vm367, %v2461, 0
    %2849 = vmatprep.subr.mxu0 0.0
    %2850 = vmatpush1.msra.mxu0 %v227
    %2851 = vmatprep.subr.mxu0 0.0
    %2852 = vmatpush1.msra.mxu0 %v228
    %2853 = vmatprep.subr.mxu0 0.0
    %2854 = vmatpush1.msra.mxu0 0.0
    %2855 = vmatprep.subr.mxu0 0.0
    %2856 = vmatpush1.msra.mxu0 0.0
    %2857 = vmatprep.subr.mxu0 0.0
    %2858 = vmatpush1.msra.mxu0 0.0
    %2859 = vmatprep.subr.mxu0 0.0
    %2860 = vmatpush1.msra.mxu0 0.0
    %2861 = vmatprep.subr.mxu0 0.0
    %2862 = vmatpush1.msra.mxu0 0.0
    %2863 = vmatprep.subr.mxu0 0.0
    %2864 = vmatpush1.msra.mxu0 0.0
    %2865 = vmatprep.subr.mxu0 0.0
    %2866 = vmatpush1.msra.mxu0 0.0
    %2867 = vmatprep.subr.mxu0 0.0
    %2868 = vmatpush1.msra.mxu0 0.0
    %2869 = vmatprep.subr.mxu0 0.0
    %2870 = vmatpush1.msra.mxu0 0.0
    %2871 = vmatprep.subr.mxu0 0.0
    %2872 = vmatpush1.msra.mxu0 0.0
    %2873 = vmatprep.subr.mxu0 0.0
    %2874 = vmatpush1.msra.mxu0 0.0
    %2875 = vmatprep.subr.mxu0 0.0
    %2876 = vmatpush1.msra.mxu0 0.0
    %2877 = vmatprep.subr.mxu0 0.0
    %2878 = vmatpush1.msra.mxu0 0.0
    %2879 = vmatprep.subr.mxu0 0.0
    %2880 = vmatpush1.msra.mxu0 0.0
    %2881 = vmatprep.subr.mxu0 0.0
    %2882 = vmatpush1.msra.mxu0 0.0
    %2883 = vmatprep.subr.mxu0 0.0
    %2884 = vmatpush1.msra.mxu0 0.0
    %2885 = vmatprep.subr.mxu0 0.0
    %2886 = vmatpush1.msra.mxu0 0.0
    %2887 = vmatprep.subr.mxu0 0.0
    %2888 = vmatpush1.msra.mxu0 0.0
    %2889 = vmatprep.subr.mxu0 0.0
    %2890 = vmatpush1.msra.mxu0 0.0
    %2891 = vmatprep.subr.mxu0 0.0
    %2892 = vmatpush1.msra.mxu0 0.0
    %2893 = vmatprep.subr.mxu0 0.0
    %2894 = vmatpush1.msra.mxu0 0.0
    %2895 = vmatprep.subr.mxu0 0.0
    %2896 = vmatpush1.msra.mxu0 0.0
    %2897 = vmatprep.subr.mxu0 0.0
    %2898 = vmatpush1.msra.mxu0 0.0
    %2899 = vmatprep.subr.mxu0 0.0
    %2900 = vmatpush1.msra.mxu0 0.0
    %2901 = vmatprep.subr.mxu0 0.0
    %2902 = vmatpush1.msra.mxu0 0.0
    %2903 = vmatprep.subr.mxu0 0.0
    %2904 = vmatpush1.msra.mxu0 0.0
    %2905 = vmatprep.subr.mxu0 0.0
    %2906 = vmatpush1.msra.mxu0 0.0
    %2907 = vmatprep.subr.mxu0 0.0
    %2908 = vmatpush1.msra.mxu0 0.0
    %2909 = vmatprep.subr.mxu0 0.0
    %2910 = vmatpush1.msra.mxu0 0.0
    %2911 = vmatprep.subr.mxu0 0.0
    %2912 = vmatpush1.msra.mxu0 0.0
    %2913 = vmatprep.mubr.f32.mxu0 0.0
    %2914 = vmatmul.mubr.f32.gmra.mrb[0].mxu0 %v2838
    %v2915 = vpop.f32.mrb[0].mxu0
    %v2916 = vadd.f32 %v2819, %v2915
    %v2917 = vpop.f32.mrb[0].mxu0
    %2918 = vmatprep.mubr.f32.mxu0 0.0
    %2919 = vmatmul.mubr.f32.gmra.mrb[0].mxu0 %v2841
    %v2920 = vpop.f32.mrb[0].mxu0
    %v2921 = vadd.f32 %v2824, %v2920
    %v2922 = vpop.f32.mrb[0].mxu0
    %2923 = vmatprep.mubr.f32.mxu0 0.0
    %2924 = vmatmul.mubr.f32.gmra.mrb[0].mxu0 %v2844
    %v2925 = vpop.f32.mrb[0].mxu0
    %v2926 = vadd.f32 %v2829, %v2925
    %v2927 = vpop.f32.mrb[0].mxu0
    %2928 = vmatprep.mubr.f32.mxu0 0.0
    %2929 = vmatmul.mubr.f32.gmra.mrb[0].mxu0 %v2847
    %v2930 = vpop.f32.mrb[0].mxu0
    %v2931 = vadd.f32 %v2834, %v2930
    %v2932 = vpop.f32.mrb[0].mxu0
    %2933 = vdwg.mxu0
    %v2934 = vadd.f32 %v2916, %v1203
    %v2935 = vadd.f32 %v2921, %v1204
    %v2936 = vadd.f32 %v2926, %v1205
    %v2937 = vadd.f32 %v2931, %v1206
    %v2938 = vsel %vm285, %v2934, 0.0
    %2939 = vadd.xlane.f32.xlu0 %v2938
    %v2940 = vpop.xlane.xlu0 %2939
    %v2941 = vsel %vm285, %v2935, 0.0
    %2942 = vadd.xlane.f32.xlu0 %v2941
    %v2943 = vpop.xlane.xlu0 %2942
    %v2944 = vsel %vm285, %v2936, 0.0
    %2945 = vadd.xlane.f32.xlu0 %v2944
    %v2946 = vpop.xlane.xlu0 %2945
    %v2947 = vsel %vm1142, %v2937, 0.0
    %2948 = vadd.xlane.f32.xlu0 %v2947
    %v2949 = vpop.xlane.xlu0 %2948
    %v2950 = vmul.f32 %v2940, %v1146
    %v2951 = vmul.f32 %v2943, %v1146
    %v2952 = vmul.f32 %v2946, %v1146
    %v2953 = vmul.f32 %v2949, %v1146
    %v2954 = vsub.f32 %v2934, %v2950
    %v2955 = vsub.f32 %v2935, %v2951
    %v2956 = vsub.f32 %v2936, %v2952
    %v2957 = vsub.f32 %v2937, %v2953
    %v2958 = vmul.f32 %v2954, %v2954
    %v2959 = vmul.f32 %v2955, %v2955
    %v2960 = vmul.f32 %v2956, %v2956
    %v2961 = vmul.f32 %v2957, %v2957
    %v2962 = vsel %vm285, %v2958, 0.0
    %2963 = vadd.xlane.f32.xlu0 %v2962
    %v2964 = vpop.xlane.xlu0 %2963
    %v2965 = vsel %vm285, %v2959, 0.0
    %2966 = vadd.xlane.f32.xlu0 %v2965
    %v2967 = vpop.xlane.xlu0 %2966
    %v2968 = vsel %vm285, %v2960, 0.0
    %2969 = vadd.xlane.f32.xlu0 %v2968
    %v2970 = vpop.xlane.xlu0 %2969
    %v2971 = vsel %vm1142, %v2961, 0.0
    %2972 = vadd.xlane.f32.xlu0 %v2971
    %v2973 = vpop.xlane.xlu0 %2972
    %v2974 = vmul.f32 %v2964, %v1146
    %v2975 = vmul.f32 %v2967, %v1146
    %v2976 = vmul.f32 %v2970, %v1146
    %v2977 = vmul.f32 %v2973, %v1146
    %v2978 = vadd.f32 %v2974, 1e-06
    %v2979 = vadd.f32 %v2975, 1e-06
    %v2980 = vadd.f32 %v2976, 1e-06
    %v2981 = vadd.f32 %v2977, 1e-06
    %v2982 = vrsqrt.pop %v2978
    %v2983 = vrsqrt.pop %v2979
    %v2984 = vrsqrt.pop %v2980
    %v2985 = vrsqrt.pop %v2981
    %v2986 = vmul.f32 %v2954, %v2982
    %v2987 = vmul.f32 %v2955, %v2983
    %v2988 = vmul.f32 %v2956, %v2984
    %v2989 = vmul.f32 %v2957, %v2985
    %v2991 = vlaneseq
    %v2992 = vshrl.u32 %v2991, 7
    %v2993 = vsub.s32 0, %v2992
    %v2994 = vrot.slane %v232, %v2993
    %v2996 = vmul.f32 %v2986, %v2994
    %v2997 = vmul.f32 %v2987, %v2994
    %v2998 = vmul.f32 %v2988, %v2994
    %v2999 = vmul.f32 %v2989, %v2994
    %v3001 = vlaneseq
    %v3002 = vshrl.u32 %v3001, 7
    %v3003 = vsub.s32 0, %v3002
    %v3004 = vrot.slane %v233, %v3003
    %v3006 = vadd.f32 %v2996, %v3004
    %v3007 = vadd.f32 %v2997, %v3004
    %v3008 = vadd.f32 %v2998, %v3004
    %v3009 = vadd.f32 %v2999, %v3004
    %v3011 = vlaneseq
    %v3012 = vshrl.u32 %v3011, 7
    %v3013 = vsub.s32 0, %v3012
    %v3014 = vrot.slane %v238, %v3013
    %v3017 = vsel %vm285, %v3006, 0
    %v3020 = vsel %vm285, %v3007, 0
    %v3023 = vsel %vm285, %v3008, 0
    %v3026 = vsel %vm285, %v3009, 0
    %3028 = vmatprep.subr.mxu0 0.0
    %3029 = vmatpush1.msra.mxu0 %v234
    %3030 = vmatprep.subr.mxu0 0.0
    %3031 = vmatpush1.msra.mxu0 %v235
    %3032 = vmatprep.subr.mxu0 0.0
    %3033 = vmatpush1.msra.mxu0 %v236
    %3034 = vmatprep.subr.mxu0 0.0
    %3035 = vmatpush1.msra.mxu0 %v237
    %3036 = vmatprep.subr.mxu0 0.0
    %3037 = vmatpush1.msra.mxu0 0.0
    %3038 = vmatprep.subr.mxu0 0.0
    %3039 = vmatpush1.msra.mxu0 0.0
    %3040 = vmatprep.subr.mxu0 0.0
    %3041 = vmatpush1.msra.mxu0 0.0
    %3042 = vmatprep.subr.mxu0 0.0
    %3043 = vmatpush1.msra.mxu0 0.0
    %3044 = vmatprep.subr.mxu0 0.0
    %3045 = vmatpush1.msra.mxu0 0.0
    %3046 = vmatprep.subr.mxu0 0.0
    %3047 = vmatpush1.msra.mxu0 0.0
    %3048 = vmatprep.subr.mxu0 0.0
    %3049 = vmatpush1.msra.mxu0 0.0
    %3050 = vmatprep.subr.mxu0 0.0
    %3051 = vmatpush1.msra.mxu0 0.0
    %3052 = vmatprep.subr.mxu0 0.0
    %3053 = vmatpush1.msra.mxu0 0.0
    %3054 = vmatprep.subr.mxu0 0.0
    %3055 = vmatpush1.msra.mxu0 0.0
    %3056 = vmatprep.subr.mxu0 0.0
    %3057 = vmatpush1.msra.mxu0 0.0
    %3058 = vmatprep.subr.mxu0 0.0
    %3059 = vmatpush1.msra.mxu0 0.0
    %3060 = vmatprep.subr.mxu0 0.0
    %3061 = vmatpush1.msra.mxu0 0.0
    %3062 = vmatprep.subr.mxu0 0.0
    %3063 = vmatpush1.msra.mxu0 0.0
    %3064 = vmatprep.subr.mxu0 0.0
    %3065 = vmatpush1.msra.mxu0 0.0
    %3066 = vmatprep.subr.mxu0 0.0
    %3067 = vmatpush1.msra.mxu0 0.0
    %3068 = vmatprep.subr.mxu0 0.0
    %3069 = vmatpush1.msra.mxu0 0.0
    %3070 = vmatprep.subr.mxu0 0.0
    %3071 = vmatpush1.msra.mxu0 0.0
    %3072 = vmatprep.subr.mxu0 0.0
    %3073 = vmatpush1.msra.mxu0 0.0
    %3074 = vmatprep.subr.mxu0 0.0
    %3075 = vmatpush1.msra.mxu0 0.0
    %3076 = vmatprep.subr.mxu0 0.0
    %3077 = vmatpush1.msra.mxu0 0.0
    %3078 = vmatprep.subr.mxu0 0.0
    %3079 = vmatpush1.msra.mxu0 0.0
    %3080 = vmatprep.subr.mxu0 0.0
    %3081 = vmatpush1.msra.mxu0 0.0
    %3082 = vmatprep.subr.mxu0 0.0
    %3083 = vmatpush1.msra.mxu0 0.0
    %3084 = vmatprep.subr.mxu0 0.0
    %3085 = vmatpush1.msra.mxu0 0.0
    %3086 = vmatprep.subr.mxu0 0.0
    %3087 = vmatpush1.msra.mxu0 0.0
    %3088 = vmatprep.subr.mxu0 0.0
    %3089 = vmatpush1.msra.mxu0 0.0
    %3090 = vmatprep.subr.mxu0 0.0
    %3091 = vmatpush1.msra.mxu0 0.0
    %3092 = vmatprep.mubr.f32.mxu0 0.0
    %3093 = vmatmul.mubr.f32.gmra.mrb[0].mxu0 %v3017
    %v3094 = vpop.f32.mrb[0].mxu0
    %v3095 = vadd.f32 %v3014, %v3094
    %v3096 = vpop.f32.mrb[0].mxu0
    %3097 = vmatprep.mubr.f32.mxu0 0.0
    %3098 = vmatmul.mubr.f32.gmra.mrb[0].mxu0 %v3020
    %v3099 = vpop.f32.mrb[0].mxu0
    %v3100 = vadd.f32 %v3014, %v3099
    %v3101 = vpop.f32.mrb[0].mxu0
    %3102 = vmatprep.mubr.f32.mxu0 0.0
    %3103 = vmatmul.mubr.f32.gmra.mrb[0].mxu0 %v3023
    %v3104 = vpop.f32.mrb[0].mxu0
    %v3105 = vadd.f32 %v3014, %v3104
    %v3106 = vpop.f32.mrb[0].mxu0
    %3107 = vmatprep.mubr.f32.mxu0 0.0
    %3108 = vmatmul.mubr.f32.gmra.mrb[0].mxu0 %v3026
    %v3109 = vpop.f32.mrb[0].mxu0
    %v3110 = vadd.f32 %v3014, %v3109
    %v3111 = vpop.f32.mrb[0].mxu0
    %3112 = vdwg.mxu0
    %v3113 = vmax.f32 %v3095, 0.0
    %v3114 = vmax.f32 %v3100, 0.0
    %v3115 = vmax.f32 %v3105, 0.0
    %v3116 = vmax.f32 %v3110, 0.0
    %v3118 = vlaneseq
    %v3119 = vshrl.u32 %v3118, 7
    %v3120 = vsub.s32 0, %v3119
    %v3121 = vrot.slane %v247, %v3120
    %vm3123 = vcmask 523264
    %v3125 = vsel %vm3123, %v3113, 0
    %v3128 = vsel %vm3123, %v3114, 0
    %v3131 = vsel %vm3123, %v3115, 0
    %v3134 = vsel %vm3123, %v3116, 0
    %3136 = vmatprep.subr.mxu0 0.0
    %3137 = vmatpush1.msra.mxu0 %v239
    %3138 = vmatprep.subr.mxu0 0.0
    %3139 = vmatpush1.msra.mxu0 %v240
    %3140 = vmatprep.subr.mxu0 0.0
    %3141 = vmatpush1.msra.mxu0 %v241
    %3142 = vmatprep.subr.mxu0 0.0
    %3143 = vmatpush1.msra.mxu0 %v242
    %3144 = vmatprep.subr.mxu0 0.0
    %3145 = vmatpush1.msra.mxu0 %v243
    %3146 = vmatprep.subr.mxu0 0.0
    %3147 = vmatpush1.msra.mxu0 %v244
    %3148 = vmatprep.subr.mxu0 0.0
    %3149 = vmatpush1.msra.mxu0 %v245
    %3150 = vmatprep.subr.mxu0 0.0
    %3151 = vmatpush1.msra.mxu0 %v246
    %3152 = vmatprep.subr.mxu0 0.0
    %3153 = vmatpush1.msra.mxu0 0.0
    %3154 = vmatprep.subr.mxu0 0.0
    %3155 = vmatpush1.msra.mxu0 0.0
    %3156 = vmatprep.subr.mxu0 0.0
    %3157 = vmatpush1.msra.mxu0 0.0
    %3158 = vmatprep.subr.mxu0 0.0
    %3159 = vmatpush1.msra.mxu0 0.0
    %3160 = vmatprep.subr.mxu0 0.0
    %3161 = vmatpush1.msra.mxu0 0.0
    %3162 = vmatprep.subr.mxu0 0.0
    %3163 = vmatpush1.msra.mxu0 0.0
    %3164 = vmatprep.subr.mxu0 0.0
    %3165 = vmatpush1.msra.mxu0 0.0
    %3166 = vmatprep.subr.mxu0 0.0
    %3167 = vmatpush1.msra.mxu0 0.0
    %3168 = vmatprep.subr.mxu0 0.0
    %3169 = vmatpush1.msra.mxu0 0.0
    %3170 = vmatprep.subr.mxu0 0.0
    %3171 = vmatpush1.msra.mxu0 0.0
    %3172 = vmatprep.subr.mxu0 0.0
    %3173 = vmatpush1.msra.mxu0 0.0
    %3174 = vmatprep.subr.mxu0 0.0
    %3175 = vmatpush1.msra.mxu0 0.0
    %3176 = vmatprep.subr.mxu0 0.0
    %3177 = vmatpush1.msra.mxu0 0.0
    %3178 = vmatprep.subr.mxu0 0.0
    %3179 = vmatpush1.msra.mxu0 0.0
    %3180 = vmatprep.subr.mxu0 0.0
    %3181 = vmatpush1.msra.mxu0 0.0
    %3182 = vmatprep.subr.mxu0 0.0
    %3183 = vmatpush1.msra.mxu0 0.0
    %3184 = vmatprep.subr.mxu0 0.0
    %3185 = vmatpush1.msra.mxu0 0.0
    %3186 = vmatprep.subr.mxu0 0.0
    %3187 = vmatpush1.msra.mxu0 0.0
    %3188 = vmatprep.subr.mxu0 0.0
    %3189 = vmatpush1.msra.mxu0 0.0
    %3190 = vmatprep.subr.mxu0 0.0
    %3191 = vmatpush1.msra.mxu0 0.0
    %3192 = vmatprep.subr.mxu0 0.0
    %3193 = vmatpush1.msra.mxu0 0.0
    %3194 = vmatprep.subr.mxu0 0.0
    %3195 = vmatpush1.msra.mxu0 0.0
    %3196 = vmatprep.subr.mxu0 0.0
    %3197 = vmatpush1.msra.mxu0 0.0
    %3198 = vmatprep.subr.mxu0 0.0
    %3199 = vmatpush1.msra.mxu0 0.0
    %3200 = vmatprep.mubr.f32.mxu0 0.0
    %3201 = vmatmul.mubr.f32.gmra.mrb[0].mxu0 %v3125
    %v3202 = vpop.f32.mrb[0].mxu0
    %v3203 = vadd.f32 %v3121, %v3202
    %v3204 = vpop.f32.mrb[0].mxu0
    %3205 = vmatprep.mubr.f32.mxu0 0.0
    %3206 = vmatmul.mubr.f32.gmra.mrb[0].mxu0 %v3128
    %v3207 = vpop.f32.mrb[0].mxu0
    %v3208 = vadd.f32 %v3121, %v3207
    %v3209 = vpop.f32.mrb[0].mxu0
    %3210 = vmatprep.mubr.f32.mxu0 0.0
    %3211 = vmatmul.mubr.f32.gmra.mrb[0].mxu0 %v3131
    %v3212 = vpop.f32.mrb[0].mxu0
    %v3213 = vadd.f32 %v3121, %v3212
    %v3214 = vpop.f32.mrb[0].mxu0
    %3215 = vmatprep.mubr.f32.mxu0 0.0
    %3216 = vmatmul.mubr.f32.gmra.mrb[0].mxu0 %v3134
    %v3217 = vpop.f32.mrb[0].mxu0
    %v3218 = vadd.f32 %v3121, %v3217
    %v3219 = vpop.f32.mrb[0].mxu0
    %3220 = vdwg.mxu0
    %v3221 = vadd.f32 %v3203, %v3006
    %v3222 = vadd.f32 %v3208, %v3007
    %v3223 = vadd.f32 %v3213, %v3008
    %v3224 = vadd.f32 %v3218, %v3009
    %v3225 = vsel %vm285, %v3221, 0.0
    %3226 = vadd.xlane.f32.xlu0 %v3225
    %v3227 = vpop.xlane.xlu0 %3226
    %v3228 = vsel %vm285, %v3222, 0.0
    %3229 = vadd.xlane.f32.xlu0 %v3228
    %v3230 = vpop.xlane.xlu0 %3229
    %v3231 = vsel %vm285, %v3223, 0.0
    %3232 = vadd.xlane.f32.xlu0 %v3231
    %v3233 = vpop.xlane.xlu0 %3232
    %v3234 = vsel %vm1142, %v3224, 0.0
    %3235 = vadd.xlane.f32.xlu0 %v3234
    %v3236 = vpop.xlane.xlu0 %3235
    %v3237 = vmul.f32 %v3227, %v1146
    %v3238 = vmul.f32 %v3230, %v1146
    %v3239 = vmul.f32 %v3233, %v1146
    %v3240 = vmul.f32 %v3236, %v1146
    %v3241 = vsub.f32 %v3221, %v3237
    %v3242 = vsub.f32 %v3222, %v3238
    %v3243 = vsub.f32 %v3223, %v3239
    %v3244 = vsub.f32 %v3224, %v3240
    %v3245 = vmul.f32 %v3241, %v3241
    %v3246 = vmul.f32 %v3242, %v3242
    %v3247 = vmul.f32 %v3243, %v3243
    %v3248 = vmul.f32 %v3244, %v3244
    %v3249 = vsel %vm285, %v3245, 0.0
    %3250 = vadd.xlane.f32.xlu0 %v3249
    %v3251 = vpop.xlane.xlu0 %3250
    %v3252 = vsel %vm285, %v3246, 0.0
    %3253 = vadd.xlane.f32.xlu0 %v3252
    %v3254 = vpop.xlane.xlu0 %3253
    %v3255 = vsel %vm285, %v3247, 0.0
    %3256 = vadd.xlane.f32.xlu0 %v3255
    %v3257 = vpop.xlane.xlu0 %3256
    %v3258 = vsel %vm1142, %v3248, 0.0
    %3259 = vadd.xlane.f32.xlu0 %v3258
    %v3260 = vpop.xlane.xlu0 %3259
    %v3261 = vmul.f32 %v3251, %v1146
    %v3262 = vmul.f32 %v3254, %v1146
    %v3263 = vmul.f32 %v3257, %v1146
    %v3264 = vmul.f32 %v3260, %v1146
    %v3265 = vadd.f32 %v3261, 1e-06
    %v3266 = vadd.f32 %v3262, 1e-06
    %v3267 = vadd.f32 %v3263, 1e-06
    %v3268 = vadd.f32 %v3264, 1e-06
    %v3269 = vrsqrt.pop %v3265
    %v3270 = vrsqrt.pop %v3266
    %v3271 = vrsqrt.pop %v3267
    %v3272 = vrsqrt.pop %v3268
    %v3273 = vmul.f32 %v3241, %v3269
    %v3274 = vmul.f32 %v3242, %v3270
    %v3275 = vmul.f32 %v3243, %v3271
    %v3276 = vmul.f32 %v3244, %v3272
    %v3278 = vlaneseq
    %v3279 = vshrl.u32 %v3278, 7
    %v3280 = vsub.s32 0, %v3279
    %v3281 = vrot.slane %v248, %v3280
    %v3283 = vmul.f32 %v3273, %v3281
    %v3284 = vmul.f32 %v3274, %v3281
    %v3285 = vmul.f32 %v3275, %v3281
    %v3286 = vmul.f32 %v3276, %v3281
    %v3288 = vlaneseq
    %v3289 = vshrl.u32 %v3288, 7
    %v3290 = vsub.s32 0, %v3289
    %v3291 = vrot.slane %v249, %v3290
    %v3293 = vadd.f32 %v3283, %v3291
    %v3294 = vadd.f32 %v3284, %v3291
    %v3295 = vadd.f32 %v3285, %v3291
    %v3296 = vadd.f32 %v3286, %v3291
    %v3298 = vsel %vm285, %v2081, 0
    %v3301 = vsel %vm285, %v2082, 0
    %v3304 = vsel %vm285, %v2083, 0
    %v3307 = vsel %vm285, %v2084, 0
    %3309 = vmatprep.subr.mxu0 0.0
    %3310 = vmatpush1.msra.mxu0 %v223
    %3311 = vmatprep.subr.mxu0 0.0
    %3312 = vmatpush1.msra.mxu0 %v224
    %3313 = vmatprep.subr.mxu0 0.0
    %3314 = vmatpush1.msra.mxu0 %v225
    %3315 = vmatprep.subr.mxu0 0.0
    %3316 = vmatpush1.msra.mxu0 %v226
    %3317 = vmatprep.subr.mxu0 0.0
    %3318 = vmatpush1.msra.mxu0 0.0
    %3319 = vmatprep.subr.mxu0 0.0
    %3320 = vmatpush1.msra.mxu0 0.0
    %3321 = vmatprep.subr.mxu0 0.0
    %3322 = vmatpush1.msra.mxu0 0.0
    %3323 = vmatprep.subr.mxu0 0.0
    %3324 = vmatpush1.msra.mxu0 0.0
    %3325 = vmatprep.subr.mxu0 0.0
    %3326 = vmatpush1.msra.mxu0 0.0
    %3327 = vmatprep.subr.mxu0 0.0
    %3328 = vmatpush1.msra.mxu0 0.0
    %3329 = vmatprep.subr.mxu0 0.0
    %3330 = vmatpush1.msra.mxu0 0.0
    %3331 = vmatprep.subr.mxu0 0.0
    %3332 = vmatpush1.msra.mxu0 0.0
    %3333 = vmatprep.subr.mxu0 0.0
    %3334 = vmatpush1.msra.mxu0 0.0
    %3335 = vmatprep.subr.mxu0 0.0
    %3336 = vmatpush1.msra.mxu0 0.0
    %3337 = vmatprep.subr.mxu0 0.0
    %3338 = vmatpush1.msra.mxu0 0.0
    %3339 = vmatprep.subr.mxu0 0.0
    %3340 = vmatpush1.msra.mxu0 0.0
    %3341 = vmatprep.subr.mxu0 0.0
    %3342 = vmatpush1.msra.mxu0 0.0
    %3343 = vmatprep.subr.mxu0 0.0
    %3344 = vmatpush1.msra.mxu0 0.0
    %3345 = vmatprep.subr.mxu0 0.0
    %3346 = vmatpush1.msra.mxu0 0.0
    %3347 = vmatprep.subr.mxu0 0.0
    %3348 = vmatpush1.msra.mxu0 0.0
    %3349 = vmatprep.subr.mxu0 0.0
    %3350 = vmatpush1.msra.mxu0 0.0
    %3351 = vmatprep.subr.mxu0 0.0
    %3352 = vmatpush1.msra.mxu0 0.0
    %3353 = vmatprep.subr.mxu0 0.0
    %3354 = vmatpush1.msra.mxu0 0.0
    %3355 = vmatprep.subr.mxu0 0.0
    %3356 = vmatpush1.msra.mxu0 0.0
    %3357 = vmatprep.subr.mxu0 0.0
    %3358 = vmatpush1.msra.mxu0 0.0
    %3359 = vmatprep.subr.mxu0 0.0
    %3360 = vmatpush1.msra.mxu0 0.0
    %3361 = vmatprep.subr.mxu0 0.0
    %3362 = vmatpush1.msra.mxu0 0.0
    %3363 = vmatprep.subr.mxu0 0.0
    %3364 = vmatpush1.msra.mxu0 0.0
    %3365 = vmatprep.subr.mxu0 0.0
    %3366 = vmatpush1.msra.mxu0 0.0
    %3367 = vmatprep.subr.mxu0 0.0
    %3368 = vmatpush1.msra.mxu0 0.0
    %3369 = vmatprep.subr.mxu0 0.0
    %3370 = vmatpush1.msra.mxu0 0.0
    %3371 = vmatprep.subr.mxu0 0.0
    %3372 = vmatpush1.msra.mxu0 0.0
    %3373 = vmatprep.mubr.f32.mxu0 0.0
    %3374 = vmatmul.mubr.f32.gmra.mrb[0].mxu0 %v3298
    %v3375 = vpop.f32.mrb[0].mxu0
    %v3376 = vadd.f32 0.0, %v3375
    %v3377 = vpop.f32.mrb[0].mxu0
    %3378 = vmatprep.mubr.f32.mxu0 0.0
    %3379 = vmatmul.mubr.f32.gmra.mrb[0].mxu0 %v3301
    %v3380 = vpop.f32.mrb[0].mxu0
    %v3381 = vadd.f32 0.0, %v3380
    %v3382 = vpop.f32.mrb[0].mxu0
    %3383 = vmatprep.mubr.f32.mxu0 0.0
    %3384 = vmatmul.mubr.f32.gmra.mrb[0].mxu0 %v3304
    %v3385 = vpop.f32.mrb[0].mxu0
    %v3386 = vadd.f32 0.0, %v3385
    %v3387 = vpop.f32.mrb[0].mxu0
    %3388 = vmatprep.mubr.f32.mxu0 0.0
    %3389 = vmatmul.mubr.f32.gmra.mrb[0].mxu0 %v3307
    %v3390 = vpop.f32.mrb[0].mxu0
    %v3391 = vadd.f32 0.0, %v3390
    %v3392 = vpop.f32.mrb[0].mxu0
    %3393 = vdwg.mxu0
    %v3394 = vmul.f32 %v3376, 0.25
    %v3395 = vmul.f32 %v3381, 0.25
    %v3396 = vmul.f32 %v3386, 0.25
    %v3397 = vmul.f32 %v3391, 0.25
    %3402 = vrot.lane.b32.xlu0 %v3376, 96
    %v3403 = vpop.permute.xlu0 %3402
    %3404 = vrot.lane.b32.xlu0 %v3381, 96
    %v3405 = vpop.permute.xlu0 %3404
    %3406 = vrot.lane.b32.xlu0 %v3386, 96
    %v3407 = vpop.permute.xlu0 %3406
    %3408 = vrot.lane.b32.xlu0 %v3391, 96
    %v3409 = vpop.permute.xlu0 %3408
    %v3411 = vsel %vm367, %v3394, 0
    %v3414 = vsel %vm367, %v3395, 0
    %v3417 = vsel %vm367, %v3396, 0
    %v3420 = vsel %vm367, %v3397, 0
    %v3422 = vsel %vm367, %v3403, 0
    %v3424 = vsel %vm367, %v3405, 0
    %v3426 = vsel %vm367, %v3407, 0
    %v3428 = vsel %vm367, %v3409, 0
    %3430 = vmatprep.subr.mxu0 0.0
    %3431 = vmatpush1.xpose.msra.mxu0 %v3422
    %3432 = vmatprep.subr.mxu0 0.0
    %3433 = vmatpush1.xpose.msra.mxu0 %v3424
    %3434 = vmatprep.subr.mxu0 0.0
    %3435 = vmatpush1.xpose.msra.mxu0 %v3426
    %3436 = vmatprep.subr.mxu0 0.0
    %3437 = vmatpush1.xpose.msra.mxu0 %v3428
    %3438 = vmatprep.subr.mxu0 0.0
    %3439 = vmatpush1.xpose.msra.mxu0 0.0
    %3440 = vmatprep.subr.mxu0 0.0
    %3441 = vmatpush1.xpose.msra.mxu0 0.0
    %3442 = vmatprep.subr.mxu0 0.0
    %3443 = vmatpush1.xpose.msra.mxu0 0.0
    %3444 = vmatprep.subr.mxu0 0.0
    %3445 = vmatpush1.xpose.msra.mxu0 0.0
    %3446 = vmatprep.subr.mxu0 0.0
    %3447 = vmatpush1.xpose.msra.mxu0 0.0
    %3448 = vmatprep.subr.mxu0 0.0
    %3449 = vmatpush1.xpose.msra.mxu0 0.0
    %3450 = vmatprep.subr.mxu0 0.0
    %3451 = vmatpush1.xpose.msra.mxu0 0.0
    %3452 = vmatprep.subr.mxu0 0.0
    %3453 = vmatpush1.xpose.msra.mxu0 0.0
    %3454 = vmatprep.subr.mxu0 0.0
    %3455 = vmatpush1.xpose.msra.mxu0 0.0
    %3456 = vmatprep.subr.mxu0 0.0
    %3457 = vmatpush1.xpose.msra.mxu0 0.0
    %3458 = vmatprep.subr.mxu0 0.0
    %3459 = vmatpush1.xpose.msra.mxu0 0.0
    %3460 = vmatprep.subr.mxu0 0.0
    %3461 = vmatpush1.xpose.msra.mxu0 0.0
    %3462 = vmatprep.subr.mxu0 0.0
    %3463 = vmatpush1.xpose.msra.mxu0 0.0
    %3464 = vmatprep.subr.mxu0 0.0
    %3465 = vmatpush1.xpose.msra.mxu0 0.0
    %3466 = vmatprep.subr.mxu0 0.0
    %3467 = vmatpush1.xpose.msra.mxu0 0.0
    %3468 = vmatprep.subr.mxu0 0.0
    %3469 = vmatpush1.xpose.msra.mxu0 0.0
    %3470 = vmatprep.subr.mxu0 0.0
    %3471 = vmatpush1.xpose.msra.mxu0 0.0
    %3472 = vmatprep.subr.mxu0 0.0
    %3473 = vmatpush1.xpose.msra.mxu0 0.0
    %3474 = vmatprep.subr.mxu0 0.0
    %3475 = vmatpush1.xpose.msra.mxu0 0.0
    %3476 = vmatprep.subr.mxu0 0.0
    %3477 = vmatpush1.xpose.msra.mxu0 0.0
    %3478 = vmatprep.subr.mxu0 0.0
    %3479 = vmatpush1.xpose.msra.mxu0 0.0
    %3480 = vmatprep.subr.mxu0 0.0
    %3481 = vmatpush1.xpose.msra.mxu0 0.0
    %3482 = vmatprep.subr.mxu0 0.0
    %3483 = vmatpush1.xpose.msra.mxu0 0.0
    %3484 = vmatprep.subr.mxu0 0.0
    %3485 = vmatpush1.xpose.msra.mxu0 0.0
    %3486 = vmatprep.subr.mxu0 0.0
    %3487 = vmatpush1.xpose.msra.mxu0 0.0
    %3488 = vmatprep.subr.mxu0 0.0
    %3489 = vmatpush1.xpose.msra.mxu0 0.0
    %3490 = vmatprep.subr.mxu0 0.0
    %3491 = vmatpush1.xpose.msra.mxu0 0.0
    %3492 = vmatprep.subr.mxu0 0.0
    %3493 = vmatpush1.xpose.msra.mxu0 0.0
    %3494 = vmatprep.mubr.f32.mxu0 0.0
    %3495 = vmatmul.mubr.f32.gmra.mrb[0].mxu0 %v3411
    %v3496 = vpop.f32.mrb[0].mxu0
    %v3497 = vadd.f32 %v190, %v3496
    %v3498 = vpop.f32.mrb[0].mxu0
    %3499 = vmatprep.mubr.f32.mxu0 0.0
    %3500 = vmatmul.mubr.f32.gmra.mrb[0].mxu0 %v3414
    %v3501 = vpop.f32.mrb[0].mxu0
    %v3502 = vadd.f32 %v191, %v3501
    %v3503 = vpop.f32.mrb[0].mxu0
    %3504 = vmatprep.mubr.f32.mxu0 0.0
    %3505 = vmatmul.mubr.f32.gmra.mrb[0].mxu0 %v3417
    %v3506 = vpop.f32.mrb[0].mxu0
    %v3507 = vadd.f32 %v192, %v3506
    %v3508 = vpop.f32.mrb[0].mxu0
    %3509 = vmatprep.mubr.f32.mxu0 0.0
    %3510 = vmatmul.mubr.f32.gmra.mrb[0].mxu0 %v3420
    %v3511 = vpop.f32.mrb[0].mxu0
    %v3512 = vadd.f32 %v193, %v3511
    %v3513 = vpop.f32.mrb[0].mxu0
    %3514 = vdwg.mxu0
    %v3515 = vsel %vm2303, %v3497, -inf
    %3516 = vmax.xlane.f32.xlu0 %v3515
    %v3517 = vpop.xlane.xlu0 %3516
    %v3518 = vsel %vm2303, %v3502, -inf
    %3519 = vmax.xlane.f32.xlu0 %v3518
    %v3520 = vpop.xlane.xlu0 %3519
    %v3521 = vsel %vm2303, %v3507, -inf
    %3522 = vmax.xlane.f32.xlu0 %v3521
    %v3523 = vpop.xlane.xlu0 %3522
    %v3524 = vsel %vm2313, %v3512, -inf
    %3525 = vmax.xlane.f32.xlu0 %v3524
    %v3526 = vpop.xlane.xlu0 %3525
    %v3527 = vsub.f32 %v3497, %v3517
    %v3528 = vsub.f32 %v3502, %v3520
    %v3529 = vsub.f32 %v3507, %v3523
    %v3530 = vsub.f32 %v3512, %v3526
    %v3531 = vmul.f32 %v3527, 1.442695
    %v3532 = vpow.pop %v3531
    %v3533 = vmul.f32 %v3528, 1.442695
    %v3534 = vpow.pop %v3533
    %v3535 = vmul.f32 %v3529, 1.442695
    %v3536 = vpow.pop %v3535
    %v3537 = vmul.f32 %v3530, 1.442695
    %v3538 = vpow.pop %v3537
    %v3539 = vsel %vm2303, %v3532, 0.0
    %3540 = vadd.xlane.f32.xlu0 %v3539
    %v3541 = vpop.xlane.xlu0 %3540
    %v3542 = vsel %vm2303, %v3534, 0.0
    %3543 = vadd.xlane.f32.xlu0 %v3542
    %v3544 = vpop.xlane.xlu0 %3543
    %v3545 = vsel %vm2303, %v3536, 0.0
    %3546 = vadd.xlane.f32.xlu0 %v3545
    %v3547 = vpop.xlane.xlu0 %3546
    %v3548 = vsel %vm2313, %v3538, 0.0
    %3549 = vadd.xlane.f32.xlu0 %v3548
    %v3550 = vpop.xlane.xlu0 %3549
    %v3551 = vrcp.pop %v3541
    %v3552 = vrcp.pop %v3544
    %v3553 = vrcp.pop %v3547
    %v3554 = vrcp.pop %v3550
    %v3555 = vmul.f32 %v3532, %v3551
    %v3556 = vmul.f32 %v3534, %v3552
    %v3557 = vmul.f32 %v3536, %v3553
    %v3558 = vmul.f32 %v3538, %v3554
    %s3559 = scalar_lea.vmem %s73, 64
    %3560 = vst.msk [vmem:[%s3559] sm:$0xff] %vm2303, %v3555
    %3561 = vst.msk [vmem:[%s3559 + $0x8] sm:$0xff] %vm2303, %v3556
    %3562 = vst.msk [vmem:[%s3559 + $0x10] sm:$0xff] %vm2303, %v3557
    %3563 = vst.msk [vmem:[%s3559 + $0x18] sm:$0xf] %vm2313, %v3558
    %3564 = vrot.lane.b32.xlu0 %v3376, 64
    %v3565 = vpop.permute.xlu0 %3564
    %3566 = vrot.lane.b32.xlu0 %v3381, 64
    %v3567 = vpop.permute.xlu0 %3566
    %3568 = vrot.lane.b32.xlu0 %v3386, 64
    %v3569 = vpop.permute.xlu0 %3568
    %3570 = vrot.lane.b32.xlu0 %v3391, 64
    %v3571 = vpop.permute.xlu0 %3570
    %v3576 = vsel %vm2303, %v3555, 0
    %v3579 = vsel %vm2303, %v3556, 0
    %v3582 = vsel %vm2303, %v3557, 0
    %v3585 = vsel %vm2303, %v3558, 0
    %v3587 = vsel %vm2376, %v3571, 0
    %3589 = vmatprep.subr.mxu0 0.0
    %3590 = vmatpush1.msra.mxu0 %v3565
    %3591 = vmatprep.subr.mxu0 0.0
    %3592 = vmatpush1.msra.mxu0 %v3567
    %3593 = vmatprep.subr.mxu0 0.0
    %3594 = vmatpush1.msra.mxu0 %v3569
    %3595 = vmatprep.subr.mxu0 0.0
    %3596 = vmatpush1.msra.mxu0 %v3587
    %3597 = vmatprep.subr.mxu0 0.0
    %3598 = vmatpush1.msra.mxu0 0.0
    %3599 = vmatprep.subr.mxu0 0.0
    %3600 = vmatpush1.msra.mxu0 0.0
    %3601 = vmatprep.subr.mxu0 0.0
    %3602 = vmatpush1.msra.mxu0 0.0
    %3603 = vmatprep.subr.mxu0 0.0
    %3604 = vmatpush1.msra.mxu0 0.0
    %3605 = vmatprep.subr.mxu0 0.0
    %3606 = vmatpush1.msra.mxu0 0.0
    %3607 = vmatprep.subr.mxu0 0.0
    %3608 = vmatpush1.msra.mxu0 0.0
    %3609 = vmatprep.subr.mxu0 0.0
    %3610 = vmatpush1.msra.mxu0 0.0
    %3611 = vmatprep.subr.mxu0 0.0
    %3612 = vmatpush1.msra.mxu0 0.0
    %3613 = vmatprep.subr.mxu0 0.0
    %3614 = vmatpush1.msra.mxu0 0.0
    %3615 = vmatprep.subr.mxu0 0.0
    %3616 = vmatpush1.msra.mxu0 0.0
    %3617 = vmatprep.subr.mxu0 0.0
    %3618 = vmatpush1.msra.mxu0 0.0
    %3619 = vmatprep.subr.mxu0 0.0
    %3620 = vmatpush1.msra.mxu0 0.0
    %3621 = vmatprep.subr.mxu0 0.0
    %3622 = vmatpush1.msra.mxu0 0.0
    %3623 = vmatprep.subr.mxu0 0.0
    %3624 = vmatpush1.msra.mxu0 0.0
    %3625 = vmatprep.subr.mxu0 0.0
    %3626 = vmatpush1.msra.mxu0 0.0
    %3627 = vmatprep.subr.mxu0 0.0
    %3628 = vmatpush1.msra.mxu0 0.0
    %3629 = vmatprep.subr.mxu0 0.0
    %3630 = vmatpush1.msra.mxu0 0.0
    %3631 = vmatprep.subr.mxu0 0.0
    %3632 = vmatpush1.msra.mxu0 0.0
    %3633 = vmatprep.subr.mxu0 0.0
    %3634 = vmatpush1.msra.mxu0 0.0
    %3635 = vmatprep.subr.mxu0 0.0
    %3636 = vmatpush1.msra.mxu0 0.0
    %3637 = vmatprep.subr.mxu0 0.0
    %3638 = vmatpush1.msra.mxu0 0.0
    %3639 = vmatprep.subr.mxu0 0.0
    %3640 = vmatpush1.msra.mxu0 0.0
    %3641 = vmatprep.subr.mxu0 0.0
    %3642 = vmatpush1.msra.mxu0 0.0
    %3643 = vmatprep.subr.mxu0 0.0
    %3644 = vmatpush1.msra.mxu0 0.0
    %3645 = vmatprep.subr.mxu0 0.0
    %3646 = vmatpush1.msra.mxu0 0.0
    %3647 = vmatprep.subr.mxu0 0.0
    %3648 = vmatpush1.msra.mxu0 0.0
    %3649 = vmatprep.subr.mxu0 0.0
    %3650 = vmatpush1.msra.mxu0 0.0
    %3651 = vmatprep.subr.mxu0 0.0
    %3652 = vmatpush1.msra.mxu0 0.0
    %3653 = vmatprep.mubr.f32.mxu0 0.0
    %3654 = vmatmul.mubr.f32.gmra.mrb[0].mxu0 %v3576
    %v3655 = vpop.f32.mrb[0].mxu0
    %v3656 = vadd.f32 0.0, %v3655
    %v3657 = vpop.f32.mrb[0].mxu0
    %3658 = vmatprep.mubr.f32.mxu0 0.0
    %3659 = vmatmul.mubr.f32.gmra.mrb[0].mxu0 %v3579
    %v3660 = vpop.f32.mrb[0].mxu0
    %v3661 = vadd.f32 0.0, %v3660
    %v3662 = vpop.f32.mrb[0].mxu0
    %3663 = vmatprep.mubr.f32.mxu0 0.0
    %3664 = vmatmul.mubr.f32.gmra.mrb[0].mxu0 %v3582
    %v3665 = vpop.f32.mrb[0].mxu0
    %v3666 = vadd.f32 0.0, %v3665
    %v3667 = vpop.f32.mrb[0].mxu0
    %3668 = vmatprep.mubr.f32.mxu0 0.0
    %3669 = vmatmul.mubr.f32.gmra.mrb[0].mxu0 %v3585
    %v3670 = vpop.f32.mrb[0].mxu0
    %v3671 = vadd.f32 0.0, %v3670
    %v3672 = vpop.f32.mrb[0].mxu0
    %3673 = vdwg.mxu0
    %3674 = vrot.lane.b32.xlu0 %v3394, 112
    %v3675 = vpop.permute.xlu0 %3674
    %3676 = vrot.lane.b32.xlu0 %v3395, 112
    %v3677 = vpop.permute.xlu0 %3676
    %3678 = vrot.lane.b32.xlu0 %v3396, 112
    %v3679 = vpop.permute.xlu0 %3678
    %3680 = vrot.lane.b32.xlu0 %v3397, 112
    %v3681 = vpop.permute.xlu0 %3680
    %3682 = vrot.lane.b32.xlu0 %v3376, 80
    %v3683 = vpop.permute.xlu0 %3682
    %3684 = vrot.lane.b32.xlu0 %v3381, 80
    %v3685 = vpop.permute.xlu0 %3684
    %3686 = vrot.lane.b32.xlu0 %v3386, 80
    %v3687 = vpop.permute.xlu0 %3686
    %3688 = vrot.lane.b32.xlu0 %v3391, 80
    %v3689 = vpop.permute.xlu0 %3688
    %v3690 = vsel %vm367, %v3675, 0
    %v3692 = vsel %vm367, %v3677, 0
    %v3694 = vsel %vm367, %v3679, 0
    %v3696 = vsel %vm367, %v3681, 0
    %v3698 = vsel %vm367, %v3683, 0
    %v3700 = vsel %vm367, %v3685, 0
    %v3702 = vsel %vm367, %v3687, 0
    %v3704 = vsel %vm367, %v3689, 0
    %3706 = vmatprep.subr.mxu0 0.0
    %3707 = vmatpush1.xpose.msra.mxu0 %v3698
    %3708 = vmatprep.subr.mxu0 0.0
    %3709 = vmatpush1.xpose.msra.mxu0 %v3700
    %3710 = vmatprep.subr.mxu0 0.0
    %3711 = vmatpush1.xpose.msra.mxu0 %v3702
    %3712 = vmatprep.subr.mxu0 0.0
    %3713 = vmatpush1.xpose.msra.mxu0 %v3704
    %3714 = vmatprep.subr.mxu0 0.0
    %3715 = vmatpush1.xpose.msra.mxu0 0.0
    %3716 = vmatprep.subr.mxu0 0.0
    %3717 = vmatpush1.xpose.msra.mxu0 0.0
    %3718 = vmatprep.subr.mxu0 0.0
    %3719 = vmatpush1.xpose.msra.mxu0 0.0
    %3720 = vmatprep.subr.mxu0 0.0
    %3721 = vmatpush1.xpose.msra.mxu0 0.0
    %3722 = vmatprep.subr.mxu0 0.0
    %3723 = vmatpush1.xpose.msra.mxu0 0.0
    %3724 = vmatprep.subr.mxu0 0.0
    %3725 = vmatpush1.xpose.msra.mxu0 0.0
    %3726 = vmatprep.subr.mxu0 0.0
    %3727 = vmatpush1.xpose.msra.mxu0 0.0
    %3728 = vmatprep.subr.mxu0 0.0
    %3729 = vmatpush1.xpose.msra.mxu0 0.0
    %3730 = vmatprep.subr.mxu0 0.0
    %3731 = vmatpush1.xpose.msra.mxu0 0.0
    %3732 = vmatprep.subr.mxu0 0.0
    %3733 = vmatpush1.xpose.msra.mxu0 0.0
    %3734 = vmatprep.subr.mxu0 0.0
    %3735 = vmatpush1.xpose.msra.mxu0 0.0
    %3736 = vmatprep.subr.mxu0 0.0
    %3737 = vmatpush1.xpose.msra.mxu0 0.0
    %3738 = vmatprep.subr.mxu0 0.0
    %3739 = vmatpush1.xpose.msra.mxu0 0.0
    %3740 = vmatprep.subr.mxu0 0.0
    %3741 = vmatpush1.xpose.msra.mxu0 0.0
    %3742 = vmatprep.subr.mxu0 0.0
    %3743 = vmatpush1.xpose.msra.mxu0 0.0
    %3744 = vmatprep.subr.mxu0 0.0
    %3745 = vmatpush1.xpose.msra.mxu0 0.0
    %3746 = vmatprep.subr.mxu0 0.0
    %3747 = vmatpush1.xpose.msra.mxu0 0.0
    %3748 = vmatprep.subr.mxu0 0.0
    %3749 = vmatpush1.xpose.msra.mxu0 0.0
    %3750 = vmatprep.subr.mxu0 0.0
    %3751 = vmatpush1.xpose.msra.mxu0 0.0
    %3752 = vmatprep.subr.mxu0 0.0
    %3753 = vmatpush1.xpose.msra.mxu0 0.0
    %3754 = vmatprep.subr.mxu0 0.0
    %3755 = vmatpush1.xpose.msra.mxu0 0.0
    %3756 = vmatprep.subr.mxu0 0.0
    %3757 = vmatpush1.xpose.msra.mxu0 0.0
    %3758 = vmatprep.subr.mxu0 0.0
    %3759 = vmatpush1.xpose.msra.mxu0 0.0
    %3760 = vmatprep.subr.mxu0 0.0
    %3761 = vmatpush1.xpose.msra.mxu0 0.0
    %3762 = vmatprep.subr.mxu0 0.0
    %3763 = vmatpush1.xpose.msra.mxu0 0.0
    %3764 = vmatprep.subr.mxu0 0.0
    %3765 = vmatpush1.xpose.msra.mxu0 0.0
    %3766 = vmatprep.subr.mxu0 0.0
    %3767 = vmatpush1.xpose.msra.mxu0 0.0
    %3768 = vmatprep.subr.mxu0 0.0
    %3769 = vmatpush1.xpose.msra.mxu0 0.0
    %3770 = vmatprep.mubr.f32.mxu0 0.0
    %3771 = vmatmul.mubr.f32.gmra.mrb[0].mxu0 %v3690
    %v3772 = vpop.f32.mrb[0].mxu0
    %v3773 = vadd.f32 %v190, %v3772
    %v3774 = vpop.f32.mrb[0].mxu0
    %3775 = vmatprep.mubr.f32.mxu0 0.0
    %3776 = vmatmul.mubr.f32.gmra.mrb[0].mxu0 %v3692
    %v3777 = vpop.f32.mrb[0].mxu0
    %v3778 = vadd.f32 %v191, %v3777
    %v3779 = vpop.f32.mrb[0].mxu0
    %3780 = vmatprep.mubr.f32.mxu0 0.0
    %3781 = vmatmul.mubr.f32.gmra.mrb[0].mxu0 %v3694
    %v3782 = vpop.f32.mrb[0].mxu0
    %v3783 = vadd.f32 %v192, %v3782
    %v3784 = vpop.f32.mrb[0].mxu0
    %3785 = vmatprep.mubr.f32.mxu0 0.0
    %3786 = vmatmul.mubr.f32.gmra.mrb[0].mxu0 %v3696
    %v3787 = vpop.f32.mrb[0].mxu0
    %v3788 = vadd.f32 %v193, %v3787
    %v3789 = vpop.f32.mrb[0].mxu0
    %3790 = vdwg.mxu0
    %v3791 = vsel %vm2303, %v3773, -inf
    %3792 = vmax.xlane.f32.xlu0 %v3791
    %v3793 = vpop.xlane.xlu0 %3792
    %v3794 = vsel %vm2303, %v3778, -inf
    %3795 = vmax.xlane.f32.xlu0 %v3794
    %v3796 = vpop.xlane.xlu0 %3795
    %v3797 = vsel %vm2303, %v3783, -inf
    %3798 = vmax.xlane.f32.xlu0 %v3797
    %v3799 = vpop.xlane.xlu0 %3798
    %v3800 = vsel %vm2313, %v3788, -inf
    %3801 = vmax.xlane.f32.xlu0 %v3800
    %v3802 = vpop.xlane.xlu0 %3801
    %v3803 = vsub.f32 %v3773, %v3793
    %v3804 = vsub.f32 %v3778, %v3796
    %v3805 = vsub.f32 %v3783, %v3799
    %v3806 = vsub.f32 %v3788, %v3802
    %v3807 = vmul.f32 %v3803, 1.442695
    %v3808 = vpow.pop %v3807
    %v3809 = vmul.f32 %v3804, 1.442695
    %v3810 = vpow.pop %v3809
    %v3811 = vmul.f32 %v3805, 1.442695
    %v3812 = vpow.pop %v3811
    %v3813 = vmul.f32 %v3806, 1.442695
    %v3814 = vpow.pop %v3813
    %v3815 = vsel %vm2303, %v3808, 0.0
    %3816 = vadd.xlane.f32.xlu0 %v3815
    %v3817 = vpop.xlane.xlu0 %3816
    %v3818 = vsel %vm2303, %v3810, 0.0
    %3819 = vadd.xlane.f32.xlu0 %v3818
    %v3820 = vpop.xlane.xlu0 %3819
    %v3821 = vsel %vm2303, %v3812, 0.0
    %3822 = vadd.xlane.f32.xlu0 %v3821
    %v3823 = vpop.xlane.xlu0 %3822
    %v3824 = vsel %vm2313, %v3814, 0.0
    %3825 = vadd.xlane.f32.xlu0 %v3824
    %v3826 = vpop.xlane.xlu0 %3825
    %v3827 = vrcp.pop %v3817
    %v3828 = vrcp.pop %v3820
    %v3829 = vrcp.pop %v3823
    %v3830 = vrcp.pop %v3826
    %v3831 = vmul.f32 %v3808, %v3827
    %v3832 = vmul.f32 %v3810, %v3828
    %v3833 = vmul.f32 %v3812, %v3829
    %v3834 = vmul.f32 %v3814, %v3830
    %s3835 = scalar_lea.vmem %s73, 96
    %3836 = vst.msk [vmem:[%s3835] sm:$0xff] %vm2303, %v3831
    %3837 = vst.msk [vmem:[%s3835 + $0x8] sm:$0xff] %vm2303, %v3832
    %3838 = vst.msk [vmem:[%s3835 + $0x10] sm:$0xff] %vm2303, %v3833
    %3839 = vst.msk [vmem:[%s3835 + $0x18] sm:$0xf] %vm2313, %v3834
    %3840 = vrot.lane.b32.xlu0 %v3376, 48
    %v3841 = vpop.permute.xlu0 %3840
    %3842 = vrot.lane.b32.xlu0 %v3381, 48
    %v3843 = vpop.permute.xlu0 %3842
    %3844 = vrot.lane.b32.xlu0 %v3386, 48
    %v3845 = vpop.permute.xlu0 %3844
    %3846 = vrot.lane.b32.xlu0 %v3391, 48
    %v3847 = vpop.permute.xlu0 %3846
    %v3852 = vsel %vm2303, %v3831, 0
    %v3855 = vsel %vm2303, %v3832, 0
    %v3858 = vsel %vm2303, %v3833, 0
    %v3861 = vsel %vm2303, %v3834, 0
    %v3863 = vsel %vm2376, %v3847, 0
    %3865 = vmatprep.subr.mxu0 0.0
    %3866 = vmatpush1.msra.mxu0 %v3841
    %3867 = vmatprep.subr.mxu0 0.0
    %3868 = vmatpush1.msra.mxu0 %v3843
    %3869 = vmatprep.subr.mxu0 0.0
    %3870 = vmatpush1.msra.mxu0 %v3845
    %3871 = vmatprep.subr.mxu0 0.0
    %3872 = vmatpush1.msra.mxu0 %v3863
    %3873 = vmatprep.subr.mxu0 0.0
    %3874 = vmatpush1.msra.mxu0 0.0
    %3875 = vmatprep.subr.mxu0 0.0
    %3876 = vmatpush1.msra.mxu0 0.0
    %3877 = vmatprep.subr.mxu0 0.0
    %3878 = vmatpush1.msra.mxu0 0.0
    %3879 = vmatprep.subr.mxu0 0.0
    %3880 = vmatpush1.msra.mxu0 0.0
    %3881 = vmatprep.subr.mxu0 0.0
    %3882 = vmatpush1.msra.mxu0 0.0
    %3883 = vmatprep.subr.mxu0 0.0
    %3884 = vmatpush1.msra.mxu0 0.0
    %3885 = vmatprep.subr.mxu0 0.0
    %3886 = vmatpush1.msra.mxu0 0.0
    %3887 = vmatprep.subr.mxu0 0.0
    %3888 = vmatpush1.msra.mxu0 0.0
    %3889 = vmatprep.subr.mxu0 0.0
    %3890 = vmatpush1.msra.mxu0 0.0
    %3891 = vmatprep.subr.mxu0 0.0
    %3892 = vmatpush1.msra.mxu0 0.0
    %3893 = vmatprep.subr.mxu0 0.0
    %3894 = vmatpush1.msra.mxu0 0.0
    %3895 = vmatprep.subr.mxu0 0.0
    %3896 = vmatpush1.msra.mxu0 0.0
    %3897 = vmatprep.subr.mxu0 0.0
    %3898 = vmatpush1.msra.mxu0 0.0
    %3899 = vmatprep.subr.mxu0 0.0
    %3900 = vmatpush1.msra.mxu0 0.0
    %3901 = vmatprep.subr.mxu0 0.0
    %3902 = vmatpush1.msra.mxu0 0.0
    %3903 = vmatprep.subr.mxu0 0.0
    %3904 = vmatpush1.msra.mxu0 0.0
    %3905 = vmatprep.subr.mxu0 0.0
    %3906 = vmatpush1.msra.mxu0 0.0
    %3907 = vmatprep.subr.mxu0 0.0
    %3908 = vmatpush1.msra.mxu0 0.0
    %3909 = vmatprep.subr.mxu0 0.0
    %3910 = vmatpush1.msra.mxu0 0.0
    %3911 = vmatprep.subr.mxu0 0.0
    %3912 = vmatpush1.msra.mxu0 0.0
    %3913 = vmatprep.subr.mxu0 0.0
    %3914 = vmatpush1.msra.mxu0 0.0
    %3915 = vmatprep.subr.mxu0 0.0
    %3916 = vmatpush1.msra.mxu0 0.0
    %3917 = vmatprep.subr.mxu0 0.0
    %3918 = vmatpush1.msra.mxu0 0.0
    %3919 = vmatprep.subr.mxu0 0.0
    %3920 = vmatpush1.msra.mxu0 0.0
    %3921 = vmatprep.subr.mxu0 0.0
    %3922 = vmatpush1.msra.mxu0 0.0
    %3923 = vmatprep.subr.mxu0 0.0
    %3924 = vmatpush1.msra.mxu0 0.0
    %3925 = vmatprep.subr.mxu0 0.0
    %3926 = vmatpush1.msra.mxu0 0.0
    %3927 = vmatprep.subr.mxu0 0.0
    %3928 = vmatpush1.msra.mxu0 0.0
    %3929 = vmatprep.mubr.f32.mxu0 0.0
    %3930 = vmatmul.mubr.f32.gmra.mrb[0].mxu0 %v3852
    %v3931 = vpop.f32.mrb[0].mxu0
    %v3932 = vadd.f32 0.0, %v3931
    %v3933 = vpop.f32.mrb[0].mxu0
    %3934 = vmatprep.mubr.f32.mxu0 0.0
    %3935 = vmatmul.mubr.f32.gmra.mrb[0].mxu0 %v3855
    %v3936 = vpop.f32.mrb[0].mxu0
    %v3937 = vadd.f32 0.0, %v3936
    %v3938 = vpop.f32.mrb[0].mxu0
    %3939 = vmatprep.mubr.f32.mxu0 0.0
    %3940 = vmatmul.mubr.f32.gmra.mrb[0].mxu0 %v3858
    %v3941 = vpop.f32.mrb[0].mxu0
    %v3942 = vadd.f32 0.0, %v3941
    %v3943 = vpop.f32.mrb[0].mxu0
    %3944 = vmatprep.mubr.f32.mxu0 0.0
    %3945 = vmatmul.mubr.f32.gmra.mrb[0].mxu0 %v3861
    %v3946 = vpop.f32.mrb[0].mxu0
    %v3947 = vadd.f32 0.0, %v3946
    %v3948 = vpop.f32.mrb[0].mxu0
    %3949 = vdwg.mxu0
    %v3951 = vsel %vm367, %v3932, 0
    %v3954 = vsel %vm367, %v3937, 0
    %v3957 = vsel %vm367, %v3942, 0
    %v3960 = vsel %vm367, %v3947, 0
    %3962 = vmatprep.subr.mxu0 0.0
    %3963 = vmatpush1.msra.mxu0 %v230
    %3964 = vmatprep.subr.mxu0 0.0
    %3965 = vmatpush1.msra.mxu0 %v231
    %3966 = vmatprep.subr.mxu0 0.0
    %3967 = vmatpush1.msra.mxu0 0.0
    %3968 = vmatprep.subr.mxu0 0.0
    %3969 = vmatpush1.msra.mxu0 0.0
    %3970 = vmatprep.subr.mxu0 0.0
    %3971 = vmatpush1.msra.mxu0 0.0
    %3972 = vmatprep.subr.mxu0 0.0
    %3973 = vmatpush1.msra.mxu0 0.0
    %3974 = vmatprep.subr.mxu0 0.0
    %3975 = vmatpush1.msra.mxu0 0.0
    %3976 = vmatprep.subr.mxu0 0.0
    %3977 = vmatpush1.msra.mxu0 0.0
    %3978 = vmatprep.subr.mxu0 0.0
    %3979 = vmatpush1.msra.mxu0 0.0
    %3980 = vmatprep.subr.mxu0 0.0
    %3981 = vmatpush1.msra.mxu0 0.0
    %3982 = vmatprep.subr.mxu0 0.0
    %3983 = vmatpush1.msra.mxu0 0.0
    %3984 = vmatprep.subr.mxu0 0.0
    %3985 = vmatpush1.msra.mxu0 0.0
    %3986 = vmatprep.subr.mxu0 0.0
    %3987 = vmatpush1.msra.mxu0 0.0
    %3988 = vmatprep.subr.mxu0 0.0
    %3989 = vmatpush1.msra.mxu0 0.0
    %3990 = vmatprep.subr.mxu0 0.0
    %3991 = vmatpush1.msra.mxu0 0.0
    %3992 = vmatprep.subr.mxu0 0.0
    %3993 = vmatpush1.msra.mxu0 0.0
    %3994 = vmatprep.subr.mxu0 0.0
    %3995 = vmatpush1.msra.mxu0 0.0
    %3996 = vmatprep.subr.mxu0 0.0
    %3997 = vmatpush1.msra.mxu0 0.0
    %3998 = vmatprep.subr.mxu0 0.0
    %3999 = vmatpush1.msra.mxu0 0.0
    %4000 = vmatprep.subr.mxu0 0.0
    %4001 = vmatpush1.msra.mxu0 0.0
    %4002 = vmatprep.subr.mxu0 0.0
    %4003 = vmatpush1.msra.mxu0 0.0
    %4004 = vmatprep.subr.mxu0 0.0
    %4005 = vmatpush1.msra.mxu0 0.0
    %4006 = vmatprep.subr.mxu0 0.0
    %4007 = vmatpush1.msra.mxu0 0.0
    %4008 = vmatprep.subr.mxu0 0.0
    %4009 = vmatpush1.msra.mxu0 0.0
    %4010 = vmatprep.subr.mxu0 0.0
    %4011 = vmatpush1.msra.mxu0 0.0
    %4012 = vmatprep.subr.mxu0 0.0
    %4013 = vmatpush1.msra.mxu0 0.0
    %4014 = vmatprep.subr.mxu0 0.0
    %4015 = vmatpush1.msra.mxu0 0.0
    %4016 = vmatprep.subr.mxu0 0.0
    %4017 = vmatpush1.msra.mxu0 0.0
    %4018 = vmatprep.subr.mxu0 0.0
    %4019 = vmatpush1.msra.mxu0 0.0
    %4020 = vmatprep.subr.mxu0 0.0
    %4021 = vmatpush1.msra.mxu0 0.0
    %4022 = vmatprep.subr.mxu0 0.0
    %4023 = vmatpush1.msra.mxu0 0.0
    %4024 = vmatprep.subr.mxu0 0.0
    %4025 = vmatpush1.msra.mxu0 0.0
    %4026 = vmatprep.mubr.f32.mxu0 0.0
    %4027 = vmatmul.mubr.f32.gmra.mrb[0].mxu0 %v3951
    %v4028 = vpop.f32.mrb[0].mxu0
    %v4029 = vadd.f32 0.0, %v4028
    %v4030 = vpop.f32.mrb[0].mxu0
    %4031 = vmatprep.mubr.f32.mxu0 0.0
    %4032 = vmatmul.mubr.f32.gmra.mrb[0].mxu0 %v3954
    %v4033 = vpop.f32.mrb[0].mxu0
    %v4034 = vadd.f32 0.0, %v4033
    %v4035 = vpop.f32.mrb[0].mxu0
    %4036 = vmatprep.mubr.f32.mxu0 0.0
    %4037 = vmatmul.mubr.f32.gmra.mrb[0].mxu0 %v3957
    %v4038 = vpop.f32.mrb[0].mxu0
    %v4039 = vadd.f32 0.0, %v4038
    %v4040 = vpop.f32.mrb[0].mxu0
    %4041 = vmatprep.mubr.f32.mxu0 0.0
    %4042 = vmatmul.mubr.f32.gmra.mrb[0].mxu0 %v3960
    %v4043 = vpop.f32.mrb[0].mxu0
    %v4044 = vadd.f32 0.0, %v4043
    %v4045 = vpop.f32.mrb[0].mxu0
    %4046 = vdwg.mxu0
    %v4048 = vsel %vm367, %v3656, 0
    %v4051 = vsel %vm367, %v3661, 0
    %v4054 = vsel %vm367, %v3666, 0
    %v4057 = vsel %vm367, %v3671, 0
    %4059 = vmatprep.subr.mxu0 0.0
    %4060 = vmatpush1.msra.mxu0 %v227
    %4061 = vmatprep.subr.mxu0 0.0
    %4062 = vmatpush1.msra.mxu0 %v228
    %4063 = vmatprep.subr.mxu0 0.0
    %4064 = vmatpush1.msra.mxu0 0.0
    %4065 = vmatprep.subr.mxu0 0.0
    %4066 = vmatpush1.msra.mxu0 0.0
    %4067 = vmatprep.subr.mxu0 0.0
    %4068 = vmatpush1.msra.mxu0 0.0
    %4069 = vmatprep.subr.mxu0 0.0
    %4070 = vmatpush1.msra.mxu0 0.0
    %4071 = vmatprep.subr.mxu0 0.0
    %4072 = vmatpush1.msra.mxu0 0.0
    %4073 = vmatprep.subr.mxu0 0.0
    %4074 = vmatpush1.msra.mxu0 0.0
    %4075 = vmatprep.subr.mxu0 0.0
    %4076 = vmatpush1.msra.mxu0 0.0
    %4077 = vmatprep.subr.mxu0 0.0
    %4078 = vmatpush1.msra.mxu0 0.0
    %4079 = vmatprep.subr.mxu0 0.0
    %4080 = vmatpush1.msra.mxu0 0.0
    %4081 = vmatprep.subr.mxu0 0.0
    %4082 = vmatpush1.msra.mxu0 0.0
    %4083 = vmatprep.subr.mxu0 0.0
    %4084 = vmatpush1.msra.mxu0 0.0
    %4085 = vmatprep.subr.mxu0 0.0
    %4086 = vmatpush1.msra.mxu0 0.0
    %4087 = vmatprep.subr.mxu0 0.0
    %4088 = vmatpush1.msra.mxu0 0.0
    %4089 = vmatprep.subr.mxu0 0.0
    %4090 = vmatpush1.msra.mxu0 0.0
    %4091 = vmatprep.subr.mxu0 0.0
    %4092 = vmatpush1.msra.mxu0 0.0
    %4093 = vmatprep.subr.mxu0 0.0
    %4094 = vmatpush1.msra.mxu0 0.0
    %4095 = vmatprep.subr.mxu0 0.0
    %4096 = vmatpush1.msra.mxu0 0.0
    %4097 = vmatprep.subr.mxu0 0.0
    %4098 = vmatpush1.msra.mxu0 0.0
    %4099 = vmatprep.subr.mxu0 0.0
    %4100 = vmatpush1.msra.mxu0 0.0
    %4101 = vmatprep.subr.mxu0 0.0
    %4102 = vmatpush1.msra.mxu0 0.0
    %4103 = vmatprep.subr.mxu0 0.0
    %4104 = vmatpush1.msra.mxu0 0.0
    %4105 = vmatprep.subr.mxu0 0.0
    %4106 = vmatpush1.msra.mxu0 0.0
    %4107 = vmatprep.subr.mxu0 0.0
    %4108 = vmatpush1.msra.mxu0 0.0
    %4109 = vmatprep.subr.mxu0 0.0
    %4110 = vmatpush1.msra.mxu0 0.0
    %4111 = vmatprep.subr.mxu0 0.0
    %4112 = vmatpush1.msra.mxu0 0.0
    %4113 = vmatprep.subr.mxu0 0.0
    %4114 = vmatpush1.msra.mxu0 0.0
    %4115 = vmatprep.subr.mxu0 0.0
    %4116 = vmatpush1.msra.mxu0 0.0
    %4117 = vmatprep.subr.mxu0 0.0
    %4118 = vmatpush1.msra.mxu0 0.0
    %4119 = vmatprep.subr.mxu0 0.0
    %4120 = vmatpush1.msra.mxu0 0.0
    %4121 = vmatprep.subr.mxu0 0.0
    %4122 = vmatpush1.msra.mxu0 0.0
    %4123 = vmatprep.mubr.f32.mxu0 0.0
    %4124 = vmatmul.mubr.f32.gmra.mrb[0].mxu0 %v4048
    %v4125 = vpop.f32.mrb[0].mxu0
    %v4126 = vadd.f32 %v4029, %v4125
    %v4127 = vpop.f32.mrb[0].mxu0
    %4128 = vmatprep.mubr.f32.mxu0 0.0
    %4129 = vmatmul.mubr.f32.gmra.mrb[0].mxu0 %v4051
    %v4130 = vpop.f32.mrb[0].mxu0
    %v4131 = vadd.f32 %v4034, %v4130
    %v4132 = vpop.f32.mrb[0].mxu0
    %4133 = vmatprep.mubr.f32.mxu0 0.0
    %4134 = vmatmul.mubr.f32.gmra.mrb[0].mxu0 %v4054
    %v4135 = vpop.f32.mrb[0].mxu0
    %v4136 = vadd.f32 %v4039, %v4135
    %v4137 = vpop.f32.mrb[0].mxu0
    %4138 = vmatprep.mubr.f32.mxu0 0.0
    %4139 = vmatmul.mubr.f32.gmra.mrb[0].mxu0 %v4057
    %v4140 = vpop.f32.mrb[0].mxu0
    %v4141 = vadd.f32 %v4044, %v4140
    %v4142 = vpop.f32.mrb[0].mxu0
    %4143 = vdwg.mxu0
    %v4144 = vadd.f32 %v4126, %v2081
    %v4145 = vadd.f32 %v4131, %v2082
    %v4146 = vadd.f32 %v4136, %v2083
    %v4147 = vadd.f32 %v4141, %v2084
    %v4148 = vsel %vm285, %v4144, 0.0
    %4149 = vadd.xlane.f32.xlu0 %v4148
    %v4150 = vpop.xlane.xlu0 %4149
    %v4151 = vsel %vm285, %v4145, 0.0
    %4152 = vadd.xlane.f32.xlu0 %v4151
    %v4153 = vpop.xlane.xlu0 %4152
    %v4154 = vsel %vm285, %v4146, 0.0
    %4155 = vadd.xlane.f32.xlu0 %v4154
    %v4156 = vpop.xlane.xlu0 %4155
    %v4157 = vsel %vm1142, %v4147, 0.0
    %4158 = vadd.xlane.f32.xlu0 %v4157
    %v4159 = vpop.xlane.xlu0 %4158
    %v4160 = vmul.f32 %v4150, %v1146
    %v4161 = vmul.f32 %v4153, %v1146
    %v4162 = vmul.f32 %v4156, %v1146
    %v4163 = vmul.f32 %v4159, %v1146
    %v4164 = vsub.f32 %v4144, %v4160
    %v4165 = vsub.f32 %v4145, %v4161
    %v4166 = vsub.f32 %v4146, %v4162
    %v4167 = vsub.f32 %v4147, %v4163
    %v4168 = vmul.f32 %v4164, %v4164
    %v4169 = vmul.f32 %v4165, %v4165
    %v4170 = vmul.f32 %v4166, %v4166
    %v4171 = vmul.f32 %v4167, %v4167
    %v4172 = vsel %vm285, %v4168, 0.0
    %4173 = vadd.xlane.f32.xlu0 %v4172
    %v4174 = vpop.xlane.xlu0 %4173
    %v4175 = vsel %vm285, %v4169, 0.0
    %4176 = vadd.xlane.f32.xlu0 %v4175
    %v4177 = vpop.xlane.xlu0 %4176
    %v4178 = vsel %vm285, %v4170, 0.0
    %4179 = vadd.xlane.f32.xlu0 %v4178
    %v4180 = vpop.xlane.xlu0 %4179
    %v4181 = vsel %vm1142, %v4171, 0.0
    %4182 = vadd.xlane.f32.xlu0 %v4181
    %v4183 = vpop.xlane.xlu0 %4182
    %v4184 = vmul.f32 %v4174, %v1146
    %v4185 = vmul.f32 %v4177, %v1146
    %v4186 = vmul.f32 %v4180, %v1146
    %v4187 = vmul.f32 %v4183, %v1146
    %v4188 = vadd.f32 %v4184, 1e-06
    %v4189 = vadd.f32 %v4185, 1e-06
    %v4190 = vadd.f32 %v4186, 1e-06
    %v4191 = vadd.f32 %v4187, 1e-06
    %v4192 = vrsqrt.pop %v4188
    %v4193 = vrsqrt.pop %v4189
    %v4194 = vrsqrt.pop %v4190
    %v4195 = vrsqrt.pop %v4191
    %v4196 = vmul.f32 %v4164, %v4192
    %v4197 = vmul.f32 %v4165, %v4193
    %v4198 = vmul.f32 %v4166, %v4194
    %v4199 = vmul.f32 %v4167, %v4195
    %v4200 = vmul.f32 %v4196, %v2994
    %v4201 = vmul.f32 %v4197, %v2994
    %v4202 = vmul.f32 %v4198, %v2994
    %v4203 = vmul.f32 %v4199, %v2994
    %v4204 = vadd.f32 %v4200, %v3004
    %v4205 = vadd.f32 %v4201, %v3004
    %v4206 = vadd.f32 %v4202, %v3004
    %v4207 = vadd.f32 %v4203, %v3004
    %v4209 = vsel %vm285, %v4204, 0
    %v4212 = vsel %vm285, %v4205, 0
    %v4215 = vsel %vm285, %v4206, 0
    %v4218 = vsel %vm285, %v4207, 0
    %4220 = vmatprep.subr.mxu0 0.0
    %4221 = vmatpush1.msra.mxu0 %v234
    %4222 = vmatprep.subr.mxu0 0.0
    %4223 = vmatpush1.msra.mxu0 %v235
    %4224 = vmatprep.subr.mxu0 0.0
    %4225 = vmatpush1.msra.mxu0 %v236
    %4226 = vmatprep.subr.mxu0 0.0
    %4227 = vmatpush1.msra.mxu0 %v237
    %4228 = vmatprep.subr.mxu0 0.0
    %4229 = vmatpush1.msra.mxu0 0.0
    %4230 = vmatprep.subr.mxu0 0.0
    %4231 = vmatpush1.msra.mxu0 0.0
    %4232 = vmatprep.subr.mxu0 0.0
    %4233 = vmatpush1.msra.mxu0 0.0
    %4234 = vmatprep.subr.mxu0 0.0
    %4235 = vmatpush1.msra.mxu0 0.0
    %4236 = vmatprep.subr.mxu0 0.0
    %4237 = vmatpush1.msra.mxu0 0.0
    %4238 = vmatprep.subr.mxu0 0.0
    %4239 = vmatpush1.msra.mxu0 0.0
    %4240 = vmatprep.subr.mxu0 0.0
    %4241 = vmatpush1.msra.mxu0 0.0
    %4242 = vmatprep.subr.mxu0 0.0
    %4243 = vmatpush1.msra.mxu0 0.0
    %4244 = vmatprep.subr.mxu0 0.0
    %4245 = vmatpush1.msra.mxu0 0.0
    %4246 = vmatprep.subr.mxu0 0.0
    %4247 = vmatpush1.msra.mxu0 0.0
    %4248 = vmatprep.subr.mxu0 0.0
    %4249 = vmatpush1.msra.mxu0 0.0
    %4250 = vmatprep.subr.mxu0 0.0
    %4251 = vmatpush1.msra.mxu0 0.0
    %4252 = vmatprep.subr.mxu0 0.0
    %4253 = vmatpush1.msra.mxu0 0.0
    %4254 = vmatprep.subr.mxu0 0.0
    %4255 = vmatpush1.msra.mxu0 0.0
    %4256 = vmatprep.subr.mxu0 0.0
    %4257 = vmatpush1.msra.mxu0 0.0
    %4258 = vmatprep.subr.mxu0 0.0
    %4259 = vmatpush1.msra.mxu0 0.0
    %4260 = vmatprep.subr.mxu0 0.0
    %4261 = vmatpush1.msra.mxu0 0.0
    %4262 = vmatprep.subr.mxu0 0.0
    %4263 = vmatpush1.msra.mxu0 0.0
    %4264 = vmatprep.subr.mxu0 0.0
    %4265 = vmatpush1.msra.mxu0 0.0
    %4266 = vmatprep.subr.mxu0 0.0
    %4267 = vmatpush1.msra.mxu0 0.0
    %4268 = vmatprep.subr.mxu0 0.0
    %4269 = vmatpush1.msra.mxu0 0.0
    %4270 = vmatprep.subr.mxu0 0.0
    %4271 = vmatpush1.msra.mxu0 0.0
    %4272 = vmatprep.subr.mxu0 0.0
    %4273 = vmatpush1.msra.mxu0 0.0
    %4274 = vmatprep.subr.mxu0 0.0
    %4275 = vmatpush1.msra.mxu0 0.0
    %4276 = vmatprep.subr.mxu0 0.0
    %4277 = vmatpush1.msra.mxu0 0.0
    %4278 = vmatprep.subr.mxu0 0.0
    %4279 = vmatpush1.msra.mxu0 0.0
    %4280 = vmatprep.subr.mxu0 0.0
    %4281 = vmatpush1.msra.mxu0 0.0
    %4282 = vmatprep.subr.mxu0 0.0
    %4283 = vmatpush1.msra.mxu0 0.0
    %4284 = vmatprep.mubr.f32.mxu0 0.0
    %4285 = vmatmul.mubr.f32.gmra.mrb[0].mxu0 %v4209
    %v4286 = vpop.f32.mrb[0].mxu0
    %v4287 = vadd.f32 %v3014, %v4286
    %v4288 = vpop.f32.mrb[0].mxu0
    %4289 = vmatprep.mubr.f32.mxu0 0.0
    %4290 = vmatmul.mubr.f32.gmra.mrb[0].mxu0 %v4212
    %v4291 = vpop.f32.mrb[0].mxu0
    %v4292 = vadd.f32 %v3014, %v4291
    %v4293 = vpop.f32.mrb[0].mxu0
    %4294 = vmatprep.mubr.f32.mxu0 0.0
    %4295 = vmatmul.mubr.f32.gmra.mrb[0].mxu0 %v4215
    %v4296 = vpop.f32.mrb[0].mxu0
    %v4297 = vadd.f32 %v3014, %v4296
    %v4298 = vpop.f32.mrb[0].mxu0
    %4299 = vmatprep.mubr.f32.mxu0 0.0
    %4300 = vmatmul.mubr.f32.gmra.mrb[0].mxu0 %v4218
    %v4301 = vpop.f32.mrb[0].mxu0
    %v4302 = vadd.f32 %v3014, %v4301
    %v4303 = vpop.f32.mrb[0].mxu0
    %4304 = vdwg.mxu0
    %v4305 = vmax.f32 %v4287, 0.0
    %v4306 = vmax.f32 %v4292, 0.0
    %v4307 = vmax.f32 %v4297, 0.0
    %v4308 = vmax.f32 %v4302, 0.0
    %v4310 = vsel %vm3123, %v4305, 0
    %v4313 = vsel %vm3123, %v4306, 0
    %v4316 = vsel %vm3123, %v4307, 0
    %v4319 = vsel %vm3123, %v4308, 0
    %4321 = vmatprep.subr.mxu0 0.0
    %4322 = vmatpush1.msra.mxu0 %v239
    %4323 = vmatprep.subr.mxu0 0.0
    %4324 = vmatpush1.msra.mxu0 %v240
    %4325 = vmatprep.subr.mxu0 0.0
    %4326 = vmatpush1.msra.mxu0 %v241
    %4327 = vmatprep.subr.mxu0 0.0
    %4328 = vmatpush1.msra.mxu0 %v242
    %4329 = vmatprep.subr.mxu0 0.0
    %4330 = vmatpush1.msra.mxu0 %v243
    %4331 = vmatprep.subr.mxu0 0.0
    %4332 = vmatpush1.msra.mxu0 %v244
    %4333 = vmatprep.subr.mxu0 0.0
    %4334 = vmatpush1.msra.mxu0 %v245
    %4335 = vmatprep.subr.mxu0 0.0
    %4336 = vmatpush1.msra.mxu0 %v246
    %4337 = vmatprep.subr.mxu0 0.0
    %4338 = vmatpush1.msra.mxu0 0.0
    %4339 = vmatprep.subr.mxu0 0.0
    %4340 = vmatpush1.msra.mxu0 0.0
    %4341 = vmatprep.subr.mxu0 0.0
    %4342 = vmatpush1.msra.mxu0 0.0
    %4343 = vmatprep.subr.mxu0 0.0
    %4344 = vmatpush1.msra.mxu0 0.0
    %4345 = vmatprep.subr.mxu0 0.0
    %4346 = vmatpush1.msra.mxu0 0.0
    %4347 = vmatprep.subr.mxu0 0.0
    %4348 = vmatpush1.msra.mxu0 0.0
    %4349 = vmatprep.subr.mxu0 0.0
    %4350 = vmatpush1.msra.mxu0 0.0
    %4351 = vmatprep.subr.mxu0 0.0
    %4352 = vmatpush1.msra.mxu0 0.0
    %4353 = vmatprep.subr.mxu0 0.0
    %4354 = vmatpush1.msra.mxu0 0.0
    %4355 = vmatprep.subr.mxu0 0.0
    %4356 = vmatpush1.msra.mxu0 0.0
    %4357 = vmatprep.subr.mxu0 0.0
    %4358 = vmatpush1.msra.mxu0 0.0
    %4359 = vmatprep.subr.mxu0 0.0
    %4360 = vmatpush1.msra.mxu0 0.0
    %4361 = vmatprep.subr.mxu0 0.0
    %4362 = vmatpush1.msra.mxu0 0.0
    %4363 = vmatprep.subr.mxu0 0.0
    %4364 = vmatpush1.msra.mxu0 0.0
    %4365 = vmatprep.subr.mxu0 0.0
    %4366 = vmatpush1.msra.mxu0 0.0
    %4367 = vmatprep.subr.mxu0 0.0
    %4368 = vmatpush1.msra.mxu0 0.0
    %4369 = vmatprep.subr.mxu0 0.0
    %4370 = vmatpush1.msra.mxu0 0.0
    %4371 = vmatprep.subr.mxu0 0.0
    %4372 = vmatpush1.msra.mxu0 0.0
    %4373 = vmatprep.subr.mxu0 0.0
    %4374 = vmatpush1.msra.mxu0 0.0
    %4375 = vmatprep.subr.mxu0 0.0
    %4376 = vmatpush1.msra.mxu0 0.0
    %4377 = vmatprep.subr.mxu0 0.0
    %4378 = vmatpush1.msra.mxu0 0.0
    %4379 = vmatprep.subr.mxu0 0.0
    %4380 = vmatpush1.msra.mxu0 0.0
    %4381 = vmatprep.subr.mxu0 0.0
    %4382 = vmatpush1.msra.mxu0 0.0
    %4383 = vmatprep.subr.mxu0 0.0
    %4384 = vmatpush1.msra.mxu0 0.0
    %4385 = vmatprep.mubr.f32.mxu0 0.0
    %4386 = vmatmul.mubr.f32.gmra.mrb[0].mxu0 %v4310
    %v4387 = vpop.f32.mrb[0].mxu0
    %v4388 = vadd.f32 %v3121, %v4387
    %v4389 = vpop.f32.mrb[0].mxu0
    %4390 = vmatprep.mubr.f32.mxu0 0.0
    %4391 = vmatmul.mubr.f32.gmra.mrb[0].mxu0 %v4313
    %v4392 = vpop.f32.mrb[0].mxu0
    %v4393 = vadd.f32 %v3121, %v4392
    %v4394 = vpop.f32.mrb[0].mxu0
    %4395 = vmatprep.mubr.f32.mxu0 0.0
    %4396 = vmatmul.mubr.f32.gmra.mrb[0].mxu0 %v4316
    %v4397 = vpop.f32.mrb[0].mxu0
    %v4398 = vadd.f32 %v3121, %v4397
    %v4399 = vpop.f32.mrb[0].mxu0
    %4400 = vmatprep.mubr.f32.mxu0 0.0
    %4401 = vmatmul.mubr.f32.gmra.mrb[0].mxu0 %v4319
    %v4402 = vpop.f32.mrb[0].mxu0
    %v4403 = vadd.f32 %v3121, %v4402
    %v4404 = vpop.f32.mrb[0].mxu0
    %4405 = vdwg.mxu0
    %v4406 = vadd.f32 %v4388, %v4204
    %v4407 = vadd.f32 %v4393, %v4205
    %v4408 = vadd.f32 %v4398, %v4206
    %v4409 = vadd.f32 %v4403, %v4207
    %v4410 = vsel %vm285, %v4406, 0.0
    %4411 = vadd.xlane.f32.xlu0 %v4410
    %v4412 = vpop.xlane.xlu0 %4411
    %v4413 = vsel %vm285, %v4407, 0.0
    %4414 = vadd.xlane.f32.xlu0 %v4413
    %v4415 = vpop.xlane.xlu0 %4414
    %v4416 = vsel %vm285, %v4408, 0.0
    %4417 = vadd.xlane.f32.xlu0 %v4416
    %v4418 = vpop.xlane.xlu0 %4417
    %v4419 = vsel %vm1142, %v4409, 0.0
    %4420 = vadd.xlane.f32.xlu0 %v4419
    %v4421 = vpop.xlane.xlu0 %4420
    %v4422 = vmul.f32 %v4412, %v1146
    %v4423 = vmul.f32 %v4415, %v1146
    %v4424 = vmul.f32 %v4418, %v1146
    %v4425 = vmul.f32 %v4421, %v1146
    %v4426 = vsub.f32 %v4406, %v4422
    %v4427 = vsub.f32 %v4407, %v4423
    %v4428 = vsub.f32 %v4408, %v4424
    %v4429 = vsub.f32 %v4409, %v4425
    %v4430 = vmul.f32 %v4426, %v4426
    %v4431 = vmul.f32 %v4427, %v4427
    %v4432 = vmul.f32 %v4428, %v4428
    %v4433 = vmul.f32 %v4429, %v4429
    %v4434 = vsel %vm285, %v4430, 0.0
    %4435 = vadd.xlane.f32.xlu0 %v4434
    %v4436 = vpop.xlane.xlu0 %4435
    %v4437 = vsel %vm285, %v4431, 0.0
    %4438 = vadd.xlane.f32.xlu0 %v4437
    %v4439 = vpop.xlane.xlu0 %4438
    %v4440 = vsel %vm285, %v4432, 0.0
    %4441 = vadd.xlane.f32.xlu0 %v4440
    %v4442 = vpop.xlane.xlu0 %4441
    %v4443 = vsel %vm1142, %v4433, 0.0
    %4444 = vadd.xlane.f32.xlu0 %v4443
    %v4445 = vpop.xlane.xlu0 %4444
    %v4446 = vmul.f32 %v4436, %v1146
    %v4447 = vmul.f32 %v4439, %v1146
    %v4448 = vmul.f32 %v4442, %v1146
    %v4449 = vmul.f32 %v4445, %v1146
    %v4450 = vadd.f32 %v4446, 1e-06
    %v4451 = vadd.f32 %v4447, 1e-06
    %v4452 = vadd.f32 %v4448, 1e-06
    %v4453 = vadd.f32 %v4449, 1e-06
    %v4454 = vrsqrt.pop %v4450
    %v4455 = vrsqrt.pop %v4451
    %v4456 = vrsqrt.pop %v4452
    %v4457 = vrsqrt.pop %v4453
    %v4458 = vmul.f32 %v4426, %v4454
    %v4459 = vmul.f32 %v4427, %v4455
    %v4460 = vmul.f32 %v4428, %v4456
    %v4461 = vmul.f32 %v4429, %v4457
    %v4462 = vmul.f32 %v4458, %v3281
    %v4463 = vmul.f32 %v4459, %v3281
    %v4464 = vmul.f32 %v4460, %v3281
    %v4465 = vmul.f32 %v4461, %v3281
    %v4466 = vadd.f32 %v4462, %v3291
    %v4467 = vadd.f32 %v4463, %v3291
    %v4468 = vadd.f32 %v4464, %v3291
    %v4469 = vadd.f32 %v4465, %v3291
    %v4471 = vsel %vm285, %v3293, 0
    %v4474 = vsel %vm285, %v3294, 0
    %v4477 = vsel %vm285, %v3295, 0
    %v4480 = vsel %vm285, %v3296, 0
    %4482 = vmatprep.subr.mxu0 0.0
    %4483 = vmatpush1.msra.mxu0 %v250
    %4484 = vmatprep.subr.mxu0 0.0
    %4485 = vmatpush1.msra.mxu0 %v251
    %4486 = vmatprep.subr.mxu0 0.0
    %4487 = vmatpush1.msra.mxu0 %v252
    %4488 = vmatprep.subr.mxu0 0.0
    %4489 = vmatpush1.msra.mxu0 %v253
    %4490 = vmatprep.subr.mxu0 0.0
    %4491 = vmatpush1.msra.mxu0 0.0
    %4492 = vmatprep.subr.mxu0 0.0
    %4493 = vmatpush1.msra.mxu0 0.0
    %4494 = vmatprep.subr.mxu0 0.0
    %4495 = vmatpush1.msra.mxu0 0.0
    %4496 = vmatprep.subr.mxu0 0.0
    %4497 = vmatpush1.msra.mxu0 0.0
    %4498 = vmatprep.subr.mxu0 0.0
    %4499 = vmatpush1.msra.mxu0 0.0
    %4500 = vmatprep.subr.mxu0 0.0
    %4501 = vmatpush1.msra.mxu0 0.0
    %4502 = vmatprep.subr.mxu0 0.0
    %4503 = vmatpush1.msra.mxu0 0.0
    %4504 = vmatprep.subr.mxu0 0.0
    %4505 = vmatpush1.msra.mxu0 0.0
    %4506 = vmatprep.subr.mxu0 0.0
    %4507 = vmatpush1.msra.mxu0 0.0
    %4508 = vmatprep.subr.mxu0 0.0
    %4509 = vmatpush1.msra.mxu0 0.0
    %4510 = vmatprep.subr.mxu0 0.0
    %4511 = vmatpush1.msra.mxu0 0.0
    %4512 = vmatprep.subr.mxu0 0.0
    %4513 = vmatpush1.msra.mxu0 0.0
    %4514 = vmatprep.subr.mxu0 0.0
    %4515 = vmatpush1.msra.mxu0 0.0
    %4516 = vmatprep.subr.mxu0 0.0
    %4517 = vmatpush1.msra.mxu0 0.0
    %4518 = vmatprep.subr.mxu0 0.0
    %4519 = vmatpush1.msra.mxu0 0.0
    %4520 = vmatprep.subr.mxu0 0.0
    %4521 = vmatpush1.msra.mxu0 0.0
    %4522 = vmatprep.subr.mxu0 0.0
    %4523 = vmatpush1.msra.mxu0 0.0
    %4524 = vmatprep.subr.mxu0 0.0
    %4525 = vmatpush1.msra.mxu0 0.0
    %4526 = vmatprep.subr.mxu0 0.0
    %4527 = vmatpush1.msra.mxu0 0.0
    %4528 = vmatprep.subr.mxu0 0.0
    %4529 = vmatpush1.msra.mxu0 0.0
    %4530 = vmatprep.subr.mxu0 0.0
    %4531 = vmatpush1.msra.mxu0 0.0
    %4532 = vmatprep.subr.mxu0 0.0
    %4533 = vmatpush1.msra.mxu0 0.0
    %4534 = vmatprep.subr.mxu0 0.0
    %4535 = vmatpush1.msra.mxu0 0.0
    %4536 = vmatprep.subr.mxu0 0.0
    %4537 = vmatpush1.msra.mxu0 0.0
    %4538 = vmatprep.subr.mxu0 0.0
    %4539 = vmatpush1.msra.mxu0 0.0
    %4540 = vmatprep.subr.mxu0 0.0
    %4541 = vmatpush1.msra.mxu0 0.0
    %4542 = vmatprep.subr.mxu0 0.0
    %4543 = vmatpush1.msra.mxu0 0.0
    %4544 = vmatprep.subr.mxu0 0.0
    %4545 = vmatpush1.msra.mxu0 0.0
    %4546 = vmatprep.mubr.f32.mxu0 0.0
    %4547 = vmatmul.mubr.f32.gmra.mrb[0].mxu0 %v4471
    %v4548 = vpop.f32.mrb[0].mxu0
    %v4549 = vadd.f32 0.0, %v4548
    %v4550 = vpop.f32.mrb[0].mxu0
    %4551 = vmatprep.mubr.f32.mxu0 0.0
    %4552 = vmatmul.mubr.f32.gmra.mrb[0].mxu0 %v4474
    %v4553 = vpop.f32.mrb[0].mxu0
    %v4554 = vadd.f32 0.0, %v4553
    %v4555 = vpop.f32.mrb[0].mxu0
    %4556 = vmatprep.mubr.f32.mxu0 0.0
    %4557 = vmatmul.mubr.f32.gmra.mrb[0].mxu0 %v4477
    %v4558 = vpop.f32.mrb[0].mxu0
    %v4559 = vadd.f32 0.0, %v4558
    %v4560 = vpop.f32.mrb[0].mxu0
    %4561 = vmatprep.mubr.f32.mxu0 0.0
    %4562 = vmatmul.mubr.f32.gmra.mrb[0].mxu0 %v4480
    %v4563 = vpop.f32.mrb[0].mxu0
    %v4564 = vadd.f32 0.0, %v4563
    %v4565 = vpop.f32.mrb[0].mxu0
    %4566 = vdwg.mxu0
    %v4567 = vmul.f32 %v4549, 0.25
    %v4568 = vmul.f32 %v4554, 0.25
    %v4569 = vmul.f32 %v4559, 0.25
    %v4570 = vmul.f32 %v4564, 0.25
    %4575 = vrot.lane.b32.xlu0 %v4549, 96
    %v4576 = vpop.permute.xlu0 %4575
    %4577 = vrot.lane.b32.xlu0 %v4554, 96
    %v4578 = vpop.permute.xlu0 %4577
    %4579 = vrot.lane.b32.xlu0 %v4559, 96
    %v4580 = vpop.permute.xlu0 %4579
    %4581 = vrot.lane.b32.xlu0 %v4564, 96
    %v4582 = vpop.permute.xlu0 %4581
    %v4584 = vsel %vm367, %v4567, 0
    %v4587 = vsel %vm367, %v4568, 0
    %v4590 = vsel %vm367, %v4569, 0
    %v4593 = vsel %vm367, %v4570, 0
    %v4595 = vsel %vm367, %v4576, 0
    %v4597 = vsel %vm367, %v4578, 0
    %v4599 = vsel %vm367, %v4580, 0
    %v4601 = vsel %vm367, %v4582, 0
    %4603 = vmatprep.subr.mxu0 0.0
    %4604 = vmatpush1.xpose.msra.mxu0 %v4595
    %4605 = vmatprep.subr.mxu0 0.0
    %4606 = vmatpush1.xpose.msra.mxu0 %v4597
    %4607 = vmatprep.subr.mxu0 0.0
    %4608 = vmatpush1.xpose.msra.mxu0 %v4599
    %4609 = vmatprep.subr.mxu0 0.0
    %4610 = vmatpush1.xpose.msra.mxu0 %v4601
    %4611 = vmatprep.subr.mxu0 0.0
    %4612 = vmatpush1.xpose.msra.mxu0 0.0
    %4613 = vmatprep.subr.mxu0 0.0
    %4614 = vmatpush1.xpose.msra.mxu0 0.0
    %4615 = vmatprep.subr.mxu0 0.0
    %4616 = vmatpush1.xpose.msra.mxu0 0.0
    %4617 = vmatprep.subr.mxu0 0.0
    %4618 = vmatpush1.xpose.msra.mxu0 0.0
    %4619 = vmatprep.subr.mxu0 0.0
    %4620 = vmatpush1.xpose.msra.mxu0 0.0
    %4621 = vmatprep.subr.mxu0 0.0
    %4622 = vmatpush1.xpose.msra.mxu0 0.0
    %4623 = vmatprep.subr.mxu0 0.0
    %4624 = vmatpush1.xpose.msra.mxu0 0.0
    %4625 = vmatprep.subr.mxu0 0.0
    %4626 = vmatpush1.xpose.msra.mxu0 0.0
    %4627 = vmatprep.subr.mxu0 0.0
    %4628 = vmatpush1.xpose.msra.mxu0 0.0
    %4629 = vmatprep.subr.mxu0 0.0
    %4630 = vmatpush1.xpose.msra.mxu0 0.0
    %4631 = vmatprep.subr.mxu0 0.0
    %4632 = vmatpush1.xpose.msra.mxu0 0.0
    %4633 = vmatprep.subr.mxu0 0.0
    %4634 = vmatpush1.xpose.msra.mxu0 0.0
    %4635 = vmatprep.subr.mxu0 0.0
    %4636 = vmatpush1.xpose.msra.mxu0 0.0
    %4637 = vmatprep.subr.mxu0 0.0
    %4638 = vmatpush1.xpose.msra.mxu0 0.0
    %4639 = vmatprep.subr.mxu0 0.0
    %4640 = vmatpush1.xpose.msra.mxu0 0.0
    %4641 = vmatprep.subr.mxu0 0.0
    %4642 = vmatpush1.xpose.msra.mxu0 0.0
    %4643 = vmatprep.subr.mxu0 0.0
    %4644 = vmatpush1.xpose.msra.mxu0 0.0
    %4645 = vmatprep.subr.mxu0 0.0
    %4646 = vmatpush1.xpose.msra.mxu0 0.0
    %4647 = vmatprep.subr.mxu0 0.0
    %4648 = vmatpush1.xpose.msra.mxu0 0.0
    %4649 = vmatprep.subr.mxu0 0.0
    %4650 = vmatpush1.xpose.msra.mxu0 0.0
    %4651 = vmatprep.subr.mxu0 0.0
    %4652 = vmatpush1.xpose.msra.mxu0 0.0
    %4653 = vmatprep.subr.mxu0 0.0
    %4654 = vmatpush1.xpose.msra.mxu0 0.0
    %4655 = vmatprep.subr.mxu0 0.0
    %4656 = vmatpush1.xpose.msra.mxu0 0.0
    %4657 = vmatprep.subr.mxu0 0.0
    %4658 = vmatpush1.xpose.msra.mxu0 0.0
    %4659 = vmatprep.subr.mxu0 0.0
    %4660 = vmatpush1.xpose.msra.mxu0 0.0
    %4661 = vmatprep.subr.mxu0 0.0
    %4662 = vmatpush1.xpose.msra.mxu0 0.0
    %4663 = vmatprep.subr.mxu0 0.0
    %4664 = vmatpush1.xpose.msra.mxu0 0.0
    %4665 = vmatprep.subr.mxu0 0.0
    %4666 = vmatpush1.xpose.msra.mxu0 0.0
    %4667 = vmatprep.mubr.f32.mxu0 0.0
    %4668 = vmatmul.mubr.f32.gmra.mrb[0].mxu0 %v4584
    %v4669 = vpop.f32.mrb[0].mxu0
    %v4670 = vadd.f32 %v190, %v4669
    %v4671 = vpop.f32.mrb[0].mxu0
    %4672 = vmatprep.mubr.f32.mxu0 0.0
    %4673 = vmatmul.mubr.f32.gmra.mrb[0].mxu0 %v4587
    %v4674 = vpop.f32.mrb[0].mxu0
    %v4675 = vadd.f32 %v191, %v4674
    %v4676 = vpop.f32.mrb[0].mxu0
    %4677 = vmatprep.mubr.f32.mxu0 0.0
    %4678 = vmatmul.mubr.f32.gmra.mrb[0].mxu0 %v4590
    %v4679 = vpop.f32.mrb[0].mxu0
    %v4680 = vadd.f32 %v192, %v4679
    %v4681 = vpop.f32.mrb[0].mxu0
    %4682 = vmatprep.mubr.f32.mxu0 0.0
    %4683 = vmatmul.mubr.f32.gmra.mrb[0].mxu0 %v4593
    %v4684 = vpop.f32.mrb[0].mxu0
    %v4685 = vadd.f32 %v193, %v4684
    %v4686 = vpop.f32.mrb[0].mxu0
    %4687 = vdwg.mxu0
    %v4688 = vsel %vm2303, %v4670, -inf
    %4689 = vmax.xlane.f32.xlu0 %v4688
    %v4690 = vpop.xlane.xlu0 %4689
    %v4691 = vsel %vm2303, %v4675, -inf
    %4692 = vmax.xlane.f32.xlu0 %v4691
    %v4693 = vpop.xlane.xlu0 %4692
    %v4694 = vsel %vm2303, %v4680, -inf
    %4695 = vmax.xlane.f32.xlu0 %v4694
    %v4696 = vpop.xlane.xlu0 %4695
    %v4697 = vsel %vm2313, %v4685, -inf
    %4698 = vmax.xlane.f32.xlu0 %v4697
    %v4699 = vpop.xlane.xlu0 %4698
    %v4700 = vsub.f32 %v4670, %v4690
    %v4701 = vsub.f32 %v4675, %v4693
    %v4702 = vsub.f32 %v4680, %v4696
    %v4703 = vsub.f32 %v4685, %v4699
    %v4704 = vmul.f32 %v4700, 1.442695
    %v4705 = vpow.pop %v4704
    %v4706 = vmul.f32 %v4701, 1.442695
    %v4707 = vpow.pop %v4706
    %v4708 = vmul.f32 %v4702, 1.442695
    %v4709 = vpow.pop %v4708
    %v4710 = vmul.f32 %v4703, 1.442695
    %v4711 = vpow.pop %v4710
    %v4712 = vsel %vm2303, %v4705, 0.0
    %4713 = vadd.xlane.f32.xlu0 %v4712
    %v4714 = vpop.xlane.xlu0 %4713
    %v4715 = vsel %vm2303, %v4707, 0.0
    %4716 = vadd.xlane.f32.xlu0 %v4715
    %v4717 = vpop.xlane.xlu0 %4716
    %v4718 = vsel %vm2303, %v4709, 0.0
    %4719 = vadd.xlane.f32.xlu0 %v4718
    %v4720 = vpop.xlane.xlu0 %4719
    %v4721 = vsel %vm2313, %v4711, 0.0
    %4722 = vadd.xlane.f32.xlu0 %v4721
    %v4723 = vpop.xlane.xlu0 %4722
    %v4724 = vrcp.pop %v4714
    %v4725 = vrcp.pop %v4717
    %v4726 = vrcp.pop %v4720
    %v4727 = vrcp.pop %v4723
    %v4728 = vmul.f32 %v4705, %v4724
    %v4729 = vmul.f32 %v4707, %v4725
    %v4730 = vmul.f32 %v4709, %v4726
    %v4731 = vmul.f32 %v4711, %v4727
    %s4732 = scalar_lea.vmem %s73, 128
    %4733 = vst.msk [vmem:[%s4732] sm:$0xff] %vm2303, %v4728
    %4734 = vst.msk [vmem:[%s4732 + $0x8] sm:$0xff] %vm2303, %v4729
    %4735 = vst.msk [vmem:[%s4732 + $0x10] sm:$0xff] %vm2303, %v4730
    %4736 = vst.msk [vmem:[%s4732 + $0x18] sm:$0xf] %vm2313, %v4731
    %4737 = vrot.lane.b32.xlu0 %v4549, 64
    %v4738 = vpop.permute.xlu0 %4737
    %4739 = vrot.lane.b32.xlu0 %v4554, 64
    %v4740 = vpop.permute.xlu0 %4739
    %4741 = vrot.lane.b32.xlu0 %v4559, 64
    %v4742 = vpop.permute.xlu0 %4741
    %4743 = vrot.lane.b32.xlu0 %v4564, 64
    %v4744 = vpop.permute.xlu0 %4743
    %v4749 = vsel %vm2303, %v4728, 0
    %v4752 = vsel %vm2303, %v4729, 0
    %v4755 = vsel %vm2303, %v4730, 0
    %v4758 = vsel %vm2303, %v4731, 0
    %v4760 = vsel %vm2376, %v4744, 0
    %4762 = vmatprep.subr.mxu0 0.0
    %4763 = vmatpush1.msra.mxu0 %v4738
    %4764 = vmatprep.subr.mxu0 0.0
    %4765 = vmatpush1.msra.mxu0 %v4740
    %4766 = vmatprep.subr.mxu0 0.0
    %4767 = vmatpush1.msra.mxu0 %v4742
    %4768 = vmatprep.subr.mxu0 0.0
    %4769 = vmatpush1.msra.mxu0 %v4760
    %4770 = vmatprep.subr.mxu0 0.0
    %4771 = vmatpush1.msra.mxu0 0.0
    %4772 = vmatprep.subr.mxu0 0.0
    %4773 = vmatpush1.msra.mxu0 0.0
    %4774 = vmatprep.subr.mxu0 0.0
    %4775 = vmatpush1.msra.mxu0 0.0
    %4776 = vmatprep.subr.mxu0 0.0
    %4777 = vmatpush1.msra.mxu0 0.0
    %4778 = vmatprep.subr.mxu0 0.0
    %4779 = vmatpush1.msra.mxu0 0.0
    %4780 = vmatprep.subr.mxu0 0.0
    %4781 = vmatpush1.msra.mxu0 0.0
    %4782 = vmatprep.subr.mxu0 0.0
    %4783 = vmatpush1.msra.mxu0 0.0
    %4784 = vmatprep.subr.mxu0 0.0
    %4785 = vmatpush1.msra.mxu0 0.0
    %4786 = vmatprep.subr.mxu0 0.0
    %4787 = vmatpush1.msra.mxu0 0.0
    %4788 = vmatprep.subr.mxu0 0.0
    %4789 = vmatpush1.msra.mxu0 0.0
    %4790 = vmatprep.subr.mxu0 0.0
    %4791 = vmatpush1.msra.mxu0 0.0
    %4792 = vmatprep.subr.mxu0 0.0
    %4793 = vmatpush1.msra.mxu0 0.0
    %4794 = vmatprep.subr.mxu0 0.0
    %4795 = vmatpush1.msra.mxu0 0.0
    %4796 = vmatprep.subr.mxu0 0.0
    %4797 = vmatpush1.msra.mxu0 0.0
    %4798 = vmatprep.subr.mxu0 0.0
    %4799 = vmatpush1.msra.mxu0 0.0
    %4800 = vmatprep.subr.mxu0 0.0
    %4801 = vmatpush1.msra.mxu0 0.0
    %4802 = vmatprep.subr.mxu0 0.0
    %4803 = vmatpush1.msra.mxu0 0.0
    %4804 = vmatprep.subr.mxu0 0.0
    %4805 = vmatpush1.msra.mxu0 0.0
    %4806 = vmatprep.subr.mxu0 0.0
    %4807 = vmatpush1.msra.mxu0 0.0
    %4808 = vmatprep.subr.mxu0 0.0
    %4809 = vmatpush1.msra.mxu0 0.0
    %4810 = vmatprep.subr.mxu0 0.0
    %4811 = vmatpush1.msra.mxu0 0.0
    %4812 = vmatprep.subr.mxu0 0.0
    %4813 = vmatpush1.msra.mxu0 0.0
    %4814 = vmatprep.subr.mxu0 0.0
    %4815 = vmatpush1.msra.mxu0 0.0
    %4816 = vmatprep.subr.mxu0 0.0
    %4817 = vmatpush1.msra.mxu0 0.0
    %4818 = vmatprep.subr.mxu0 0.0
    %4819 = vmatpush1.msra.mxu0 0.0
    %4820 = vmatprep.subr.mxu0 0.0
    %4821 = vmatpush1.msra.mxu0 0.0
    %4822 = vmatprep.subr.mxu0 0.0
    %4823 = vmatpush1.msra.mxu0 0.0
    %4824 = vmatprep.subr.mxu0 0.0
    %4825 = vmatpush1.msra.mxu0 0.0
    %4826 = vmatprep.mubr.f32.mxu0 0.0
    %4827 = vmatmul.mubr.f32.gmra.mrb[0].mxu0 %v4749
    %v4828 = vpop.f32.mrb[0].mxu0
    %v4829 = vadd.f32 0.0, %v4828
    %v4830 = vpop.f32.mrb[0].mxu0
    %4831 = vmatprep.mubr.f32.mxu0 0.0
    %4832 = vmatmul.mubr.f32.gmra.mrb[0].mxu0 %v4752
    %v4833 = vpop.f32.mrb[0].mxu0
    %v4834 = vadd.f32 0.0, %v4833
    %v4835 = vpop.f32.mrb[0].mxu0
    %4836 = vmatprep.mubr.f32.mxu0 0.0
    %4837 = vmatmul.mubr.f32.gmra.mrb[0].mxu0 %v4755
    %v4838 = vpop.f32.mrb[0].mxu0
    %v4839 = vadd.f32 0.0, %v4838
    %v4840 = vpop.f32.mrb[0].mxu0
    %4841 = vmatprep.mubr.f32.mxu0 0.0
    %4842 = vmatmul.mubr.f32.gmra.mrb[0].mxu0 %v4758
    %v4843 = vpop.f32.mrb[0].mxu0
    %v4844 = vadd.f32 0.0, %v4843
    %v4845 = vpop.f32.mrb[0].mxu0
    %4846 = vdwg.mxu0
    %4847 = vrot.lane.b32.xlu0 %v4567, 112
    %v4848 = vpop.permute.xlu0 %4847
    %4849 = vrot.lane.b32.xlu0 %v4568, 112
    %v4850 = vpop.permute.xlu0 %4849
    %4851 = vrot.lane.b32.xlu0 %v4569, 112
    %v4852 = vpop.permute.xlu0 %4851
    %4853 = vrot.lane.b32.xlu0 %v4570, 112
    %v4854 = vpop.permute.xlu0 %4853
    %4855 = vrot.lane.b32.xlu0 %v4549, 80
    %v4856 = vpop.permute.xlu0 %4855
    %4857 = vrot.lane.b32.xlu0 %v4554, 80
    %v4858 = vpop.permute.xlu0 %4857
    %4859 = vrot.lane.b32.xlu0 %v4559, 80
    %v4860 = vpop.permute.xlu0 %4859
    %4861 = vrot.lane.b32.xlu0 %v4564, 80
    %v4862 = vpop.permute.xlu0 %4861
    %v4863 = vsel %vm367, %v4848, 0
    %v4865 = vsel %vm367, %v4850, 0
    %v4867 = vsel %vm367, %v4852, 0
    %v4869 = vsel %vm367, %v4854, 0
    %v4871 = vsel %vm367, %v4856, 0
    %v4873 = vsel %vm367, %v4858, 0
    %v4875 = vsel %vm367, %v4860, 0
    %v4877 = vsel %vm367, %v4862, 0
    %4879 = vmatprep.subr.mxu0 0.0
    %4880 = vmatpush1.xpose.msra.mxu0 %v4871
    %4881 = vmatprep.subr.mxu0 0.0
    %4882 = vmatpush1.xpose.msra.mxu0 %v4873
    %4883 = vmatprep.subr.mxu0 0.0
    %4884 = vmatpush1.xpose.msra.mxu0 %v4875
    %4885 = vmatprep.subr.mxu0 0.0
    %4886 = vmatpush1.xpose.msra.mxu0 %v4877
    %4887 = vmatprep.subr.mxu0 0.0
    %4888 = vmatpush1.xpose.msra.mxu0 0.0
    %4889 = vmatprep.subr.mxu0 0.0
    %4890 = vmatpush1.xpose.msra.mxu0 0.0
    %4891 = vmatprep.subr.mxu0 0.0
    %4892 = vmatpush1.xpose.msra.mxu0 0.0
    %4893 = vmatprep.subr.mxu0 0.0
    %4894 = vmatpush1.xpose.msra.mxu0 0.0
    %4895 = vmatprep.subr.mxu0 0.0
    %4896 = vmatpush1.xpose.msra.mxu0 0.0
    %4897 = vmatprep.subr.mxu0 0.0
    %4898 = vmatpush1.xpose.msra.mxu0 0.0
    %4899 = vmatprep.subr.mxu0 0.0
    %4900 = vmatpush1.xpose.msra.mxu0 0.0
    %4901 = vmatprep.subr.mxu0 0.0
    %4902 = vmatpush1.xpose.msra.mxu0 0.0
    %4903 = vmatprep.subr.mxu0 0.0
    %4904 = vmatpush1.xpose.msra.mxu0 0.0
    %4905 = vmatprep.subr.mxu0 0.0
    %4906 = vmatpush1.xpose.msra.mxu0 0.0
    %4907 = vmatprep.subr.mxu0 0.0
    %4908 = vmatpush1.xpose.msra.mxu0 0.0
    %4909 = vmatprep.subr.mxu0 0.0
    %4910 = vmatpush1.xpose.msra.mxu0 0.0
    %4911 = vmatprep.subr.mxu0 0.0
    %4912 = vmatpush1.xpose.msra.mxu0 0.0
    %4913 = vmatprep.subr.mxu0 0.0
    %4914 = vmatpush1.xpose.msra.mxu0 0.0
    %4915 = vmatprep.subr.mxu0 0.0
    %4916 = vmatpush1.xpose.msra.mxu0 0.0
    %4917 = vmatprep.subr.mxu0 0.0
    %4918 = vmatpush1.xpose.msra.mxu0 0.0
    %4919 = vmatprep.subr.mxu0 0.0
    %4920 = vmatpush1.xpose.msra.mxu0 0.0
    %4921 = vmatprep.subr.mxu0 0.0
    %4922 = vmatpush1.xpose.msra.mxu0 0.0
    %4923 = vmatprep.subr.mxu0 0.0
    %4924 = vmatpush1.xpose.msra.mxu0 0.0
    %4925 = vmatprep.subr.mxu0 0.0
    %4926 = vmatpush1.xpose.msra.mxu0 0.0
    %4927 = vmatprep.subr.mxu0 0.0
    %4928 = vmatpush1.xpose.msra.mxu0 0.0
    %4929 = vmatprep.subr.mxu0 0.0
    %4930 = vmatpush1.xpose.msra.mxu0 0.0
    %4931 = vmatprep.subr.mxu0 0.0
    %4932 = vmatpush1.xpose.msra.mxu0 0.0
    %4933 = vmatprep.subr.mxu0 0.0
    %4934 = vmatpush1.xpose.msra.mxu0 0.0
    %4935 = vmatprep.subr.mxu0 0.0
    %4936 = vmatpush1.xpose.msra.mxu0 0.0
    %4937 = vmatprep.subr.mxu0 0.0
    %4938 = vmatpush1.xpose.msra.mxu0 0.0
    %4939 = vmatprep.subr.mxu0 0.0
    %4940 = vmatpush1.xpose.msra.mxu0 0.0
    %4941 = vmatprep.subr.mxu0 0.0
    %4942 = vmatpush1.xpose.msra.mxu0 0.0
    %4943 = vmatprep.mubr.f32.mxu0 0.0
    %4944 = vmatmul.mubr.f32.gmra.mrb[0].mxu0 %v4863
    %v4945 = vpop.f32.mrb[0].mxu0
    %v4946 = vadd.f32 %v190, %v4945
    %v4947 = vpop.f32.mrb[0].mxu0
    %4948 = vmatprep.mubr.f32.mxu0 0.0
    %4949 = vmatmul.mubr.f32.gmra.mrb[0].mxu0 %v4865
    %v4950 = vpop.f32.mrb[0].mxu0
    %v4951 = vadd.f32 %v191, %v4950
    %v4952 = vpop.f32.mrb[0].mxu0
    %4953 = vmatprep.mubr.f32.mxu0 0.0
    %4954 = vmatmul.mubr.f32.gmra.mrb[0].mxu0 %v4867
    %v4955 = vpop.f32.mrb[0].mxu0
    %v4956 = vadd.f32 %v192, %v4955
    %v4957 = vpop.f32.mrb[0].mxu0
    %4958 = vmatprep.mubr.f32.mxu0 0.0
    %4959 = vmatmul.mubr.f32.gmra.mrb[0].mxu0 %v4869
    %v4960 = vpop.f32.mrb[0].mxu0
    %v4961 = vadd.f32 %v193, %v4960
    %v4962 = vpop.f32.mrb[0].mxu0
    %4963 = vdwg.mxu0
    %v4964 = vsel %vm2303, %v4946, -inf
    %4965 = vmax.xlane.f32.xlu0 %v4964
    %v4966 = vpop.xlane.xlu0 %4965
    %v4967 = vsel %vm2303, %v4951, -inf
    %4968 = vmax.xlane.f32.xlu0 %v4967
    %v4969 = vpop.xlane.xlu0 %4968
    %v4970 = vsel %vm2303, %v4956, -inf
    %4971 = vmax.xlane.f32.xlu0 %v4970
    %v4972 = vpop.xlane.xlu0 %4971
    %v4973 = vsel %vm2313, %v4961, -inf
    %4974 = vmax.xlane.f32.xlu0 %v4973
    %v4975 = vpop.xlane.xlu0 %4974
    %v4976 = vsub.f32 %v4946, %v4966
    %v4977 = vsub.f32 %v4951, %v4969
    %v4978 = vsub.f32 %v4956, %v4972
    %v4979 = vsub.f32 %v4961, %v4975
    %v4980 = vmul.f32 %v4976, 1.442695
    %v4981 = vpow.pop %v4980
    %v4982 = vmul.f32 %v4977, 1.442695
    %v4983 = vpow.pop %v4982
    %v4984 = vmul.f32 %v4978, 1.442695
    %v4985 = vpow.pop %v4984
    %v4986 = vmul.f32 %v4979, 1.442695
    %v4987 = vpow.pop %v4986
    %v4988 = vsel %vm2303, %v4981, 0.0
    %4989 = vadd.xlane.f32.xlu0 %v4988
    %v4990 = vpop.xlane.xlu0 %4989
    %v4991 = vsel %vm2303, %v4983, 0.0
    %4992 = vadd.xlane.f32.xlu0 %v4991
    %v4993 = vpop.xlane.xlu0 %4992
    %v4994 = vsel %vm2303, %v4985, 0.0
    %4995 = vadd.xlane.f32.xlu0 %v4994
    %v4996 = vpop.xlane.xlu0 %4995
    %v4997 = vsel %vm2313, %v4987, 0.0
    %4998 = vadd.xlane.f32.xlu0 %v4997
    %v4999 = vpop.xlane.xlu0 %4998
    %v5000 = vrcp.pop %v4990
    %v5001 = vrcp.pop %v4993
    %v5002 = vrcp.pop %v4996
    %v5003 = vrcp.pop %v4999
    %v5004 = vmul.f32 %v4981, %v5000
    %v5005 = vmul.f32 %v4983, %v5001
    %v5006 = vmul.f32 %v4985, %v5002
    %v5007 = vmul.f32 %v4987, %v5003
    %s5008 = scalar_lea.vmem %s73, 160
    %5009 = vst.msk [vmem:[%s5008] sm:$0xff] %vm2303, %v5004
    %5010 = vst.msk [vmem:[%s5008 + $0x8] sm:$0xff] %vm2303, %v5005
    %5011 = vst.msk [vmem:[%s5008 + $0x10] sm:$0xff] %vm2303, %v5006
    %5012 = vst.msk [vmem:[%s5008 + $0x18] sm:$0xf] %vm2313, %v5007
    %5013 = vrot.lane.b32.xlu0 %v4549, 48
    %v5014 = vpop.permute.xlu0 %5013
    %5015 = vrot.lane.b32.xlu0 %v4554, 48
    %v5016 = vpop.permute.xlu0 %5015
    %5017 = vrot.lane.b32.xlu0 %v4559, 48
    %v5018 = vpop.permute.xlu0 %5017
    %5019 = vrot.lane.b32.xlu0 %v4564, 48
    %v5020 = vpop.permute.xlu0 %5019
    %v5025 = vsel %vm2303, %v5004, 0
    %v5028 = vsel %vm2303, %v5005, 0
    %v5031 = vsel %vm2303, %v5006, 0
    %v5034 = vsel %vm2303, %v5007, 0
    %v5036 = vsel %vm2376, %v5020, 0
    %5038 = vmatprep.subr.mxu0 0.0
    %5039 = vmatpush1.msra.mxu0 %v5014
    %5040 = vmatprep.subr.mxu0 0.0
    %5041 = vmatpush1.msra.mxu0 %v5016
    %5042 = vmatprep.subr.mxu0 0.0
    %5043 = vmatpush1.msra.mxu0 %v5018
    %5044 = vmatprep.subr.mxu0 0.0
    %5045 = vmatpush1.msra.mxu0 %v5036
    %5046 = vmatprep.subr.mxu0 0.0
    %5047 = vmatpush1.msra.mxu0 0.0
    %5048 = vmatprep.subr.mxu0 0.0
    %5049 = vmatpush1.msra.mxu0 0.0
    %5050 = vmatprep.subr.mxu0 0.0
    %5051 = vmatpush1.msra.mxu0 0.0
    %5052 = vmatprep.subr.mxu0 0.0
    %5053 = vmatpush1.msra.mxu0 0.0
    %5054 = vmatprep.subr.mxu0 0.0
    %5055 = vmatpush1.msra.mxu0 0.0
    %5056 = vmatprep.subr.mxu0 0.0
    %5057 = vmatpush1.msra.mxu0 0.0
    %5058 = vmatprep.subr.mxu0 0.0
    %5059 = vmatpush1.msra.mxu0 0.0
    %5060 = vmatprep.subr.mxu0 0.0
    %5061 = vmatpush1.msra.mxu0 0.0
    %5062 = vmatprep.subr.mxu0 0.0
    %5063 = vmatpush1.msra.mxu0 0.0
    %5064 = vmatprep.subr.mxu0 0.0
    %5065 = vmatpush1.msra.mxu0 0.0
    %5066 = vmatprep.subr.mxu0 0.0
    %5067 = vmatpush1.msra.mxu0 0.0
    %5068 = vmatprep.subr.mxu0 0.0
    %5069 = vmatpush1.msra.mxu0 0.0
    %5070 = vmatprep.subr.mxu0 0.0
    %5071 = vmatpush1.msra.mxu0 0.0
    %5072 = vmatprep.subr.mxu0 0.0
    %5073 = vmatpush1.msra.mxu0 0.0
    %5074 = vmatprep.subr.mxu0 0.0
    %5075 = vmatpush1.msra.mxu0 0.0
    %5076 = vmatprep.subr.mxu0 0.0
    %5077 = vmatpush1.msra.mxu0 0.0
    %5078 = vmatprep.subr.mxu0 0.0
    %5079 = vmatpush1.msra.mxu0 0.0
    %5080 = vmatprep.subr.mxu0 0.0
    %5081 = vmatpush1.msra.mxu0 0.0
    %5082 = vmatprep.subr.mxu0 0.0
    %5083 = vmatpush1.msra.mxu0 0.0
    %5084 = vmatprep.subr.mxu0 0.0
    %5085 = vmatpush1.msra.mxu0 0.0
    %5086 = vmatprep.subr.mxu0 0.0
    %5087 = vmatpush1.msra.mxu0 0.0
    %5088 = vmatprep.subr.mxu0 0.0
    %5089 = vmatpush1.msra.mxu0 0.0
    %5090 = vmatprep.subr.mxu0 0.0
    %5091 = vmatpush1.msra.mxu0 0.0
    %5092 = vmatprep.subr.mxu0 0.0
    %5093 = vmatpush1.msra.mxu0 0.0
    %5094 = vmatprep.subr.mxu0 0.0
    %5095 = vmatpush1.msra.mxu0 0.0
    %5096 = vmatprep.subr.mxu0 0.0
    %5097 = vmatpush1.msra.mxu0 0.0
    %5098 = vmatprep.subr.mxu0 0.0
    %5099 = vmatpush1.msra.mxu0 0.0
    %5100 = vmatprep.subr.mxu0 0.0
    %5101 = vmatpush1.msra.mxu0 0.0
    %5102 = vmatprep.mubr.f32.mxu0 0.0
    %5103 = vmatmul.mubr.f32.gmra.mrb[0].mxu0 %v5025
    %v5104 = vpop.f32.mrb[0].mxu0
    %v5105 = vadd.f32 0.0, %v5104
    %v5106 = vpop.f32.mrb[0].mxu0
    %5107 = vmatprep.mubr.f32.mxu0 0.0
    %5108 = vmatmul.mubr.f32.gmra.mrb[0].mxu0 %v5028
    %v5109 = vpop.f32.mrb[0].mxu0
    %v5110 = vadd.f32 0.0, %v5109
    %v5111 = vpop.f32.mrb[0].mxu0
    %5112 = vmatprep.mubr.f32.mxu0 0.0
    %5113 = vmatmul.mubr.f32.gmra.mrb[0].mxu0 %v5031
    %v5114 = vpop.f32.mrb[0].mxu0
    %v5115 = vadd.f32 0.0, %v5114
    %v5116 = vpop.f32.mrb[0].mxu0
    %5117 = vmatprep.mubr.f32.mxu0 0.0
    %5118 = vmatmul.mubr.f32.gmra.mrb[0].mxu0 %v5034
    %v5119 = vpop.f32.mrb[0].mxu0
    %v5120 = vadd.f32 0.0, %v5119
    %v5121 = vpop.f32.mrb[0].mxu0
    %5122 = vdwg.mxu0
    %v5124 = vsel %vm367, %v5105, 0
    %v5127 = vsel %vm367, %v5110, 0
    %v5130 = vsel %vm367, %v5115, 0
    %v5133 = vsel %vm367, %v5120, 0
    %5135 = vmatprep.subr.mxu0 0.0
    %5136 = vmatpush1.msra.mxu0 %v257
    %5137 = vmatprep.subr.mxu0 0.0
    %5138 = vmatpush1.msra.mxu0 %v258
    %5139 = vmatprep.subr.mxu0 0.0
    %5140 = vmatpush1.msra.mxu0 0.0
    %5141 = vmatprep.subr.mxu0 0.0
    %5142 = vmatpush1.msra.mxu0 0.0
    %5143 = vmatprep.subr.mxu0 0.0
    %5144 = vmatpush1.msra.mxu0 0.0
    %5145 = vmatprep.subr.mxu0 0.0
    %5146 = vmatpush1.msra.mxu0 0.0
    %5147 = vmatprep.subr.mxu0 0.0
    %5148 = vmatpush1.msra.mxu0 0.0
    %5149 = vmatprep.subr.mxu0 0.0
    %5150 = vmatpush1.msra.mxu0 0.0
    %5151 = vmatprep.subr.mxu0 0.0
    %5152 = vmatpush1.msra.mxu0 0.0
    %5153 = vmatprep.subr.mxu0 0.0
    %5154 = vmatpush1.msra.mxu0 0.0
    %5155 = vmatprep.subr.mxu0 0.0
    %5156 = vmatpush1.msra.mxu0 0.0
    %5157 = vmatprep.subr.mxu0 0.0
    %5158 = vmatpush1.msra.mxu0 0.0
    %5159 = vmatprep.subr.mxu0 0.0
    %5160 = vmatpush1.msra.mxu0 0.0
    %5161 = vmatprep.subr.mxu0 0.0
    %5162 = vmatpush1.msra.mxu0 0.0
    %5163 = vmatprep.subr.mxu0 0.0
    %5164 = vmatpush1.msra.mxu0 0.0
    %5165 = vmatprep.subr.mxu0 0.0
    %5166 = vmatpush1.msra.mxu0 0.0
    %5167 = vmatprep.subr.mxu0 0.0
    %5168 = vmatpush1.msra.mxu0 0.0
    %5169 = vmatprep.subr.mxu0 0.0
    %5170 = vmatpush1.msra.mxu0 0.0
    %5171 = vmatprep.subr.mxu0 0.0
    %5172 = vmatpush1.msra.mxu0 0.0
    %5173 = vmatprep.subr.mxu0 0.0
    %5174 = vmatpush1.msra.mxu0 0.0
    %5175 = vmatprep.subr.mxu0 0.0
    %5176 = vmatpush1.msra.mxu0 0.0
    %5177 = vmatprep.subr.mxu0 0.0
    %5178 = vmatpush1.msra.mxu0 0.0
    %5179 = vmatprep.subr.mxu0 0.0
    %5180 = vmatpush1.msra.mxu0 0.0
    %5181 = vmatprep.subr.mxu0 0.0
    %5182 = vmatpush1.msra.mxu0 0.0
    %5183 = vmatprep.subr.mxu0 0.0
    %5184 = vmatpush1.msra.mxu0 0.0
    %5185 = vmatprep.subr.mxu0 0.0
    %5186 = vmatpush1.msra.mxu0 0.0
    %5187 = vmatprep.subr.mxu0 0.0
    %5188 = vmatpush1.msra.mxu0 0.0
    %5189 = vmatprep.subr.mxu0 0.0
    %5190 = vmatpush1.msra.mxu0 0.0
    %5191 = vmatprep.subr.mxu0 0.0
    %5192 = vmatpush1.msra.mxu0 0.0
    %5193 = vmatprep.subr.mxu0 0.0
    %5194 = vmatpush1.msra.mxu0 0.0
    %5195 = vmatprep.subr.mxu0 0.0
    %5196 = vmatpush1.msra.mxu0 0.0
    %5197 = vmatprep.subr.mxu0 0.0
    %5198 = vmatpush1.msra.mxu0 0.0
    %5199 = vmatprep.mubr.f32.mxu0 0.0
    %5200 = vmatmul.mubr.f32.gmra.mrb[0].mxu0 %v5124
    %v5201 = vpop.f32.mrb[0].mxu0
    %v5202 = vadd.f32 0.0, %v5201
    %v5203 = vpop.f32.mrb[0].mxu0
    %5204 = vmatprep.mubr.f32.mxu0 0.0
    %5205 = vmatmul.mubr.f32.gmra.mrb[0].mxu0 %v5127
    %v5206 = vpop.f32.mrb[0].mxu0
    %v5207 = vadd.f32 0.0, %v5206
    %v5208 = vpop.f32.mrb[0].mxu0
    %5209 = vmatprep.mubr.f32.mxu0 0.0
    %5210 = vmatmul.mubr.f32.gmra.mrb[0].mxu0 %v5130
    %v5211 = vpop.f32.mrb[0].mxu0
    %v5212 = vadd.f32 0.0, %v5211
    %v5213 = vpop.f32.mrb[0].mxu0
    %5214 = vmatprep.mubr.f32.mxu0 0.0
    %5215 = vmatmul.mubr.f32.gmra.mrb[0].mxu0 %v5133
    %v5216 = vpop.f32.mrb[0].mxu0
    %v5217 = vadd.f32 0.0, %v5216
    %v5218 = vpop.f32.mrb[0].mxu0
    %5219 = vdwg.mxu0
    %v5221 = vsel %vm367, %v4829, 0
    %v5224 = vsel %vm367, %v4834, 0
    %v5227 = vsel %vm367, %v4839, 0
    %v5230 = vsel %vm367, %v4844, 0
    %5232 = vmatprep.subr.mxu0 0.0
    %5233 = vmatpush1.msra.mxu0 %v254
    %5234 = vmatprep.subr.mxu0 0.0
    %5235 = vmatpush1.msra.mxu0 %v255
    %5236 = vmatprep.subr.mxu0 0.0
    %5237 = vmatpush1.msra.mxu0 0.0
    %5238 = vmatprep.subr.mxu0 0.0
    %5239 = vmatpush1.msra.mxu0 0.0
    %5240 = vmatprep.subr.mxu0 0.0
    %5241 = vmatpush1.msra.mxu0 0.0
    %5242 = vmatprep.subr.mxu0 0.0
    %5243 = vmatpush1.msra.mxu0 0.0
    %5244 = vmatprep.subr.mxu0 0.0
    %5245 = vmatpush1.msra.mxu0 0.0
    %5246 = vmatprep.subr.mxu0 0.0
    %5247 = vmatpush1.msra.mxu0 0.0
    %5248 = vmatprep.subr.mxu0 0.0
    %5249 = vmatpush1.msra.mxu0 0.0
    %5250 = vmatprep.subr.mxu0 0.0
    %5251 = vmatpush1.msra.mxu0 0.0
    %5252 = vmatprep.subr.mxu0 0.0
    %5253 = vmatpush1.msra.mxu0 0.0
    %5254 = vmatprep.subr.mxu0 0.0
    %5255 = vmatpush1.msra.mxu0 0.0
    %5256 = vmatprep.subr.mxu0 0.0
    %5257 = vmatpush1.msra.mxu0 0.0
    %5258 = vmatprep.subr.mxu0 0.0
    %5259 = vmatpush1.msra.mxu0 0.0
    %5260 = vmatprep.subr.mxu0 0.0
    %5261 = vmatpush1.msra.mxu0 0.0
    %5262 = vmatprep.subr.mxu0 0.0
    %5263 = vmatpush1.msra.mxu0 0.0
    %5264 = vmatprep.subr.mxu0 0.0
    %5265 = vmatpush1.msra.mxu0 0.0
    %5266 = vmatprep.subr.mxu0 0.0
    %5267 = vmatpush1.msra.mxu0 0.0
    %5268 = vmatprep.subr.mxu0 0.0
    %5269 = vmatpush1.msra.mxu0 0.0
    %5270 = vmatprep.subr.mxu0 0.0
    %5271 = vmatpush1.msra.mxu0 0.0
    %5272 = vmatprep.subr.mxu0 0.0
    %5273 = vmatpush1.msra.mxu0 0.0
    %5274 = vmatprep.subr.mxu0 0.0
    %5275 = vmatpush1.msra.mxu0 0.0
    %5276 = vmatprep.subr.mxu0 0.0
    %5277 = vmatpush1.msra.mxu0 0.0
    %5278 = vmatprep.subr.mxu0 0.0
    %5279 = vmatpush1.msra.mxu0 0.0
    %5280 = vmatprep.subr.mxu0 0.0
    %5281 = vmatpush1.msra.mxu0 0.0
    %5282 = vmatprep.subr.mxu0 0.0
    %5283 = vmatpush1.msra.mxu0 0.0
    %5284 = vmatprep.subr.mxu0 0.0
    %5285 = vmatpush1.msra.mxu0 0.0
    %5286 = vmatprep.subr.mxu0 0.0
    %5287 = vmatpush1.msra.mxu0 0.0
    %5288 = vmatprep.subr.mxu0 0.0
    %5289 = vmatpush1.msra.mxu0 0.0
    %5290 = vmatprep.subr.mxu0 0.0
    %5291 = vmatpush1.msra.mxu0 0.0
    %5292 = vmatprep.subr.mxu0 0.0
    %5293 = vmatpush1.msra.mxu0 0.0
    %5294 = vmatprep.subr.mxu0 0.0
    %5295 = vmatpush1.msra.mxu0 0.0
    %5296 = vmatprep.mubr.f32.mxu0 0.0
    %5297 = vmatmul.mubr.f32.gmra.mrb[0].mxu0 %v5221
    %v5298 = vpop.f32.mrb[0].mxu0
    %v5299 = vadd.f32 %v5202, %v5298
    %v5300 = vpop.f32.mrb[0].mxu0
    %5301 = vmatprep.mubr.f32.mxu0 0.0
    %5302 = vmatmul.mubr.f32.gmra.mrb[0].mxu0 %v5224
    %v5303 = vpop.f32.mrb[0].mxu0
    %v5304 = vadd.f32 %v5207, %v5303
    %v5305 = vpop.f32.mrb[0].mxu0
    %5306 = vmatprep.mubr.f32.mxu0 0.0
    %5307 = vmatmul.mubr.f32.gmra.mrb[0].mxu0 %v5227
    %v5308 = vpop.f32.mrb[0].mxu0
    %v5309 = vadd.f32 %v5212, %v5308
    %v5310 = vpop.f32.mrb[0].mxu0
    %5311 = vmatprep.mubr.f32.mxu0 0.0
    %5312 = vmatmul.mubr.f32.gmra.mrb[0].mxu0 %v5230
    %v5313 = vpop.f32.mrb[0].mxu0
    %v5314 = vadd.f32 %v5217, %v5313
    %v5315 = vpop.f32.mrb[0].mxu0
    %5316 = vdwg.mxu0
    %v5317 = vadd.f32 %v5299, %v3293
    %v5318 = vadd.f32 %v5304, %v3294
    %v5319 = vadd.f32 %v5309, %v3295
    %v5320 = vadd.f32 %v5314, %v3296
    %v5321 = vsel %vm285, %v5317, 0.0
    %5322 = vadd.xlane.f32.xlu0 %v5321
    %v5323 = vpop.xlane.xlu0 %5322
    %v5324 = vsel %vm285, %v5318, 0.0
    %5325 = vadd.xlane.f32.xlu0 %v5324
    %v5326 = vpop.xlane.xlu0 %5325
    %v5327 = vsel %vm285, %v5319, 0.0
    %5328 = vadd.xlane.f32.xlu0 %v5327
    %v5329 = vpop.xlane.xlu0 %5328
    %v5330 = vsel %vm1142, %v5320, 0.0
    %5331 = vadd.xlane.f32.xlu0 %v5330
    %v5332 = vpop.xlane.xlu0 %5331
    %v5333 = vmul.f32 %v5323, %v1146
    %v5334 = vmul.f32 %v5326, %v1146
    %v5335 = vmul.f32 %v5329, %v1146
    %v5336 = vmul.f32 %v5332, %v1146
    %v5337 = vsub.f32 %v5317, %v5333
    %v5338 = vsub.f32 %v5318, %v5334
    %v5339 = vsub.f32 %v5319, %v5335
    %v5340 = vsub.f32 %v5320, %v5336
    %v5341 = vmul.f32 %v5337, %v5337
    %v5342 = vmul.f32 %v5338, %v5338
    %v5343 = vmul.f32 %v5339, %v5339
    %v5344 = vmul.f32 %v5340, %v5340
    %v5345 = vsel %vm285, %v5341, 0.0
    %5346 = vadd.xlane.f32.xlu0 %v5345
    %v5347 = vpop.xlane.xlu0 %5346
    %v5348 = vsel %vm285, %v5342, 0.0
    %5349 = vadd.xlane.f32.xlu0 %v5348
    %v5350 = vpop.xlane.xlu0 %5349
    %v5351 = vsel %vm285, %v5343, 0.0
    %5352 = vadd.xlane.f32.xlu0 %v5351
    %v5353 = vpop.xlane.xlu0 %5352
    %v5354 = vsel %vm1142, %v5344, 0.0
    %5355 = vadd.xlane.f32.xlu0 %v5354
    %v5356 = vpop.xlane.xlu0 %5355
    %v5357 = vmul.f32 %v5347, %v1146
    %v5358 = vmul.f32 %v5350, %v1146
    %v5359 = vmul.f32 %v5353, %v1146
    %v5360 = vmul.f32 %v5356, %v1146
    %v5361 = vadd.f32 %v5357, 1e-06
    %v5362 = vadd.f32 %v5358, 1e-06
    %v5363 = vadd.f32 %v5359, 1e-06
    %v5364 = vadd.f32 %v5360, 1e-06
    %v5365 = vrsqrt.pop %v5361
    %v5366 = vrsqrt.pop %v5362
    %v5367 = vrsqrt.pop %v5363
    %v5368 = vrsqrt.pop %v5364
    %v5369 = vmul.f32 %v5337, %v5365
    %v5370 = vmul.f32 %v5338, %v5366
    %v5371 = vmul.f32 %v5339, %v5367
    %v5372 = vmul.f32 %v5340, %v5368
    %v5374 = vlaneseq
    %v5375 = vshrl.u32 %v5374, 7
    %v5376 = vsub.s32 0, %v5375
    %v5377 = vrot.slane %v259, %v5376
    %v5379 = vmul.f32 %v5369, %v5377
    %v5380 = vmul.f32 %v5370, %v5377
    %v5381 = vmul.f32 %v5371, %v5377
    %v5382 = vmul.f32 %v5372, %v5377
    %v5384 = vlaneseq
    %v5385 = vshrl.u32 %v5384, 7
    %v5386 = vsub.s32 0, %v5385
    %v5387 = vrot.slane %v260, %v5386
    %v5389 = vadd.f32 %v5379, %v5387
    %v5390 = vadd.f32 %v5380, %v5387
    %v5391 = vadd.f32 %v5381, %v5387
    %v5392 = vadd.f32 %v5382, %v5387
    %v5394 = vlaneseq
    %v5395 = vshrl.u32 %v5394, 7
    %v5396 = vsub.s32 0, %v5395
    %v5397 = vrot.slane %v265, %v5396
    %v5400 = vsel %vm285, %v5389, 0
    %v5403 = vsel %vm285, %v5390, 0
    %v5406 = vsel %vm285, %v5391, 0
    %v5409 = vsel %vm285, %v5392, 0
    %5411 = vmatprep.subr.mxu0 0.0
    %5412 = vmatpush1.msra.mxu0 %v261
    %5413 = vmatprep.subr.mxu0 0.0
    %5414 = vmatpush1.msra.mxu0 %v262
    %5415 = vmatprep.subr.mxu0 0.0
    %5416 = vmatpush1.msra.mxu0 %v263
    %5417 = vmatprep.subr.mxu0 0.0
    %5418 = vmatpush1.msra.mxu0 %v264
    %5419 = vmatprep.subr.mxu0 0.0
    %5420 = vmatpush1.msra.mxu0 0.0
    %5421 = vmatprep.subr.mxu0 0.0
    %5422 = vmatpush1.msra.mxu0 0.0
    %5423 = vmatprep.subr.mxu0 0.0
    %5424 = vmatpush1.msra.mxu0 0.0
    %5425 = vmatprep.subr.mxu0 0.0
    %5426 = vmatpush1.msra.mxu0 0.0
    %5427 = vmatprep.subr.mxu0 0.0
    %5428 = vmatpush1.msra.mxu0 0.0
    %5429 = vmatprep.subr.mxu0 0.0
    %5430 = vmatpush1.msra.mxu0 0.0
    %5431 = vmatprep.subr.mxu0 0.0
    %5432 = vmatpush1.msra.mxu0 0.0
    %5433 = vmatprep.subr.mxu0 0.0
    %5434 = vmatpush1.msra.mxu0 0.0
    %5435 = vmatprep.subr.mxu0 0.0
    %5436 = vmatpush1.msra.mxu0 0.0
    %5437 = vmatprep.subr.mxu0 0.0
    %5438 = vmatpush1.msra.mxu0 0.0
    %5439 = vmatprep.subr.mxu0 0.0
    %5440 = vmatpush1.msra.mxu0 0.0
    %5441 = vmatprep.subr.mxu0 0.0
    %5442 = vmatpush1.msra.mxu0 0.0
    %5443 = vmatprep.subr.mxu0 0.0
    %5444 = vmatpush1.msra.mxu0 0.0
    %5445 = vmatprep.subr.mxu0 0.0
    %5446 = vmatpush1.msra.mxu0 0.0
    %5447 = vmatprep.subr.mxu0 0.0
    %5448 = vmatpush1.msra.mxu0 0.0
    %5449 = vmatprep.subr.mxu0 0.0
    %5450 = vmatpush1.msra.mxu0 0.0
    %5451 = vmatprep.subr.mxu0 0.0
    %5452 = vmatpush1.msra.mxu0 0.0
    %5453 = vmatprep.subr.mxu0 0.0
    %5454 = vmatpush1.msra.mxu0 0.0
    %5455 = vmatprep.subr.mxu0 0.0
    %5456 = vmatpush1.msra.mxu0 0.0
    %5457 = vmatprep.subr.mxu0 0.0
    %5458 = vmatpush1.msra.mxu0 0.0
    %5459 = vmatprep.subr.mxu0 0.0
    %5460 = vmatpush1.msra.mxu0 0.0
    %5461 = vmatprep.subr.mxu0 0.0
    %5462 = vmatpush1.msra.mxu0 0.0
    %5463 = vmatprep.subr.mxu0 0.0
    %5464 = vmatpush1.msra.mxu0 0.0
    %5465 = vmatprep.subr.mxu0 0.0
    %5466 = vmatpush1.msra.mxu0 0.0
    %5467 = vmatprep.subr.mxu0 0.0
    %5468 = vmatpush1.msra.mxu0 0.0
    %5469 = vmatprep.subr.mxu0 0.0
    %5470 = vmatpush1.msra.mxu0 0.0
    %5471 = vmatprep.subr.mxu0 0.0
    %5472 = vmatpush1.msra.mxu0 0.0
    %5473 = vmatprep.subr.mxu0 0.0
    %5474 = vmatpush1.msra.mxu0 0.0
    %5475 = vmatprep.mubr.f32.mxu0 0.0
    %5476 = vmatmul.mubr.f32.gmra.mrb[0].mxu0 %v5400
    %v5477 = vpop.f32.mrb[0].mxu0
    %v5478 = vadd.f32 %v5397, %v5477
    %v5479 = vpop.f32.mrb[0].mxu0
    %5480 = vmatprep.mubr.f32.mxu0 0.0
    %5481 = vmatmul.mubr.f32.gmra.mrb[0].mxu0 %v5403
    %v5482 = vpop.f32.mrb[0].mxu0
    %v5483 = vadd.f32 %v5397, %v5482
    %v5484 = vpop.f32.mrb[0].mxu0
    %5485 = vmatprep.mubr.f32.mxu0 0.0
    %5486 = vmatmul.mubr.f32.gmra.mrb[0].mxu0 %v5406
    %v5487 = vpop.f32.mrb[0].mxu0
    %v5488 = vadd.f32 %v5397, %v5487
    %v5489 = vpop.f32.mrb[0].mxu0
    %5490 = vmatprep.mubr.f32.mxu0 0.0
    %5491 = vmatmul.mubr.f32.gmra.mrb[0].mxu0 %v5409
    %v5492 = vpop.f32.mrb[0].mxu0
    %v5493 = vadd.f32 %v5397, %v5492
    %v5494 = vpop.f32.mrb[0].mxu0
    %5495 = vdwg.mxu0
    %v5496 = vmax.f32 %v5478, 0.0
    %v5497 = vmax.f32 %v5483, 0.0
    %v5498 = vmax.f32 %v5488, 0.0
    %v5499 = vmax.f32 %v5493, 0.0
    %v5501 = vlaneseq
    %v5502 = vshrl.u32 %v5501, 7
    %v5503 = vsub.s32 0, %v5502
    %v5504 = vrot.slane %v274, %v5503
    %v5507 = vsel %vm3123, %v5496, 0
    %v5510 = vsel %vm3123, %v5497, 0
    %v5513 = vsel %vm3123, %v5498, 0
    %v5516 = vsel %vm3123, %v5499, 0
    %5518 = vmatprep.subr.mxu0 0.0
    %5519 = vmatpush1.msra.mxu0 %v266
    %5520 = vmatprep.subr.mxu0 0.0
    %5521 = vmatpush1.msra.mxu0 %v267
    %5522 = vmatprep.subr.mxu0 0.0
    %5523 = vmatpush1.msra.mxu0 %v268
    %5524 = vmatprep.subr.mxu0 0.0
    %5525 = vmatpush1.msra.mxu0 %v269
    %5526 = vmatprep.subr.mxu0 0.0
    %5527 = vmatpush1.msra.mxu0 %v270
    %5528 = vmatprep.subr.mxu0 0.0
    %5529 = vmatpush1.msra.mxu0 %v271
    %5530 = vmatprep.subr.mxu0 0.0
    %5531 = vmatpush1.msra.mxu0 %v272
    %5532 = vmatprep.subr.mxu0 0.0
    %5533 = vmatpush1.msra.mxu0 %v273
    %5534 = vmatprep.subr.mxu0 0.0
    %5535 = vmatpush1.msra.mxu0 0.0
    %5536 = vmatprep.subr.mxu0 0.0
    %5537 = vmatpush1.msra.mxu0 0.0
    %5538 = vmatprep.subr.mxu0 0.0
    %5539 = vmatpush1.msra.mxu0 0.0
    %5540 = vmatprep.subr.mxu0 0.0
    %5541 = vmatpush1.msra.mxu0 0.0
    %5542 = vmatprep.subr.mxu0 0.0
    %5543 = vmatpush1.msra.mxu0 0.0
    %5544 = vmatprep.subr.mxu0 0.0
    %5545 = vmatpush1.msra.mxu0 0.0
    %5546 = vmatprep.subr.mxu0 0.0
    %5547 = vmatpush1.msra.mxu0 0.0
    %5548 = vmatprep.subr.mxu0 0.0
    %5549 = vmatpush1.msra.mxu0 0.0
    %5550 = vmatprep.subr.mxu0 0.0
    %5551 = vmatpush1.msra.mxu0 0.0
    %5552 = vmatprep.subr.mxu0 0.0
    %5553 = vmatpush1.msra.mxu0 0.0
    %5554 = vmatprep.subr.mxu0 0.0
    %5555 = vmatpush1.msra.mxu0 0.0
    %5556 = vmatprep.subr.mxu0 0.0
    %5557 = vmatpush1.msra.mxu0 0.0
    %5558 = vmatprep.subr.mxu0 0.0
    %5559 = vmatpush1.msra.mxu0 0.0
    %5560 = vmatprep.subr.mxu0 0.0
    %5561 = vmatpush1.msra.mxu0 0.0
    %5562 = vmatprep.subr.mxu0 0.0
    %5563 = vmatpush1.msra.mxu0 0.0
    %5564 = vmatprep.subr.mxu0 0.0
    %5565 = vmatpush1.msra.mxu0 0.0
    %5566 = vmatprep.subr.mxu0 0.0
    %5567 = vmatpush1.msra.mxu0 0.0
    %5568 = vmatprep.subr.mxu0 0.0
    %5569 = vmatpush1.msra.mxu0 0.0
    %5570 = vmatprep.subr.mxu0 0.0
    %5571 = vmatpush1.msra.mxu0 0.0
    %5572 = vmatprep.subr.mxu0 0.0
    %5573 = vmatpush1.msra.mxu0 0.0
    %5574 = vmatprep.subr.mxu0 0.0
    %5575 = vmatpush1.msra.mxu0 0.0
    %5576 = vmatprep.subr.mxu0 0.0
    %5577 = vmatpush1.msra.mxu0 0.0
    %5578 = vmatprep.subr.mxu0 0.0
    %5579 = vmatpush1.msra.mxu0 0.0
    %5580 = vmatprep.subr.mxu0 0.0
    %5581 = vmatpush1.msra.mxu0 0.0
    %5582 = vmatprep.mubr.f32.mxu0 0.0
    %5583 = vmatmul.mubr.f32.gmra.mrb[0].mxu0 %v5507
    %v5584 = vpop.f32.mrb[0].mxu0
    %v5585 = vadd.f32 %v5504, %v5584
    %v5586 = vpop.f32.mrb[0].mxu0
    %5587 = vmatprep.mubr.f32.mxu0 0.0
    %5588 = vmatmul.mubr.f32.gmra.mrb[0].mxu0 %v5510
    %v5589 = vpop.f32.mrb[0].mxu0
    %v5590 = vadd.f32 %v5504, %v5589
    %v5591 = vpop.f32.mrb[0].mxu0
    %5592 = vmatprep.mubr.f32.mxu0 0.0
    %5593 = vmatmul.mubr.f32.gmra.mrb[0].mxu0 %v5513
    %v5594 = vpop.f32.mrb[0].mxu0
    %v5595 = vadd.f32 %v5504, %v5594
    %v5596 = vpop.f32.mrb[0].mxu0
    %5597 = vmatprep.mubr.f32.mxu0 0.0
    %5598 = vmatmul.mubr.f32.gmra.mrb[0].mxu0 %v5516
    %v5599 = vpop.f32.mrb[0].mxu0
    %v5600 = vadd.f32 %v5504, %v5599
    %v5601 = vpop.f32.mrb[0].mxu0
    %5602 = vdwg.mxu0
    %v5603 = vadd.f32 %v5585, %v5389
    %v5604 = vadd.f32 %v5590, %v5390
    %v5605 = vadd.f32 %v5595, %v5391
    %v5606 = vadd.f32 %v5600, %v5392
    %v5607 = vsel %vm285, %v5603, 0.0
    %5608 = vadd.xlane.f32.xlu0 %v5607
    %v5609 = vpop.xlane.xlu0 %5608
    %v5610 = vsel %vm285, %v5604, 0.0
    %5611 = vadd.xlane.f32.xlu0 %v5610
    %v5612 = vpop.xlane.xlu0 %5611
    %v5613 = vsel %vm285, %v5605, 0.0
    %5614 = vadd.xlane.f32.xlu0 %v5613
    %v5615 = vpop.xlane.xlu0 %5614
    %v5616 = vsel %vm1142, %v5606, 0.0
    %5617 = vadd.xlane.f32.xlu0 %v5616
    %v5618 = vpop.xlane.xlu0 %5617
    %v5619 = vmul.f32 %v5609, %v1146
    %v5620 = vmul.f32 %v5612, %v1146
    %v5621 = vmul.f32 %v5615, %v1146
    %v5622 = vmul.f32 %v5618, %v1146
    %v5623 = vsub.f32 %v5603, %v5619
    %v5624 = vsub.f32 %v5604, %v5620
    %v5625 = vsub.f32 %v5605, %v5621
    %v5626 = vsub.f32 %v5606, %v5622
    %v5627 = vmul.f32 %v5623, %v5623
    %v5628 = vmul.f32 %v5624, %v5624
    %v5629 = vmul.f32 %v5625, %v5625
    %v5630 = vmul.f32 %v5626, %v5626
    %v5631 = vsel %vm285, %v5627, 0.0
    %5632 = vadd.xlane.f32.xlu0 %v5631
    %v5633 = vpop.xlane.xlu0 %5632
    %v5634 = vsel %vm285, %v5628, 0.0
    %5635 = vadd.xlane.f32.xlu0 %v5634
    %v5636 = vpop.xlane.xlu0 %5635
    %v5637 = vsel %vm285, %v5629, 0.0
    %5638 = vadd.xlane.f32.xlu0 %v5637
    %v5639 = vpop.xlane.xlu0 %5638
    %v5640 = vsel %vm1142, %v5630, 0.0
    %5641 = vadd.xlane.f32.xlu0 %v5640
    %v5642 = vpop.xlane.xlu0 %5641
    %v5643 = vmul.f32 %v5633, %v1146
    %v5644 = vmul.f32 %v5636, %v1146
    %v5645 = vmul.f32 %v5639, %v1146
    %v5646 = vmul.f32 %v5642, %v1146
    %v5647 = vadd.f32 %v5643, 1e-06
    %v5648 = vadd.f32 %v5644, 1e-06
    %v5649 = vadd.f32 %v5645, 1e-06
    %v5650 = vadd.f32 %v5646, 1e-06
    %v5651 = vrsqrt.pop %v5647
    %v5652 = vrsqrt.pop %v5648
    %v5653 = vrsqrt.pop %v5649
    %v5654 = vrsqrt.pop %v5650
    %v5655 = vmul.f32 %v5623, %v5651
    %v5656 = vmul.f32 %v5624, %v5652
    %v5657 = vmul.f32 %v5625, %v5653
    %v5658 = vmul.f32 %v5626, %v5654
    %v5660 = vlaneseq
    %v5661 = vshrl.u32 %v5660, 7
    %v5662 = vsub.s32 0, %v5661
    %v5663 = vrot.slane %v275, %v5662
    %v5665 = vmul.f32 %v5655, %v5663
    %v5666 = vmul.f32 %v5656, %v5663
    %v5667 = vmul.f32 %v5657, %v5663
    %v5668 = vmul.f32 %v5658, %v5663
    %v5670 = vlaneseq
    %v5671 = vshrl.u32 %v5670, 7
    %v5672 = vsub.s32 0, %v5671
    %v5673 = vrot.slane %v276, %v5672
    %v5675 = vadd.f32 %v5665, %v5673
    %v5676 = vadd.f32 %v5666, %v5673
    %v5677 = vadd.f32 %v5667, %v5673
    %v5678 = vadd.f32 %v5668, %v5673
    %v5680 = vsel %vm285, %v4466, 0
    %v5683 = vsel %vm285, %v4467, 0
    %v5686 = vsel %vm285, %v4468, 0
    %v5689 = vsel %vm285, %v4469, 0
    %5691 = vmatprep.subr.mxu0 0.0
    %5692 = vmatpush1.msra.mxu0 %v250
    %5693 = vmatprep.subr.mxu0 0.0
    %5694 = vmatpush1.msra.mxu0 %v251
    %5695 = vmatprep.subr.mxu0 0.0
    %5696 = vmatpush1.msra.mxu0 %v252
    %5697 = vmatprep.subr.mxu0 0.0
    %5698 = vmatpush1.msra.mxu0 %v253
    %5699 = vmatprep.subr.mxu0 0.0
    %5700 = vmatpush1.msra.mxu0 0.0
    %5701 = vmatprep.subr.mxu0 0.0
    %5702 = vmatpush1.msra.mxu0 0.0
    %5703 = vmatprep.subr.mxu0 0.0
    %5704 = vmatpush1.msra.mxu0 0.0
    %5705 = vmatprep.subr.mxu0 0.0
    %5706 = vmatpush1.msra.mxu0 0.0
    %5707 = vmatprep.subr.mxu0 0.0
    %5708 = vmatpush1.msra.mxu0 0.0
    %5709 = vmatprep.subr.mxu0 0.0
    %5710 = vmatpush1.msra.mxu0 0.0
    %5711 = vmatprep.subr.mxu0 0.0
    %5712 = vmatpush1.msra.mxu0 0.0
    %5713 = vmatprep.subr.mxu0 0.0
    %5714 = vmatpush1.msra.mxu0 0.0
    %5715 = vmatprep.subr.mxu0 0.0
    %5716 = vmatpush1.msra.mxu0 0.0
    %5717 = vmatprep.subr.mxu0 0.0
    %5718 = vmatpush1.msra.mxu0 0.0
    %5719 = vmatprep.subr.mxu0 0.0
    %5720 = vmatpush1.msra.mxu0 0.0
    %5721 = vmatprep.subr.mxu0 0.0
    %5722 = vmatpush1.msra.mxu0 0.0
    %5723 = vmatprep.subr.mxu0 0.0
    %5724 = vmatpush1.msra.mxu0 0.0
    %5725 = vmatprep.subr.mxu0 0.0
    %5726 = vmatpush1.msra.mxu0 0.0
    %5727 = vmatprep.subr.mxu0 0.0
    %5728 = vmatpush1.msra.mxu0 0.0
    %5729 = vmatprep.subr.mxu0 0.0
    %5730 = vmatpush1.msra.mxu0 0.0
    %5731 = vmatprep.subr.mxu0 0.0
    %5732 = vmatpush1.msra.mxu0 0.0
    %5733 = vmatprep.subr.mxu0 0.0
    %5734 = vmatpush1.msra.mxu0 0.0
    %5735 = vmatprep.subr.mxu0 0.0
    %5736 = vmatpush1.msra.mxu0 0.0
    %5737 = vmatprep.subr.mxu0 0.0
    %5738 = vmatpush1.msra.mxu0 0.0
    %5739 = vmatprep.subr.mxu0 0.0
    %5740 = vmatpush1.msra.mxu0 0.0
    %5741 = vmatprep.subr.mxu0 0.0
    %5742 = vmatpush1.msra.mxu0 0.0
    %5743 = vmatprep.subr.mxu0 0.0
    %5744 = vmatpush1.msra.mxu0 0.0
    %5745 = vmatprep.subr.mxu0 0.0
    %5746 = vmatpush1.msra.mxu0 0.0
    %5747 = vmatprep.subr.mxu0 0.0
    %5748 = vmatpush1.msra.mxu0 0.0
    %5749 = vmatprep.subr.mxu0 0.0
    %5750 = vmatpush1.msra.mxu0 0.0
    %5751 = vmatprep.subr.mxu0 0.0
    %5752 = vmatpush1.msra.mxu0 0.0
    %5753 = vmatprep.subr.mxu0 0.0
    %5754 = vmatpush1.msra.mxu0 0.0
    %5755 = vmatprep.mubr.f32.mxu0 0.0
    %5756 = vmatmul.mubr.f32.gmra.mrb[0].mxu0 %v5680
    %v5757 = vpop.f32.mrb[0].mxu0
    %v5758 = vadd.f32 0.0, %v5757
    %v5759 = vpop.f32.mrb[0].mxu0
    %5760 = vmatprep.mubr.f32.mxu0 0.0
    %5761 = vmatmul.mubr.f32.gmra.mrb[0].mxu0 %v5683
    %v5762 = vpop.f32.mrb[0].mxu0
    %v5763 = vadd.f32 0.0, %v5762
    %v5764 = vpop.f32.mrb[0].mxu0
    %5765 = vmatprep.mubr.f32.mxu0 0.0
    %5766 = vmatmul.mubr.f32.gmra.mrb[0].mxu0 %v5686
    %v5767 = vpop.f32.mrb[0].mxu0
    %v5768 = vadd.f32 0.0, %v5767
    %v5769 = vpop.f32.mrb[0].mxu0
    %5770 = vmatprep.mubr.f32.mxu0 0.0
    %5771 = vmatmul.mubr.f32.gmra.mrb[0].mxu0 %v5689
    %v5772 = vpop.f32.mrb[0].mxu0
    %v5773 = vadd.f32 0.0, %v5772
    %v5774 = vpop.f32.mrb[0].mxu0
    %5775 = vdwg.mxu0
    %v5776 = vmul.f32 %v5758, 0.25
    %v5777 = vmul.f32 %v5763, 0.25
    %v5778 = vmul.f32 %v5768, 0.25
    %v5779 = vmul.f32 %v5773, 0.25
    %5784 = vrot.lane.b32.xlu0 %v5758, 96
    %v5785 = vpop.permute.xlu0 %5784
    %5786 = vrot.lane.b32.xlu0 %v5763, 96
    %v5787 = vpop.permute.xlu0 %5786
    %5788 = vrot.lane.b32.xlu0 %v5768, 96
    %v5789 = vpop.permute.xlu0 %5788
    %5790 = vrot.lane.b32.xlu0 %v5773, 96
    %v5791 = vpop.permute.xlu0 %5790
    %v5793 = vsel %vm367, %v5776, 0
    %v5796 = vsel %vm367, %v5777, 0
    %v5799 = vsel %vm367, %v5778, 0
    %v5802 = vsel %vm367, %v5779, 0
    %v5804 = vsel %vm367, %v5785, 0
    %v5806 = vsel %vm367, %v5787, 0
    %v5808 = vsel %vm367, %v5789, 0
    %v5810 = vsel %vm367, %v5791, 0
    %5812 = vmatprep.subr.mxu0 0.0
    %5813 = vmatpush1.xpose.msra.mxu0 %v5804
    %5814 = vmatprep.subr.mxu0 0.0
    %5815 = vmatpush1.xpose.msra.mxu0 %v5806
    %5816 = vmatprep.subr.mxu0 0.0
    %5817 = vmatpush1.xpose.msra.mxu0 %v5808
    %5818 = vmatprep.subr.mxu0 0.0
    %5819 = vmatpush1.xpose.msra.mxu0 %v5810
    %5820 = vmatprep.subr.mxu0 0.0
    %5821 = vmatpush1.xpose.msra.mxu0 0.0
    %5822 = vmatprep.subr.mxu0 0.0
    %5823 = vmatpush1.xpose.msra.mxu0 0.0
    %5824 = vmatprep.subr.mxu0 0.0
    %5825 = vmatpush1.xpose.msra.mxu0 0.0
    %5826 = vmatprep.subr.mxu0 0.0
    %5827 = vmatpush1.xpose.msra.mxu0 0.0
    %5828 = vmatprep.subr.mxu0 0.0
    %5829 = vmatpush1.xpose.msra.mxu0 0.0
    %5830 = vmatprep.subr.mxu0 0.0
    %5831 = vmatpush1.xpose.msra.mxu0 0.0
    %5832 = vmatprep.subr.mxu0 0.0
    %5833 = vmatpush1.xpose.msra.mxu0 0.0
    %5834 = vmatprep.subr.mxu0 0.0
    %5835 = vmatpush1.xpose.msra.mxu0 0.0
    %5836 = vmatprep.subr.mxu0 0.0
    %5837 = vmatpush1.xpose.msra.mxu0 0.0
    %5838 = vmatprep.subr.mxu0 0.0
    %5839 = vmatpush1.xpose.msra.mxu0 0.0
    %5840 = vmatprep.subr.mxu0 0.0
    %5841 = vmatpush1.xpose.msra.mxu0 0.0
    %5842 = vmatprep.subr.mxu0 0.0
    %5843 = vmatpush1.xpose.msra.mxu0 0.0
    %5844 = vmatprep.subr.mxu0 0.0
    %5845 = vmatpush1.xpose.msra.mxu0 0.0
    %5846 = vmatprep.subr.mxu0 0.0
    %5847 = vmatpush1.xpose.msra.mxu0 0.0
    %5848 = vmatprep.subr.mxu0 0.0
    %5849 = vmatpush1.xpose.msra.mxu0 0.0
    %5850 = vmatprep.subr.mxu0 0.0
    %5851 = vmatpush1.xpose.msra.mxu0 0.0
    %5852 = vmatprep.subr.mxu0 0.0
    %5853 = vmatpush1.xpose.msra.mxu0 0.0
    %5854 = vmatprep.subr.mxu0 0.0
    %5855 = vmatpush1.xpose.msra.mxu0 0.0
    %5856 = vmatprep.subr.mxu0 0.0
    %5857 = vmatpush1.xpose.msra.mxu0 0.0
    %5858 = vmatprep.subr.mxu0 0.0
    %5859 = vmatpush1.xpose.msra.mxu0 0.0
    %5860 = vmatprep.subr.mxu0 0.0
    %5861 = vmatpush1.xpose.msra.mxu0 0.0
    %5862 = vmatprep.subr.mxu0 0.0
    %5863 = vmatpush1.xpose.msra.mxu0 0.0
    %5864 = vmatprep.subr.mxu0 0.0
    %5865 = vmatpush1.xpose.msra.mxu0 0.0
    %5866 = vmatprep.subr.mxu0 0.0
    %5867 = vmatpush1.xpose.msra.mxu0 0.0
    %5868 = vmatprep.subr.mxu0 0.0
    %5869 = vmatpush1.xpose.msra.mxu0 0.0
    %5870 = vmatprep.subr.mxu0 0.0
    %5871 = vmatpush1.xpose.msra.mxu0 0.0
    %5872 = vmatprep.subr.mxu0 0.0
    %5873 = vmatpush1.xpose.msra.mxu0 0.0
    %5874 = vmatprep.subr.mxu0 0.0
    %5875 = vmatpush1.xpose.msra.mxu0 0.0
    %5876 = vmatprep.mubr.f32.mxu0 0.0
    %5877 = vmatmul.mubr.f32.gmra.mrb[0].mxu0 %v5793
    %v5878 = vpop.f32.mrb[0].mxu0
    %v5879 = vadd.f32 %v190, %v5878
    %v5880 = vpop.f32.mrb[0].mxu0
    %5881 = vmatprep.mubr.f32.mxu0 0.0
    %5882 = vmatmul.mubr.f32.gmra.mrb[0].mxu0 %v5796
    %v5883 = vpop.f32.mrb[0].mxu0
    %v5884 = vadd.f32 %v191, %v5883
    %v5885 = vpop.f32.mrb[0].mxu0
    %5886 = vmatprep.mubr.f32.mxu0 0.0
    %5887 = vmatmul.mubr.f32.gmra.mrb[0].mxu0 %v5799
    %v5888 = vpop.f32.mrb[0].mxu0
    %v5889 = vadd.f32 %v192, %v5888
    %v5890 = vpop.f32.mrb[0].mxu0
    %5891 = vmatprep.mubr.f32.mxu0 0.0
    %5892 = vmatmul.mubr.f32.gmra.mrb[0].mxu0 %v5802
    %v5893 = vpop.f32.mrb[0].mxu0
    %v5894 = vadd.f32 %v193, %v5893
    %v5895 = vpop.f32.mrb[0].mxu0
    %5896 = vdwg.mxu0
    %v5897 = vsel %vm2303, %v5879, -inf
    %5898 = vmax.xlane.f32.xlu0 %v5897
    %v5899 = vpop.xlane.xlu0 %5898
    %v5900 = vsel %vm2303, %v5884, -inf
    %5901 = vmax.xlane.f32.xlu0 %v5900
    %v5902 = vpop.xlane.xlu0 %5901
    %v5903 = vsel %vm2303, %v5889, -inf
    %5904 = vmax.xlane.f32.xlu0 %v5903
    %v5905 = vpop.xlane.xlu0 %5904
    %v5906 = vsel %vm2313, %v5894, -inf
    %5907 = vmax.xlane.f32.xlu0 %v5906
    %v5908 = vpop.xlane.xlu0 %5907
    %v5909 = vsub.f32 %v5879, %v5899
    %v5910 = vsub.f32 %v5884, %v5902
    %v5911 = vsub.f32 %v5889, %v5905
    %v5912 = vsub.f32 %v5894, %v5908
    %v5913 = vmul.f32 %v5909, 1.442695
    %v5914 = vpow.pop %v5913
    %v5915 = vmul.f32 %v5910, 1.442695
    %v5916 = vpow.pop %v5915
    %v5917 = vmul.f32 %v5911, 1.442695
    %v5918 = vpow.pop %v5917
    %v5919 = vmul.f32 %v5912, 1.442695
    %v5920 = vpow.pop %v5919
    %v5921 = vsel %vm2303, %v5914, 0.0
    %5922 = vadd.xlane.f32.xlu0 %v5921
    %v5923 = vpop.xlane.xlu0 %5922
    %v5924 = vsel %vm2303, %v5916, 0.0
    %5925 = vadd.xlane.f32.xlu0 %v5924
    %v5926 = vpop.xlane.xlu0 %5925
    %v5927 = vsel %vm2303, %v5918, 0.0
    %5928 = vadd.xlane.f32.xlu0 %v5927
    %v5929 = vpop.xlane.xlu0 %5928
    %v5930 = vsel %vm2313, %v5920, 0.0
    %5931 = vadd.xlane.f32.xlu0 %v5930
    %v5932 = vpop.xlane.xlu0 %5931
    %v5933 = vrcp.pop %v5923
    %v5934 = vrcp.pop %v5926
    %v5935 = vrcp.pop %v5929
    %v5936 = vrcp.pop %v5932
    %v5937 = vmul.f32 %v5914, %v5933
    %v5938 = vmul.f32 %v5916, %v5934
    %v5939 = vmul.f32 %v5918, %v5935
    %v5940 = vmul.f32 %v5920, %v5936
    %s5941 = scalar_lea.vmem %s73, 192
    %5942 = vst.msk [vmem:[%s5941] sm:$0xff] %vm2303, %v5937
    %5943 = vst.msk [vmem:[%s5941 + $0x8] sm:$0xff] %vm2303, %v5938
    %5944 = vst.msk [vmem:[%s5941 + $0x10] sm:$0xff] %vm2303, %v5939
    %5945 = vst.msk [vmem:[%s5941 + $0x18] sm:$0xf] %vm2313, %v5940
    %5946 = vrot.lane.b32.xlu0 %v5758, 64
    %v5947 = vpop.permute.xlu0 %5946
    %5948 = vrot.lane.b32.xlu0 %v5763, 64
    %v5949 = vpop.permute.xlu0 %5948
    %5950 = vrot.lane.b32.xlu0 %v5768, 64
    %v5951 = vpop.permute.xlu0 %5950
    %5952 = vrot.lane.b32.xlu0 %v5773, 64
    %v5953 = vpop.permute.xlu0 %5952
    %v5958 = vsel %vm2303, %v5937, 0
    %v5961 = vsel %vm2303, %v5938, 0
    %v5964 = vsel %vm2303, %v5939, 0
    %v5967 = vsel %vm2303, %v5940, 0
    %v5969 = vsel %vm2376, %v5953, 0
    %5971 = vmatprep.subr.mxu0 0.0
    %5972 = vmatpush1.msra.mxu0 %v5947
    %5973 = vmatprep.subr.mxu0 0.0
    %5974 = vmatpush1.msra.mxu0 %v5949
    %5975 = vmatprep.subr.mxu0 0.0
    %5976 = vmatpush1.msra.mxu0 %v5951
    %5977 = vmatprep.subr.mxu0 0.0
    %5978 = vmatpush1.msra.mxu0 %v5969
    %5979 = vmatprep.subr.mxu0 0.0
    %5980 = vmatpush1.msra.mxu0 0.0
    %5981 = vmatprep.subr.mxu0 0.0
    %5982 = vmatpush1.msra.mxu0 0.0
    %5983 = vmatprep.subr.mxu0 0.0
    %5984 = vmatpush1.msra.mxu0 0.0
    %5985 = vmatprep.subr.mxu0 0.0
    %5986 = vmatpush1.msra.mxu0 0.0
    %5987 = vmatprep.subr.mxu0 0.0
    %5988 = vmatpush1.msra.mxu0 0.0
    %5989 = vmatprep.subr.mxu0 0.0
    %5990 = vmatpush1.msra.mxu0 0.0
    %5991 = vmatprep.subr.mxu0 0.0
    %5992 = vmatpush1.msra.mxu0 0.0
    %5993 = vmatprep.subr.mxu0 0.0
    %5994 = vmatpush1.msra.mxu0 0.0
    %5995 = vmatprep.subr.mxu0 0.0
    %5996 = vmatpush1.msra.mxu0 0.0
    %5997 = vmatprep.subr.mxu0 0.0
    %5998 = vmatpush1.msra.mxu0 0.0
    %5999 = vmatprep.subr.mxu0 0.0
    %6000 = vmatpush1.msra.mxu0 0.0
    %6001 = vmatprep.subr.mxu0 0.0
    %6002 = vmatpush1.msra.mxu0 0.0
    %6003 = vmatprep.subr.mxu0 0.0
    %6004 = vmatpush1.msra.mxu0 0.0
    %6005 = vmatprep.subr.mxu0 0.0
    %6006 = vmatpush1.msra.mxu0 0.0
    %6007 = vmatprep.subr.mxu0 0.0
    %6008 = vmatpush1.msra.mxu0 0.0
    %6009 = vmatprep.subr.mxu0 0.0
    %6010 = vmatpush1.msra.mxu0 0.0
    %6011 = vmatprep.subr.mxu0 0.0
    %6012 = vmatpush1.msra.mxu0 0.0
    %6013 = vmatprep.subr.mxu0 0.0
    %6014 = vmatpush1.msra.mxu0 0.0
    %6015 = vmatprep.subr.mxu0 0.0
    %6016 = vmatpush1.msra.mxu0 0.0
    %6017 = vmatprep.subr.mxu0 0.0
    %6018 = vmatpush1.msra.mxu0 0.0
    %6019 = vmatprep.subr.mxu0 0.0
    %6020 = vmatpush1.msra.mxu0 0.0
    %6021 = vmatprep.subr.mxu0 0.0
    %6022 = vmatpush1.msra.mxu0 0.0
    %6023 = vmatprep.subr.mxu0 0.0
    %6024 = vmatpush1.msra.mxu0 0.0
    %6025 = vmatprep.subr.mxu0 0.0
    %6026 = vmatpush1.msra.mxu0 0.0
    %6027 = vmatprep.subr.mxu0 0.0
    %6028 = vmatpush1.msra.mxu0 0.0
    %6029 = vmatprep.subr.mxu0 0.0
    %6030 = vmatpush1.msra.mxu0 0.0
    %6031 = vmatprep.subr.mxu0 0.0
    %6032 = vmatpush1.msra.mxu0 0.0
    %6033 = vmatprep.subr.mxu0 0.0
    %6034 = vmatpush1.msra.mxu0 0.0
    %6035 = vmatprep.mubr.f32.mxu0 0.0
    %6036 = vmatmul.mubr.f32.gmra.mrb[0].mxu0 %v5958
    %v6037 = vpop.f32.mrb[0].mxu0
    %v6038 = vadd.f32 0.0, %v6037
    %v6039 = vpop.f32.mrb[0].mxu0
    %6040 = vmatprep.mubr.f32.mxu0 0.0
    %6041 = vmatmul.mubr.f32.gmra.mrb[0].mxu0 %v5961
    %v6042 = vpop.f32.mrb[0].mxu0
    %v6043 = vadd.f32 0.0, %v6042
    %v6044 = vpop.f32.mrb[0].mxu0
    %6045 = vmatprep.mubr.f32.mxu0 0.0
    %6046 = vmatmul.mubr.f32.gmra.mrb[0].mxu0 %v5964
    %v6047 = vpop.f32.mrb[0].mxu0
    %v6048 = vadd.f32 0.0, %v6047
    %v6049 = vpop.f32.mrb[0].mxu0
    %6050 = vmatprep.mubr.f32.mxu0 0.0
    %6051 = vmatmul.mubr.f32.gmra.mrb[0].mxu0 %v5967
    %v6052 = vpop.f32.mrb[0].mxu0
    %v6053 = vadd.f32 0.0, %v6052
    %v6054 = vpop.f32.mrb[0].mxu0
    %6055 = vdwg.mxu0
    %6056 = vrot.lane.b32.xlu0 %v5776, 112
    %v6057 = vpop.permute.xlu0 %6056
    %6058 = vrot.lane.b32.xlu0 %v5777, 112
    %v6059 = vpop.permute.xlu0 %6058
    %6060 = vrot.lane.b32.xlu0 %v5778, 112
    %v6061 = vpop.permute.xlu0 %6060
    %6062 = vrot.lane.b32.xlu0 %v5779, 112
    %v6063 = vpop.permute.xlu0 %6062
    %6064 = vrot.lane.b32.xlu0 %v5758, 80
    %v6065 = vpop.permute.xlu0 %6064
    %6066 = vrot.lane.b32.xlu0 %v5763, 80
    %v6067 = vpop.permute.xlu0 %6066
    %6068 = vrot.lane.b32.xlu0 %v5768, 80
    %v6069 = vpop.permute.xlu0 %6068
    %6070 = vrot.lane.b32.xlu0 %v5773, 80
    %v6071 = vpop.permute.xlu0 %6070
    %v6072 = vsel %vm367, %v6057, 0
    %v6074 = vsel %vm367, %v6059, 0
    %v6076 = vsel %vm367, %v6061, 0
    %v6078 = vsel %vm367, %v6063, 0
    %v6080 = vsel %vm367, %v6065, 0
    %v6082 = vsel %vm367, %v6067, 0
    %v6084 = vsel %vm367, %v6069, 0
    %v6086 = vsel %vm367, %v6071, 0
    %6088 = vmatprep.subr.mxu0 0.0
    %6089 = vmatpush1.xpose.msra.mxu0 %v6080
    %6090 = vmatprep.subr.mxu0 0.0
    %6091 = vmatpush1.xpose.msra.mxu0 %v6082
    %6092 = vmatprep.subr.mxu0 0.0
    %6093 = vmatpush1.xpose.msra.mxu0 %v6084
    %6094 = vmatprep.subr.mxu0 0.0
    %6095 = vmatpush1.xpose.msra.mxu0 %v6086
    %6096 = vmatprep.subr.mxu0 0.0
    %6097 = vmatpush1.xpose.msra.mxu0 0.0
    %6098 = vmatprep.subr.mxu0 0.0
    %6099 = vmatpush1.xpose.msra.mxu0 0.0
    %6100 = vmatprep.subr.mxu0 0.0
    %6101 = vmatpush1.xpose.msra.mxu0 0.0
    %6102 = vmatprep.subr.mxu0 0.0
    %6103 = vmatpush1.xpose.msra.mxu0 0.0
    %6104 = vmatprep.subr.mxu0 0.0
    %6105 = vmatpush1.xpose.msra.mxu0 0.0
    %6106 = vmatprep.subr.mxu0 0.0
    %6107 = vmatpush1.xpose.msra.mxu0 0.0
    %6108 = vmatprep.subr.mxu0 0.0
    %6109 = vmatpush1.xpose.msra.mxu0 0.0
    %6110 = vmatprep.subr.mxu0 0.0
    %6111 = vmatpush1.xpose.msra.mxu0 0.0
    %6112 = vmatprep.subr.mxu0 0.0
    %6113 = vmatpush1.xpose.msra.mxu0 0.0
    %6114 = vmatprep.subr.mxu0 0.0
    %6115 = vmatpush1.xpose.msra.mxu0 0.0
    %6116 = vmatprep.subr.mxu0 0.0
    %6117 = vmatpush1.xpose.msra.mxu0 0.0
    %6118 = vmatprep.subr.mxu0 0.0
    %6119 = vmatpush1.xpose.msra.mxu0 0.0
    %6120 = vmatprep.subr.mxu0 0.0
    %6121 = vmatpush1.xpose.msra.mxu0 0.0
    %6122 = vmatprep.subr.mxu0 0.0
    %6123 = vmatpush1.xpose.msra.mxu0 0.0
    %6124 = vmatprep.subr.mxu0 0.0
    %6125 = vmatpush1.xpose.msra.mxu0 0.0
    %6126 = vmatprep.subr.mxu0 0.0
    %6127 = vmatpush1.xpose.msra.mxu0 0.0
    %6128 = vmatprep.subr.mxu0 0.0
    %6129 = vmatpush1.xpose.msra.mxu0 0.0
    %6130 = vmatprep.subr.mxu0 0.0
    %6131 = vmatpush1.xpose.msra.mxu0 0.0
    %6132 = vmatprep.subr.mxu0 0.0
    %6133 = vmatpush1.xpose.msra.mxu0 0.0
    %6134 = vmatprep.subr.mxu0 0.0
    %6135 = vmatpush1.xpose.msra.mxu0 0.0
    %6136 = vmatprep.subr.mxu0 0.0
    %6137 = vmatpush1.xpose.msra.mxu0 0.0
    %6138 = vmatprep.subr.mxu0 0.0
    %6139 = vmatpush1.xpose.msra.mxu0 0.0
    %6140 = vmatprep.subr.mxu0 0.0
    %6141 = vmatpush1.xpose.msra.mxu0 0.0
    %6142 = vmatprep.subr.mxu0 0.0
    %6143 = vmatpush1.xpose.msra.mxu0 0.0
    %6144 = vmatprep.subr.mxu0 0.0
    %6145 = vmatpush1.xpose.msra.mxu0 0.0
    %6146 = vmatprep.subr.mxu0 0.0
    %6147 = vmatpush1.xpose.msra.mxu0 0.0
    %6148 = vmatprep.subr.mxu0 0.0
    %6149 = vmatpush1.xpose.msra.mxu0 0.0
    %6150 = vmatprep.subr.mxu0 0.0
    %6151 = vmatpush1.xpose.msra.mxu0 0.0
    %6152 = vmatprep.mubr.f32.mxu0 0.0
    %6153 = vmatmul.mubr.f32.gmra.mrb[0].mxu0 %v6072
    %v6154 = vpop.f32.mrb[0].mxu0
    %v6155 = vadd.f32 %v190, %v6154
    %v6156 = vpop.f32.mrb[0].mxu0
    %6157 = vmatprep.mubr.f32.mxu0 0.0
    %6158 = vmatmul.mubr.f32.gmra.mrb[0].mxu0 %v6074
    %v6159 = vpop.f32.mrb[0].mxu0
    %v6160 = vadd.f32 %v191, %v6159
    %v6161 = vpop.f32.mrb[0].mxu0
    %6162 = vmatprep.mubr.f32.mxu0 0.0
    %6163 = vmatmul.mubr.f32.gmra.mrb[0].mxu0 %v6076
    %v6164 = vpop.f32.mrb[0].mxu0
    %v6165 = vadd.f32 %v192, %v6164
    %v6166 = vpop.f32.mrb[0].mxu0
    %6167 = vmatprep.mubr.f32.mxu0 0.0
    %6168 = vmatmul.mubr.f32.gmra.mrb[0].mxu0 %v6078
    %v6169 = vpop.f32.mrb[0].mxu0
    %v6170 = vadd.f32 %v193, %v6169
    %v6171 = vpop.f32.mrb[0].mxu0
    %6172 = vdwg.mxu0
    %v6173 = vsel %vm2303, %v6155, -inf
    %6174 = vmax.xlane.f32.xlu0 %v6173
    %v6175 = vpop.xlane.xlu0 %6174
    %v6176 = vsel %vm2303, %v6160, -inf
    %6177 = vmax.xlane.f32.xlu0 %v6176
    %v6178 = vpop.xlane.xlu0 %6177
    %v6179 = vsel %vm2303, %v6165, -inf
    %6180 = vmax.xlane.f32.xlu0 %v6179
    %v6181 = vpop.xlane.xlu0 %6180
    %v6182 = vsel %vm2313, %v6170, -inf
    %6183 = vmax.xlane.f32.xlu0 %v6182
    %v6184 = vpop.xlane.xlu0 %6183
    %v6185 = vsub.f32 %v6155, %v6175
    %v6186 = vsub.f32 %v6160, %v6178
    %v6187 = vsub.f32 %v6165, %v6181
    %v6188 = vsub.f32 %v6170, %v6184
    %v6189 = vmul.f32 %v6185, 1.442695
    %v6190 = vpow.pop %v6189
    %v6191 = vmul.f32 %v6186, 1.442695
    %v6192 = vpow.pop %v6191
    %v6193 = vmul.f32 %v6187, 1.442695
    %v6194 = vpow.pop %v6193
    %v6195 = vmul.f32 %v6188, 1.442695
    %v6196 = vpow.pop %v6195
    %v6197 = vsel %vm2303, %v6190, 0.0
    %6198 = vadd.xlane.f32.xlu0 %v6197
    %v6199 = vpop.xlane.xlu0 %6198
    %v6200 = vsel %vm2303, %v6192, 0.0
    %6201 = vadd.xlane.f32.xlu0 %v6200
    %v6202 = vpop.xlane.xlu0 %6201
    %v6203 = vsel %vm2303, %v6194, 0.0
    %6204 = vadd.xlane.f32.xlu0 %v6203
    %v6205 = vpop.xlane.xlu0 %6204
    %v6206 = vsel %vm2313, %v6196, 0.0
    %6207 = vadd.xlane.f32.xlu0 %v6206
    %v6208 = vpop.xlane.xlu0 %6207
    %v6209 = vrcp.pop %v6199
    %v6210 = vrcp.pop %v6202
    %v6211 = vrcp.pop %v6205
    %v6212 = vrcp.pop %v6208
    %v6213 = vmul.f32 %v6190, %v6209
    %v6214 = vmul.f32 %v6192, %v6210
    %v6215 = vmul.f32 %v6194, %v6211
    %v6216 = vmul.f32 %v6196, %v6212
    %s6217 = scalar_lea.vmem %s73, 224
    %6218 = vst.msk [vmem:[%s6217] sm:$0xff] %vm2303, %v6213
    %6219 = vst.msk [vmem:[%s6217 + $0x8] sm:$0xff] %vm2303, %v6214
    %6220 = vst.msk [vmem:[%s6217 + $0x10] sm:$0xff] %vm2303, %v6215
    %6221 = vst.msk [vmem:[%s6217 + $0x18] sm:$0xf] %vm2313, %v6216
    %6222 = vrot.lane.b32.xlu0 %v5758, 48
    %v6223 = vpop.permute.xlu0 %6222
    %6224 = vrot.lane.b32.xlu0 %v5763, 48
    %v6225 = vpop.permute.xlu0 %6224
    %6226 = vrot.lane.b32.xlu0 %v5768, 48
    %v6227 = vpop.permute.xlu0 %6226
    %6228 = vrot.lane.b32.xlu0 %v5773, 48
    %v6229 = vpop.permute.xlu0 %6228
    %v6234 = vsel %vm2303, %v6213, 0
    %v6237 = vsel %vm2303, %v6214, 0
    %v6240 = vsel %vm2303, %v6215, 0
    %v6243 = vsel %vm2303, %v6216, 0
    %v6245 = vsel %vm2376, %v6229, 0
    %6247 = vmatprep.subr.mxu0 0.0
    %6248 = vmatpush1.msra.mxu0 %v6223
    %6249 = vmatprep.subr.mxu0 0.0
    %6250 = vmatpush1.msra.mxu0 %v6225
    %6251 = vmatprep.subr.mxu0 0.0
    %6252 = vmatpush1.msra.mxu0 %v6227
    %6253 = vmatprep.subr.mxu0 0.0
    %6254 = vmatpush1.msra.mxu0 %v6245
    %6255 = vmatprep.subr.mxu0 0.0
    %6256 = vmatpush1.msra.mxu0 0.0
    %6257 = vmatprep.subr.mxu0 0.0
    %6258 = vmatpush1.msra.mxu0 0.0
    %6259 = vmatprep.subr.mxu0 0.0
    %6260 = vmatpush1.msra.mxu0 0.0
    %6261 = vmatprep.subr.mxu0 0.0
    %6262 = vmatpush1.msra.mxu0 0.0
    %6263 = vmatprep.subr.mxu0 0.0
    %6264 = vmatpush1.msra.mxu0 0.0
    %6265 = vmatprep.subr.mxu0 0.0
    %6266 = vmatpush1.msra.mxu0 0.0
    %6267 = vmatprep.subr.mxu0 0.0
    %6268 = vmatpush1.msra.mxu0 0.0
    %6269 = vmatprep.subr.mxu0 0.0
    %6270 = vmatpush1.msra.mxu0 0.0
    %6271 = vmatprep.subr.mxu0 0.0
    %6272 = vmatpush1.msra.mxu0 0.0
    %6273 = vmatprep.subr.mxu0 0.0
    %6274 = vmatpush1.msra.mxu0 0.0
    %6275 = vmatprep.subr.mxu0 0.0
    %6276 = vmatpush1.msra.mxu0 0.0
    %6277 = vmatprep.subr.mxu0 0.0
    %6278 = vmatpush1.msra.mxu0 0.0
    %6279 = vmatprep.subr.mxu0 0.0
    %6280 = vmatpush1.msra.mxu0 0.0
    %6281 = vmatprep.subr.mxu0 0.0
    %6282 = vmatpush1.msra.mxu0 0.0
    %6283 = vmatprep.subr.mxu0 0.0
    %6284 = vmatpush1.msra.mxu0 0.0
    %6285 = vmatprep.subr.mxu0 0.0
    %6286 = vmatpush1.msra.mxu0 0.0
    %6287 = vmatprep.subr.mxu0 0.0
    %6288 = vmatpush1.msra.mxu0 0.0
    %6289 = vmatprep.subr.mxu0 0.0
    %6290 = vmatpush1.msra.mxu0 0.0
    %6291 = vmatprep.subr.mxu0 0.0
    %6292 = vmatpush1.msra.mxu0 0.0
    %6293 = vmatprep.subr.mxu0 0.0
    %6294 = vmatpush1.msra.mxu0 0.0
    %6295 = vmatprep.subr.mxu0 0.0
    %6296 = vmatpush1.msra.mxu0 0.0
    %6297 = vmatprep.subr.mxu0 0.0
    %6298 = vmatpush1.msra.mxu0 0.0
    %6299 = vmatprep.subr.mxu0 0.0
    %6300 = vmatpush1.msra.mxu0 0.0
    %6301 = vmatprep.subr.mxu0 0.0
    %6302 = vmatpush1.msra.mxu0 0.0
    %6303 = vmatprep.subr.mxu0 0.0
    %6304 = vmatpush1.msra.mxu0 0.0
    %6305 = vmatprep.subr.mxu0 0.0
    %6306 = vmatpush1.msra.mxu0 0.0
    %6307 = vmatprep.subr.mxu0 0.0
    %6308 = vmatpush1.msra.mxu0 0.0
    %6309 = vmatprep.subr.mxu0 0.0
    %6310 = vmatpush1.msra.mxu0 0.0
    %6311 = vmatprep.mubr.f32.mxu0 0.0
    %6312 = vmatmul.mubr.f32.gmra.mrb[0].mxu0 %v6234
    %v6313 = vpop.f32.mrb[0].mxu0
    %v6314 = vadd.f32 0.0, %v6313
    %v6315 = vpop.f32.mrb[0].mxu0
    %6316 = vmatprep.mubr.f32.mxu0 0.0
    %6317 = vmatmul.mubr.f32.gmra.mrb[0].mxu0 %v6237
    %v6318 = vpop.f32.mrb[0].mxu0
    %v6319 = vadd.f32 0.0, %v6318
    %v6320 = vpop.f32.mrb[0].mxu0
    %6321 = vmatprep.mubr.f32.mxu0 0.0
    %6322 = vmatmul.mubr.f32.gmra.mrb[0].mxu0 %v6240
    %v6323 = vpop.f32.mrb[0].mxu0
    %v6324 = vadd.f32 0.0, %v6323
    %v6325 = vpop.f32.mrb[0].mxu0
    %6326 = vmatprep.mubr.f32.mxu0 0.0
    %6327 = vmatmul.mubr.f32.gmra.mrb[0].mxu0 %v6243
    %v6328 = vpop.f32.mrb[0].mxu0
    %v6329 = vadd.f32 0.0, %v6328
    %v6330 = vpop.f32.mrb[0].mxu0
    %6331 = vdwg.mxu0
    %v6333 = vsel %vm367, %v6314, 0
    %v6336 = vsel %vm367, %v6319, 0
    %v6339 = vsel %vm367, %v6324, 0
    %v6342 = vsel %vm367, %v6329, 0
    %6344 = vmatprep.subr.mxu0 0.0
    %6345 = vmatpush1.msra.mxu0 %v257
    %6346 = vmatprep.subr.mxu0 0.0
    %6347 = vmatpush1.msra.mxu0 %v258
    %6348 = vmatprep.subr.mxu0 0.0
    %6349 = vmatpush1.msra.mxu0 0.0
    %6350 = vmatprep.subr.mxu0 0.0
    %6351 = vmatpush1.msra.mxu0 0.0
    %6352 = vmatprep.subr.mxu0 0.0
    %6353 = vmatpush1.msra.mxu0 0.0
    %6354 = vmatprep.subr.mxu0 0.0
    %6355 = vmatpush1.msra.mxu0 0.0
    %6356 = vmatprep.subr.mxu0 0.0
    %6357 = vmatpush1.msra.mxu0 0.0
    %6358 = vmatprep.subr.mxu0 0.0
    %6359 = vmatpush1.msra.mxu0 0.0
    %6360 = vmatprep.subr.mxu0 0.0
    %6361 = vmatpush1.msra.mxu0 0.0
    %6362 = vmatprep.subr.mxu0 0.0
    %6363 = vmatpush1.msra.mxu0 0.0
    %6364 = vmatprep.subr.mxu0 0.0
    %6365 = vmatpush1.msra.mxu0 0.0
    %6366 = vmatprep.subr.mxu0 0.0
    %6367 = vmatpush1.msra.mxu0 0.0
    %6368 = vmatprep.subr.mxu0 0.0
    %6369 = vmatpush1.msra.mxu0 0.0
    %6370 = vmatprep.subr.mxu0 0.0
    %6371 = vmatpush1.msra.mxu0 0.0
    %6372 = vmatprep.subr.mxu0 0.0
    %6373 = vmatpush1.msra.mxu0 0.0
    %6374 = vmatprep.subr.mxu0 0.0
    %6375 = vmatpush1.msra.mxu0 0.0
    %6376 = vmatprep.subr.mxu0 0.0
    %6377 = vmatpush1.msra.mxu0 0.0
    %6378 = vmatprep.subr.mxu0 0.0
    %6379 = vmatpush1.msra.mxu0 0.0
    %6380 = vmatprep.subr.mxu0 0.0
    %6381 = vmatpush1.msra.mxu0 0.0
    %6382 = vmatprep.subr.mxu0 0.0
    %6383 = vmatpush1.msra.mxu0 0.0
    %6384 = vmatprep.subr.mxu0 0.0
    %6385 = vmatpush1.msra.mxu0 0.0
    %6386 = vmatprep.subr.mxu0 0.0
    %6387 = vmatpush1.msra.mxu0 0.0
    %6388 = vmatprep.subr.mxu0 0.0
    %6389 = vmatpush1.msra.mxu0 0.0
    %6390 = vmatprep.subr.mxu0 0.0
    %6391 = vmatpush1.msra.mxu0 0.0
    %6392 = vmatprep.subr.mxu0 0.0
    %6393 = vmatpush1.msra.mxu0 0.0
    %6394 = vmatprep.subr.mxu0 0.0
    %6395 = vmatpush1.msra.mxu0 0.0
    %6396 = vmatprep.subr.mxu0 0.0
    %6397 = vmatpush1.msra.mxu0 0.0
    %6398 = vmatprep.subr.mxu0 0.0
    %6399 = vmatpush1.msra.mxu0 0.0
    %6400 = vmatprep.subr.mxu0 0.0
    %6401 = vmatpush1.msra.mxu0 0.0
    %6402 = vmatprep.subr.mxu0 0.0
    %6403 = vmatpush1.msra.mxu0 0.0
    %6404 = vmatprep.subr.mxu0 0.0
    %6405 = vmatpush1.msra.mxu0 0.0
    %6406 = vmatprep.subr.mxu0 0.0
    %6407 = vmatpush1.msra.mxu0 0.0
    %6408 = vmatprep.mubr.f32.mxu0 0.0
    %6409 = vmatmul.mubr.f32.gmra.mrb[0].mxu0 %v6333
    %v6410 = vpop.f32.mrb[0].mxu0
    %v6411 = vadd.f32 0.0, %v6410
    %v6412 = vpop.f32.mrb[0].mxu0
    %6413 = vmatprep.mubr.f32.mxu0 0.0
    %6414 = vmatmul.mubr.f32.gmra.mrb[0].mxu0 %v6336
    %v6415 = vpop.f32.mrb[0].mxu0
    %v6416 = vadd.f32 0.0, %v6415
    %v6417 = vpop.f32.mrb[0].mxu0
    %6418 = vmatprep.mubr.f32.mxu0 0.0
    %6419 = vmatmul.mubr.f32.gmra.mrb[0].mxu0 %v6339
    %v6420 = vpop.f32.mrb[0].mxu0
    %v6421 = vadd.f32 0.0, %v6420
    %v6422 = vpop.f32.mrb[0].mxu0
    %6423 = vmatprep.mubr.f32.mxu0 0.0
    %6424 = vmatmul.mubr.f32.gmra.mrb[0].mxu0 %v6342
    %v6425 = vpop.f32.mrb[0].mxu0
    %v6426 = vadd.f32 0.0, %v6425
    %v6427 = vpop.f32.mrb[0].mxu0
    %6428 = vdwg.mxu0
    %v6430 = vsel %vm367, %v6038, 0
    %v6433 = vsel %vm367, %v6043, 0
    %v6436 = vsel %vm367, %v6048, 0
    %v6439 = vsel %vm367, %v6053, 0
    %6441 = vmatprep.subr.mxu0 0.0
    %6442 = vmatpush1.msra.mxu0 %v254
    %6443 = vmatprep.subr.mxu0 0.0
    %6444 = vmatpush1.msra.mxu0 %v255
    %6445 = vmatprep.subr.mxu0 0.0
    %6446 = vmatpush1.msra.mxu0 0.0
    %6447 = vmatprep.subr.mxu0 0.0
    %6448 = vmatpush1.msra.mxu0 0.0
    %6449 = vmatprep.subr.mxu0 0.0
    %6450 = vmatpush1.msra.mxu0 0.0
    %6451 = vmatprep.subr.mxu0 0.0
    %6452 = vmatpush1.msra.mxu0 0.0
    %6453 = vmatprep.subr.mxu0 0.0
    %6454 = vmatpush1.msra.mxu0 0.0
    %6455 = vmatprep.subr.mxu0 0.0
    %6456 = vmatpush1.msra.mxu0 0.0
    %6457 = vmatprep.subr.mxu0 0.0
    %6458 = vmatpush1.msra.mxu0 0.0
    %6459 = vmatprep.subr.mxu0 0.0
    %6460 = vmatpush1.msra.mxu0 0.0
    %6461 = vmatprep.subr.mxu0 0.0
    %6462 = vmatpush1.msra.mxu0 0.0
    %6463 = vmatprep.subr.mxu0 0.0
    %6464 = vmatpush1.msra.mxu0 0.0
    %6465 = vmatprep.subr.mxu0 0.0
    %6466 = vmatpush1.msra.mxu0 0.0
    %6467 = vmatprep.subr.mxu0 0.0
    %6468 = vmatpush1.msra.mxu0 0.0
    %6469 = vmatprep.subr.mxu0 0.0
    %6470 = vmatpush1.msra.mxu0 0.0
    %6471 = vmatprep.subr.mxu0 0.0
    %6472 = vmatpush1.msra.mxu0 0.0
    %6473 = vmatprep.subr.mxu0 0.0
    %6474 = vmatpush1.msra.mxu0 0.0
    %6475 = vmatprep.subr.mxu0 0.0
    %6476 = vmatpush1.msra.mxu0 0.0
    %6477 = vmatprep.subr.mxu0 0.0
    %6478 = vmatpush1.msra.mxu0 0.0
    %6479 = vmatprep.subr.mxu0 0.0
    %6480 = vmatpush1.msra.mxu0 0.0
    %6481 = vmatprep.subr.mxu0 0.0
    %6482 = vmatpush1.msra.mxu0 0.0
    %6483 = vmatprep.subr.mxu0 0.0
    %6484 = vmatpush1.msra.mxu0 0.0
    %6485 = vmatprep.subr.mxu0 0.0
    %6486 = vmatpush1.msra.mxu0 0.0
    %6487 = vmatprep.subr.mxu0 0.0
    %6488 = vmatpush1.msra.mxu0 0.0
    %6489 = vmatprep.subr.mxu0 0.0
    %6490 = vmatpush1.msra.mxu0 0.0
    %6491 = vmatprep.subr.mxu0 0.0
    %6492 = vmatpush1.msra.mxu0 0.0
    %6493 = vmatprep.subr.mxu0 0.0
    %6494 = vmatpush1.msra.mxu0 0.0
    %6495 = vmatprep.subr.mxu0 0.0
    %6496 = vmatpush1.msra.mxu0 0.0
    %6497 = vmatprep.subr.mxu0 0.0
    %6498 = vmatpush1.msra.mxu0 0.0
    %6499 = vmatprep.subr.mxu0 0.0
    %6500 = vmatpush1.msra.mxu0 0.0
    %6501 = vmatprep.subr.mxu0 0.0
    %6502 = vmatpush1.msra.mxu0 0.0
    %6503 = vmatprep.subr.mxu0 0.0
    %6504 = vmatpush1.msra.mxu0 0.0
    %6505 = vmatprep.mubr.f32.mxu0 0.0
    %6506 = vmatmul.mubr.f32.gmra.mrb[0].mxu0 %v6430
    %v6507 = vpop.f32.mrb[0].mxu0
    %v6508 = vadd.f32 %v6411, %v6507
    %v6509 = vpop.f32.mrb[0].mxu0
    %6510 = vmatprep.mubr.f32.mxu0 0.0
    %6511 = vmatmul.mubr.f32.gmra.mrb[0].mxu0 %v6433
    %v6512 = vpop.f32.mrb[0].mxu0
    %v6513 = vadd.f32 %v6416, %v6512
    %v6514 = vpop.f32.mrb[0].mxu0
    %6515 = vmatprep.mubr.f32.mxu0 0.0
    %6516 = vmatmul.mubr.f32.gmra.mrb[0].mxu0 %v6436
    %v6517 = vpop.f32.mrb[0].mxu0
    %v6518 = vadd.f32 %v6421, %v6517
    %v6519 = vpop.f32.mrb[0].mxu0
    %6520 = vmatprep.mubr.f32.mxu0 0.0
    %6521 = vmatmul.mubr.f32.gmra.mrb[0].mxu0 %v6439
    %v6522 = vpop.f32.mrb[0].mxu0
    %v6523 = vadd.f32 %v6426, %v6522
    %v6524 = vpop.f32.mrb[0].mxu0
    %6525 = vdwg.mxu0
    %v6526 = vadd.f32 %v6508, %v4466
    %v6527 = vadd.f32 %v6513, %v4467
    %v6528 = vadd.f32 %v6518, %v4468
    %v6529 = vadd.f32 %v6523, %v4469
    %v6530 = vsel %vm285, %v6526, 0.0
    %6531 = vadd.xlane.f32.xlu0 %v6530
    %v6532 = vpop.xlane.xlu0 %6531
    %v6533 = vsel %vm285, %v6527, 0.0
    %6534 = vadd.xlane.f32.xlu0 %v6533
    %v6535 = vpop.xlane.xlu0 %6534
    %v6536 = vsel %vm285, %v6528, 0.0
    %6537 = vadd.xlane.f32.xlu0 %v6536
    %v6538 = vpop.xlane.xlu0 %6537
    %v6539 = vsel %vm1142, %v6529, 0.0
    %6540 = vadd.xlane.f32.xlu0 %v6539
    %v6541 = vpop.xlane.xlu0 %6540
    %v6542 = vmul.f32 %v6532, %v1146
    %v6543 = vmul.f32 %v6535, %v1146
    %v6544 = vmul.f32 %v6538, %v1146
    %v6545 = vmul.f32 %v6541, %v1146
    %v6546 = vsub.f32 %v6526, %v6542
    %v6547 = vsub.f32 %v6527, %v6543
    %v6548 = vsub.f32 %v6528, %v6544
    %v6549 = vsub.f32 %v6529, %v6545
    %v6550 = vmul.f32 %v6546, %v6546
    %v6551 = vmul.f32 %v6547, %v6547
    %v6552 = vmul.f32 %v6548, %v6548
    %v6553 = vmul.f32 %v6549, %v6549
    %v6554 = vsel %vm285, %v6550, 0.0
    %6555 = vadd.xlane.f32.xlu0 %v6554
    %v6556 = vpop.xlane.xlu0 %6555
    %v6557 = vsel %vm285, %v6551, 0.0
    %6558 = vadd.xlane.f32.xlu0 %v6557
    %v6559 = vpop.xlane.xlu0 %6558
    %v6560 = vsel %vm285, %v6552, 0.0
    %6561 = vadd.xlane.f32.xlu0 %v6560
    %v6562 = vpop.xlane.xlu0 %6561
    %v6563 = vsel %vm1142, %v6553, 0.0
    %6564 = vadd.xlane.f32.xlu0 %v6563
    %v6565 = vpop.xlane.xlu0 %6564
    %v6566 = vmul.f32 %v6556, %v1146
    %v6567 = vmul.f32 %v6559, %v1146
    %v6568 = vmul.f32 %v6562, %v1146
    %v6569 = vmul.f32 %v6565, %v1146
    %v6570 = vadd.f32 %v6566, 1e-06
    %v6571 = vadd.f32 %v6567, 1e-06
    %v6572 = vadd.f32 %v6568, 1e-06
    %v6573 = vadd.f32 %v6569, 1e-06
    %v6574 = vrsqrt.pop %v6570
    %v6575 = vrsqrt.pop %v6571
    %v6576 = vrsqrt.pop %v6572
    %v6577 = vrsqrt.pop %v6573
    %v6578 = vmul.f32 %v6546, %v6574
    %v6579 = vmul.f32 %v6547, %v6575
    %v6580 = vmul.f32 %v6548, %v6576
    %v6581 = vmul.f32 %v6549, %v6577
    %v6582 = vmul.f32 %v6578, %v5377
    %v6583 = vmul.f32 %v6579, %v5377
    %v6584 = vmul.f32 %v6580, %v5377
    %v6585 = vmul.f32 %v6581, %v5377
    %v6586 = vadd.f32 %v6582, %v5387
    %v6587 = vadd.f32 %v6583, %v5387
    %v6588 = vadd.f32 %v6584, %v5387
    %v6589 = vadd.f32 %v6585, %v5387
    %v6591 = vsel %vm285, %v6586, 0
    %v6594 = vsel %vm285, %v6587, 0
    %v6597 = vsel %vm285, %v6588, 0
    %v6600 = vsel %vm285, %v6589, 0
    %6602 = vmatprep.subr.mxu0 0.0
    %6603 = vmatpush1.msra.mxu0 %v261
    %6604 = vmatprep.subr.mxu0 0.0
    %6605 = vmatpush1.msra.mxu0 %v262
    %6606 = vmatprep.subr.mxu0 0.0
    %6607 = vmatpush1.msra.mxu0 %v263
    %6608 = vmatprep.subr.mxu0 0.0
    %6609 = vmatpush1.msra.mxu0 %v264
    %6610 = vmatprep.subr.mxu0 0.0
    %6611 = vmatpush1.msra.mxu0 0.0
    %6612 = vmatprep.subr.mxu0 0.0
    %6613 = vmatpush1.msra.mxu0 0.0
    %6614 = vmatprep.subr.mxu0 0.0
    %6615 = vmatpush1.msra.mxu0 0.0
    %6616 = vmatprep.subr.mxu0 0.0
    %6617 = vmatpush1.msra.mxu0 0.0
    %6618 = vmatprep.subr.mxu0 0.0
    %6619 = vmatpush1.msra.mxu0 0.0
    %6620 = vmatprep.subr.mxu0 0.0
    %6621 = vmatpush1.msra.mxu0 0.0
    %6622 = vmatprep.subr.mxu0 0.0
    %6623 = vmatpush1.msra.mxu0 0.0
    %6624 = vmatprep.subr.mxu0 0.0
    %6625 = vmatpush1.msra.mxu0 0.0
    %6626 = vmatprep.subr.mxu0 0.0
    %6627 = vmatpush1.msra.mxu0 0.0
    %6628 = vmatprep.subr.mxu0 0.0
    %6629 = vmatpush1.msra.mxu0 0.0
    %6630 = vmatprep.subr.mxu0 0.0
    %6631 = vmatpush1.msra.mxu0 0.0
    %6632 = vmatprep.subr.mxu0 0.0
    %6633 = vmatpush1.msra.mxu0 0.0
    %6634 = vmatprep.subr.mxu0 0.0
    %6635 = vmatpush1.msra.mxu0 0.0
    %6636 = vmatprep.subr.mxu0 0.0
    %6637 = vmatpush1.msra.mxu0 0.0
    %6638 = vmatprep.subr.mxu0 0.0
    %6639 = vmatpush1.msra.mxu0 0.0
    %6640 = vmatprep.subr.mxu0 0.0
    %6641 = vmatpush1.msra.mxu0 0.0
    %6642 = vmatprep.subr.mxu0 0.0
    %6643 = vmatpush1.msra.mxu0 0.0
    %6644 = vmatprep.subr.mxu0 0.0
    %6645 = vmatpush1.msra.mxu0 0.0
    %6646 = vmatprep.subr.mxu0 0.0
    %6647 = vmatpush1.msra.mxu0 0.0
    %6648 = vmatprep.subr.mxu0 0.0
    %6649 = vmatpush1.msra.mxu0 0.0
    %6650 = vmatprep.subr.mxu0 0.0
    %6651 = vmatpush1.msra.mxu0 0.0
    %6652 = vmatprep.subr.mxu0 0.0
    %6653 = vmatpush1.msra.mxu0 0.0
    %6654 = vmatprep.subr.mxu0 0.0
    %6655 = vmatpush1.msra.mxu0 0.0
    %6656 = vmatprep.subr.mxu0 0.0
    %6657 = vmatpush1.msra.mxu0 0.0
    %6658 = vmatprep.subr.mxu0 0.0
    %6659 = vmatpush1.msra.mxu0 0.0
    %6660 = vmatprep.subr.mxu0 0.0
    %6661 = vmatpush1.msra.mxu0 0.0
    %6662 = vmatprep.subr.mxu0 0.0
    %6663 = vmatpush1.msra.mxu0 0.0
    %6664 = vmatprep.subr.mxu0 0.0
    %6665 = vmatpush1.msra.mxu0 0.0
    %6666 = vmatprep.mubr.f32.mxu0 0.0
    %6667 = vmatmul.mubr.f32.gmra.mrb[0].mxu0 %v6591
    %v6668 = vpop.f32.mrb[0].mxu0
    %v6669 = vadd.f32 %v5397, %v6668
    %v6670 = vpop.f32.mrb[0].mxu0
    %6671 = vmatprep.mubr.f32.mxu0 0.0
    %6672 = vmatmul.mubr.f32.gmra.mrb[0].mxu0 %v6594
    %v6673 = vpop.f32.mrb[0].mxu0
    %v6674 = vadd.f32 %v5397, %v6673
    %v6675 = vpop.f32.mrb[0].mxu0
    %6676 = vmatprep.mubr.f32.mxu0 0.0
    %6677 = vmatmul.mubr.f32.gmra.mrb[0].mxu0 %v6597
    %v6678 = vpop.f32.mrb[0].mxu0
    %v6679 = vadd.f32 %v5397, %v6678
    %v6680 = vpop.f32.mrb[0].mxu0
    %6681 = vmatprep.mubr.f32.mxu0 0.0
    %6682 = vmatmul.mubr.f32.gmra.mrb[0].mxu0 %v6600
    %v6683 = vpop.f32.mrb[0].mxu0
    %v6684 = vadd.f32 %v5397, %v6683
    %v6685 = vpop.f32.mrb[0].mxu0
    %6686 = vdwg.mxu0
    %v6687 = vmax.f32 %v6669, 0.0
    %v6688 = vmax.f32 %v6674, 0.0
    %v6689 = vmax.f32 %v6679, 0.0
    %v6690 = vmax.f32 %v6684, 0.0
    %v6692 = vsel %vm3123, %v6687, 0
    %v6695 = vsel %vm3123, %v6688, 0
    %v6698 = vsel %vm3123, %v6689, 0
    %v6701 = vsel %vm3123, %v6690, 0
    %6703 = vmatprep.subr.mxu0 0.0
    %6704 = vmatpush1.msra.mxu0 %v266
    %6705 = vmatprep.subr.mxu0 0.0
    %6706 = vmatpush1.msra.mxu0 %v267
    %6707 = vmatprep.subr.mxu0 0.0
    %6708 = vmatpush1.msra.mxu0 %v268
    %6709 = vmatprep.subr.mxu0 0.0
    %6710 = vmatpush1.msra.mxu0 %v269
    %6711 = vmatprep.subr.mxu0 0.0
    %6712 = vmatpush1.msra.mxu0 %v270
    %6713 = vmatprep.subr.mxu0 0.0
    %6714 = vmatpush1.msra.mxu0 %v271
    %6715 = vmatprep.subr.mxu0 0.0
    %6716 = vmatpush1.msra.mxu0 %v272
    %6717 = vmatprep.subr.mxu0 0.0
    %6718 = vmatpush1.msra.mxu0 %v273
    %6719 = vmatprep.subr.mxu0 0.0
    %6720 = vmatpush1.msra.mxu0 0.0
    %6721 = vmatprep.subr.mxu0 0.0
    %6722 = vmatpush1.msra.mxu0 0.0
    %6723 = vmatprep.subr.mxu0 0.0
    %6724 = vmatpush1.msra.mxu0 0.0
    %6725 = vmatprep.subr.mxu0 0.0
    %6726 = vmatpush1.msra.mxu0 0.0
    %6727 = vmatprep.subr.mxu0 0.0
    %6728 = vmatpush1.msra.mxu0 0.0
    %6729 = vmatprep.subr.mxu0 0.0
    %6730 = vmatpush1.msra.mxu0 0.0
    %6731 = vmatprep.subr.mxu0 0.0
    %6732 = vmatpush1.msra.mxu0 0.0
    %6733 = vmatprep.subr.mxu0 0.0
    %6734 = vmatpush1.msra.mxu0 0.0
    %6735 = vmatprep.subr.mxu0 0.0
    %6736 = vmatpush1.msra.mxu0 0.0
    %6737 = vmatprep.subr.mxu0 0.0
    %6738 = vmatpush1.msra.mxu0 0.0
    %6739 = vmatprep.subr.mxu0 0.0
    %6740 = vmatpush1.msra.mxu0 0.0
    %6741 = vmatprep.subr.mxu0 0.0
    %6742 = vmatpush1.msra.mxu0 0.0
    %6743 = vmatprep.subr.mxu0 0.0
    %6744 = vmatpush1.msra.mxu0 0.0
    %6745 = vmatprep.subr.mxu0 0.0
    %6746 = vmatpush1.msra.mxu0 0.0
    %6747 = vmatprep.subr.mxu0 0.0
    %6748 = vmatpush1.msra.mxu0 0.0
    %6749 = vmatprep.subr.mxu0 0.0
    %6750 = vmatpush1.msra.mxu0 0.0
    %6751 = vmatprep.subr.mxu0 0.0
    %6752 = vmatpush1.msra.mxu0 0.0
    %6753 = vmatprep.subr.mxu0 0.0
    %6754 = vmatpush1.msra.mxu0 0.0
    %6755 = vmatprep.subr.mxu0 0.0
    %6756 = vmatpush1.msra.mxu0 0.0
    %6757 = vmatprep.subr.mxu0 0.0
    %6758 = vmatpush1.msra.mxu0 0.0
    %6759 = vmatprep.subr.mxu0 0.0
    %6760 = vmatpush1.msra.mxu0 0.0
    %6761 = vmatprep.subr.mxu0 0.0
    %6762 = vmatpush1.msra.mxu0 0.0
    %6763 = vmatprep.subr.mxu0 0.0
    %6764 = vmatpush1.msra.mxu0 0.0
    %6765 = vmatprep.subr.mxu0 0.0
    %6766 = vmatpush1.msra.mxu0 0.0
    %6767 = vmatprep.mubr.f32.mxu0 0.0
    %6768 = vmatmul.mubr.f32.gmra.mrb[0].mxu0 %v6692
    %v6769 = vpop.f32.mrb[0].mxu0
    %v6770 = vadd.f32 %v5504, %v6769
    %v6771 = vpop.f32.mrb[0].mxu0
    %6772 = vmatprep.mubr.f32.mxu0 0.0
    %6773 = vmatmul.mubr.f32.gmra.mrb[0].mxu0 %v6695
    %v6774 = vpop.f32.mrb[0].mxu0
    %v6775 = vadd.f32 %v5504, %v6774
    %v6776 = vpop.f32.mrb[0].mxu0
    %6777 = vmatprep.mubr.f32.mxu0 0.0
    %6778 = vmatmul.mubr.f32.gmra.mrb[0].mxu0 %v6698
    %v6779 = vpop.f32.mrb[0].mxu0
    %v6780 = vadd.f32 %v5504, %v6779
    %v6781 = vpop.f32.mrb[0].mxu0
    %6782 = vmatprep.mubr.f32.mxu0 0.0
    %6783 = vmatmul.mubr.f32.gmra.mrb[0].mxu0 %v6701
    %v6784 = vpop.f32.mrb[0].mxu0
    %v6785 = vadd.f32 %v5504, %v6784
    %v6786 = vpop.f32.mrb[0].mxu0
    %6787 = vdwg.mxu0
    %v6788 = vadd.f32 %v6770, %v6586
    %v6789 = vadd.f32 %v6775, %v6587
    %v6790 = vadd.f32 %v6780, %v6588
    %v6791 = vadd.f32 %v6785, %v6589
    %v6792 = vsel %vm285, %v6788, 0.0
    %6793 = vadd.xlane.f32.xlu0 %v6792
    %v6794 = vpop.xlane.xlu0 %6793
    %v6795 = vsel %vm285, %v6789, 0.0
    %6796 = vadd.xlane.f32.xlu0 %v6795
    %v6797 = vpop.xlane.xlu0 %6796
    %v6798 = vsel %vm285, %v6790, 0.0
    %6799 = vadd.xlane.f32.xlu0 %v6798
    %v6800 = vpop.xlane.xlu0 %6799
    %v6801 = vsel %vm1142, %v6791, 0.0
    %6802 = vadd.xlane.f32.xlu0 %v6801
    %v6803 = vpop.xlane.xlu0 %6802
    %v6804 = vmul.f32 %v6794, %v1146
    %v6805 = vmul.f32 %v6797, %v1146
    %v6806 = vmul.f32 %v6800, %v1146
    %v6807 = vmul.f32 %v6803, %v1146
    %v6808 = vsub.f32 %v6788, %v6804
    %v6809 = vsub.f32 %v6789, %v6805
    %v6810 = vsub.f32 %v6790, %v6806
    %v6811 = vsub.f32 %v6791, %v6807
    %v6812 = vmul.f32 %v6808, %v6808
    %v6813 = vmul.f32 %v6809, %v6809
    %v6814 = vmul.f32 %v6810, %v6810
    %v6815 = vmul.f32 %v6811, %v6811
    %v6816 = vsel %vm285, %v6812, 0.0
    %6817 = vadd.xlane.f32.xlu0 %v6816
    %v6818 = vpop.xlane.xlu0 %6817
    %v6819 = vsel %vm285, %v6813, 0.0
    %6820 = vadd.xlane.f32.xlu0 %v6819
    %v6821 = vpop.xlane.xlu0 %6820
    %v6822 = vsel %vm285, %v6814, 0.0
    %6823 = vadd.xlane.f32.xlu0 %v6822
    %v6824 = vpop.xlane.xlu0 %6823
    %v6825 = vsel %vm1142, %v6815, 0.0
    %6826 = vadd.xlane.f32.xlu0 %v6825
    %v6827 = vpop.xlane.xlu0 %6826
    %v6828 = vmul.f32 %v6818, %v1146
    %v6829 = vmul.f32 %v6821, %v1146
    %v6830 = vmul.f32 %v6824, %v1146
    %v6831 = vmul.f32 %v6827, %v1146
    %v6832 = vadd.f32 %v6828, 1e-06
    %v6833 = vadd.f32 %v6829, 1e-06
    %v6834 = vadd.f32 %v6830, 1e-06
    %v6835 = vadd.f32 %v6831, 1e-06
    %v6836 = vrsqrt.pop %v6832
    %v6837 = vrsqrt.pop %v6833
    %v6838 = vrsqrt.pop %v6834
    %v6839 = vrsqrt.pop %v6835
    %v6840 = vmul.f32 %v6808, %v6836
    %v6841 = vmul.f32 %v6809, %v6837
    %v6842 = vmul.f32 %v6810, %v6838
    %v6843 = vmul.f32 %v6811, %v6839
    %v6844 = vmul.f32 %v6840, %v5663
    %v6845 = vmul.f32 %v6841, %v5663
    %v6846 = vmul.f32 %v6842, %v5663
    %v6847 = vmul.f32 %v6843, %v5663
    %v6848 = vadd.f32 %v6844, %v5673
    %v6849 = vadd.f32 %v6845, %v5673
    %v6850 = vadd.f32 %v6846, %v5673
    %v6851 = vadd.f32 %v6847, %v5673
    %v6853 = vsel %vm2303, %v194, 0
    %v6856 = vsel %vm2303, %v195, 0
    %v6859 = vsel %vm2303, %v196, 0
    %v6862 = vsel %vm2303, %v197, 0
    %v6865 = vsel %vm2303, %v198, 0
    %v6868 = vsel %vm2303, %v199, 0
    %v6871 = vsel %vm2376, %v5678, 0
    %6873 = vmatprep.subr.mxu0 0.0
    %6874 = vmatpush1.msra.mxu0 %v5675
    %6875 = vmatprep.subr.mxu0 0.0
    %6876 = vmatpush1.msra.mxu0 %v5676
    %6877 = vmatprep.subr.mxu0 0.0
    %6878 = vmatpush1.msra.mxu0 %v5677
    %6879 = vmatprep.subr.mxu0 0.0
    %6880 = vmatpush1.msra.mxu0 %v6871
    %6881 = vmatprep.subr.mxu0 0.0
    %6882 = vmatpush1.msra.mxu0 0.0
    %6883 = vmatprep.subr.mxu0 0.0
    %6884 = vmatpush1.msra.mxu0 0.0
    %6885 = vmatprep.subr.mxu0 0.0
    %6886 = vmatpush1.msra.mxu0 0.0
    %6887 = vmatprep.subr.mxu0 0.0
    %6888 = vmatpush1.msra.mxu0 0.0
    %6889 = vmatprep.subr.mxu0 0.0
    %6890 = vmatpush1.msra.mxu0 0.0
    %6891 = vmatprep.subr.mxu0 0.0
    %6892 = vmatpush1.msra.mxu0 0.0
    %6893 = vmatprep.subr.mxu0 0.0
    %6894 = vmatpush1.msra.mxu0 0.0
    %6895 = vmatprep.subr.mxu0 0.0
    %6896 = vmatpush1.msra.mxu0 0.0
    %6897 = vmatprep.subr.mxu0 0.0
    %6898 = vmatpush1.msra.mxu0 0.0
    %6899 = vmatprep.subr.mxu0 0.0
    %6900 = vmatpush1.msra.mxu0 0.0
    %6901 = vmatprep.subr.mxu0 0.0
    %6902 = vmatpush1.msra.mxu0 0.0
    %6903 = vmatprep.subr.mxu0 0.0
    %6904 = vmatpush1.msra.mxu0 0.0
    %6905 = vmatprep.subr.mxu0 0.0
    %6906 = vmatpush1.msra.mxu0 0.0
    %6907 = vmatprep.subr.mxu0 0.0
    %6908 = vmatpush1.msra.mxu0 0.0
    %6909 = vmatprep.subr.mxu0 0.0
    %6910 = vmatpush1.msra.mxu0 0.0
    %6911 = vmatprep.subr.mxu0 0.0
    %6912 = vmatpush1.msra.mxu0 0.0
    %6913 = vmatprep.subr.mxu0 0.0
    %6914 = vmatpush1.msra.mxu0 0.0
    %6915 = vmatprep.subr.mxu0 0.0
    %6916 = vmatpush1.msra.mxu0 0.0
    %6917 = vmatprep.subr.mxu0 0.0
    %6918 = vmatpush1.msra.mxu0 0.0
    %6919 = vmatprep.subr.mxu0 0.0
    %6920 = vmatpush1.msra.mxu0 0.0
    %6921 = vmatprep.subr.mxu0 0.0
    %6922 = vmatpush1.msra.mxu0 0.0
    %6923 = vmatprep.subr.mxu0 0.0
    %6924 = vmatpush1.msra.mxu0 0.0
    %6925 = vmatprep.subr.mxu0 0.0
    %6926 = vmatpush1.msra.mxu0 0.0
    %6927 = vmatprep.subr.mxu0 0.0
    %6928 = vmatpush1.msra.mxu0 0.0
    %6929 = vmatprep.subr.mxu0 0.0
    %6930 = vmatpush1.msra.mxu0 0.0
    %6931 = vmatprep.subr.mxu0 0.0
    %6932 = vmatpush1.msra.mxu0 0.0
    %6933 = vmatprep.subr.mxu0 0.0
    %6934 = vmatpush1.msra.mxu0 0.0
    %6935 = vmatprep.subr.mxu0 0.0
    %6936 = vmatpush1.msra.mxu0 0.0
    %6937 = vmatprep.mubr.f32.mxu0 0.0
    %6938 = vmatmul.mubr.f32.gmra.mrb[0].mxu0 %v6853
    %v6939 = vpop.f32.mrb[0].mxu0
    %v6940 = vadd.f32 0.0, %v6939
    %v6941 = vpop.f32.mrb[0].mxu0
    %6942 = vmatprep.mubr.f32.mxu0 0.0
    %6943 = vmatmul.mubr.f32.gmra.mrb[0].mxu0 %v6856
    %v6944 = vpop.f32.mrb[0].mxu0
    %v6945 = vadd.f32 0.0, %v6944
    %v6946 = vpop.f32.mrb[0].mxu0
    %6947 = vmatprep.mubr.f32.mxu0 0.0
    %6948 = vmatmul.mubr.f32.gmra.mrb[0].mxu0 %v6859
    %v6949 = vpop.f32.mrb[0].mxu0
    %v6950 = vadd.f32 0.0, %v6949
    %v6951 = vpop.f32.mrb[0].mxu0
    %6952 = vmatprep.mubr.f32.mxu0 0.0
    %6953 = vmatmul.mubr.f32.gmra.mrb[0].mxu0 %v6862
    %v6954 = vpop.f32.mrb[0].mxu0
    %v6955 = vadd.f32 0.0, %v6954
    %v6956 = vpop.f32.mrb[0].mxu0
    %6957 = vmatprep.mubr.f32.mxu0 0.0
    %6958 = vmatmul.mubr.f32.gmra.mrb[0].mxu0 %v6865
    %v6959 = vpop.f32.mrb[0].mxu0
    %v6960 = vadd.f32 0.0, %v6959
    %v6961 = vpop.f32.mrb[0].mxu0
    %6962 = vmatprep.mubr.f32.mxu0 0.0
    %6963 = vmatmul.mubr.f32.gmra.mrb[0].mxu0 %v6868
    %v6964 = vpop.f32.mrb[0].mxu0
    %v6965 = vadd.f32 0.0, %v6964
    %v6966 = vpop.f32.mrb[0].mxu0
    %6967 = vdwg.mxu0
    %6968 = vst.msk [vmem:[%s71] sm:$0xff] %vm285, %v6940
    %6969 = vst.msk [vmem:[%s71 + $0x8] sm:$0xff] %vm285, %v6945
    %6970 = vst.msk [vmem:[%s71 + $0x10] sm:$0xff] %vm285, %v6950
    %6971 = vst.msk [vmem:[%s71 + $0x18] sm:$0xff] %vm285, %v6955
    %6972 = vst.msk [vmem:[%s71 + $0x20] sm:$0xff] %vm285, %v6960
    %6973 = vst.msk [vmem:[%s71 + $0x28] sm:$0xff] %vm285, %v6965
    %v6975 = vsel %vm2376, %v6851, 0
    %6977 = vmatprep.subr.mxu0 0.0
    %6978 = vmatpush1.msra.mxu0 %v6848
    %6979 = vmatprep.subr.mxu0 0.0
    %6980 = vmatpush1.msra.mxu0 %v6849
    %6981 = vmatprep.subr.mxu0 0.0
    %6982 = vmatpush1.msra.mxu0 %v6850
    %6983 = vmatprep.subr.mxu0 0.0
    %6984 = vmatpush1.msra.mxu0 %v6975
    %6985 = vmatprep.subr.mxu0 0.0
    %6986 = vmatpush1.msra.mxu0 0.0
    %6987 = vmatprep.subr.mxu0 0.0
    %6988 = vmatpush1.msra.mxu0 0.0
    %6989 = vmatprep.subr.mxu0 0.0
    %6990 = vmatpush1.msra.mxu0 0.0
    %6991 = vmatprep.subr.mxu0 0.0
    %6992 = vmatpush1.msra.mxu0 0.0
    %6993 = vmatprep.subr.mxu0 0.0
    %6994 = vmatpush1.msra.mxu0 0.0
    %6995 = vmatprep.subr.mxu0 0.0
    %6996 = vmatpush1.msra.mxu0 0.0
    %6997 = vmatprep.subr.mxu0 0.0
    %6998 = vmatpush1.msra.mxu0 0.0
    %6999 = vmatprep.subr.mxu0 0.0
    %7000 = vmatpush1.msra.mxu0 0.0
    %7001 = vmatprep.subr.mxu0 0.0
    %7002 = vmatpush1.msra.mxu0 0.0
    %7003 = vmatprep.subr.mxu0 0.0
    %7004 = vmatpush1.msra.mxu0 0.0
    %7005 = vmatprep.subr.mxu0 0.0
    %7006 = vmatpush1.msra.mxu0 0.0
    %7007 = vmatprep.subr.mxu0 0.0
    %7008 = vmatpush1.msra.mxu0 0.0
    %7009 = vmatprep.subr.mxu0 0.0
    %7010 = vmatpush1.msra.mxu0 0.0
    %7011 = vmatprep.subr.mxu0 0.0
    %7012 = vmatpush1.msra.mxu0 0.0
    %7013 = vmatprep.subr.mxu0 0.0
    %7014 = vmatpush1.msra.mxu0 0.0
    %7015 = vmatprep.subr.mxu0 0.0
    %7016 = vmatpush1.msra.mxu0 0.0
    %7017 = vmatprep.subr.mxu0 0.0
    %7018 = vmatpush1.msra.mxu0 0.0
    %7019 = vmatprep.subr.mxu0 0.0
    %7020 = vmatpush1.msra.mxu0 0.0
    %7021 = vmatprep.subr.mxu0 0.0
    %7022 = vmatpush1.msra.mxu0 0.0
    %7023 = vmatprep.subr.mxu0 0.0
    %7024 = vmatpush1.msra.mxu0 0.0
    %7025 = vmatprep.subr.mxu0 0.0
    %7026 = vmatpush1.msra.mxu0 0.0
    %7027 = vmatprep.subr.mxu0 0.0
    %7028 = vmatpush1.msra.mxu0 0.0
    %7029 = vmatprep.subr.mxu0 0.0
    %7030 = vmatpush1.msra.mxu0 0.0
    %7031 = vmatprep.subr.mxu0 0.0
    %7032 = vmatpush1.msra.mxu0 0.0
    %7033 = vmatprep.subr.mxu0 0.0
    %7034 = vmatpush1.msra.mxu0 0.0
    %7035 = vmatprep.subr.mxu0 0.0
    %7036 = vmatpush1.msra.mxu0 0.0
    %7037 = vmatprep.subr.mxu0 0.0
    %7038 = vmatpush1.msra.mxu0 0.0
    %7039 = vmatprep.subr.mxu0 0.0
    %7040 = vmatpush1.msra.mxu0 0.0
    %7041 = vmatprep.mubr.f32.mxu0 0.0
    %7042 = vmatmul.mubr.f32.gmra.mrb[0].mxu0 %v6853
    %v7043 = vpop.f32.mrb[0].mxu0
    %v7044 = vadd.f32 0.0, %v7043
    %v7045 = vpop.f32.mrb[0].mxu0
    %7046 = vmatprep.mubr.f32.mxu0 0.0
    %7047 = vmatmul.mubr.f32.gmra.mrb[0].mxu0 %v6856
    %v7048 = vpop.f32.mrb[0].mxu0
    %v7049 = vadd.f32 0.0, %v7048
    %v7050 = vpop.f32.mrb[0].mxu0
    %7051 = vmatprep.mubr.f32.mxu0 0.0
    %7052 = vmatmul.mubr.f32.gmra.mrb[0].mxu0 %v6859
    %v7053 = vpop.f32.mrb[0].mxu0
    %v7054 = vadd.f32 0.0, %v7053
    %v7055 = vpop.f32.mrb[0].mxu0
    %7056 = vmatprep.mubr.f32.mxu0 0.0
    %7057 = vmatmul.mubr.f32.gmra.mrb[0].mxu0 %v6862
    %v7058 = vpop.f32.mrb[0].mxu0
    %v7059 = vadd.f32 0.0, %v7058
    %v7060 = vpop.f32.mrb[0].mxu0
    %7061 = vmatprep.mubr.f32.mxu0 0.0
    %7062 = vmatmul.mubr.f32.gmra.mrb[0].mxu0 %v6865
    %v7063 = vpop.f32.mrb[0].mxu0
    %v7064 = vadd.f32 0.0, %v7063
    %v7065 = vpop.f32.mrb[0].mxu0
    %7066 = vmatprep.mubr.f32.mxu0 0.0
    %7067 = vmatmul.mubr.f32.gmra.mrb[0].mxu0 %v6868
    %v7068 = vpop.f32.mrb[0].mxu0
    %v7069 = vadd.f32 0.0, %v7068
    %v7070 = vpop.f32.mrb[0].mxu0
    %7071 = vdwg.mxu0
    %s7072 = scalar_lea.vmem %s71, 48
    %7073 = vst.msk [vmem:[%s7072] sm:$0xff] %vm285, %v7044
    %7074 = vst.msk [vmem:[%s7072 + $0x8] sm:$0xff] %vm285, %v7049
    %7075 = vst.msk [vmem:[%s7072 + $0x10] sm:$0xff] %vm285, %v7054
    %7076 = vst.msk [vmem:[%s7072 + $0x18] sm:$0xff] %vm285, %v7059
    %7077 = vst.msk [vmem:[%s7072 + $0x20] sm:$0xff] %vm285, %v7064
    %7078 = vst.msk [vmem:[%s7072 + $0x28] sm:$0xff] %vm285, %v7069
    // Predicated region
    $region154: #{tpu_custom_call.1} parent=1 // pred_check
      _
    $region155: #{tpu_custom_call.1} parent=1 // pred_check_branch
      %7080 = sbr.rel (0) target = $region157
    $region156: #{tpu_custom_call.1} parent=1 // pred_region
      _
    $region157: #{tpu_custom_call.1} parent=1 // pred_fallthru
      _
    // Predicated region
    $region158: #{tpu_custom_call.1} parent=1 // pred_check
      _
    $region159: #{tpu_custom_call.1} parent=1 // pred_check_branch
      %7082 = sbr.rel (0) target = $region161
    $region160: #{tpu_custom_call.1} parent=1 // pred_region
      _
    $region161: #{tpu_custom_call.1} parent=1 // pred_fallthru
      _
    // Predicated region
    $region162: #{tpu_custom_call.1} parent=1 // pred_check
      _
    $region163: #{tpu_custom_call.1} parent=1 // pred_check_branch
      %7084 = sbr.rel (0) target = $region165
    $region164: #{tpu_custom_call.1} parent=1 // pred_region
      _
    $region165: #{tpu_custom_call.1} parent=1 // pred_fallthru
      _
    // Predicated region
    $region166: #{tpu_custom_call.1} parent=1 // pred_check
      _
    $region167: #{tpu_custom_call.1} parent=1 // pred_check_branch
      %7086 = sbr.rel (0) target = $region169
    $region168: #{tpu_custom_call.1} parent=1 // pred_region
      _
    $region169: #{tpu_custom_call.1} parent=1 // pred_fallthru
      _
    %7087 = vsyncpa [#allocation3], 1
    %7088 = vsyncpa [#allocation5], 1

</llo_original>
